<compile_context>
chip_gen: v7x
topology: tpu7x:2x2x1
jax: 0.10.0
libtpu: 0.0.40
codegen_flags: <defaults>
</compile_context>

<pallas_src>
import functools

import jax
import jax.numpy as jnp
from jax.experimental import pallas as pl
from jax.experimental.pallas import tpu as pltpu

EPS = 1e-5
LANE = 128


def _round_up(x, m):
    return (x + m - 1) // m * m


def _conv_stats_kernel(x_ref, w_ref, scale_ref, shift_ref, y_ref, stats_ref,
                       pad_ref, col_ref, *, H, W, Cpad, input_relu):
    """Per-image: (optional affine+ReLU on input) -> 3x3 conv via im2col -> BN stats."""
    f32 = jnp.float32

    # Per-channel affine (+ optional ReLU) fused into the input load.
    x = x_ref[0].astype(f32)                          # (H, W, Cpad)
    x = x * scale_ref[...] + shift_ref[...]           # (1, Cpad) broadcasts over (W, Cpad)
    if input_relu:
        x = jnp.maximum(x, 0.0)

    # Zero only the 1-pixel halo ring; the interior is fully overwritten below.
    zrow = jnp.zeros((1, W + 2, Cpad), f32)
    zcol = jnp.zeros((H, 1, Cpad), f32)
    pad_ref[0:1, :, :] = zrow
    pad_ref[H + 1:H + 2, :, :] = zrow
    pad_ref[1:H + 1, 0:1, :] = zcol
    pad_ref[1:H + 1, W + 1:W + 2, :] = zcol
    pad_ref[1:H + 1, 1:W + 1, :] = x

    # im2col: nine shifted windows -> one (H*W, 9*Cpad) slab, then a single MXU matmul
    # with contraction depth K = 9*Cpad.
    for dh in range(3):
        for dw in range(3):
            tap = dh * 3 + dw
            col_ref[:, tap * Cpad:(tap + 1) * Cpad] = (
                pad_ref[dh:dh + H, dw:dw + W, :].reshape(H * W, Cpad))
    y = jnp.dot(col_ref[...], w_ref[...], preferred_element_type=f32)   # (H*W, Cpad)

    y_ref[...] = y.reshape(1, H, W, Cpad).astype(y_ref.dtype)

    # Fused BatchNorm statistics: per-channel sum and sum-of-squares in one sweep
    # while the conv result is still live.
    ssum = jnp.sum(y, axis=0, keepdims=True)          # (1, Cpad)
    ssq = jnp.sum(y * y, axis=0, keepdims=True)       # (1, Cpad)
    stats_ref[...] = jnp.concatenate([ssum, ssq], axis=0)[None]   # (1, 2, Cpad)


def _finalize_kernel(y_ref, x_ref, scale_ref, shift_ref, o_ref):
    """out = relu(BN2_affine(y2) + x)."""
    y = y_ref[...]
    x = x_ref[...].astype(jnp.float32)
    o = jnp.maximum(y * scale_ref[...] + shift_ref[...] + x, 0.0)
    o_ref[...] = o.astype(o_ref.dtype)


def _conv_bn_stats(x_nhwc, w2d, scale, shift, *, input_relu):
    N, H, W, Cpad = x_nhwc.shape
    kernel = functools.partial(_conv_stats_kernel, H=H, W=W, Cpad=Cpad,
                               input_relu=input_relu)
    flops = 2 * N * H * W * (9 * Cpad) * Cpad
    bytes_accessed = 4 * (x_nhwc.size + w2d.size + 2 * Cpad
                          + N * H * W * Cpad + N * 2 * Cpad)
    return pl.pallas_call(
        kernel,
        out_shape=(jax.ShapeDtypeStruct((N, H, W, Cpad), jnp.float32),
                   jax.ShapeDtypeStruct((N, 2, Cpad), jnp.float32)),
        grid=(N,),
        in_specs=[
            pl.BlockSpec((1, H, W, Cpad), lambda n: (n, 0, 0, 0)),
            pl.BlockSpec((9 * Cpad, Cpad), lambda n: (0, 0)),
            pl.BlockSpec((1, Cpad), lambda n: (0, 0)),
            pl.BlockSpec((1, Cpad), lambda n: (0, 0)),
        ],
        out_specs=(
            pl.BlockSpec((1, H, W, Cpad), lambda n: (n, 0, 0, 0)),
            pl.BlockSpec((1, 2, Cpad), lambda n: (n, 0, 0)),
        ),
        scratch_shapes=[
            pltpu.VMEM((H + 2, W + 2, Cpad), jnp.float32),   # zero-halo padded image
            pltpu.VMEM((H * W, 9 * Cpad), jnp.float32),      # im2col slab
        ],
        compiler_params=pltpu.CompilerParams(dimension_semantics=("parallel",)),
        cost_estimate=pl.CostEstimate(flops=flops, transcendentals=0,
                                      bytes_accessed=bytes_accessed),
    )(x_nhwc, w2d, scale, shift)


def _finalize(y2, x_nhwc, scale, shift):
    N, H, W, Cpad = y2.shape
    return pl.pallas_call(
        _finalize_kernel,
        out_shape=jax.ShapeDtypeStruct((N, H, W, Cpad), jnp.float32),
        grid=(N,),
        in_specs=[
            pl.BlockSpec((1, H, W, Cpad), lambda n: (n, 0, 0, 0)),
            pl.BlockSpec((1, H, W, Cpad), lambda n: (n, 0, 0, 0)),
            pl.BlockSpec((1, Cpad), lambda n: (0, 0)),
            pl.BlockSpec((1, Cpad), lambda n: (0, 0)),
        ],
        out_specs=pl.BlockSpec((1, H, W, Cpad), lambda n: (n, 0, 0, 0)),
        input_output_aliases={0: 0},   # reuse y2's HBM buffer for the output
        compiler_params=pltpu.CompilerParams(dimension_semantics=("parallel",)),
    )(y2, x_nhwc, scale, shift)


def _fold_bn(stats, gamma_pad, beta_pad, count):
    """Reduce per-image (sum, sumsq) and fold training-mode BN into a per-channel affine."""
    tot = jnp.sum(stats, axis=0)                 # (2, Cpad)
    mean = tot[0] / count
    var = tot[1] / count - mean * mean           # biased variance (training mode)
    inv = jax.lax.rsqrt(var + EPS)
    scale = gamma_pad * inv
    shift = beta_pad - mean * scale
    return scale.reshape(1, -1), shift.reshape(1, -1)


def residual_block(x_nchw, w1, g1, b1, w2, g2, b2):
    """x_nchw: (N, C, H, W); conv weights wi: (C, C, 3, 3) (PyTorch OIHW)."""
    N, C, H, W = x_nchw.shape
    Cpad = _round_up(max(C, LANE), LANE)
    pad_c = Cpad - C

    # NCHW -> NHWC, channels zero-padded to the lane width (padded channels stay 0
    # through conv/BN because their weights are 0 and their beta is padded with 0).
    x_nhwc = jnp.transpose(x_nchw, (0, 2, 3, 1)).astype(jnp.float32)
    x_nhwc = jnp.pad(x_nhwc, ((0, 0), (0, 0), (0, 0), (0, pad_c)))

    def pack_weight(w):
        # (O, I, kh, kw) -> (kh, kw, I, O) -> zero-pad -> (9*Cpad, Cpad)
        wk = jnp.transpose(w, (2, 3, 1, 0)).astype(jnp.float32)
        wk = jnp.pad(wk, ((0, 0), (0, 0), (0, pad_c), (0, pad_c)))
        return wk.reshape(9 * Cpad, Cpad)

    w1k, w2k = pack_weight(w1), pack_weight(w2)
    g1p = jnp.pad(g1.astype(jnp.float32), (0, pad_c), constant_values=1.0)
    g2p = jnp.pad(g2.astype(jnp.float32), (0, pad_c), constant_values=1.0)
    b1p = jnp.pad(b1.astype(jnp.float32), (0, pad_c))
    b2p = jnp.pad(b2.astype(jnp.float32), (0, pad_c))

    ones = jnp.ones((1, Cpad), jnp.float32)
    zeros = jnp.zeros((1, Cpad), jnp.float32)
    count = jnp.float32(N * H * W)

    # Pass 1: conv1 + BN1 statistics.
    y1, stats1 = _conv_bn_stats(x_nhwc, w1k, ones, zeros, input_relu=False)
    scale1, shift1 = _fold_bn(stats1, g1p, b1p, count)
    # Pass 2: BN1 affine + ReLU fused into conv2's input, conv2 + BN2 statistics.
    y2, stats2 = _conv_bn_stats(y1, w2k, scale1, shift1, input_relu=True)
    scale2, shift2 = _fold_bn(stats2, g2p, b2p, count)
    # Pass 3: BN2 affine + residual add + ReLU.
    out = _finalize(y2, x_nhwc, scale2, shift2)

    out = out[..., :C].astype(x_nchw.dtype)
    return jnp.transpose(out, (0, 3, 1, 2))


def _reference(x, w1, g1, b1, w2, g2, b2):
    """Pure-JAX reference matching the PyTorch module in training mode."""
    def conv(y, w):
        return jax.lax.conv_general_dilated(
            y, w, window_strides=(1, 1), padding=((1, 1), (1, 1)),
            dimension_numbers=("NCHW", "OIHW", "NCHW"))

    def bn(y, g, b):
        mean = jnp.mean(y, axis=(0, 2, 3), keepdims=True)
        var = jnp.mean((y - mean) ** 2, axis=(0, 2, 3), keepdims=True)
        return ((y - mean) * jax.lax.rsqrt(var + EPS)
                * g.reshape(1, -1, 1, 1) + b.reshape(1, -1, 1, 1))

    y = jax.nn.relu(bn(conv(x, w1), g1, b1))
    y = bn(conv(y, w2), g2, b2)
    return jax.nn.relu(y + x)


if __name__ == "__main__":
    N, C, H, W = 2, 4, 16, 16

    key = jax.random.PRNGKey(0)
    kx, k1, k2, kg1, kb1, kg2, kb2 = jax.random.split(key, 7)

    x = jax.random.normal(kx, (N, C, H, W), jnp.float32)

    # Conv2d default-style init: uniform(-1/sqrt(fan_in), 1/sqrt(fan_in)), fan_in = C*3*3.
    bound = 1.0 / jnp.sqrt(jnp.float32(C * 3 * 3))
    w1 = jax.random.uniform(k1, (C, C, 3, 3), jnp.float32, -bound, bound)
    w2 = jax.random.uniform(k2, (C, C, 3, 3), jnp.float32, -bound, bound)
    # BatchNorm affine params (non-trivial values for a stronger test).
    g1 = jax.random.uniform(kg1, (C,), jnp.float32, 0.5, 1.5)
    b1 = 0.1 * jax.random.normal(kb1, (C,), jnp.float32)
    g2 = jax.random.uniform(kg2, (C,), jnp.float32, 0.5, 1.5)
    b2 = 0.1 * jax.random.normal(kb2, (C,), jnp.float32)

    residual_block_jit = jax.jit(residual_block)
    out = jax.block_until_ready(residual_block_jit(x, w1, g1, b1, w2, g2, b2))

    ref = jax.block_until_ready(_reference(x, w1, g1, b1, w2, g2, b2))
    assert out.shape == (N, C, H, W) and out.dtype == jnp.float32
    if not jnp.allclose(out, ref, atol=1e-4, rtol=1e-4):
        raise AssertionError("Pallas kernel mismatch vs JAX reference")

    print("KERNEL_OK")
</pallas_src>

<mosaic_0001>
module attributes {stable_mosaic.version = 11 : i64} {
  func.func @_conv_stats_kernel(%arg0: i32, %arg1: memref<1x16x16x128xf32, #tpu.memory_space<vmem>>, %arg2: memref<1152x128xf32, #tpu.memory_space<vmem>>, %arg3: memref<1x128xf32, #tpu.memory_space<vmem>>, %arg4: memref<1x128xf32, #tpu.memory_space<vmem>>, %arg5: memref<1x16x16x128xf32, #tpu.memory_space<vmem>>, %arg6: memref<1x2x128xf32, #tpu.memory_space<vmem>>, %arg7: memref<18x18x128xf32, #tpu.memory_space<vmem>>, %arg8: memref<256x1152xf32, #tpu.memory_space<vmem>>) attributes {dimension_semantics = [#tpu.dimension_semantics<parallel>], iteration_bounds = array<i64: 2>, scalar_prefetch = 0 : i64, scratch_operands = 2 : i64, tpu.core_type = #tpu.core_type<tc>, window_params = [{transform_indices = @transform_0, window_bounds = array<i64: 1, 16, 16, 128>}, {pipeline_mode = #tpu.pipeline_mode<synchronous>, transform_indices = @transform_1, window_bounds = array<i64: 1152, 128>}, {pipeline_mode = #tpu.pipeline_mode<synchronous>, transform_indices = @transform_2, window_bounds = array<i64: 1, 128>}, {pipeline_mode = #tpu.pipeline_mode<synchronous>, transform_indices = @transform_3, window_bounds = array<i64: 1, 128>}, {transform_indices = @transform_4, window_bounds = array<i64: 1, 16, 16, 128>}, {transform_indices = @transform_5, window_bounds = array<i64: 1, 2, 128>}]} {
    %c0 = arith.constant 0 : index
    %c0_0 = arith.constant 0 : index
    %c0_1 = arith.constant 0 : index
    %c0_2 = arith.constant 0 : index
    %0 = vector.load %arg1[%c0, %c0_0, %c0_1, %c0_2] : memref<1x16x16x128xf32, #tpu.memory_space<vmem>>, vector<1x16x16x128xf32>
    %1 = vector.shape_cast %0 : vector<1x16x16x128xf32> to vector<16x16x128xf32>
    %c0_3 = arith.constant 0 : index
    %c0_4 = arith.constant 0 : index
    %2 = vector.load %arg3[%c0_3, %c0_4] : memref<1x128xf32, #tpu.memory_space<vmem>>, vector<1x128xf32>
    %3 = vector.shape_cast %2 : vector<1x128xf32> to vector<1x1x128xf32>
    %4 = vector.broadcast %3 : vector<1x1x128xf32> to vector<16x16x128xf32>
    %5 = arith.mulf %1, %4 : vector<16x16x128xf32>
    %c0_5 = arith.constant 0 : index
    %c0_6 = arith.constant 0 : index
    %6 = vector.load %arg4[%c0_5, %c0_6] : memref<1x128xf32, #tpu.memory_space<vmem>>, vector<1x128xf32>
    %7 = vector.shape_cast %6 : vector<1x128xf32> to vector<1x1x128xf32>
    %8 = vector.broadcast %7 : vector<1x1x128xf32> to vector<16x16x128xf32>
    %9 = arith.addf %5, %8 : vector<16x16x128xf32>
    %cst = arith.constant 0.000000e+00 : f32
    %10 = vector.broadcast %cst : f32 to vector<1x18x128xf32>
    %cst_7 = arith.constant 0.000000e+00 : f32
    %11 = vector.broadcast %cst_7 : f32 to vector<16x1x128xf32>
    %c0_8 = arith.constant 0 : index
    %c0_9 = arith.constant 0 : index
    %c0_10 = arith.constant 0 : index
    %12 = vector.load %arg7[%c0_8, %c0_9, %c0_10] : memref<18x18x128xf32, #tpu.memory_space<vmem>>, vector<1x18x128xf32>
    tpu.vector_store %arg7[%c0_8, %c0_9, %c0_10], %10 {strides = array<i32>} : memref<18x18x128xf32, #tpu.memory_space<vmem>>, vector<1x18x128xf32>,
    %c17 = arith.constant 17 : index
    %c0_11 = arith.constant 0 : index
    %c0_12 = arith.constant 0 : index
    %13 = vector.load %arg7[%c17, %c0_11, %c0_12] : memref<18x18x128xf32, #tpu.memory_space<vmem>>, vector<1x18x128xf32>
    tpu.vector_store %arg7[%c17, %c0_11, %c0_12], %10 {strides = array<i32>} : memref<18x18x128xf32, #tpu.memory_space<vmem>>, vector<1x18x128xf32>,
    %c1 = arith.constant 1 : index
    %c0_13 = arith.constant 0 : index
    %c0_14 = arith.constant 0 : index
    %14 = vector.load %arg7[%c1, %c0_13, %c0_14] : memref<18x18x128xf32, #tpu.memory_space<vmem>>, vector<16x1x128xf32>
    tpu.vector_store %arg7[%c1, %c0_13, %c0_14], %11 {strides = array<i32>} : memref<18x18x128xf32, #tpu.memory_space<vmem>>, vector<16x1x128xf32>,
    %c1_15 = arith.constant 1 : index
    %c17_16 = arith.constant 17 : index
    %c0_17 = arith.constant 0 : index
    %15 = vector.load %arg7[%c1_15, %c17_16, %c0_17] : memref<18x18x128xf32, #tpu.memory_space<vmem>>, vector<16x1x128xf32>
    tpu.vector_store %arg7[%c1_15, %c17_16, %c0_17], %11 {strides = array<i32>} : memref<18x18x128xf32, #tpu.memory_space<vmem>>, vector<16x1x128xf32>,
    %c1_18 = arith.constant 1 : index
    %c1_19 = arith.constant 1 : index
    %c0_20 = arith.constant 0 : index
    %16 = vector.load %arg7[%c1_18, %c1_19, %c0_20] : memref<18x18x128xf32, #tpu.memory_space<vmem>>, vector<16x16x128xf32>
    tpu.vector_store %arg7[%c1_18, %c1_19, %c0_20], %9 {strides = array<i32>} : memref<18x18x128xf32, #tpu.memory_space<vmem>>, vector<16x16x128xf32>,
    %c0_21 = arith.constant 0 : index
    %c0_22 = arith.constant 0 : index
    %c0_23 = arith.constant 0 : index
    %17 = vector.load %arg7[%c0_21, %c0_22, %c0_23] : memref<18x18x128xf32, #tpu.memory_space<vmem>>, vector<16x16x128xf32>
    %18 = vector.shape_cast %17 : vector<16x16x128xf32> to vector<256x128xf32>
    %c0_24 = arith.constant 0 : index
    %c0_25 = arith.constant 0 : index
    %19 = vector.load %arg8[%c0_24, %c0_25] : memref<256x1152xf32, #tpu.memory_space<vmem>>, vector<256x128xf32>
    tpu.vector_store %arg8[%c0_24, %c0_25], %18 {strides = array<i32>} : memref<256x1152xf32, #tpu.memory_space<vmem>>, vector<256x128xf32>,
    %c0_26 = arith.constant 0 : index
    %c1_27 = arith.constant 1 : index
    %c0_28 = arith.constant 0 : index
    %20 = vector.load %arg7[%c0_26, %c1_27, %c0_28] : memref<18x18x128xf32, #tpu.memory_space<vmem>>, vector<16x16x128xf32>
    %21 = vector.shape_cast %20 : vector<16x16x128xf32> to vector<256x128xf32>
    %c0_29 = arith.constant 0 : index
    %c128 = arith.constant 128 : index
    %22 = vector.load %arg8[%c0_29, %c128] : memref<256x1152xf32, #tpu.memory_space<vmem>>, vector<256x128xf32>
    tpu.vector_store %arg8[%c0_29, %c128], %21 {strides = array<i32>} : memref<256x1152xf32, #tpu.memory_space<vmem>>, vector<256x128xf32>,
    %c0_30 = arith.constant 0 : index
    %c2 = arith.constant 2 : index
    %c0_31 = arith.constant 0 : index
    %23 = vector.load %arg7[%c0_30, %c2, %c0_31] : memref<18x18x128xf32, #tpu.memory_space<vmem>>, vector<16x16x128xf32>
    %24 = vector.shape_cast %23 : vector<16x16x128xf32> to vector<256x128xf32>
    %c0_32 = arith.constant 0 : index
    %c256 = arith.constant 256 : index
    %25 = vector.load %arg8[%c0_32, %c256] : memref<256x1152xf32, #tpu.memory_space<vmem>>, vector<256x128xf32>
    tpu.vector_store %arg8[%c0_32, %c256], %24 {strides = array<i32>} : memref<256x1152xf32, #tpu.memory_space<vmem>>, vector<256x128xf32>,
    %c1_33 = arith.constant 1 : index
    %c0_34 = arith.constant 0 : index
    %c0_35 = arith.constant 0 : index
    %26 = vector.load %arg7[%c1_33, %c0_34, %c0_35] : memref<18x18x128xf32, #tpu.memory_space<vmem>>, vector<16x16x128xf32>
    %27 = vector.shape_cast %26 : vector<16x16x128xf32> to vector<256x128xf32>
    %c0_36 = arith.constant 0 : index
    %c384 = arith.constant 384 : index
    %28 = vector.load %arg8[%c0_36, %c384] : memref<256x1152xf32, #tpu.memory_space<vmem>>, vector<256x128xf32>
    tpu.vector_store %arg8[%c0_36, %c384], %27 {strides = array<i32>} : memref<256x1152xf32, #tpu.memory_space<vmem>>, vector<256x128xf32>,
    %c1_37 = arith.constant 1 : index
    %c1_38 = arith.constant 1 : index
    %c0_39 = arith.constant 0 : index
    %29 = vector.load %arg7[%c1_37, %c1_38, %c0_39] : memref<18x18x128xf32, #tpu.memory_space<vmem>>, vector<16x16x128xf32>
    %30 = vector.shape_cast %29 : vector<16x16x128xf32> to vector<256x128xf32>
    %c0_40 = arith.constant 0 : index
    %c512 = arith.constant 512 : index
    %31 = vector.load %arg8[%c0_40, %c512] : memref<256x1152xf32, #tpu.memory_space<vmem>>, vector<256x128xf32>
    tpu.vector_store %arg8[%c0_40, %c512], %30 {strides = array<i32>} : memref<256x1152xf32, #tpu.memory_space<vmem>>, vector<256x128xf32>,
    %c1_41 = arith.constant 1 : index
    %c2_42 = arith.constant 2 : index
    %c0_43 = arith.constant 0 : index
    %32 = vector.load %arg7[%c1_41, %c2_42, %c0_43] : memref<18x18x128xf32, #tpu.memory_space<vmem>>, vector<16x16x128xf32>
    %33 = vector.shape_cast %32 : vector<16x16x128xf32> to vector<256x128xf32>
    %c0_44 = arith.constant 0 : index
    %c640 = arith.constant 640 : index
    %34 = vector.load %arg8[%c0_44, %c640] : memref<256x1152xf32, #tpu.memory_space<vmem>>, vector<256x128xf32>
    tpu.vector_store %arg8[%c0_44, %c640], %33 {strides = array<i32>} : memref<256x1152xf32, #tpu.memory_space<vmem>>, vector<256x128xf32>,
    %c2_45 = arith.constant 2 : index
    %c0_46 = arith.constant 0 : index
    %c0_47 = arith.constant 0 : index
    %35 = vector.load %arg7[%c2_45, %c0_46, %c0_47] : memref<18x18x128xf32, #tpu.memory_space<vmem>>, vector<16x16x128xf32>
    %36 = vector.shape_cast %35 : vector<16x16x128xf32> to vector<256x128xf32>
    %c0_48 = arith.constant 0 : index
    %c768 = arith.constant 768 : index
    %37 = vector.load %arg8[%c0_48, %c768] : memref<256x1152xf32, #tpu.memory_space<vmem>>, vector<256x128xf32>
    tpu.vector_store %arg8[%c0_48, %c768], %36 {strides = array<i32>} : memref<256x1152xf32, #tpu.memory_space<vmem>>, vector<256x128xf32>,
    %c2_49 = arith.constant 2 : index
    %c1_50 = arith.constant 1 : index
    %c0_51 = arith.constant 0 : index
    %38 = vector.load %arg7[%c2_49, %c1_50, %c0_51] : memref<18x18x128xf32, #tpu.memory_space<vmem>>, vector<16x16x128xf32>
    %39 = vector.shape_cast %38 : vector<16x16x128xf32> to vector<256x128xf32>
    %c0_52 = arith.constant 0 : index
    %c896 = arith.constant 896 : index
    %40 = vector.load %arg8[%c0_52, %c896] : memref<256x1152xf32, #tpu.memory_space<vmem>>, vector<256x128xf32>
    tpu.vector_store %arg8[%c0_52, %c896], %39 {strides = array<i32>} : memref<256x1152xf32, #tpu.memory_space<vmem>>, vector<256x128xf32>,
    %c2_53 = arith.constant 2 : index
    %c2_54 = arith.constant 2 : index
    %c0_55 = arith.constant 0 : index
    %41 = vector.load %arg7[%c2_53, %c2_54, %c0_55] : memref<18x18x128xf32, #tpu.memory_space<vmem>>, vector<16x16x128xf32>
    %42 = vector.shape_cast %41 : vector<16x16x128xf32> to vector<256x128xf32>
    %c0_56 = arith.constant 0 : index
    %c1024 = arith.constant 1024 : index
    %43 = vector.load %arg8[%c0_56, %c1024] : memref<256x1152xf32, #tpu.memory_space<vmem>>, vector<256x128xf32>
    tpu.vector_store %arg8[%c0_56, %c1024], %42 {strides = array<i32>} : memref<256x1152xf32, #tpu.memory_space<vmem>>, vector<256x128xf32>,
    %c0_57 = arith.constant 0 : index
    %c0_58 = arith.constant 0 : index
    %44 = vector.load %arg8[%c0_57, %c0_58] : memref<256x1152xf32, #tpu.memory_space<vmem>>, vector<256x1152xf32>
    %c0_59 = arith.constant 0 : index
    %c0_60 = arith.constant 0 : index
    %45 = vector.load %arg2[%c0_59, %c0_60] : memref<1152x128xf32, #tpu.memory_space<vmem>>, vector<1152x128xf32>
    %cst_61 = arith.constant dense<0.000000e+00> : vector<256x128xf32>
    %46 = tpu.matmul %44, %45, %cst_61 {dimension_numbers = #tpu.dot_dimension_numbers<[1], [0], [0], [1], [0, 0, 1, 1], [], []>} : vector<256x1152xf32>, vector<1152x128xf32>, vector<256x128xf32> -> vector<256x128xf32>
    %47 = vector.shape_cast %46 : vector<256x128xf32> to vector<1x16x16x128xf32>
    %c0_62 = arith.constant 0 : index
    %c0_63 = arith.constant 0 : index
    %c0_64 = arith.constant 0 : index
    %c0_65 = arith.constant 0 : index
    %48 = vector.load %arg5[%c0_62, %c0_63, %c0_64, %c0_65] : memref<1x16x16x128xf32, #tpu.memory_space<vmem>>, vector<1x16x16x128xf32>
    tpu.vector_store %arg5[%c0_62, %c0_63, %c0_64, %c0_65], %47 {strides = array<i32>} : memref<1x16x16x128xf32, #tpu.memory_space<vmem>>, vector<1x16x16x128xf32>,
    %cst_66 = arith.constant dense<0.000000e+00> : vector<128xf32>
    %49 = vector.multi_reduction <add>, %46, %cst_66 [0] : vector<256x128xf32> to vector<128xf32>
    %50 = vector.shape_cast %49 : vector<128xf32> to vector<1x128xf32>
    %51 = arith.mulf %46, %46 : vector<256x128xf32>
    %cst_67 = arith.constant dense<0.000000e+00> : vector<128xf32>
    %52 = vector.multi_reduction <add>, %51, %cst_67 [0] : vector<256x128xf32> to vector<128xf32>
    %53 = vector.shape_cast %52 : vector<128xf32> to vector<1x128xf32>
    %54 = tpu.concatenate %50, %53 in 0 : vector<1x128xf32>, vector<1x128xf32> -> vector<2x128xf32>
    %55 = vector.shape_cast %54 : vector<2x128xf32> to vector<1x2x128xf32>
    %c0_68 = arith.constant 0 : index
    %c0_69 = arith.constant 0 : index
    %c0_70 = arith.constant 0 : index
    %56 = vector.load %arg6[%c0_68, %c0_69, %c0_70] : memref<1x2x128xf32, #tpu.memory_space<vmem>>, vector<1x2x128xf32>
    tpu.vector_store %arg6[%c0_68, %c0_69, %c0_70], %55 {strides = array<i32>} : memref<1x2x128xf32, #tpu.memory_space<vmem>>, vector<1x2x128xf32>,
    return
  }
  func.func @transform_0(%arg0: i32) -> (i32, i32, i32, i32) {
    %c0_i32 = arith.constant 0 : i32
    %c0_i32_0 = arith.constant 0 : i32
    %c0_i32_1 = arith.constant 0 : i32
    %c0_i32_2 = arith.constant 0 : i32
    return %arg0, %c0_i32, %c0_i32_0, %c0_i32_1 : i32, i32, i32, i32
  }
  func.func @transform_1(%arg0: i32) -> (i32, i32) {
    %c0_i32 = arith.constant 0 : i32
    %c0_i32_0 = arith.constant 0 : i32
    %c0_i32_1 = arith.constant 0 : i32
    return %c0_i32, %c0_i32_0 : i32, i32
  }
  func.func @transform_2(%arg0: i32) -> (i32, i32) {
    %c0_i32 = arith.constant 0 : i32
    %c0_i32_0 = arith.constant 0 : i32
    %c0_i32_1 = arith.constant 0 : i32
    return %c0_i32, %c0_i32_0 : i32, i32
  }
  func.func @transform_3(%arg0: i32) -> (i32, i32) {
    %c0_i32 = arith.constant 0 : i32
    %c0_i32_0 = arith.constant 0 : i32
    %c0_i32_1 = arith.constant 0 : i32
    return %c0_i32, %c0_i32_0 : i32, i32
  }
  func.func @transform_4(%arg0: i32) -> (i32, i32, i32, i32) {
    %c0_i32 = arith.constant 0 : i32
    %c0_i32_0 = arith.constant 0 : i32
    %c0_i32_1 = arith.constant 0 : i32
    %c0_i32_2 = arith.constant 0 : i32
    return %arg0, %c0_i32, %c0_i32_0, %c0_i32_1 : i32, i32, i32, i32
  }
  func.func @transform_5(%arg0: i32) -> (i32, i32, i32) {
    %c0_i32 = arith.constant 0 : i32
    %c0_i32_0 = arith.constant 0 : i32
    %c0_i32_1 = arith.constant 0 : i32
    return %arg0, %c0_i32, %c0_i32_0 : i32, i32, i32
  }
}

module attributes {stable_mosaic.version = 11 : i64} {
  func.func @_conv_stats_kernel(%arg0: i32, %arg1: memref<1x16x16x128xf32, #tpu.memory_space<vmem>>, %arg2: memref<1152x128xf32, #tpu.memory_space<vmem>>, %arg3: memref<1x128xf32, #tpu.memory_space<vmem>>, %arg4: memref<1x128xf32, #tpu.memory_space<vmem>>, %arg5: memref<1x16x16x128xf32, #tpu.memory_space<vmem>>, %arg6: memref<1x2x128xf32, #tpu.memory_space<vmem>>, %arg7: memref<18x18x128xf32, #tpu.memory_space<vmem>>, %arg8: memref<256x1152xf32, #tpu.memory_space<vmem>>) attributes {dimension_semantics = [#tpu.dimension_semantics<parallel>], iteration_bounds = array<i64: 2>, scalar_prefetch = 0 : i64, scratch_operands = 2 : i64, tpu.core_type = #tpu.core_type<tc>, window_params = [{transform_indices = @transform_0, window_bounds = array<i64: 1, 16, 16, 128>}, {pipeline_mode = #tpu.pipeline_mode<synchronous>, transform_indices = @transform_1, window_bounds = array<i64: 1152, 128>}, {pipeline_mode = #tpu.pipeline_mode<synchronous>, transform_indices = @transform_2, window_bounds = array<i64: 1, 128>}, {pipeline_mode = #tpu.pipeline_mode<synchronous>, transform_indices = @transform_3, window_bounds = array<i64: 1, 128>}, {transform_indices = @transform_4, window_bounds = array<i64: 1, 16, 16, 128>}, {transform_indices = @transform_5, window_bounds = array<i64: 1, 2, 128>}]} {
    %c0 = arith.constant 0 : index
    %c0_0 = arith.constant 0 : index
    %c0_1 = arith.constant 0 : index
    %c0_2 = arith.constant 0 : index
    %0 = vector.load %arg1[%c0, %c0_0, %c0_1, %c0_2] : memref<1x16x16x128xf32, #tpu.memory_space<vmem>>, vector<1x16x16x128xf32>
    %1 = vector.shape_cast %0 : vector<1x16x16x128xf32> to vector<16x16x128xf32>
    %c0_3 = arith.constant 0 : index
    %c0_4 = arith.constant 0 : index
    %2 = vector.load %arg3[%c0_3, %c0_4] : memref<1x128xf32, #tpu.memory_space<vmem>>, vector<1x128xf32>
    %3 = vector.shape_cast %2 : vector<1x128xf32> to vector<1x1x128xf32>
    %4 = vector.broadcast %3 : vector<1x1x128xf32> to vector<16x16x128xf32>
    %5 = arith.mulf %1, %4 : vector<16x16x128xf32>
    %c0_5 = arith.constant 0 : index
    %c0_6 = arith.constant 0 : index
    %6 = vector.load %arg4[%c0_5, %c0_6] : memref<1x128xf32, #tpu.memory_space<vmem>>, vector<1x128xf32>
    %7 = vector.shape_cast %6 : vector<1x128xf32> to vector<1x1x128xf32>
    %8 = vector.broadcast %7 : vector<1x1x128xf32> to vector<16x16x128xf32>
    %9 = arith.addf %5, %8 : vector<16x16x128xf32>
    %cst = arith.constant 0.000000e+00 : f32
    %10 = vector.broadcast %cst : f32 to vector<16x16x128xf32>
    %11 = arith.maximumf %9, %10 : vector<16x16x128xf32>
    %cst_7 = arith.constant 0.000000e+00 : f32
    %12 = vector.broadcast %cst_7 : f32 to vector<1x18x128xf32>
    %cst_8 = arith.constant 0.000000e+00 : f32
    %13 = vector.broadcast %cst_8 : f32 to vector<16x1x128xf32>
    %c0_9 = arith.constant 0 : index
    %c0_10 = arith.constant 0 : index
    %c0_11 = arith.constant 0 : index
    %14 = vector.load %arg7[%c0_9, %c0_10, %c0_11] : memref<18x18x128xf32, #tpu.memory_space<vmem>>, vector<1x18x128xf32>
    tpu.vector_store %arg7[%c0_9, %c0_10, %c0_11], %12 {strides = array<i32>} : memref<18x18x128xf32, #tpu.memory_space<vmem>>, vector<1x18x128xf32>,
    %c17 = arith.constant 17 : index
    %c0_12 = arith.constant 0 : index
    %c0_13 = arith.constant 0 : index
    %15 = vector.load %arg7[%c17, %c0_12, %c0_13] : memref<18x18x128xf32, #tpu.memory_space<vmem>>, vector<1x18x128xf32>
    tpu.vector_store %arg7[%c17, %c0_12, %c0_13], %12 {strides = array<i32>} : memref<18x18x128xf32, #tpu.memory_space<vmem>>, vector<1x18x128xf32>,
    %c1 = arith.constant 1 : index
    %c0_14 = arith.constant 0 : index
    %c0_15 = arith.constant 0 : index
    %16 = vector.load %arg7[%c1, %c0_14, %c0_15] : memref<18x18x128xf32, #tpu.memory_space<vmem>>, vector<16x1x128xf32>
    tpu.vector_store %arg7[%c1, %c0_14, %c0_15], %13 {strides = array<i32>} : memref<18x18x128xf32, #tpu.memory_space<vmem>>, vector<16x1x128xf32>,
    %c1_16 = arith.constant 1 : index
    %c17_17 = arith.constant 17 : index
    %c0_18 = arith.constant 0 : index
    %17 = vector.load %arg7[%c1_16, %c17_17, %c0_18] : memref<18x18x128xf32, #tpu.memory_space<vmem>>, vector<16x1x128xf32>
    tpu.vector_store %arg7[%c1_16, %c17_17, %c0_18], %13 {strides = array<i32>} : memref<18x18x128xf32, #tpu.memory_space<vmem>>, vector<16x1x128xf32>,
    %c1_19 = arith.constant 1 : index
    %c1_20 = arith.constant 1 : index
    %c0_21 = arith.constant 0 : index
    %18 = vector.load %arg7[%c1_19, %c1_20, %c0_21] : memref<18x18x128xf32, #tpu.memory_space<vmem>>, vector<16x16x128xf32>
    tpu.vector_store %arg7[%c1_19, %c1_20, %c0_21], %11 {strides = array<i32>} : memref<18x18x128xf32, #tpu.memory_space<vmem>>, vector<16x16x128xf32>,
    %c0_22 = arith.constant 0 : index
    %c0_23 = arith.constant 0 : index
    %c0_24 = arith.constant 0 : index
    %19 = vector.load %arg7[%c0_22, %c0_23, %c0_24] : memref<18x18x128xf32, #tpu.memory_space<vmem>>, vector<16x16x128xf32>
    %20 = vector.shape_cast %19 : vector<16x16x128xf32> to vector<256x128xf32>
    %c0_25 = arith.constant 0 : index
    %c0_26 = arith.constant 0 : index
    %21 = vector.load %arg8[%c0_25, %c0_26] : memref<256x1152xf32, #tpu.memory_space<vmem>>, vector<256x128xf32>
    tpu.vector_store %arg8[%c0_25, %c0_26], %20 {strides = array<i32>} : memref<256x1152xf32, #tpu.memory_space<vmem>>, vector<256x128xf32>,
    %c0_27 = arith.constant 0 : index
    %c1_28 = arith.constant 1 : index
    %c0_29 = arith.constant 0 : index
    %22 = vector.load %arg7[%c0_27, %c1_28, %c0_29] : memref<18x18x128xf32, #tpu.memory_space<vmem>>, vector<16x16x128xf32>
    %23 = vector.shape_cast %22 : vector<16x16x128xf32> to vector<256x128xf32>
    %c0_30 = arith.constant 0 : index
    %c128 = arith.constant 128 : index
    %24 = vector.load %arg8[%c0_30, %c128] : memref<256x1152xf32, #tpu.memory_space<vmem>>, vector<256x128xf32>
    tpu.vector_store %arg8[%c0_30, %c128], %23 {strides = array<i32>} : memref<256x1152xf32, #tpu.memory_space<vmem>>, vector<256x128xf32>,
    %c0_31 = arith.constant 0 : index
    %c2 = arith.constant 2 : index
    %c0_32 = arith.constant 0 : index
    %25 = vector.load %arg7[%c0_31, %c2, %c0_32] : memref<18x18x128xf32, #tpu.memory_space<vmem>>, vector<16x16x128xf32>
    %26 = vector.shape_cast %25 : vector<16x16x128xf32> to vector<256x128xf32>
    %c0_33 = arith.constant 0 : index
    %c256 = arith.constant 256 : index
    %27 = vector.load %arg8[%c0_33, %c256] : memref<256x1152xf32, #tpu.memory_space<vmem>>, vector<256x128xf32>
    tpu.vector_store %arg8[%c0_33, %c256], %26 {strides = array<i32>} : memref<256x1152xf32, #tpu.memory_space<vmem>>, vector<256x128xf32>,
    %c1_34 = arith.constant 1 : index
    %c0_35 = arith.constant 0 : index
    %c0_36 = arith.constant 0 : index
    %28 = vector.load %arg7[%c1_34, %c0_35, %c0_36] : memref<18x18x128xf32, #tpu.memory_space<vmem>>, vector<16x16x128xf32>
    %29 = vector.shape_cast %28 : vector<16x16x128xf32> to vector<256x128xf32>
    %c0_37 = arith.constant 0 : index
    %c384 = arith.constant 384 : index
    %30 = vector.load %arg8[%c0_37, %c384] : memref<256x1152xf32, #tpu.memory_space<vmem>>, vector<256x128xf32>
    tpu.vector_store %arg8[%c0_37, %c384], %29 {strides = array<i32>} : memref<256x1152xf32, #tpu.memory_space<vmem>>, vector<256x128xf32>,
    %c1_38 = arith.constant 1 : index
    %c1_39 = arith.constant 1 : index
    %c0_40 = arith.constant 0 : index
    %31 = vector.load %arg7[%c1_38, %c1_39, %c0_40] : memref<18x18x128xf32, #tpu.memory_space<vmem>>, vector<16x16x128xf32>
    %32 = vector.shape_cast %31 : vector<16x16x128xf32> to vector<256x128xf32>
    %c0_41 = arith.constant 0 : index
    %c512 = arith.constant 512 : index
    %33 = vector.load %arg8[%c0_41, %c512] : memref<256x1152xf32, #tpu.memory_space<vmem>>, vector<256x128xf32>
    tpu.vector_store %arg8[%c0_41, %c512], %32 {strides = array<i32>} : memref<256x1152xf32, #tpu.memory_space<vmem>>, vector<256x128xf32>,
    %c1_42 = arith.constant 1 : index
    %c2_43 = arith.constant 2 : index
    %c0_44 = arith.constant 0 : index
    %34 = vector.load %arg7[%c1_42, %c2_43, %c0_44] : memref<18x18x128xf32, #tpu.memory_space<vmem>>, vector<16x16x128xf32>
    %35 = vector.shape_cast %34 : vector<16x16x128xf32> to vector<256x128xf32>
    %c0_45 = arith.constant 0 : index
    %c640 = arith.constant 640 : index
    %36 = vector.load %arg8[%c0_45, %c640] : memref<256x1152xf32, #tpu.memory_space<vmem>>, vector<256x128xf32>
    tpu.vector_store %arg8[%c0_45, %c640], %35 {strides = array<i32>} : memref<256x1152xf32, #tpu.memory_space<vmem>>, vector<256x128xf32>,
    %c2_46 = arith.constant 2 : index
    %c0_47 = arith.constant 0 : index
    %c0_48 = arith.constant 0 : index
    %37 = vector.load %arg7[%c2_46, %c0_47, %c0_48] : memref<18x18x128xf32, #tpu.memory_space<vmem>>, vector<16x16x128xf32>
    %38 = vector.shape_cast %37 : vector<16x16x128xf32> to vector<256x128xf32>
    %c0_49 = arith.constant 0 : index
    %c768 = arith.constant 768 : index
    %39 = vector.load %arg8[%c0_49, %c768] : memref<256x1152xf32, #tpu.memory_space<vmem>>, vector<256x128xf32>
    tpu.vector_store %arg8[%c0_49, %c768], %38 {strides = array<i32>} : memref<256x1152xf32, #tpu.memory_space<vmem>>, vector<256x128xf32>,
    %c2_50 = arith.constant 2 : index
    %c1_51 = arith.constant 1 : index
    %c0_52 = arith.constant 0 : index
    %40 = vector.load %arg7[%c2_50, %c1_51, %c0_52] : memref<18x18x128xf32, #tpu.memory_space<vmem>>, vector<16x16x128xf32>
    %41 = vector.shape_cast %40 : vector<16x16x128xf32> to vector<256x128xf32>
    %c0_53 = arith.constant 0 : index
    %c896 = arith.constant 896 : index
    %42 = vector.load %arg8[%c0_53, %c896] : memref<256x1152xf32, #tpu.memory_space<vmem>>, vector<256x128xf32>
    tpu.vector_store %arg8[%c0_53, %c896], %41 {strides = array<i32>} : memref<256x1152xf32, #tpu.memory_space<vmem>>, vector<256x128xf32>,
    %c2_54 = arith.constant 2 : index
    %c2_55 = arith.constant 2 : index
    %c0_56 = arith.constant 0 : index
    %43 = vector.load %arg7[%c2_54, %c2_55, %c0_56] : memref<18x18x128xf32, #tpu.memory_space<vmem>>, vector<16x16x128xf32>
    %44 = vector.shape_cast %43 : vector<16x16x128xf32> to vector<256x128xf32>
    %c0_57 = arith.constant 0 : index
    %c1024 = arith.constant 1024 : index
    %45 = vector.load %arg8[%c0_57, %c1024] : memref<256x1152xf32, #tpu.memory_space<vmem>>, vector<256x128xf32>
    tpu.vector_store %arg8[%c0_57, %c1024], %44 {strides = array<i32>} : memref<256x1152xf32, #tpu.memory_space<vmem>>, vector<256x128xf32>,
    %c0_58 = arith.constant 0 : index
    %c0_59 = arith.constant 0 : index
    %46 = vector.load %arg8[%c0_58, %c0_59] : memref<256x1152xf32, #tpu.memory_space<vmem>>, vector<256x1152xf32>
    %c0_60 = arith.constant 0 : index
    %c0_61 = arith.constant 0 : index
    %47 = vector.load %arg2[%c0_60, %c0_61] : memref<1152x128xf32, #tpu.memory_space<vmem>>, vector<1152x128xf32>
    %cst_62 = arith.constant dense<0.000000e+00> : vector<256x128xf32>
    %48 = tpu.matmul %46, %47, %cst_62 {dimension_numbers = #tpu.dot_dimension_numbers<[1], [0], [0], [1], [0, 0, 1, 1], [], []>} : vector<256x1152xf32>, vector<1152x128xf32>, vector<256x128xf32> -> vector<256x128xf32>
    %49 = vector.shape_cast %48 : vector<256x128xf32> to vector<1x16x16x128xf32>
    %c0_63 = arith.constant 0 : index
    %c0_64 = arith.constant 0 : index
    %c0_65 = arith.constant 0 : index
    %c0_66 = arith.constant 0 : index
    %50 = vector.load %arg5[%c0_63, %c0_64, %c0_65, %c0_66] : memref<1x16x16x128xf32, #tpu.memory_space<vmem>>, vector<1x16x16x128xf32>
    tpu.vector_store %arg5[%c0_63, %c0_64, %c0_65, %c0_66], %49 {strides = array<i32>} : memref<1x16x16x128xf32, #tpu.memory_space<vmem>>, vector<1x16x16x128xf32>,
    %cst_67 = arith.constant dense<0.000000e+00> : vector<128xf32>
    %51 = vector.multi_reduction <add>, %48, %cst_67 [0] : vector<256x128xf32> to vector<128xf32>
    %52 = vector.shape_cast %51 : vector<128xf32> to vector<1x128xf32>
    %53 = arith.mulf %48, %48 : vector<256x128xf32>
    %cst_68 = arith.constant dense<0.000000e+00> : vector<128xf32>
    %54 = vector.multi_reduction <add>, %53, %cst_68 [0] : vector<256x128xf32> to vector<128xf32>
    %55 = vector.shape_cast %54 : vector<128xf32> to vector<1x128xf32>
    %56 = tpu.concatenate %52, %55 in 0 : vector<1x128xf32>, vector<1x128xf32> -> vector<2x128xf32>
    %57 = vector.shape_cast %56 : vector<2x128xf32> to vector<1x2x128xf32>
    %c0_69 = arith.constant 0 : index
    %c0_70 = arith.constant 0 : index
    %c0_71 = arith.constant 0 : index
    %58 = vector.load %arg6[%c0_69, %c0_70, %c0_71] : memref<1x2x128xf32, #tpu.memory_space<vmem>>, vector<1x2x128xf32>
    tpu.vector_store %arg6[%c0_69, %c0_70, %c0_71], %57 {strides = array<i32>} : memref<1x2x128xf32, #tpu.memory_space<vmem>>, vector<1x2x128xf32>,
    return
  }
  func.func @transform_0(%arg0: i32) -> (i32, i32, i32, i32) {
    %c0_i32 = arith.constant 0 : i32
    %c0_i32_0 = arith.constant 0 : i32
    %c0_i32_1 = arith.constant 0 : i32
    %c0_i32_2 = arith.constant 0 : i32
    return %arg0, %c0_i32, %c0_i32_0, %c0_i32_1 : i32, i32, i32, i32
  }
  func.func @transform_1(%arg0: i32) -> (i32, i32) {
    %c0_i32 = arith.constant 0 : i32
    %c0_i32_0 = arith.constant 0 : i32
    %c0_i32_1 = arith.constant 0 : i32
    return %c0_i32, %c0_i32_0 : i32, i32
  }
  func.func @transform_2(%arg0: i32) -> (i32, i32) {
    %c0_i32 = arith.constant 0 : i32
    %c0_i32_0 = arith.constant 0 : i32
    %c0_i32_1 = arith.constant 0 : i32
    return %c0_i32, %c0_i32_0 : i32, i32
  }
  func.func @transform_3(%arg0: i32) -> (i32, i32) {
    %c0_i32 = arith.constant 0 : i32
    %c0_i32_0 = arith.constant 0 : i32
    %c0_i32_1 = arith.constant 0 : i32
    return %c0_i32, %c0_i32_0 : i32, i32
  }
  func.func @transform_4(%arg0: i32) -> (i32, i32, i32, i32) {
    %c0_i32 = arith.constant 0 : i32
    %c0_i32_0 = arith.constant 0 : i32
    %c0_i32_1 = arith.constant 0 : i32
    %c0_i32_2 = arith.constant 0 : i32
    return %arg0, %c0_i32, %c0_i32_0, %c0_i32_1 : i32, i32, i32, i32
  }
  func.func @transform_5(%arg0: i32) -> (i32, i32, i32) {
    %c0_i32 = arith.constant 0 : i32
    %c0_i32_0 = arith.constant 0 : i32
    %c0_i32_1 = arith.constant 0 : i32
    return %arg0, %c0_i32, %c0_i32_0 : i32, i32, i32
  }
}

module attributes {stable_mosaic.version = 11 : i64} {
  func.func @_finalize_kernel(%arg0: i32, %arg1: memref<1x16x16x128xf32, #tpu.memory_space<vmem>>, %arg2: memref<1x16x16x128xf32, #tpu.memory_space<vmem>>, %arg3: memref<1x128xf32, #tpu.memory_space<vmem>>, %arg4: memref<1x128xf32, #tpu.memory_space<vmem>>, %arg5: memref<1x16x16x128xf32, #tpu.memory_space<vmem>>) attributes {dimension_semantics = [#tpu.dimension_semantics<parallel>], iteration_bounds = array<i64: 2>, scalar_prefetch = 0 : i64, scratch_operands = 0 : i64, tpu.core_type = #tpu.core_type<tc>, window_params = [{transform_indices = @transform_0, window_bounds = array<i64: 1, 16, 16, 128>}, {transform_indices = @transform_1, window_bounds = array<i64: 1, 16, 16, 128>}, {pipeline_mode = #tpu.pipeline_mode<synchronous>, transform_indices = @transform_2, window_bounds = array<i64: 1, 128>}, {pipeline_mode = #tpu.pipeline_mode<synchronous>, transform_indices = @transform_3, window_bounds = array<i64: 1, 128>}, {transform_indices = @transform_4, window_bounds = array<i64: 1, 16, 16, 128>}]} {
    %c0 = arith.constant 0 : index
    %c0_0 = arith.constant 0 : index
    %c0_1 = arith.constant 0 : index
    %c0_2 = arith.constant 0 : index
    %0 = vector.load %arg1[%c0, %c0_0, %c0_1, %c0_2] : memref<1x16x16x128xf32, #tpu.memory_space<vmem>>, vector<1x16x16x128xf32>
    %c0_3 = arith.constant 0 : index
    %c0_4 = arith.constant 0 : index
    %c0_5 = arith.constant 0 : index
    %c0_6 = arith.constant 0 : index
    %1 = vector.load %arg2[%c0_3, %c0_4, %c0_5, %c0_6] : memref<1x16x16x128xf32, #tpu.memory_space<vmem>>, vector<1x16x16x128xf32>
    %c0_7 = arith.constant 0 : index
    %c0_8 = arith.constant 0 : index
    %2 = vector.load %arg3[%c0_7, %c0_8] : memref<1x128xf32, #tpu.memory_space<vmem>>, vector<1x128xf32>
    %3 = vector.shape_cast %2 : vector<1x128xf32> to vector<1x1x1x128xf32>
    %4 = vector.broadcast %3 : vector<1x1x1x128xf32> to vector<1x16x16x128xf32>
    %5 = arith.mulf %0, %4 : vector<1x16x16x128xf32>
    %c0_9 = arith.constant 0 : index
    %c0_10 = arith.constant 0 : index
    %6 = vector.load %arg4[%c0_9, %c0_10] : memref<1x128xf32, #tpu.memory_space<vmem>>, vector<1x128xf32>
    %7 = vector.shape_cast %6 : vector<1x128xf32> to vector<1x1x1x128xf32>
    %8 = vector.broadcast %7 : vector<1x1x1x128xf32> to vector<1x16x16x128xf32>
    %9 = arith.addf %5, %8 : vector<1x16x16x128xf32>
    %10 = arith.addf %9, %1 : vector<1x16x16x128xf32>
    %cst = arith.constant 0.000000e+00 : f32
    %11 = vector.broadcast %cst : f32 to vector<1x16x16x128xf32>
    %12 = arith.maximumf %10, %11 : vector<1x16x16x128xf32>
    %c0_11 = arith.constant 0 : index
    %c0_12 = arith.constant 0 : index
    %c0_13 = arith.constant 0 : index
    %c0_14 = arith.constant 0 : index
    %13 = vector.load %arg5[%c0_11, %c0_12, %c0_13, %c0_14] : memref<1x16x16x128xf32, #tpu.memory_space<vmem>>, vector<1x16x16x128xf32>
    tpu.vector_store %arg5[%c0_11, %c0_12, %c0_13, %c0_14], %12 {strides = array<i32>} : memref<1x16x16x128xf32, #tpu.memory_space<vmem>>, vector<1x16x16x128xf32>,
    return
  }
  func.func @transform_0(%arg0: i32) -> (i32, i32, i32, i32) {
    %c0_i32 = arith.constant 0 : i32
    %c0_i32_0 = arith.constant 0 : i32
    %c0_i32_1 = arith.constant 0 : i32
    %c0_i32_2 = arith.constant 0 : i32
    return %arg0, %c0_i32, %c0_i32_0, %c0_i32_1 : i32, i32, i32, i32
  }
  func.func @transform_1(%arg0: i32) -> (i32, i32, i32, i32) {
    %c0_i32 = arith.constant 0 : i32
    %c0_i32_0 = arith.constant 0 : i32
    %c0_i32_1 = arith.constant 0 : i32
    %c0_i32_2 = arith.constant 0 : i32
    return %arg0, %c0_i32, %c0_i32_0, %c0_i32_1 : i32, i32, i32, i32
  }
  func.func @transform_2(%arg0: i32) -> (i32, i32) {
    %c0_i32 = arith.constant 0 : i32
    %c0_i32_0 = arith.constant 0 : i32
    %c0_i32_1 = arith.constant 0 : i32
    return %c0_i32, %c0_i32_0 : i32, i32
  }
  func.func @transform_3(%arg0: i32) -> (i32, i32) {
    %c0_i32 = arith.constant 0 : i32
    %c0_i32_0 = arith.constant 0 : i32
    %c0_i32_1 = arith.constant 0 : i32
    return %c0_i32, %c0_i32_0 : i32, i32
  }
  func.func @transform_4(%arg0: i32) -> (i32, i32, i32, i32) {
    %c0_i32 = arith.constant 0 : i32
    %c0_i32_0 = arith.constant 0 : i32
    %c0_i32_1 = arith.constant 0 : i32
    %c0_i32_2 = arith.constant 0 : i32
    return %arg0, %c0_i32, %c0_i32_0, %c0_i32_1 : i32, i32, i32, i32
  }
}

</mosaic_0001>

<llo_original>
// kernel: residual_block.5
$region0: #{residual_block.5}
  #allocation0 [shape = 'u32[]', space=smem, size = 0x4, offset = 0x4, fixed_abs, tag = 'smem constant byte address 0x4 - core index']
  #allocation1 [shape = 'u32[144,128]{1,0:T(1,128)}', space=vmem, size = 0x12000, scoped, tag = 'internal scratch']
  %s0 = inlined_call_operand.vmem [shape: f32[2,16,16,128], index: 0, kind: input, shape index: {}, may-alias: {0,4}]
  %s1 = inlined_call_operand.vmem [shape: f32[2,16,16,128], index: 1, kind: input, shape index: {}]
  %s2 = inlined_call_operand.vmem [shape: f32[1,128], index: 2, kind: input, shape index: {}]
  %s3 = inlined_call_operand.vmem [shape: f32[1,128], index: 3, kind: input, shape index: {}]
  %s4 = inlined_call_operand.vmem [shape: f32[2,16,16,128], index: 4, kind: output, shape index: {}, may-alias: {0,4}]
  %s5 = sld [smem:[#allocation0]]
  $region49: #{residual_block.5} parent=0
    _
  %s7 = ssub.s32 1, %s5
  %s8 = scalar_select 0, %s7, %s5
  loop: start=0, step=1, limit=4
  $region2: #{residual_block.5} parent=0 // loop_pre_header
    _
  $region3: #{residual_block.5} parent=0 // loop_header
    %s10 = sphi 0, %s14
    %p11 = scmp.ge.s32.totalorder %s10, 4
    %s20 = sphi 0, %s22
    %s23 = sphi 0, %s20
    %s24 = sphi 0, %s23
    %s40 = sphi 0, %s24
    %s46 = sphi 0, %s48
    %s49 = sphi 0, %s46
    %s50 = sphi 0, %s49
    %s66 = sphi 0, %s50
    %s70 = sphi 0, %s70
    %s72 = sphi 0, %s70
    %s73 = sphi 0, %s72
    %s87 = sphi 0, %s73
    %s91 = sphi 0, %s91
    %s93 = sphi 0, %s91
    %s94 = sphi 0, %s93
    %s108 = sphi 0, %s94
    %s114 = sphi 0, %s116
    %s117 = sphi 0, %s114
    %s118 = sphi 0, %s117
    %s134 = sphi 0, %s118
  $region4: #{residual_block.5} parent=0 // loop_header_branch
    %13 = sbr.rel (%p11) target = $region8
  $region5: #{residual_block.5} parent=0 // loop_body
    %s15 = ssub.s32 %s10, 1
    %s16 = ssub.s32 %s10, 2
    %s17 = sadd.s32 %s10, 1
    %s18 = ssub.s32 %s10, %s17
    %p19 = scmp.eq.s32.totalorder %s18, 0
    %s21 = sadd.s32 %s20, 1
    %s22 = scalar_select %p19, %s20, %s21
    %p25 = pneg %p19
    %p26 = scmp.eq.s32.totalorder %s10, 1
    %p27 = por %p25, %p26
    %p28 = scmp.ne.s32.totalorder %s20, %s23
    %p29 = scmp.eq.s32.totalorder %s10, 0
    %p30 = por %p28, %p29
    %p31 = scmp.ne.s32.totalorder %s20, %s23
    %p32 = scmp.eq.s32.totalorder %s15, 1
    %p33 = por %p31, %p32
    %p34 = scmp.ne.s32.totalorder %s23, %s24
    %p35 = scmp.eq.s32.totalorder %s15, 0
    %p36 = por %p34, %p35
    %p37 = scmp.ne.s32.totalorder %s23, %s24
    %p38 = scmp.eq.s32.totalorder %s16, 1
    %p39 = por %p37, %p38
    %p41 = scmp.ne.s32.totalorder %s24, %s40
    %p42 = scmp.eq.s32.totalorder %s16, 0
    %p43 = por %p41, %p42
    %s44 = ssub.s32 %s10, %s17
    %p45 = scmp.eq.s32.totalorder %s44, 0
    %s47 = sadd.s32 %s46, 1
    %s48 = scalar_select %p45, %s46, %s47
    %p51 = pneg %p45
    %p52 = scmp.eq.s32.totalorder %s10, 1
    %p53 = por %p51, %p52
    %p54 = scmp.ne.s32.totalorder %s46, %s49
    %p55 = scmp.eq.s32.totalorder %s10, 0
    %p56 = por %p54, %p55
    %p57 = scmp.ne.s32.totalorder %s46, %s49
    %p58 = scmp.eq.s32.totalorder %s15, 1
    %p59 = por %p57, %p58
    %p60 = scmp.ne.s32.totalorder %s49, %s50
    %p61 = scmp.eq.s32.totalorder %s15, 0
    %p62 = por %p60, %p61
    %p63 = scmp.ne.s32.totalorder %s49, %s50
    %p64 = scmp.eq.s32.totalorder %s16, 1
    %p65 = por %p63, %p64
    %p67 = scmp.ne.s32.totalorder %s50, %s66
    %p68 = scmp.eq.s32.totalorder %s16, 0
    %p69 = por %p67, %p68
    %s71 = sadd.s32 %s70, 1
    %p74 = scmp.eq.s32.totalorder %s10, 1
    %p75 = scmp.ne.s32.totalorder %s70, %s72
    %p76 = scmp.eq.s32.totalorder %s10, 0
    %p77 = por %p75, %p76
    %p78 = scmp.ne.s32.totalorder %s70, %s72
    %p79 = scmp.eq.s32.totalorder %s15, 1
    %p80 = por %p78, %p79
    %p81 = scmp.ne.s32.totalorder %s72, %s73
    %p82 = scmp.eq.s32.totalorder %s15, 0
    %p83 = por %p81, %p82
    %p84 = scmp.ne.s32.totalorder %s72, %s73
    %p85 = scmp.eq.s32.totalorder %s16, 1
    %p86 = por %p84, %p85
    %p88 = scmp.ne.s32.totalorder %s73, %s87
    %p89 = scmp.eq.s32.totalorder %s16, 0
    %p90 = por %p88, %p89
    %s92 = sadd.s32 %s91, 1
    %p95 = scmp.eq.s32.totalorder %s10, 1
    %p96 = scmp.ne.s32.totalorder %s91, %s93
    %p97 = scmp.eq.s32.totalorder %s10, 0
    %p98 = por %p96, %p97
    %p99 = scmp.ne.s32.totalorder %s91, %s93
    %p100 = scmp.eq.s32.totalorder %s15, 1
    %p101 = por %p99, %p100
    %p102 = scmp.ne.s32.totalorder %s93, %s94
    %p103 = scmp.eq.s32.totalorder %s15, 0
    %p104 = por %p102, %p103
    %p105 = scmp.ne.s32.totalorder %s93, %s94
    %p106 = scmp.eq.s32.totalorder %s16, 1
    %p107 = por %p105, %p106
    %p109 = scmp.ne.s32.totalorder %s94, %s108
    %p110 = scmp.eq.s32.totalorder %s16, 0
    %p111 = por %p109, %p110
    %s112 = ssub.s32 %s10, %s17
    %p113 = scmp.eq.s32.totalorder %s112, 0
    %s115 = sadd.s32 %s114, 1
    %s116 = scalar_select %p113, %s114, %s115
    %p119 = pneg %p113
    %p120 = scmp.eq.s32.totalorder %s10, 1
    %p121 = por %p119, %p120
    %p122 = scmp.ne.s32.totalorder %s114, %s117
    %p123 = scmp.eq.s32.totalorder %s10, 0
    %p124 = por %p122, %p123
    %p125 = scmp.ne.s32.totalorder %s114, %s117
    %p126 = scmp.eq.s32.totalorder %s15, 1
    %p127 = por %p125, %p126
    %p128 = scmp.ne.s32.totalorder %s117, %s118
    %p129 = scmp.eq.s32.totalorder %s15, 0
    %p130 = por %p128, %p129
    %p131 = scmp.ne.s32.totalorder %s117, %s118
    %p132 = scmp.eq.s32.totalorder %s16, 1
    %p133 = por %p131, %p132
    %p135 = scmp.ne.s32.totalorder %s118, %s134
    %p136 = scmp.eq.s32.totalorder %s16, 0
    %p137 = por %p135, %p136
    %p138 = scmp.le.s32.totalorder 1, %s10
    %p139 = scmp.lt.s32.totalorder %s10, 3
    %p140 = pnand %p138, %p139
    %p141 = pneg %p140
    // Predicated region
    $region9: #{residual_block.5} parent=5 // pred_check
      _
    $region10: #{residual_block.5} parent=5 // pred_check_branch
      %143 = sbr.rel (%p140) target = $region12
    $region11: #{residual_block.5} parent=5 // pred_region
      %s144 = ssub.s32 %s10, 1
      // Predicated region
      $region13: #{residual_block.5} parent=11 // pred_check
        %p145 = pneg %p83
      $region14: #{residual_block.5} parent=11 // pred_check_branch
        %147 = sbr.rel (%p145) target = $region16
      $region15: #{residual_block.5} parent=11 // pred_region
        _
      $region16: #{residual_block.5} parent=11 // pred_fallthru
        _
      // Predicated region
      $region17: #{residual_block.5} parent=11 // pred_check
        %p148 = pneg %p104
      $region18: #{residual_block.5} parent=11 // pred_check_branch
        %150 = sbr.rel (%p148) target = $region20
      $region19: #{residual_block.5} parent=11 // pred_region
        _
      $region20: #{residual_block.5} parent=11 // pred_fallthru
        _
    $region12: #{residual_block.5} parent=5 // pred_fallthru
      _
    %p151 = scmp.lt.s32.totalorder %s10, 2
    // Predicated region
    $region21: #{residual_block.5} parent=5 // pred_check
      %p152 = pneg %p151
    $region22: #{residual_block.5} parent=5 // pred_check_branch
      %154 = sbr.rel (%p152) target = $region24
    $region23: #{residual_block.5} parent=5 // pred_region
      // Predicated region
      $region25: #{residual_block.5} parent=23 // pred_check
        %p155 = pneg %p30
      $region26: #{residual_block.5} parent=23 // pred_check_branch
        %157 = sbr.rel (%p155) target = $region28
      $region27: #{residual_block.5} parent=23 // pred_region
        %p158 = scmp.lt.s32.totalorder %s10, 1
        %s159 = scalar_select %p158, %s10, 1
        %s160 = smul.addr %s159, 32
        %s161 = smul.addr %s160, 8
        %s162 = scalar_lea.vmem %s0, %s161
      $region28: #{residual_block.5} parent=23 // pred_fallthru
        _
      // Predicated region
      $region29: #{residual_block.5} parent=23 // pred_check
        %p163 = pneg %p56
      $region30: #{residual_block.5} parent=23 // pred_check_branch
        %165 = sbr.rel (%p163) target = $region32
      $region31: #{residual_block.5} parent=23 // pred_region
        %p166 = scmp.lt.s32.totalorder %s10, 1
        %s167 = scalar_select %p166, %s10, 1
        %s168 = smul.addr %s167, 32
        %s169 = smul.addr %s168, 8
        %s170 = scalar_lea.vmem %s1, %s169
      $region32: #{residual_block.5} parent=23 // pred_fallthru
        _
    $region24: #{residual_block.5} parent=5 // pred_fallthru
      _
    %p171 = scmp.le.s32.totalorder 1, %s10
    %p172 = scmp.lt.s32.totalorder %s10, 3
    %p173 = pnand %p171, %p172
    %p174 = pneg %p173
    // Predicated region
    $region33: #{residual_block.5} parent=5 // pred_check
      _
    $region34: #{residual_block.5} parent=5 // pred_check_branch
      %176 = sbr.rel (%p173) target = $region36
    $region35: #{residual_block.5} parent=5 // pred_region
      %s177 = ssub.s32 %s10, 1
      %p178 = scmp.lt.s32.totalorder %s15, 1
      %s179 = scalar_select %p178, %s15, 1
      %s180 = smul.addr %s179, 32
      %s181 = smul.addr %s180, 8
      %s182 = scalar_lea.vmem %s0, %s181
      %p183 = pneg %p36
      %p184 = pneg %p33
      %p185 = scmp.lt.s32.totalorder %s15, 1
      %s186 = scalar_select %p185, %s15, 1
      %s187 = smul.addr %s186, 32
      %s188 = smul.addr %s187, 8
      %s189 = scalar_lea.vmem %s1, %s188
      %p190 = pneg %p62
      %p191 = pneg %p59
      %p192 = pneg %p83
      %p193 = pneg %p80
      %p194 = pneg %p104
      %p195 = pneg %p101
      %p196 = pneg %p130
      %p197 = pneg %p127
      %p198 = scmp.lt.s32.totalorder %s15, 1
      %s199 = scalar_select %p198, %s15, 1
      %s200 = smul.addr %s199, 32
      %s201 = smul.addr %s200, 8
      %s202 = scalar_lea.vmem %s4, %s201
      %p203 = scmp.lt.s32.totalorder %s15, 1
      %s204 = scalar_select %p203, %s15, 1
      %s205 = smul.addr %s204, 32
      %s206 = smul.addr %s205, 8
      %s207 = scalar_lea.vmem %s0, %s206
      %p208 = scmp.lt.s32.totalorder %s15, 1
      %s209 = scalar_select %p208, %s15, 1
      %s210 = smul.addr %s209, 32
      %s211 = smul.addr %s210, 8
      %s212 = scalar_lea.vmem %s1, %s211
      %p213 = scmp.lt.s32.totalorder %s15, 1
      %s214 = scalar_select %p213, %s15, 1
      %s215 = smul.addr %s214, 32
      %s216 = smul.addr %s215, 8
      %s217 = scalar_lea.vmem %s4, %s216
      %v218 = vld [vmem:[%s207] sm:$0xff]
      %v219 = vld [vmem:[%s207 + $0x8] sm:$0xff]
      %v220 = vld [vmem:[%s207 + $0x10] sm:$0xff]
      %v221 = vld [vmem:[%s207 + $0x18] sm:$0xff]
      %v222 = vld [vmem:[%s207 + $0x20] sm:$0xff]
      %v223 = vld [vmem:[%s207 + $0x28] sm:$0xff]
      %v224 = vld [vmem:[%s207 + $0x30] sm:$0xff]
      %v225 = vld [vmem:[%s207 + $0x38] sm:$0xff]
      %v226 = vld [vmem:[%s207 + $0x40] sm:$0xff]
      %v227 = vld [vmem:[%s207 + $0x48] sm:$0xff]
      %v228 = vld [vmem:[%s207 + $0x50] sm:$0xff]
      %v229 = vld [vmem:[%s207 + $0x58] sm:$0xff]
      %v230 = vld [vmem:[%s207 + $0x60] sm:$0xff]
      %v231 = vld [vmem:[%s207 + $0x68] sm:$0xff]
      %v232 = vld [vmem:[%s207 + $0x70] sm:$0xff]
      %v233 = vld [vmem:[%s207 + $0x78] sm:$0xff]
      %v234 = vld [vmem:[%s207 + $0x80] sm:$0xff]
      %v235 = vld [vmem:[%s207 + $0x88] sm:$0xff]
      %v236 = vld [vmem:[%s207 + $0x90] sm:$0xff]
      %v237 = vld [vmem:[%s207 + $0x98] sm:$0xff]
      %v238 = vld [vmem:[%s207 + $0xa0] sm:$0xff]
      %v239 = vld [vmem:[%s207 + $0xa8] sm:$0xff]
      %v240 = vld [vmem:[%s207 + $0xb0] sm:$0xff]
      %v241 = vld [vmem:[%s207 + $0xb8] sm:$0xff]
      %v242 = vld [vmem:[%s207 + $0xc0] sm:$0xff]
      %v243 = vld [vmem:[%s207 + $0xc8] sm:$0xff]
      %v244 = vld [vmem:[%s207 + $0xd0] sm:$0xff]
      %v245 = vld [vmem:[%s207 + $0xd8] sm:$0xff]
      %v246 = vld [vmem:[%s207 + $0xe0] sm:$0xff]
      %v247 = vld [vmem:[%s207 + $0xe8] sm:$0xff]
      %v248 = vld [vmem:[%s207 + $0xf0] sm:$0xff]
      %v249 = vld [vmem:[%s207 + $0xf8] sm:$0xff]
      %v250 = vld [vmem:[%s212] sm:$0xff]
      %v251 = vld [vmem:[%s212 + $0x8] sm:$0xff]
      %v252 = vld [vmem:[%s212 + $0x10] sm:$0xff]
      %v253 = vld [vmem:[%s212 + $0x18] sm:$0xff]
      %v254 = vld [vmem:[%s212 + $0x20] sm:$0xff]
      %v255 = vld [vmem:[%s212 + $0x28] sm:$0xff]
      %v256 = vld [vmem:[%s212 + $0x30] sm:$0xff]
      %v257 = vld [vmem:[%s212 + $0x38] sm:$0xff]
      %v258 = vld [vmem:[%s212 + $0x40] sm:$0xff]
      %v259 = vld [vmem:[%s212 + $0x48] sm:$0xff]
      %v260 = vld [vmem:[%s212 + $0x50] sm:$0xff]
      %v261 = vld [vmem:[%s212 + $0x58] sm:$0xff]
      %v262 = vld [vmem:[%s212 + $0x60] sm:$0xff]
      %v263 = vld [vmem:[%s212 + $0x68] sm:$0xff]
      %v264 = vld [vmem:[%s212 + $0x70] sm:$0xff]
      %v265 = vld [vmem:[%s212 + $0x78] sm:$0xff]
      %v266 = vld [vmem:[%s212 + $0x80] sm:$0xff]
      %v267 = vld [vmem:[%s212 + $0x88] sm:$0xff]
      %v268 = vld [vmem:[%s212 + $0x90] sm:$0xff]
      %v269 = vld [vmem:[%s212 + $0x98] sm:$0xff]
      %v270 = vld [vmem:[%s212 + $0xa0] sm:$0xff]
      %v271 = vld [vmem:[%s212 + $0xa8] sm:$0xff]
      %v272 = vld [vmem:[%s212 + $0xb0] sm:$0xff]
      %v273 = vld [vmem:[%s212 + $0xb8] sm:$0xff]
      %v274 = vld [vmem:[%s212 + $0xc0] sm:$0xff]
      %v275 = vld [vmem:[%s212 + $0xc8] sm:$0xff]
      %v276 = vld [vmem:[%s212 + $0xd0] sm:$0xff]
      %v277 = vld [vmem:[%s212 + $0xd8] sm:$0xff]
      %v278 = vld [vmem:[%s212 + $0xe0] sm:$0xff]
      %v279 = vld [vmem:[%s212 + $0xe8] sm:$0xff]
      %v280 = vld [vmem:[%s212 + $0xf0] sm:$0xff]
      %v281 = vld [vmem:[%s212 + $0xf8] sm:$0xff]
      %v282 = vld [vmem:[%s2] sm:$0x1]
      %v284 = vlaneseq
      %v285 = vshrl.u32 %v284, 7
      %v286 = vsub.s32 0, %v285
      %v287 = vrot.slane %v282, %v286
      %v289 = vmul.f32 %v218, %v287
      %v290 = vmul.f32 %v219, %v287
      %v291 = vmul.f32 %v220, %v287
      %v292 = vmul.f32 %v221, %v287
      %v293 = vmul.f32 %v222, %v287
      %v294 = vmul.f32 %v223, %v287
      %v295 = vmul.f32 %v224, %v287
      %v296 = vmul.f32 %v225, %v287
      %v297 = vmul.f32 %v226, %v287
      %v298 = vmul.f32 %v227, %v287
      %v299 = vmul.f32 %v228, %v287
      %v300 = vmul.f32 %v229, %v287
      %v301 = vmul.f32 %v230, %v287
      %v302 = vmul.f32 %v231, %v287
      %v303 = vmul.f32 %v232, %v287
      %v304 = vmul.f32 %v233, %v287
      %v305 = vmul.f32 %v234, %v287
      %v306 = vmul.f32 %v235, %v287
      %v307 = vmul.f32 %v236, %v287
      %v308 = vmul.f32 %v237, %v287
      %v309 = vmul.f32 %v238, %v287
      %v310 = vmul.f32 %v239, %v287
      %v311 = vmul.f32 %v240, %v287
      %v312 = vmul.f32 %v241, %v287
      %v313 = vmul.f32 %v242, %v287
      %v314 = vmul.f32 %v243, %v287
      %v315 = vmul.f32 %v244, %v287
      %v316 = vmul.f32 %v245, %v287
      %v317 = vmul.f32 %v246, %v287
      %v318 = vmul.f32 %v247, %v287
      %v319 = vmul.f32 %v248, %v287
      %v320 = vmul.f32 %v249, %v287
      %v321 = vld [vmem:[%s3] sm:$0x1]
      %v323 = vlaneseq
      %v324 = vshrl.u32 %v323, 7
      %v325 = vsub.s32 0, %v324
      %v326 = vrot.slane %v321, %v325
      %v328 = vadd.f32 %v289, %v326
      %v329 = vadd.f32 %v290, %v326
      %v330 = vadd.f32 %v291, %v326
      %v331 = vadd.f32 %v292, %v326
      %v332 = vadd.f32 %v293, %v326
      %v333 = vadd.f32 %v294, %v326
      %v334 = vadd.f32 %v295, %v326
      %v335 = vadd.f32 %v296, %v326
      %v336 = vadd.f32 %v297, %v326
      %v337 = vadd.f32 %v298, %v326
      %v338 = vadd.f32 %v299, %v326
      %v339 = vadd.f32 %v300, %v326
      %v340 = vadd.f32 %v301, %v326
      %v341 = vadd.f32 %v302, %v326
      %v342 = vadd.f32 %v303, %v326
      %v343 = vadd.f32 %v304, %v326
      %v344 = vadd.f32 %v305, %v326
      %v345 = vadd.f32 %v306, %v326
      %v346 = vadd.f32 %v307, %v326
      %v347 = vadd.f32 %v308, %v326
      %v348 = vadd.f32 %v309, %v326
      %v349 = vadd.f32 %v310, %v326
      %v350 = vadd.f32 %v311, %v326
      %v351 = vadd.f32 %v312, %v326
      %v352 = vadd.f32 %v313, %v326
      %v353 = vadd.f32 %v314, %v326
      %v354 = vadd.f32 %v315, %v326
      %v355 = vadd.f32 %v316, %v326
      %v356 = vadd.f32 %v317, %v326
      %v357 = vadd.f32 %v318, %v326
      %v358 = vadd.f32 %v319, %v326
      %v359 = vadd.f32 %v320, %v326
      %v360 = vadd.f32 %v328, %v250
      %v361 = vadd.f32 %v329, %v251
      %v362 = vadd.f32 %v330, %v252
      %v363 = vadd.f32 %v331, %v253
      %v364 = vadd.f32 %v332, %v254
      %v365 = vadd.f32 %v333, %v255
      %v366 = vadd.f32 %v334, %v256
      %v367 = vadd.f32 %v335, %v257
      %v368 = vadd.f32 %v336, %v258
      %v369 = vadd.f32 %v337, %v259
      %v370 = vadd.f32 %v338, %v260
      %v371 = vadd.f32 %v339, %v261
      %v372 = vadd.f32 %v340, %v262
      %v373 = vadd.f32 %v341, %v263
      %v374 = vadd.f32 %v342, %v264
      %v375 = vadd.f32 %v343, %v265
      %v376 = vadd.f32 %v344, %v266
      %v377 = vadd.f32 %v345, %v267
      %v378 = vadd.f32 %v346, %v268
      %v379 = vadd.f32 %v347, %v269
      %v380 = vadd.f32 %v348, %v270
      %v381 = vadd.f32 %v349, %v271
      %v382 = vadd.f32 %v350, %v272
      %v383 = vadd.f32 %v351, %v273
      %v384 = vadd.f32 %v352, %v274
      %v385 = vadd.f32 %v353, %v275
      %v386 = vadd.f32 %v354, %v276
      %v387 = vadd.f32 %v355, %v277
      %v388 = vadd.f32 %v356, %v278
      %v389 = vadd.f32 %v357, %v279
      %v390 = vadd.f32 %v358, %v280
      %v391 = vadd.f32 %v359, %v281
      %v392 = vmax.f32 %v360, 0.0
      %v393 = vmax.f32 %v361, 0.0
      %v394 = vmax.f32 %v362, 0.0
      %v395 = vmax.f32 %v363, 0.0
      %v396 = vmax.f32 %v364, 0.0
      %v397 = vmax.f32 %v365, 0.0
      %v398 = vmax.f32 %v366, 0.0
      %v399 = vmax.f32 %v367, 0.0
      %v400 = vmax.f32 %v368, 0.0
      %v401 = vmax.f32 %v369, 0.0
      %v402 = vmax.f32 %v370, 0.0
      %v403 = vmax.f32 %v371, 0.0
      %v404 = vmax.f32 %v372, 0.0
      %v405 = vmax.f32 %v373, 0.0
      %v406 = vmax.f32 %v374, 0.0
      %v407 = vmax.f32 %v375, 0.0
      %v408 = vmax.f32 %v376, 0.0
      %v409 = vmax.f32 %v377, 0.0
      %v410 = vmax.f32 %v378, 0.0
      %v411 = vmax.f32 %v379, 0.0
      %v412 = vmax.f32 %v380, 0.0
      %v413 = vmax.f32 %v381, 0.0
      %v414 = vmax.f32 %v382, 0.0
      %v415 = vmax.f32 %v383, 0.0
      %v416 = vmax.f32 %v384, 0.0
      %v417 = vmax.f32 %v385, 0.0
      %v418 = vmax.f32 %v386, 0.0
      %v419 = vmax.f32 %v387, 0.0
      %v420 = vmax.f32 %v388, 0.0
      %v421 = vmax.f32 %v389, 0.0
      %v422 = vmax.f32 %v390, 0.0
      %v423 = vmax.f32 %v391, 0.0
      %424 = vst [vmem:[%s217] sm:$0xff] %v392
      %425 = vst [vmem:[%s217 + $0x8] sm:$0xff] %v393
      %426 = vst [vmem:[%s217 + $0x10] sm:$0xff] %v394
      %427 = vst [vmem:[%s217 + $0x18] sm:$0xff] %v395
      %428 = vst [vmem:[%s217 + $0x20] sm:$0xff] %v396
      %429 = vst [vmem:[%s217 + $0x28] sm:$0xff] %v397
      %430 = vst [vmem:[%s217 + $0x30] sm:$0xff] %v398
      %431 = vst [vmem:[%s217 + $0x38] sm:$0xff] %v399
      %432 = vst [vmem:[%s217 + $0x40] sm:$0xff] %v400
      %433 = vst [vmem:[%s217 + $0x48] sm:$0xff] %v401
      %434 = vst [vmem:[%s217 + $0x50] sm:$0xff] %v402
      %435 = vst [vmem:[%s217 + $0x58] sm:$0xff] %v403
      %436 = vst [vmem:[%s217 + $0x60] sm:$0xff] %v404
      %437 = vst [vmem:[%s217 + $0x68] sm:$0xff] %v405
      %438 = vst [vmem:[%s217 + $0x70] sm:$0xff] %v406
      %439 = vst [vmem:[%s217 + $0x78] sm:$0xff] %v407
      %440 = vst [vmem:[%s217 + $0x80] sm:$0xff] %v408
      %441 = vst [vmem:[%s217 + $0x88] sm:$0xff] %v409
      %442 = vst [vmem:[%s217 + $0x90] sm:$0xff] %v410
      %443 = vst [vmem:[%s217 + $0x98] sm:$0xff] %v411
      %444 = vst [vmem:[%s217 + $0xa0] sm:$0xff] %v412
      %445 = vst [vmem:[%s217 + $0xa8] sm:$0xff] %v413
      %446 = vst [vmem:[%s217 + $0xb0] sm:$0xff] %v414
      %447 = vst [vmem:[%s217 + $0xb8] sm:$0xff] %v415
      %448 = vst [vmem:[%s217 + $0xc0] sm:$0xff] %v416
      %449 = vst [vmem:[%s217 + $0xc8] sm:$0xff] %v417
      %450 = vst [vmem:[%s217 + $0xd0] sm:$0xff] %v418
      %451 = vst [vmem:[%s217 + $0xd8] sm:$0xff] %v419
      %452 = vst [vmem:[%s217 + $0xe0] sm:$0xff] %v420
      %453 = vst [vmem:[%s217 + $0xe8] sm:$0xff] %v421
      %454 = vst [vmem:[%s217 + $0xf0] sm:$0xff] %v422
      %455 = vst [vmem:[%s217 + $0xf8] sm:$0xff] %v423
      %p456 = scmp.lt.s32.totalorder %s15, 1
      %s457 = scalar_select %p456, %s15, 1
      %s458 = smul.addr %s457, 32
      %s459 = smul.addr %s458, 8
      %s460 = scalar_lea.vmem %s4, %s459
      // Predicated region
      $region37: #{residual_block.5} parent=35 // pred_check
        %p461 = pneg %p127
      $region38: #{residual_block.5} parent=35 // pred_check_branch
        %463 = sbr.rel (%p461) target = $region40
      $region39: #{residual_block.5} parent=35 // pred_region
        _
      $region40: #{residual_block.5} parent=35 // pred_fallthru
        _
    $region36: #{residual_block.5} parent=5 // pred_fallthru
      _
    %p464 = scmp.le.s32.totalorder 2, %s10
    // Predicated region
    $region41: #{residual_block.5} parent=5 // pred_check
      %p465 = pneg %p464
    $region42: #{residual_block.5} parent=5 // pred_check_branch
      %467 = sbr.rel (%p465) target = $region44
    $region43: #{residual_block.5} parent=5 // pred_region
      %s468 = ssub.s32 %s10, 2
      // Predicated region
      $region45: #{residual_block.5} parent=43 // pred_check
        %p469 = pneg %p133
      $region46: #{residual_block.5} parent=43 // pred_check_branch
        %471 = sbr.rel (%p469) target = $region48
      $region47: #{residual_block.5} parent=43 // pred_region
        %p472 = scmp.lt.s32.totalorder %s16, 1
        %s473 = scalar_select %p472, %s16, 1
        %s474 = smul.addr %s473, 32
        %s475 = smul.addr %s474, 8
        %s476 = scalar_lea.vmem %s4, %s475
      $region48: #{residual_block.5} parent=43 // pred_fallthru
        _
    $region44: #{residual_block.5} parent=5 // pred_fallthru
      _
  $region6: #{residual_block.5} parent=0 // loop_footer
    %s14 = sadd.s32 1, %s10
  $region7: #{residual_block.5} parent=0 // loop_footer_branch
    %9 = sbr.rel target = $region3
  $region8: #{residual_block.5} parent=0 // loop_exit
    _

// kernel: residual_block.3
$region0: #{residual_block.3}
  #allocation0 [shape = 'u32[]', space=smem, size = 0x4, offset = 0x4, fixed_abs, tag = 'smem constant byte address 0x4 - core index']
  #allocation1 [shape = 'u32[144,128]{1,0:T(1,128)}', space=vmem, size = 0x12000, scoped, tag = 'internal scratch']
  #allocation2 [shape = 'f32[18,18,128]{2,1,0:T(8,128)}', space=vmem, size = 0x36000, scoped, tag = 'scratch operand']
  #allocation3 [shape = 'f32[256,1152]{1,0:T(8,128)}', space=vmem, size = 0x120000, scoped, tag = 'scratch operand']
  %s0 = inlined_call_operand.vmem [shape: f32[2,16,16,128], index: 0, kind: input, shape index: {}]
  %s1 = inlined_call_operand.vmem [shape: f32[1152,128], index: 1, kind: input, shape index: {}]
  %s2 = inlined_call_operand.vmem [shape: f32[1,128], index: 2, kind: input, shape index: {}]
  %s3 = inlined_call_operand.vmem [shape: f32[1,128], index: 3, kind: input, shape index: {}]
  %s4 = inlined_call_operand.vmem [shape: f32[2,16,16,128], index: 4, kind: output, shape index: {0}]
  %s5 = inlined_call_operand.vmem [shape: f32[2,2,128], index: 5, kind: output, shape index: {1}]
  %6 = xla_tuple %s4, %s5
  %s7 = sld [smem:[#allocation0]]
  $region57: #{residual_block.3} parent=0
    _
  %s9 = ssub.s32 1, %s7
  %s10 = scalar_select 0, %s9, %s7
  loop: start=0, step=1, limit=4
  $region2: #{residual_block.3} parent=0 // loop_pre_header
    _
  $region3: #{residual_block.3} parent=0 // loop_header
    %s12 = sphi 0, %s16
    %p13 = scmp.ge.s32.totalorder %s12, 4
    %s22 = sphi 0, %s24
    %s25 = sphi 0, %s22
    %s26 = sphi 0, %s25
    %s42 = sphi 0, %s26
    %s46 = sphi 0, %s46
    %s48 = sphi 0, %s46
    %s49 = sphi 0, %s48
    %s63 = sphi 0, %s49
    %s67 = sphi 0, %s67
    %s69 = sphi 0, %s67
    %s70 = sphi 0, %s69
    %s84 = sphi 0, %s70
    %s88 = sphi 0, %s88
    %s90 = sphi 0, %s88
    %s91 = sphi 0, %s90
    %s105 = sphi 0, %s91
    %s111 = sphi 0, %s113
    %s114 = sphi 0, %s111
    %s115 = sphi 0, %s114
    %s131 = sphi 0, %s115
    %s137 = sphi 0, %s139
    %s140 = sphi 0, %s137
    %s141 = sphi 0, %s140
    %s157 = sphi 0, %s141
  $region4: #{residual_block.3} parent=0 // loop_header_branch
    %15 = sbr.rel (%p13) target = $region8
  $region5: #{residual_block.3} parent=0 // loop_body
    %s17 = ssub.s32 %s12, 1
    %s18 = ssub.s32 %s12, 2
    %s19 = sadd.s32 %s12, 1
    %s20 = ssub.s32 %s12, %s19
    %p21 = scmp.eq.s32.totalorder %s20, 0
    %s23 = sadd.s32 %s22, 1
    %s24 = scalar_select %p21, %s22, %s23
    %p27 = pneg %p21
    %p28 = scmp.eq.s32.totalorder %s12, 1
    %p29 = por %p27, %p28
    %p30 = scmp.ne.s32.totalorder %s22, %s25
    %p31 = scmp.eq.s32.totalorder %s12, 0
    %p32 = por %p30, %p31
    %p33 = scmp.ne.s32.totalorder %s22, %s25
    %p34 = scmp.eq.s32.totalorder %s17, 1
    %p35 = por %p33, %p34
    %p36 = scmp.ne.s32.totalorder %s25, %s26
    %p37 = scmp.eq.s32.totalorder %s17, 0
    %p38 = por %p36, %p37
    %p39 = scmp.ne.s32.totalorder %s25, %s26
    %p40 = scmp.eq.s32.totalorder %s18, 1
    %p41 = por %p39, %p40
    %p43 = scmp.ne.s32.totalorder %s26, %s42
    %p44 = scmp.eq.s32.totalorder %s18, 0
    %p45 = por %p43, %p44
    %s47 = sadd.s32 %s46, 1
    %p50 = scmp.eq.s32.totalorder %s12, 1
    %p51 = scmp.ne.s32.totalorder %s46, %s48
    %p52 = scmp.eq.s32.totalorder %s12, 0
    %p53 = por %p51, %p52
    %p54 = scmp.ne.s32.totalorder %s46, %s48
    %p55 = scmp.eq.s32.totalorder %s17, 1
    %p56 = por %p54, %p55
    %p57 = scmp.ne.s32.totalorder %s48, %s49
    %p58 = scmp.eq.s32.totalorder %s17, 0
    %p59 = por %p57, %p58
    %p60 = scmp.ne.s32.totalorder %s48, %s49
    %p61 = scmp.eq.s32.totalorder %s18, 1
    %p62 = por %p60, %p61
    %p64 = scmp.ne.s32.totalorder %s49, %s63
    %p65 = scmp.eq.s32.totalorder %s18, 0
    %p66 = por %p64, %p65
    %s68 = sadd.s32 %s67, 1
    %p71 = scmp.eq.s32.totalorder %s12, 1
    %p72 = scmp.ne.s32.totalorder %s67, %s69
    %p73 = scmp.eq.s32.totalorder %s12, 0
    %p74 = por %p72, %p73
    %p75 = scmp.ne.s32.totalorder %s67, %s69
    %p76 = scmp.eq.s32.totalorder %s17, 1
    %p77 = por %p75, %p76
    %p78 = scmp.ne.s32.totalorder %s69, %s70
    %p79 = scmp.eq.s32.totalorder %s17, 0
    %p80 = por %p78, %p79
    %p81 = scmp.ne.s32.totalorder %s69, %s70
    %p82 = scmp.eq.s32.totalorder %s18, 1
    %p83 = por %p81, %p82
    %p85 = scmp.ne.s32.totalorder %s70, %s84
    %p86 = scmp.eq.s32.totalorder %s18, 0
    %p87 = por %p85, %p86
    %s89 = sadd.s32 %s88, 1
    %p92 = scmp.eq.s32.totalorder %s12, 1
    %p93 = scmp.ne.s32.totalorder %s88, %s90
    %p94 = scmp.eq.s32.totalorder %s12, 0
    %p95 = por %p93, %p94
    %p96 = scmp.ne.s32.totalorder %s88, %s90
    %p97 = scmp.eq.s32.totalorder %s17, 1
    %p98 = por %p96, %p97
    %p99 = scmp.ne.s32.totalorder %s90, %s91
    %p100 = scmp.eq.s32.totalorder %s17, 0
    %p101 = por %p99, %p100
    %p102 = scmp.ne.s32.totalorder %s90, %s91
    %p103 = scmp.eq.s32.totalorder %s18, 1
    %p104 = por %p102, %p103
    %p106 = scmp.ne.s32.totalorder %s91, %s105
    %p107 = scmp.eq.s32.totalorder %s18, 0
    %p108 = por %p106, %p107
    %s109 = ssub.s32 %s12, %s19
    %p110 = scmp.eq.s32.totalorder %s109, 0
    %s112 = sadd.s32 %s111, 1
    %s113 = scalar_select %p110, %s111, %s112
    %p116 = pneg %p110
    %p117 = scmp.eq.s32.totalorder %s12, 1
    %p118 = por %p116, %p117
    %p119 = scmp.ne.s32.totalorder %s111, %s114
    %p120 = scmp.eq.s32.totalorder %s12, 0
    %p121 = por %p119, %p120
    %p122 = scmp.ne.s32.totalorder %s111, %s114
    %p123 = scmp.eq.s32.totalorder %s17, 1
    %p124 = por %p122, %p123
    %p125 = scmp.ne.s32.totalorder %s114, %s115
    %p126 = scmp.eq.s32.totalorder %s17, 0
    %p127 = por %p125, %p126
    %p128 = scmp.ne.s32.totalorder %s114, %s115
    %p129 = scmp.eq.s32.totalorder %s18, 1
    %p130 = por %p128, %p129
    %p132 = scmp.ne.s32.totalorder %s115, %s131
    %p133 = scmp.eq.s32.totalorder %s18, 0
    %p134 = por %p132, %p133
    %s135 = ssub.s32 %s12, %s19
    %p136 = scmp.eq.s32.totalorder %s135, 0
    %s138 = sadd.s32 %s137, 1
    %s139 = scalar_select %p136, %s137, %s138
    %p142 = pneg %p136
    %p143 = scmp.eq.s32.totalorder %s12, 1
    %p144 = por %p142, %p143
    %p145 = scmp.ne.s32.totalorder %s137, %s140
    %p146 = scmp.eq.s32.totalorder %s12, 0
    %p147 = por %p145, %p146
    %p148 = scmp.ne.s32.totalorder %s137, %s140
    %p149 = scmp.eq.s32.totalorder %s17, 1
    %p150 = por %p148, %p149
    %p151 = scmp.ne.s32.totalorder %s140, %s141
    %p152 = scmp.eq.s32.totalorder %s17, 0
    %p153 = por %p151, %p152
    %p154 = scmp.ne.s32.totalorder %s140, %s141
    %p155 = scmp.eq.s32.totalorder %s18, 1
    %p156 = por %p154, %p155
    %p158 = scmp.ne.s32.totalorder %s141, %s157
    %p159 = scmp.eq.s32.totalorder %s18, 0
    %p160 = por %p158, %p159
    %p161 = scmp.le.s32.totalorder 1, %s12
    %p162 = scmp.lt.s32.totalorder %s12, 3
    %p163 = pnand %p161, %p162
    %p164 = pneg %p163
    // Predicated region
    $region9: #{residual_block.3} parent=5 // pred_check
      _
    $region10: #{residual_block.3} parent=5 // pred_check_branch
      %166 = sbr.rel (%p163) target = $region12
    $region11: #{residual_block.3} parent=5 // pred_region
      %s167 = ssub.s32 %s12, 1
      // Predicated region
      $region13: #{residual_block.3} parent=11 // pred_check
        %p168 = pneg %p59
      $region14: #{residual_block.3} parent=11 // pred_check_branch
        %170 = sbr.rel (%p168) target = $region16
      $region15: #{residual_block.3} parent=11 // pred_region
        _
      $region16: #{residual_block.3} parent=11 // pred_fallthru
        _
      // Predicated region
      $region17: #{residual_block.3} parent=11 // pred_check
        %p171 = pneg %p80
      $region18: #{residual_block.3} parent=11 // pred_check_branch
        %173 = sbr.rel (%p171) target = $region20
      $region19: #{residual_block.3} parent=11 // pred_region
        _
      $region20: #{residual_block.3} parent=11 // pred_fallthru
        _
      // Predicated region
      $region21: #{residual_block.3} parent=11 // pred_check
        %p174 = pneg %p101
      $region22: #{residual_block.3} parent=11 // pred_check_branch
        %176 = sbr.rel (%p174) target = $region24
      $region23: #{residual_block.3} parent=11 // pred_region
        _
      $region24: #{residual_block.3} parent=11 // pred_fallthru
        _
    $region12: #{residual_block.3} parent=5 // pred_fallthru
      _
    %p177 = scmp.lt.s32.totalorder %s12, 2
    // Predicated region
    $region25: #{residual_block.3} parent=5 // pred_check
      %p178 = pneg %p177
    $region26: #{residual_block.3} parent=5 // pred_check_branch
      %180 = sbr.rel (%p178) target = $region28
    $region27: #{residual_block.3} parent=5 // pred_region
      // Predicated region
      $region29: #{residual_block.3} parent=27 // pred_check
        %p181 = pneg %p32
      $region30: #{residual_block.3} parent=27 // pred_check_branch
        %183 = sbr.rel (%p181) target = $region32
      $region31: #{residual_block.3} parent=27 // pred_region
        %p184 = scmp.lt.s32.totalorder %s12, 1
        %s185 = scalar_select %p184, %s12, 1
        %s186 = smul.addr %s185, 32
        %s187 = smul.addr %s186, 8
        %s188 = scalar_lea.vmem %s0, %s187
      $region32: #{residual_block.3} parent=27 // pred_fallthru
        _
    $region28: #{residual_block.3} parent=5 // pred_fallthru
      _
    %p189 = scmp.le.s32.totalorder 1, %s12
    %p190 = scmp.lt.s32.totalorder %s12, 3
    %p191 = pnand %p189, %p190
    %p192 = pneg %p191
    // Predicated region
    $region33: #{residual_block.3} parent=5 // pred_check
      _
    $region34: #{residual_block.3} parent=5 // pred_check_branch
      %194 = sbr.rel (%p191) target = $region36
    $region35: #{residual_block.3} parent=5 // pred_region
      %s195 = ssub.s32 %s12, 1
      %p196 = scmp.lt.s32.totalorder %s17, 1
      %s197 = scalar_select %p196, %s17, 1
      %s198 = smul.addr %s197, 32
      %s199 = smul.addr %s198, 8
      %s200 = scalar_lea.vmem %s0, %s199
      %p201 = pneg %p38
      %p202 = pneg %p35
      %p203 = pneg %p59
      %p204 = pneg %p56
      %p205 = pneg %p80
      %p206 = pneg %p77
      %p207 = pneg %p101
      %p208 = pneg %p98
      %p209 = pneg %p127
      %p210 = pneg %p124
      %p211 = scmp.lt.s32.totalorder %s17, 1
      %s212 = scalar_select %p211, %s17, 1
      %s213 = smul.addr %s212, 32
      %s214 = smul.addr %s213, 8
      %s215 = scalar_lea.vmem %s4, %s214
      %p216 = pneg %p153
      %p217 = pneg %p150
      %p218 = scmp.lt.s32.totalorder %s17, 1
      %s219 = scalar_select %p218, %s17, 1
      %s220 = smul.addr %s219, 2
      %s221 = scalar_lea.vmem %s5, %s220
      %p222 = scmp.lt.s32.totalorder %s17, 1
      %s223 = scalar_select %p222, %s17, 1
      %s224 = smul.addr %s223, 32
      %s225 = smul.addr %s224, 8
      %s226 = scalar_lea.vmem %s0, %s225
      %p227 = scmp.lt.s32.totalorder %s17, 1
      %s228 = scalar_select %p227, %s17, 1
      %s229 = smul.addr %s228, 32
      %s230 = smul.addr %s229, 8
      %s231 = scalar_lea.vmem %s4, %s230
      %p232 = scmp.lt.s32.totalorder %s17, 1
      %s233 = scalar_select %p232, %s17, 1
      %s234 = smul.addr %s233, 2
      %s235 = scalar_lea.vmem %s5, %s234
      %v236 = vld [vmem:[%s226] sm:$0xff]
      %v237 = vld [vmem:[%s226 + $0x8] sm:$0xff]
      %v238 = vld [vmem:[%s226 + $0x10] sm:$0xff]
      %v239 = vld [vmem:[%s226 + $0x18] sm:$0xff]
      %v240 = vld [vmem:[%s226 + $0x20] sm:$0xff]
      %v241 = vld [vmem:[%s226 + $0x28] sm:$0xff]
      %v242 = vld [vmem:[%s226 + $0x30] sm:$0xff]
      %v243 = vld [vmem:[%s226 + $0x38] sm:$0xff]
      %v244 = vld [vmem:[%s226 + $0x40] sm:$0xff]
      %v245 = vld [vmem:[%s226 + $0x48] sm:$0xff]
      %v246 = vld [vmem:[%s226 + $0x50] sm:$0xff]
      %v247 = vld [vmem:[%s226 + $0x58] sm:$0xff]
      %v248 = vld [vmem:[%s226 + $0x60] sm:$0xff]
      %v249 = vld [vmem:[%s226 + $0x68] sm:$0xff]
      %v250 = vld [vmem:[%s226 + $0x70] sm:$0xff]
      %v251 = vld [vmem:[%s226 + $0x78] sm:$0xff]
      %v252 = vld [vmem:[%s226 + $0x80] sm:$0xff]
      %v253 = vld [vmem:[%s226 + $0x88] sm:$0xff]
      %v254 = vld [vmem:[%s226 + $0x90] sm:$0xff]
      %v255 = vld [vmem:[%s226 + $0x98] sm:$0xff]
      %v256 = vld [vmem:[%s226 + $0xa0] sm:$0xff]
      %v257 = vld [vmem:[%s226 + $0xa8] sm:$0xff]
      %v258 = vld [vmem:[%s226 + $0xb0] sm:$0xff]
      %v259 = vld [vmem:[%s226 + $0xb8] sm:$0xff]
      %v260 = vld [vmem:[%s226 + $0xc0] sm:$0xff]
      %v261 = vld [vmem:[%s226 + $0xc8] sm:$0xff]
      %v262 = vld [vmem:[%s226 + $0xd0] sm:$0xff]
      %v263 = vld [vmem:[%s226 + $0xd8] sm:$0xff]
      %v264 = vld [vmem:[%s226 + $0xe0] sm:$0xff]
      %v265 = vld [vmem:[%s226 + $0xe8] sm:$0xff]
      %v266 = vld [vmem:[%s226 + $0xf0] sm:$0xff]
      %v267 = vld [vmem:[%s226 + $0xf8] sm:$0xff]
      %v268 = vld [vmem:[%s2] sm:$0x1]
      %v270 = vlaneseq
      %v271 = vshrl.u32 %v270, 7
      %v272 = vsub.s32 0, %v271
      %v273 = vrot.slane %v268, %v272
      %v275 = vmul.f32 %v236, %v273
      %v276 = vmul.f32 %v237, %v273
      %v277 = vmul.f32 %v238, %v273
      %v278 = vmul.f32 %v239, %v273
      %v279 = vmul.f32 %v240, %v273
      %v280 = vmul.f32 %v241, %v273
      %v281 = vmul.f32 %v242, %v273
      %v282 = vmul.f32 %v243, %v273
      %v283 = vmul.f32 %v244, %v273
      %v284 = vmul.f32 %v245, %v273
      %v285 = vmul.f32 %v246, %v273
      %v286 = vmul.f32 %v247, %v273
      %v287 = vmul.f32 %v248, %v273
      %v288 = vmul.f32 %v249, %v273
      %v289 = vmul.f32 %v250, %v273
      %v290 = vmul.f32 %v251, %v273
      %v291 = vmul.f32 %v252, %v273
      %v292 = vmul.f32 %v253, %v273
      %v293 = vmul.f32 %v254, %v273
      %v294 = vmul.f32 %v255, %v273
      %v295 = vmul.f32 %v256, %v273
      %v296 = vmul.f32 %v257, %v273
      %v297 = vmul.f32 %v258, %v273
      %v298 = vmul.f32 %v259, %v273
      %v299 = vmul.f32 %v260, %v273
      %v300 = vmul.f32 %v261, %v273
      %v301 = vmul.f32 %v262, %v273
      %v302 = vmul.f32 %v263, %v273
      %v303 = vmul.f32 %v264, %v273
      %v304 = vmul.f32 %v265, %v273
      %v305 = vmul.f32 %v266, %v273
      %v306 = vmul.f32 %v267, %v273
      %v307 = vld [vmem:[%s3] sm:$0x1]
      %v309 = vlaneseq
      %v310 = vshrl.u32 %v309, 7
      %v311 = vsub.s32 0, %v310
      %v312 = vrot.slane %v307, %v311
      %v314 = vadd.f32 %v275, %v312
      %v315 = vadd.f32 %v276, %v312
      %v316 = vadd.f32 %v277, %v312
      %v317 = vadd.f32 %v278, %v312
      %v318 = vadd.f32 %v279, %v312
      %v319 = vadd.f32 %v280, %v312
      %v320 = vadd.f32 %v281, %v312
      %v321 = vadd.f32 %v282, %v312
      %v322 = vadd.f32 %v283, %v312
      %v323 = vadd.f32 %v284, %v312
      %v324 = vadd.f32 %v285, %v312
      %v325 = vadd.f32 %v286, %v312
      %v326 = vadd.f32 %v287, %v312
      %v327 = vadd.f32 %v288, %v312
      %v328 = vadd.f32 %v289, %v312
      %v329 = vadd.f32 %v290, %v312
      %v330 = vadd.f32 %v291, %v312
      %v331 = vadd.f32 %v292, %v312
      %v332 = vadd.f32 %v293, %v312
      %v333 = vadd.f32 %v294, %v312
      %v334 = vadd.f32 %v295, %v312
      %v335 = vadd.f32 %v296, %v312
      %v336 = vadd.f32 %v297, %v312
      %v337 = vadd.f32 %v298, %v312
      %v338 = vadd.f32 %v299, %v312
      %v339 = vadd.f32 %v300, %v312
      %v340 = vadd.f32 %v301, %v312
      %v341 = vadd.f32 %v302, %v312
      %v342 = vadd.f32 %v303, %v312
      %v343 = vadd.f32 %v304, %v312
      %v344 = vadd.f32 %v305, %v312
      %v345 = vadd.f32 %v306, %v312
      %346 = vst [vmem:[#allocation2] sm:$0xff] 0.0
      %347 = vst [vmem:[#allocation2 + $0x8] sm:$0xff] 0.0
      %348 = vst [vmem:[#allocation2 + $0x10] sm:$0x3] 0.0
      %s349 = scalar_lea.vmem [#allocation2], 408
      %350 = vst [vmem:[%s349] sm:$0xff] 0.0
      %351 = vst [vmem:[%s349 + $0x8] sm:$0xff] 0.0
      %352 = vst [vmem:[%s349 + $0x10] sm:$0x3] 0.0
      %s353 = scalar_lea.vmem [#allocation2], 24
      %354 = vst [vmem:[%s353] sm:$0x1] 0.0
      %355 = vst [vmem:[%s353 + $0x18] sm:$0x1] 0.0
      %356 = vst [vmem:[%s353 + $0x30] sm:$0x1] 0.0
      %357 = vst [vmem:[%s353 + $0x48] sm:$0x1] 0.0
      %358 = vst [vmem:[%s353 + $0x60] sm:$0x1] 0.0
      %359 = vst [vmem:[%s353 + $0x78] sm:$0x1] 0.0
      %360 = vst [vmem:[%s353 + $0x90] sm:$0x1] 0.0
      %361 = vst [vmem:[%s353 + $0xa8] sm:$0x1] 0.0
      %362 = vst [vmem:[%s353 + $0xc0] sm:$0x1] 0.0
      %363 = vst [vmem:[%s353 + $0xd8] sm:$0x1] 0.0
      %364 = vst [vmem:[%s353 + $0xf0] sm:$0x1] 0.0
      %365 = vst [vmem:[%s353 + $0x108] sm:$0x1] 0.0
      %366 = vst [vmem:[%s353 + $0x120] sm:$0x1] 0.0
      %367 = vst [vmem:[%s353 + $0x138] sm:$0x1] 0.0
      %368 = vst [vmem:[%s353 + $0x150] sm:$0x1] 0.0
      %369 = vst [vmem:[%s353 + $0x168] sm:$0x1] 0.0
      %370 = vst [vmem:[%s353 + $0x11] sm:$0x1] 0.0
      %371 = vst [vmem:[%s353 + $0x29] sm:$0x1] 0.0
      %372 = vst [vmem:[%s353 + $0x41] sm:$0x1] 0.0
      %373 = vst [vmem:[%s353 + $0x59] sm:$0x1] 0.0
      %374 = vst [vmem:[%s353 + $0x71] sm:$0x1] 0.0
      %375 = vst [vmem:[%s353 + $0x89] sm:$0x1] 0.0
      %376 = vst [vmem:[%s353 + $0xa1] sm:$0x1] 0.0
      %377 = vst [vmem:[%s353 + $0xb9] sm:$0x1] 0.0
      %378 = vst [vmem:[%s353 + $0xd1] sm:$0x1] 0.0
      %379 = vst [vmem:[%s353 + $0xe9] sm:$0x1] 0.0
      %380 = vst [vmem:[%s353 + $0x101] sm:$0x1] 0.0
      %381 = vst [vmem:[%s353 + $0x119] sm:$0x1] 0.0
      %382 = vst [vmem:[%s353 + $0x131] sm:$0x1] 0.0
      %383 = vst [vmem:[%s353 + $0x149] sm:$0x1] 0.0
      %384 = vst [vmem:[%s353 + $0x161] sm:$0x1] 0.0
      %385 = vst [vmem:[%s353 + $0x179] sm:$0x1] 0.0
      %386 = vst [vmem:[%s353 + $0x1] sm:$0xff] %v314
      %387 = vst [vmem:[%s353 + $0x9] sm:$0xff] %v315
      %388 = vst [vmem:[%s353 + $0x19] sm:$0xff] %v316
      %389 = vst [vmem:[%s353 + $0x21] sm:$0xff] %v317
      %390 = vst [vmem:[%s353 + $0x31] sm:$0xff] %v318
      %391 = vst [vmem:[%s353 + $0x39] sm:$0xff] %v319
      %392 = vst [vmem:[%s353 + $0x49] sm:$0xff] %v320
      %393 = vst [vmem:[%s353 + $0x51] sm:$0xff] %v321
      %394 = vst [vmem:[%s353 + $0x61] sm:$0xff] %v322
      %395 = vst [vmem:[%s353 + $0x69] sm:$0xff] %v323
      %396 = vst [vmem:[%s353 + $0x79] sm:$0xff] %v324
      %397 = vst [vmem:[%s353 + $0x81] sm:$0xff] %v325
      %398 = vst [vmem:[%s353 + $0x91] sm:$0xff] %v326
      %399 = vst [vmem:[%s353 + $0x99] sm:$0xff] %v327
      %400 = vst [vmem:[%s353 + $0xa9] sm:$0xff] %v328
      %401 = vst [vmem:[%s353 + $0xb1] sm:$0xff] %v329
      %402 = vst [vmem:[%s353 + $0xc1] sm:$0xff] %v330
      %403 = vst [vmem:[%s353 + $0xc9] sm:$0xff] %v331
      %404 = vst [vmem:[%s353 + $0xd9] sm:$0xff] %v332
      %405 = vst [vmem:[%s353 + $0xe1] sm:$0xff] %v333
      %406 = vst [vmem:[%s353 + $0xf1] sm:$0xff] %v334
      %407 = vst [vmem:[%s353 + $0xf9] sm:$0xff] %v335
      %408 = vst [vmem:[%s353 + $0x109] sm:$0xff] %v336
      %409 = vst [vmem:[%s353 + $0x111] sm:$0xff] %v337
      %410 = vst [vmem:[%s353 + $0x121] sm:$0xff] %v338
      %411 = vst [vmem:[%s353 + $0x129] sm:$0xff] %v339
      %412 = vst [vmem:[%s353 + $0x139] sm:$0xff] %v340
      %413 = vst [vmem:[%s353 + $0x141] sm:$0xff] %v341
      %414 = vst [vmem:[%s353 + $0x151] sm:$0xff] %v342
      %415 = vst [vmem:[%s353 + $0x159] sm:$0xff] %v343
      %416 = vst [vmem:[%s353 + $0x169] sm:$0xff] %v344
      %417 = vst [vmem:[%s353 + $0x171] sm:$0xff] %v345
      %v418 = vld [vmem:[#allocation2] sm:$0xff]
      %v419 = vld [vmem:[#allocation2 + $0x8] sm:$0xff]
      %v420 = vld [vmem:[#allocation2 + $0x18] sm:$0xff]
      %v421 = vld [vmem:[#allocation2 + $0x20] sm:$0xff]
      %v422 = vld [vmem:[#allocation2 + $0x30] sm:$0xff]
      %v423 = vld [vmem:[#allocation2 + $0x38] sm:$0xff]
      %v424 = vld [vmem:[#allocation2 + $0x48] sm:$0xff]
      %v425 = vld [vmem:[#allocation2 + $0x50] sm:$0xff]
      %v426 = vld [vmem:[#allocation2 + $0x60] sm:$0xff]
      %v427 = vld [vmem:[#allocation2 + $0x68] sm:$0xff]
      %v428 = vld [vmem:[#allocation2 + $0x78] sm:$0xff]
      %v429 = vld [vmem:[#allocation2 + $0x80] sm:$0xff]
      %v430 = vld [vmem:[#allocation2 + $0x90] sm:$0xff]
      %v431 = vld [vmem:[#allocation2 + $0x98] sm:$0xff]
      %v432 = vld [vmem:[#allocation2 + $0xa8] sm:$0xff]
      %v433 = vld [vmem:[#allocation2 + $0xb0] sm:$0xff]
      %v434 = vld [vmem:[#allocation2 + $0xc0] sm:$0xff]
      %v435 = vld [vmem:[#allocation2 + $0xc8] sm:$0xff]
      %v436 = vld [vmem:[#allocation2 + $0xd8] sm:$0xff]
      %v437 = vld [vmem:[#allocation2 + $0xe0] sm:$0xff]
      %v438 = vld [vmem:[#allocation2 + $0xf0] sm:$0xff]
      %v439 = vld [vmem:[#allocation2 + $0xf8] sm:$0xff]
      %v440 = vld [vmem:[#allocation2 + $0x108] sm:$0xff]
      %v441 = vld [vmem:[#allocation2 + $0x110] sm:$0xff]
      %v442 = vld [vmem:[#allocation2 + $0x120] sm:$0xff]
      %v443 = vld [vmem:[#allocation2 + $0x128] sm:$0xff]
      %v444 = vld [vmem:[#allocation2 + $0x138] sm:$0xff]
      %v445 = vld [vmem:[#allocation2 + $0x140] sm:$0xff]
      %v446 = vld [vmem:[#allocation2 + $0x150] sm:$0xff]
      %v447 = vld [vmem:[#allocation2 + $0x158] sm:$0xff]
      %v448 = vld [vmem:[#allocation2 + $0x168] sm:$0xff]
      %v449 = vld [vmem:[#allocation2 + $0x170] sm:$0xff]
      %450 = vst [vmem:[#allocation3] sm:$0xff] %v418
      %451 = vst [vmem:[#allocation3 + $0x48] sm:$0xff] %v419
      %452 = vst [vmem:[#allocation3 + $0x90] sm:$0xff] %v420
      %453 = vst [vmem:[#allocation3 + $0xd8] sm:$0xff] %v421
      %454 = vst [vmem:[#allocation3 + $0x120] sm:$0xff] %v422
      %455 = vst [vmem:[#allocation3 + $0x168] sm:$0xff] %v423
      %456 = vst [vmem:[#allocation3 + $0x1b0] sm:$0xff] %v424
      %457 = vst [vmem:[#allocation3 + $0x1f8] sm:$0xff] %v425
      %458 = vst [vmem:[#allocation3 + $0x240] sm:$0xff] %v426
      %459 = vst [vmem:[#allocation3 + $0x288] sm:$0xff] %v427
      %460 = vst [vmem:[#allocation3 + $0x2d0] sm:$0xff] %v428
      %461 = vst [vmem:[#allocation3 + $0x318] sm:$0xff] %v429
      %462 = vst [vmem:[#allocation3 + $0x360] sm:$0xff] %v430
      %463 = vst [vmem:[#allocation3 + $0x3a8] sm:$0xff] %v431
      %464 = vst [vmem:[#allocation3 + $0x3f0] sm:$0xff] %v432
      %465 = vst [vmem:[#allocation3 + $0x438] sm:$0xff] %v433
      %466 = vst [vmem:[#allocation3 + $0x480] sm:$0xff] %v434
      %467 = vst [vmem:[#allocation3 + $0x4c8] sm:$0xff] %v435
      %468 = vst [vmem:[#allocation3 + $0x510] sm:$0xff] %v436
      %469 = vst [vmem:[#allocation3 + $0x558] sm:$0xff] %v437
      %470 = vst [vmem:[#allocation3 + $0x5a0] sm:$0xff] %v438
      %471 = vst [vmem:[#allocation3 + $0x5e8] sm:$0xff] %v439
      %472 = vst [vmem:[#allocation3 + $0x630] sm:$0xff] %v440
      %473 = vst [vmem:[#allocation3 + $0x678] sm:$0xff] %v441
      %474 = vst [vmem:[#allocation3 + $0x6c0] sm:$0xff] %v442
      %475 = vst [vmem:[#allocation3 + $0x708] sm:$0xff] %v443
      %476 = vst [vmem:[#allocation3 + $0x750] sm:$0xff] %v444
      %477 = vst [vmem:[#allocation3 + $0x798] sm:$0xff] %v445
      %478 = vst [vmem:[#allocation3 + $0x7e0] sm:$0xff] %v446
      %479 = vst [vmem:[#allocation3 + $0x828] sm:$0xff] %v447
      %480 = vst [vmem:[#allocation3 + $0x870] sm:$0xff] %v448
      %481 = vst [vmem:[#allocation3 + $0x8b8] sm:$0xff] %v449
      %v482 = vld [vmem:[#allocation2 + $0x1] sm:$0xff]
      %v483 = vld [vmem:[#allocation2 + $0x9] sm:$0xff]
      %v484 = vld [vmem:[#allocation2 + $0x19] sm:$0xff]
      %v485 = vld [vmem:[#allocation2 + $0x21] sm:$0xff]
      %v486 = vld [vmem:[#allocation2 + $0x31] sm:$0xff]
      %v487 = vld [vmem:[#allocation2 + $0x39] sm:$0xff]
      %v488 = vld [vmem:[#allocation2 + $0x49] sm:$0xff]
      %v489 = vld [vmem:[#allocation2 + $0x51] sm:$0xff]
      %v490 = vld [vmem:[#allocation2 + $0x61] sm:$0xff]
      %v491 = vld [vmem:[#allocation2 + $0x69] sm:$0xff]
      %v492 = vld [vmem:[#allocation2 + $0x79] sm:$0xff]
      %v493 = vld [vmem:[#allocation2 + $0x81] sm:$0xff]
      %v494 = vld [vmem:[#allocation2 + $0x91] sm:$0xff]
      %v495 = vld [vmem:[#allocation2 + $0x99] sm:$0xff]
      %v496 = vld [vmem:[#allocation2 + $0xa9] sm:$0xff]
      %v497 = vld [vmem:[#allocation2 + $0xb1] sm:$0xff]
      %v498 = vld [vmem:[#allocation2 + $0xc1] sm:$0xff]
      %v499 = vld [vmem:[#allocation2 + $0xc9] sm:$0xff]
      %v500 = vld [vmem:[#allocation2 + $0xd9] sm:$0xff]
      %v501 = vld [vmem:[#allocation2 + $0xe1] sm:$0xff]
      %v502 = vld [vmem:[#allocation2 + $0xf1] sm:$0xff]
      %v503 = vld [vmem:[#allocation2 + $0xf9] sm:$0xff]
      %v504 = vld [vmem:[#allocation2 + $0x109] sm:$0xff]
      %v505 = vld [vmem:[#allocation2 + $0x111] sm:$0xff]
      %v506 = vld [vmem:[#allocation2 + $0x121] sm:$0xff]
      %v507 = vld [vmem:[#allocation2 + $0x129] sm:$0xff]
      %v508 = vld [vmem:[#allocation2 + $0x139] sm:$0xff]
      %v509 = vld [vmem:[#allocation2 + $0x141] sm:$0xff]
      %v510 = vld [vmem:[#allocation2 + $0x151] sm:$0xff]
      %v511 = vld [vmem:[#allocation2 + $0x159] sm:$0xff]
      %v512 = vld [vmem:[#allocation2 + $0x169] sm:$0xff]
      %v513 = vld [vmem:[#allocation2 + $0x171] sm:$0xff]
      %514 = vst [vmem:[#allocation3 + $0x8] sm:$0xff] %v482
      %515 = vst [vmem:[#allocation3 + $0x50] sm:$0xff] %v483
      %516 = vst [vmem:[#allocation3 + $0x98] sm:$0xff] %v484
      %517 = vst [vmem:[#allocation3 + $0xe0] sm:$0xff] %v485
      %518 = vst [vmem:[#allocation3 + $0x128] sm:$0xff] %v486
      %519 = vst [vmem:[#allocation3 + $0x170] sm:$0xff] %v487
      %520 = vst [vmem:[#allocation3 + $0x1b8] sm:$0xff] %v488
      %521 = vst [vmem:[#allocation3 + $0x200] sm:$0xff] %v489
      %522 = vst [vmem:[#allocation3 + $0x248] sm:$0xff] %v490
      %523 = vst [vmem:[#allocation3 + $0x290] sm:$0xff] %v491
      %524 = vst [vmem:[#allocation3 + $0x2d8] sm:$0xff] %v492
      %525 = vst [vmem:[#allocation3 + $0x320] sm:$0xff] %v493
      %526 = vst [vmem:[#allocation3 + $0x368] sm:$0xff] %v494
      %527 = vst [vmem:[#allocation3 + $0x3b0] sm:$0xff] %v495
      %528 = vst [vmem:[#allocation3 + $0x3f8] sm:$0xff] %v496
      %529 = vst [vmem:[#allocation3 + $0x440] sm:$0xff] %v497
      %530 = vst [vmem:[#allocation3 + $0x488] sm:$0xff] %v498
      %531 = vst [vmem:[#allocation3 + $0x4d0] sm:$0xff] %v499
      %532 = vst [vmem:[#allocation3 + $0x518] sm:$0xff] %v500
      %533 = vst [vmem:[#allocation3 + $0x560] sm:$0xff] %v501
      %534 = vst [vmem:[#allocation3 + $0x5a8] sm:$0xff] %v502
      %535 = vst [vmem:[#allocation3 + $0x5f0] sm:$0xff] %v503
      %536 = vst [vmem:[#allocation3 + $0x638] sm:$0xff] %v504
      %537 = vst [vmem:[#allocation3 + $0x680] sm:$0xff] %v505
      %538 = vst [vmem:[#allocation3 + $0x6c8] sm:$0xff] %v506
      %539 = vst [vmem:[#allocation3 + $0x710] sm:$0xff] %v507
      %540 = vst [vmem:[#allocation3 + $0x758] sm:$0xff] %v508
      %541 = vst [vmem:[#allocation3 + $0x7a0] sm:$0xff] %v509
      %542 = vst [vmem:[#allocation3 + $0x7e8] sm:$0xff] %v510
      %543 = vst [vmem:[#allocation3 + $0x830] sm:$0xff] %v511
      %544 = vst [vmem:[#allocation3 + $0x878] sm:$0xff] %v512
      %545 = vst [vmem:[#allocation3 + $0x8c0] sm:$0xff] %v513
      %v546 = vld [vmem:[#allocation2 + $0x2] sm:$0xff]
      %v547 = vld [vmem:[#allocation2 + $0xa] sm:$0xff]
      %v548 = vld [vmem:[#allocation2 + $0x1a] sm:$0xff]
      %v549 = vld [vmem:[#allocation2 + $0x22] sm:$0xff]
      %v550 = vld [vmem:[#allocation2 + $0x32] sm:$0xff]
      %v551 = vld [vmem:[#allocation2 + $0x3a] sm:$0xff]
      %v552 = vld [vmem:[#allocation2 + $0x4a] sm:$0xff]
      %v553 = vld [vmem:[#allocation2 + $0x52] sm:$0xff]
      %v554 = vld [vmem:[#allocation2 + $0x62] sm:$0xff]
      %v555 = vld [vmem:[#allocation2 + $0x6a] sm:$0xff]
      %v556 = vld [vmem:[#allocation2 + $0x7a] sm:$0xff]
      %v557 = vld [vmem:[#allocation2 + $0x82] sm:$0xff]
      %v558 = vld [vmem:[#allocation2 + $0x92] sm:$0xff]
      %v559 = vld [vmem:[#allocation2 + $0x9a] sm:$0xff]
      %v560 = vld [vmem:[#allocation2 + $0xaa] sm:$0xff]
      %v561 = vld [vmem:[#allocation2 + $0xb2] sm:$0xff]
      %v562 = vld [vmem:[#allocation2 + $0xc2] sm:$0xff]
      %v563 = vld [vmem:[#allocation2 + $0xca] sm:$0xff]
      %v564 = vld [vmem:[#allocation2 + $0xda] sm:$0xff]
      %v565 = vld [vmem:[#allocation2 + $0xe2] sm:$0xff]
      %v566 = vld [vmem:[#allocation2 + $0xf2] sm:$0xff]
      %v567 = vld [vmem:[#allocation2 + $0xfa] sm:$0xff]
      %v568 = vld [vmem:[#allocation2 + $0x10a] sm:$0xff]
      %v569 = vld [vmem:[#allocation2 + $0x112] sm:$0xff]
      %v570 = vld [vmem:[#allocation2 + $0x122] sm:$0xff]
      %v571 = vld [vmem:[#allocation2 + $0x12a] sm:$0xff]
      %v572 = vld [vmem:[#allocation2 + $0x13a] sm:$0xff]
      %v573 = vld [vmem:[#allocation2 + $0x142] sm:$0xff]
      %v574 = vld [vmem:[#allocation2 + $0x152] sm:$0xff]
      %v575 = vld [vmem:[#allocation2 + $0x15a] sm:$0xff]
      %v576 = vld [vmem:[#allocation2 + $0x16a] sm:$0xff]
      %v577 = vld [vmem:[#allocation2 + $0x172] sm:$0xff]
      %578 = vst [vmem:[#allocation3 + $0x10] sm:$0xff] %v546
      %579 = vst [vmem:[#allocation3 + $0x58] sm:$0xff] %v547
      %580 = vst [vmem:[#allocation3 + $0xa0] sm:$0xff] %v548
      %581 = vst [vmem:[#allocation3 + $0xe8] sm:$0xff] %v549
      %582 = vst [vmem:[#allocation3 + $0x130] sm:$0xff] %v550
      %583 = vst [vmem:[#allocation3 + $0x178] sm:$0xff] %v551
      %584 = vst [vmem:[#allocation3 + $0x1c0] sm:$0xff] %v552
      %585 = vst [vmem:[#allocation3 + $0x208] sm:$0xff] %v553
      %586 = vst [vmem:[#allocation3 + $0x250] sm:$0xff] %v554
      %587 = vst [vmem:[#allocation3 + $0x298] sm:$0xff] %v555
      %588 = vst [vmem:[#allocation3 + $0x2e0] sm:$0xff] %v556
      %589 = vst [vmem:[#allocation3 + $0x328] sm:$0xff] %v557
      %590 = vst [vmem:[#allocation3 + $0x370] sm:$0xff] %v558
      %591 = vst [vmem:[#allocation3 + $0x3b8] sm:$0xff] %v559
      %592 = vst [vmem:[#allocation3 + $0x400] sm:$0xff] %v560
      %593 = vst [vmem:[#allocation3 + $0x448] sm:$0xff] %v561
      %594 = vst [vmem:[#allocation3 + $0x490] sm:$0xff] %v562
      %595 = vst [vmem:[#allocation3 + $0x4d8] sm:$0xff] %v563
      %596 = vst [vmem:[#allocation3 + $0x520] sm:$0xff] %v564
      %597 = vst [vmem:[#allocation3 + $0x568] sm:$0xff] %v565
      %598 = vst [vmem:[#allocation3 + $0x5b0] sm:$0xff] %v566
      %599 = vst [vmem:[#allocation3 + $0x5f8] sm:$0xff] %v567
      %600 = vst [vmem:[#allocation3 + $0x640] sm:$0xff] %v568
      %601 = vst [vmem:[#allocation3 + $0x688] sm:$0xff] %v569
      %602 = vst [vmem:[#allocation3 + $0x6d0] sm:$0xff] %v570
      %603 = vst [vmem:[#allocation3 + $0x718] sm:$0xff] %v571
      %604 = vst [vmem:[#allocation3 + $0x760] sm:$0xff] %v572
      %605 = vst [vmem:[#allocation3 + $0x7a8] sm:$0xff] %v573
      %606 = vst [vmem:[#allocation3 + $0x7f0] sm:$0xff] %v574
      %607 = vst [vmem:[#allocation3 + $0x838] sm:$0xff] %v575
      %608 = vst [vmem:[#allocation3 + $0x880] sm:$0xff] %v576
      %609 = vst [vmem:[#allocation3 + $0x8c8] sm:$0xff] %v577
      %v610 = vld [vmem:[%s353] sm:$0xff]
      %v611 = vld [vmem:[%s353 + $0x8] sm:$0xff]
      %v612 = vld [vmem:[%s353 + $0x18] sm:$0xff]
      %v613 = vld [vmem:[%s353 + $0x20] sm:$0xff]
      %v614 = vld [vmem:[%s353 + $0x30] sm:$0xff]
      %v615 = vld [vmem:[%s353 + $0x38] sm:$0xff]
      %v616 = vld [vmem:[%s353 + $0x48] sm:$0xff]
      %v617 = vld [vmem:[%s353 + $0x50] sm:$0xff]
      %v618 = vld [vmem:[%s353 + $0x60] sm:$0xff]
      %v619 = vld [vmem:[%s353 + $0x68] sm:$0xff]
      %v620 = vld [vmem:[%s353 + $0x78] sm:$0xff]
      %v621 = vld [vmem:[%s353 + $0x80] sm:$0xff]
      %v622 = vld [vmem:[%s353 + $0x90] sm:$0xff]
      %v623 = vld [vmem:[%s353 + $0x98] sm:$0xff]
      %v624 = vld [vmem:[%s353 + $0xa8] sm:$0xff]
      %v625 = vld [vmem:[%s353 + $0xb0] sm:$0xff]
      %v626 = vld [vmem:[%s353 + $0xc0] sm:$0xff]
      %v627 = vld [vmem:[%s353 + $0xc8] sm:$0xff]
      %v628 = vld [vmem:[%s353 + $0xd8] sm:$0xff]
      %v629 = vld [vmem:[%s353 + $0xe0] sm:$0xff]
      %v630 = vld [vmem:[%s353 + $0xf0] sm:$0xff]
      %v631 = vld [vmem:[%s353 + $0xf8] sm:$0xff]
      %v632 = vld [vmem:[%s353 + $0x108] sm:$0xff]
      %v633 = vld [vmem:[%s353 + $0x110] sm:$0xff]
      %v634 = vld [vmem:[%s353 + $0x120] sm:$0xff]
      %v635 = vld [vmem:[%s353 + $0x128] sm:$0xff]
      %v636 = vld [vmem:[%s353 + $0x138] sm:$0xff]
      %v637 = vld [vmem:[%s353 + $0x140] sm:$0xff]
      %v638 = vld [vmem:[%s353 + $0x150] sm:$0xff]
      %v639 = vld [vmem:[%s353 + $0x158] sm:$0xff]
      %v640 = vld [vmem:[%s353 + $0x168] sm:$0xff]
      %v641 = vld [vmem:[%s353 + $0x170] sm:$0xff]
      %642 = vst [vmem:[#allocation3 + $0x18] sm:$0xff] %v610
      %643 = vst [vmem:[#allocation3 + $0x60] sm:$0xff] %v611
      %644 = vst [vmem:[#allocation3 + $0xa8] sm:$0xff] %v612
      %645 = vst [vmem:[#allocation3 + $0xf0] sm:$0xff] %v613
      %646 = vst [vmem:[#allocation3 + $0x138] sm:$0xff] %v614
      %647 = vst [vmem:[#allocation3 + $0x180] sm:$0xff] %v615
      %648 = vst [vmem:[#allocation3 + $0x1c8] sm:$0xff] %v616
      %649 = vst [vmem:[#allocation3 + $0x210] sm:$0xff] %v617
      %650 = vst [vmem:[#allocation3 + $0x258] sm:$0xff] %v618
      %651 = vst [vmem:[#allocation3 + $0x2a0] sm:$0xff] %v619
      %652 = vst [vmem:[#allocation3 + $0x2e8] sm:$0xff] %v620
      %653 = vst [vmem:[#allocation3 + $0x330] sm:$0xff] %v621
      %654 = vst [vmem:[#allocation3 + $0x378] sm:$0xff] %v622
      %655 = vst [vmem:[#allocation3 + $0x3c0] sm:$0xff] %v623
      %656 = vst [vmem:[#allocation3 + $0x408] sm:$0xff] %v624
      %657 = vst [vmem:[#allocation3 + $0x450] sm:$0xff] %v625
      %658 = vst [vmem:[#allocation3 + $0x498] sm:$0xff] %v626
      %659 = vst [vmem:[#allocation3 + $0x4e0] sm:$0xff] %v627
      %660 = vst [vmem:[#allocation3 + $0x528] sm:$0xff] %v628
      %661 = vst [vmem:[#allocation3 + $0x570] sm:$0xff] %v629
      %662 = vst [vmem:[#allocation3 + $0x5b8] sm:$0xff] %v630
      %663 = vst [vmem:[#allocation3 + $0x600] sm:$0xff] %v631
      %664 = vst [vmem:[#allocation3 + $0x648] sm:$0xff] %v632
      %665 = vst [vmem:[#allocation3 + $0x690] sm:$0xff] %v633
      %666 = vst [vmem:[#allocation3 + $0x6d8] sm:$0xff] %v634
      %667 = vst [vmem:[#allocation3 + $0x720] sm:$0xff] %v635
      %668 = vst [vmem:[#allocation3 + $0x768] sm:$0xff] %v636
      %669 = vst [vmem:[#allocation3 + $0x7b0] sm:$0xff] %v637
      %670 = vst [vmem:[#allocation3 + $0x7f8] sm:$0xff] %v638
      %671 = vst [vmem:[#allocation3 + $0x840] sm:$0xff] %v639
      %672 = vst [vmem:[#allocation3 + $0x888] sm:$0xff] %v640
      %673 = vst [vmem:[#allocation3 + $0x8d0] sm:$0xff] %v641
      %v674 = vld [vmem:[%s353 + $0x1] sm:$0xff]
      %v675 = vld [vmem:[%s353 + $0x9] sm:$0xff]
      %v676 = vld [vmem:[%s353 + $0x19] sm:$0xff]
      %v677 = vld [vmem:[%s353 + $0x21] sm:$0xff]
      %v678 = vld [vmem:[%s353 + $0x31] sm:$0xff]
      %v679 = vld [vmem:[%s353 + $0x39] sm:$0xff]
      %v680 = vld [vmem:[%s353 + $0x49] sm:$0xff]
      %v681 = vld [vmem:[%s353 + $0x51] sm:$0xff]
      %v682 = vld [vmem:[%s353 + $0x61] sm:$0xff]
      %v683 = vld [vmem:[%s353 + $0x69] sm:$0xff]
      %v684 = vld [vmem:[%s353 + $0x79] sm:$0xff]
      %v685 = vld [vmem:[%s353 + $0x81] sm:$0xff]
      %v686 = vld [vmem:[%s353 + $0x91] sm:$0xff]
      %v687 = vld [vmem:[%s353 + $0x99] sm:$0xff]
      %v688 = vld [vmem:[%s353 + $0xa9] sm:$0xff]
      %v689 = vld [vmem:[%s353 + $0xb1] sm:$0xff]
      %v690 = vld [vmem:[%s353 + $0xc1] sm:$0xff]
      %v691 = vld [vmem:[%s353 + $0xc9] sm:$0xff]
      %v692 = vld [vmem:[%s353 + $0xd9] sm:$0xff]
      %v693 = vld [vmem:[%s353 + $0xe1] sm:$0xff]
      %v694 = vld [vmem:[%s353 + $0xf1] sm:$0xff]
      %v695 = vld [vmem:[%s353 + $0xf9] sm:$0xff]
      %v696 = vld [vmem:[%s353 + $0x109] sm:$0xff]
      %v697 = vld [vmem:[%s353 + $0x111] sm:$0xff]
      %v698 = vld [vmem:[%s353 + $0x121] sm:$0xff]
      %v699 = vld [vmem:[%s353 + $0x129] sm:$0xff]
      %v700 = vld [vmem:[%s353 + $0x139] sm:$0xff]
      %v701 = vld [vmem:[%s353 + $0x141] sm:$0xff]
      %v702 = vld [vmem:[%s353 + $0x151] sm:$0xff]
      %v703 = vld [vmem:[%s353 + $0x159] sm:$0xff]
      %v704 = vld [vmem:[%s353 + $0x169] sm:$0xff]
      %v705 = vld [vmem:[%s353 + $0x171] sm:$0xff]
      %706 = vst [vmem:[#allocation3 + $0x20] sm:$0xff] %v674
      %707 = vst [vmem:[#allocation3 + $0x68] sm:$0xff] %v675
      %708 = vst [vmem:[#allocation3 + $0xb0] sm:$0xff] %v676
      %709 = vst [vmem:[#allocation3 + $0xf8] sm:$0xff] %v677
      %710 = vst [vmem:[#allocation3 + $0x140] sm:$0xff] %v678
      %711 = vst [vmem:[#allocation3 + $0x188] sm:$0xff] %v679
      %712 = vst [vmem:[#allocation3 + $0x1d0] sm:$0xff] %v680
      %713 = vst [vmem:[#allocation3 + $0x218] sm:$0xff] %v681
      %714 = vst [vmem:[#allocation3 + $0x260] sm:$0xff] %v682
      %715 = vst [vmem:[#allocation3 + $0x2a8] sm:$0xff] %v683
      %716 = vst [vmem:[#allocation3 + $0x2f0] sm:$0xff] %v684
      %717 = vst [vmem:[#allocation3 + $0x338] sm:$0xff] %v685
      %718 = vst [vmem:[#allocation3 + $0x380] sm:$0xff] %v686
      %719 = vst [vmem:[#allocation3 + $0x3c8] sm:$0xff] %v687
      %720 = vst [vmem:[#allocation3 + $0x410] sm:$0xff] %v688
      %721 = vst [vmem:[#allocation3 + $0x458] sm:$0xff] %v689
      %722 = vst [vmem:[#allocation3 + $0x4a0] sm:$0xff] %v690
      %723 = vst [vmem:[#allocation3 + $0x4e8] sm:$0xff] %v691
      %724 = vst [vmem:[#allocation3 + $0x530] sm:$0xff] %v692
      %725 = vst [vmem:[#allocation3 + $0x578] sm:$0xff] %v693
      %726 = vst [vmem:[#allocation3 + $0x5c0] sm:$0xff] %v694
      %727 = vst [vmem:[#allocation3 + $0x608] sm:$0xff] %v695
      %728 = vst [vmem:[#allocation3 + $0x650] sm:$0xff] %v696
      %729 = vst [vmem:[#allocation3 + $0x698] sm:$0xff] %v697
      %730 = vst [vmem:[#allocation3 + $0x6e0] sm:$0xff] %v698
      %731 = vst [vmem:[#allocation3 + $0x728] sm:$0xff] %v699
      %732 = vst [vmem:[#allocation3 + $0x770] sm:$0xff] %v700
      %733 = vst [vmem:[#allocation3 + $0x7b8] sm:$0xff] %v701
      %734 = vst [vmem:[#allocation3 + $0x800] sm:$0xff] %v702
      %735 = vst [vmem:[#allocation3 + $0x848] sm:$0xff] %v703
      %736 = vst [vmem:[#allocation3 + $0x890] sm:$0xff] %v704
      %737 = vst [vmem:[#allocation3 + $0x8d8] sm:$0xff] %v705
      %v738 = vld [vmem:[%s353 + $0x2] sm:$0xff]
      %v739 = vld [vmem:[%s353 + $0xa] sm:$0xff]
      %v740 = vld [vmem:[%s353 + $0x1a] sm:$0xff]
      %v741 = vld [vmem:[%s353 + $0x22] sm:$0xff]
      %v742 = vld [vmem:[%s353 + $0x32] sm:$0xff]
      %v743 = vld [vmem:[%s353 + $0x3a] sm:$0xff]
      %v744 = vld [vmem:[%s353 + $0x4a] sm:$0xff]
      %v745 = vld [vmem:[%s353 + $0x52] sm:$0xff]
      %v746 = vld [vmem:[%s353 + $0x62] sm:$0xff]
      %v747 = vld [vmem:[%s353 + $0x6a] sm:$0xff]
      %v748 = vld [vmem:[%s353 + $0x7a] sm:$0xff]
      %v749 = vld [vmem:[%s353 + $0x82] sm:$0xff]
      %v750 = vld [vmem:[%s353 + $0x92] sm:$0xff]
      %v751 = vld [vmem:[%s353 + $0x9a] sm:$0xff]
      %v752 = vld [vmem:[%s353 + $0xaa] sm:$0xff]
      %v753 = vld [vmem:[%s353 + $0xb2] sm:$0xff]
      %v754 = vld [vmem:[%s353 + $0xc2] sm:$0xff]
      %v755 = vld [vmem:[%s353 + $0xca] sm:$0xff]
      %v756 = vld [vmem:[%s353 + $0xda] sm:$0xff]
      %v757 = vld [vmem:[%s353 + $0xe2] sm:$0xff]
      %v758 = vld [vmem:[%s353 + $0xf2] sm:$0xff]
      %v759 = vld [vmem:[%s353 + $0xfa] sm:$0xff]
      %v760 = vld [vmem:[%s353 + $0x10a] sm:$0xff]
      %v761 = vld [vmem:[%s353 + $0x112] sm:$0xff]
      %v762 = vld [vmem:[%s353 + $0x122] sm:$0xff]
      %v763 = vld [vmem:[%s353 + $0x12a] sm:$0xff]
      %v764 = vld [vmem:[%s353 + $0x13a] sm:$0xff]
      %v765 = vld [vmem:[%s353 + $0x142] sm:$0xff]
      %v766 = vld [vmem:[%s353 + $0x152] sm:$0xff]
      %v767 = vld [vmem:[%s353 + $0x15a] sm:$0xff]
      %v768 = vld [vmem:[%s353 + $0x16a] sm:$0xff]
      %v769 = vld [vmem:[%s353 + $0x172] sm:$0xff]
      %770 = vst [vmem:[#allocation3 + $0x28] sm:$0xff] %v738
      %771 = vst [vmem:[#allocation3 + $0x70] sm:$0xff] %v739
      %772 = vst [vmem:[#allocation3 + $0xb8] sm:$0xff] %v740
      %773 = vst [vmem:[#allocation3 + $0x100] sm:$0xff] %v741
      %774 = vst [vmem:[#allocation3 + $0x148] sm:$0xff] %v742
      %775 = vst [vmem:[#allocation3 + $0x190] sm:$0xff] %v743
      %776 = vst [vmem:[#allocation3 + $0x1d8] sm:$0xff] %v744
      %777 = vst [vmem:[#allocation3 + $0x220] sm:$0xff] %v745
      %778 = vst [vmem:[#allocation3 + $0x268] sm:$0xff] %v746
      %779 = vst [vmem:[#allocation3 + $0x2b0] sm:$0xff] %v747
      %780 = vst [vmem:[#allocation3 + $0x2f8] sm:$0xff] %v748
      %781 = vst [vmem:[#allocation3 + $0x340] sm:$0xff] %v749
      %782 = vst [vmem:[#allocation3 + $0x388] sm:$0xff] %v750
      %783 = vst [vmem:[#allocation3 + $0x3d0] sm:$0xff] %v751
      %784 = vst [vmem:[#allocation3 + $0x418] sm:$0xff] %v752
      %785 = vst [vmem:[#allocation3 + $0x460] sm:$0xff] %v753
      %786 = vst [vmem:[#allocation3 + $0x4a8] sm:$0xff] %v754
      %787 = vst [vmem:[#allocation3 + $0x4f0] sm:$0xff] %v755
      %788 = vst [vmem:[#allocation3 + $0x538] sm:$0xff] %v756
      %789 = vst [vmem:[#allocation3 + $0x580] sm:$0xff] %v757
      %790 = vst [vmem:[#allocation3 + $0x5c8] sm:$0xff] %v758
      %791 = vst [vmem:[#allocation3 + $0x610] sm:$0xff] %v759
      %792 = vst [vmem:[#allocation3 + $0x658] sm:$0xff] %v760
      %793 = vst [vmem:[#allocation3 + $0x6a0] sm:$0xff] %v761
      %794 = vst [vmem:[#allocation3 + $0x6e8] sm:$0xff] %v762
      %795 = vst [vmem:[#allocation3 + $0x730] sm:$0xff] %v763
      %796 = vst [vmem:[#allocation3 + $0x778] sm:$0xff] %v764
      %797 = vst [vmem:[#allocation3 + $0x7c0] sm:$0xff] %v765
      %798 = vst [vmem:[#allocation3 + $0x808] sm:$0xff] %v766
      %799 = vst [vmem:[#allocation3 + $0x850] sm:$0xff] %v767
      %800 = vst [vmem:[#allocation3 + $0x898] sm:$0xff] %v768
      %801 = vst [vmem:[#allocation3 + $0x8e0] sm:$0xff] %v769
      %s802 = scalar_lea.vmem [#allocation2], 48
      %v803 = vld [vmem:[%s802] sm:$0xff]
      %v804 = vld [vmem:[%s802 + $0x8] sm:$0xff]
      %v805 = vld [vmem:[%s802 + $0x18] sm:$0xff]
      %v806 = vld [vmem:[%s802 + $0x20] sm:$0xff]
      %v807 = vld [vmem:[%s802 + $0x30] sm:$0xff]
      %v808 = vld [vmem:[%s802 + $0x38] sm:$0xff]
      %v809 = vld [vmem:[%s802 + $0x48] sm:$0xff]
      %v810 = vld [vmem:[%s802 + $0x50] sm:$0xff]
      %v811 = vld [vmem:[%s802 + $0x60] sm:$0xff]
      %v812 = vld [vmem:[%s802 + $0x68] sm:$0xff]
      %v813 = vld [vmem:[%s802 + $0x78] sm:$0xff]
      %v814 = vld [vmem:[%s802 + $0x80] sm:$0xff]
      %v815 = vld [vmem:[%s802 + $0x90] sm:$0xff]
      %v816 = vld [vmem:[%s802 + $0x98] sm:$0xff]
      %v817 = vld [vmem:[%s802 + $0xa8] sm:$0xff]
      %v818 = vld [vmem:[%s802 + $0xb0] sm:$0xff]
      %v819 = vld [vmem:[%s802 + $0xc0] sm:$0xff]
      %v820 = vld [vmem:[%s802 + $0xc8] sm:$0xff]
      %v821 = vld [vmem:[%s802 + $0xd8] sm:$0xff]
      %v822 = vld [vmem:[%s802 + $0xe0] sm:$0xff]
      %v823 = vld [vmem:[%s802 + $0xf0] sm:$0xff]
      %v824 = vld [vmem:[%s802 + $0xf8] sm:$0xff]
      %v825 = vld [vmem:[%s802 + $0x108] sm:$0xff]
      %v826 = vld [vmem:[%s802 + $0x110] sm:$0xff]
      %v827 = vld [vmem:[%s802 + $0x120] sm:$0xff]
      %v828 = vld [vmem:[%s802 + $0x128] sm:$0xff]
      %v829 = vld [vmem:[%s802 + $0x138] sm:$0xff]
      %v830 = vld [vmem:[%s802 + $0x140] sm:$0xff]
      %v831 = vld [vmem:[%s802 + $0x150] sm:$0xff]
      %v832 = vld [vmem:[%s802 + $0x158] sm:$0xff]
      %v833 = vld [vmem:[%s802 + $0x168] sm:$0xff]
      %v834 = vld [vmem:[%s802 + $0x170] sm:$0xff]
      %835 = vst [vmem:[#allocation3 + $0x30] sm:$0xff] %v803
      %836 = vst [vmem:[#allocation3 + $0x78] sm:$0xff] %v804
      %837 = vst [vmem:[#allocation3 + $0xc0] sm:$0xff] %v805
      %838 = vst [vmem:[#allocation3 + $0x108] sm:$0xff] %v806
      %839 = vst [vmem:[#allocation3 + $0x150] sm:$0xff] %v807
      %840 = vst [vmem:[#allocation3 + $0x198] sm:$0xff] %v808
      %841 = vst [vmem:[#allocation3 + $0x1e0] sm:$0xff] %v809
      %842 = vst [vmem:[#allocation3 + $0x228] sm:$0xff] %v810
      %843 = vst [vmem:[#allocation3 + $0x270] sm:$0xff] %v811
      %844 = vst [vmem:[#allocation3 + $0x2b8] sm:$0xff] %v812
      %845 = vst [vmem:[#allocation3 + $0x300] sm:$0xff] %v813
      %846 = vst [vmem:[#allocation3 + $0x348] sm:$0xff] %v814
      %847 = vst [vmem:[#allocation3 + $0x390] sm:$0xff] %v815
      %848 = vst [vmem:[#allocation3 + $0x3d8] sm:$0xff] %v816
      %849 = vst [vmem:[#allocation3 + $0x420] sm:$0xff] %v817
      %850 = vst [vmem:[#allocation3 + $0x468] sm:$0xff] %v818
      %851 = vst [vmem:[#allocation3 + $0x4b0] sm:$0xff] %v819
      %852 = vst [vmem:[#allocation3 + $0x4f8] sm:$0xff] %v820
      %853 = vst [vmem:[#allocation3 + $0x540] sm:$0xff] %v821
      %854 = vst [vmem:[#allocation3 + $0x588] sm:$0xff] %v822
      %855 = vst [vmem:[#allocation3 + $0x5d0] sm:$0xff] %v823
      %856 = vst [vmem:[#allocation3 + $0x618] sm:$0xff] %v824
      %857 = vst [vmem:[#allocation3 + $0x660] sm:$0xff] %v825
      %858 = vst [vmem:[#allocation3 + $0x6a8] sm:$0xff] %v826
      %859 = vst [vmem:[#allocation3 + $0x6f0] sm:$0xff] %v827
      %860 = vst [vmem:[#allocation3 + $0x738] sm:$0xff] %v828
      %861 = vst [vmem:[#allocation3 + $0x780] sm:$0xff] %v829
      %862 = vst [vmem:[#allocation3 + $0x7c8] sm:$0xff] %v830
      %863 = vst [vmem:[#allocation3 + $0x810] sm:$0xff] %v831
      %864 = vst [vmem:[#allocation3 + $0x858] sm:$0xff] %v832
      %865 = vst [vmem:[#allocation3 + $0x8a0] sm:$0xff] %v833
      %866 = vst [vmem:[#allocation3 + $0x8e8] sm:$0xff] %v834
      %v867 = vld [vmem:[%s802 + $0x1] sm:$0xff]
      %v868 = vld [vmem:[%s802 + $0x9] sm:$0xff]
      %v869 = vld [vmem:[%s802 + $0x19] sm:$0xff]
      %v870 = vld [vmem:[%s802 + $0x21] sm:$0xff]
      %v871 = vld [vmem:[%s802 + $0x31] sm:$0xff]
      %v872 = vld [vmem:[%s802 + $0x39] sm:$0xff]
      %v873 = vld [vmem:[%s802 + $0x49] sm:$0xff]
      %v874 = vld [vmem:[%s802 + $0x51] sm:$0xff]
      %v875 = vld [vmem:[%s802 + $0x61] sm:$0xff]
      %v876 = vld [vmem:[%s802 + $0x69] sm:$0xff]
      %v877 = vld [vmem:[%s802 + $0x79] sm:$0xff]
      %v878 = vld [vmem:[%s802 + $0x81] sm:$0xff]
      %v879 = vld [vmem:[%s802 + $0x91] sm:$0xff]
      %v880 = vld [vmem:[%s802 + $0x99] sm:$0xff]
      %v881 = vld [vmem:[%s802 + $0xa9] sm:$0xff]
      %v882 = vld [vmem:[%s802 + $0xb1] sm:$0xff]
      %v883 = vld [vmem:[%s802 + $0xc1] sm:$0xff]
      %v884 = vld [vmem:[%s802 + $0xc9] sm:$0xff]
      %v885 = vld [vmem:[%s802 + $0xd9] sm:$0xff]
      %v886 = vld [vmem:[%s802 + $0xe1] sm:$0xff]
      %v887 = vld [vmem:[%s802 + $0xf1] sm:$0xff]
      %v888 = vld [vmem:[%s802 + $0xf9] sm:$0xff]
      %v889 = vld [vmem:[%s802 + $0x109] sm:$0xff]
      %v890 = vld [vmem:[%s802 + $0x111] sm:$0xff]
      %v891 = vld [vmem:[%s802 + $0x121] sm:$0xff]
      %v892 = vld [vmem:[%s802 + $0x129] sm:$0xff]
      %v893 = vld [vmem:[%s802 + $0x139] sm:$0xff]
      %v894 = vld [vmem:[%s802 + $0x141] sm:$0xff]
      %v895 = vld [vmem:[%s802 + $0x151] sm:$0xff]
      %v896 = vld [vmem:[%s802 + $0x159] sm:$0xff]
      %v897 = vld [vmem:[%s802 + $0x169] sm:$0xff]
      %v898 = vld [vmem:[%s802 + $0x171] sm:$0xff]
      %899 = vst [vmem:[#allocation3 + $0x38] sm:$0xff] %v867
      %900 = vst [vmem:[#allocation3 + $0x80] sm:$0xff] %v868
      %901 = vst [vmem:[#allocation3 + $0xc8] sm:$0xff] %v869
      %902 = vst [vmem:[#allocation3 + $0x110] sm:$0xff] %v870
      %903 = vst [vmem:[#allocation3 + $0x158] sm:$0xff] %v871
      %904 = vst [vmem:[#allocation3 + $0x1a0] sm:$0xff] %v872
      %905 = vst [vmem:[#allocation3 + $0x1e8] sm:$0xff] %v873
      %906 = vst [vmem:[#allocation3 + $0x230] sm:$0xff] %v874
      %907 = vst [vmem:[#allocation3 + $0x278] sm:$0xff] %v875
      %908 = vst [vmem:[#allocation3 + $0x2c0] sm:$0xff] %v876
      %909 = vst [vmem:[#allocation3 + $0x308] sm:$0xff] %v877
      %910 = vst [vmem:[#allocation3 + $0x350] sm:$0xff] %v878
      %911 = vst [vmem:[#allocation3 + $0x398] sm:$0xff] %v879
      %912 = vst [vmem:[#allocation3 + $0x3e0] sm:$0xff] %v880
      %913 = vst [vmem:[#allocation3 + $0x428] sm:$0xff] %v881
      %914 = vst [vmem:[#allocation3 + $0x470] sm:$0xff] %v882
      %915 = vst [vmem:[#allocation3 + $0x4b8] sm:$0xff] %v883
      %916 = vst [vmem:[#allocation3 + $0x500] sm:$0xff] %v884
      %917 = vst [vmem:[#allocation3 + $0x548] sm:$0xff] %v885
      %918 = vst [vmem:[#allocation3 + $0x590] sm:$0xff] %v886
      %919 = vst [vmem:[#allocation3 + $0x5d8] sm:$0xff] %v887
      %920 = vst [vmem:[#allocation3 + $0x620] sm:$0xff] %v888
      %921 = vst [vmem:[#allocation3 + $0x668] sm:$0xff] %v889
      %922 = vst [vmem:[#allocation3 + $0x6b0] sm:$0xff] %v890
      %923 = vst [vmem:[#allocation3 + $0x6f8] sm:$0xff] %v891
      %924 = vst [vmem:[#allocation3 + $0x740] sm:$0xff] %v892
      %925 = vst [vmem:[#allocation3 + $0x788] sm:$0xff] %v893
      %926 = vst [vmem:[#allocation3 + $0x7d0] sm:$0xff] %v894
      %927 = vst [vmem:[#allocation3 + $0x818] sm:$0xff] %v895
      %928 = vst [vmem:[#allocation3 + $0x860] sm:$0xff] %v896
      %929 = vst [vmem:[#allocation3 + $0x8a8] sm:$0xff] %v897
      %930 = vst [vmem:[#allocation3 + $0x8f0] sm:$0xff] %v898
      %v931 = vld [vmem:[%s802 + $0x2] sm:$0xff]
      %v932 = vld [vmem:[%s802 + $0xa] sm:$0xff]
      %v933 = vld [vmem:[%s802 + $0x1a] sm:$0xff]
      %v934 = vld [vmem:[%s802 + $0x22] sm:$0xff]
      %v935 = vld [vmem:[%s802 + $0x32] sm:$0xff]
      %v936 = vld [vmem:[%s802 + $0x3a] sm:$0xff]
      %v937 = vld [vmem:[%s802 + $0x4a] sm:$0xff]
      %v938 = vld [vmem:[%s802 + $0x52] sm:$0xff]
      %v939 = vld [vmem:[%s802 + $0x62] sm:$0xff]
      %v940 = vld [vmem:[%s802 + $0x6a] sm:$0xff]
      %v941 = vld [vmem:[%s802 + $0x7a] sm:$0xff]
      %v942 = vld [vmem:[%s802 + $0x82] sm:$0xff]
      %v943 = vld [vmem:[%s802 + $0x92] sm:$0xff]
      %v944 = vld [vmem:[%s802 + $0x9a] sm:$0xff]
      %v945 = vld [vmem:[%s802 + $0xaa] sm:$0xff]
      %v946 = vld [vmem:[%s802 + $0xb2] sm:$0xff]
      %v947 = vld [vmem:[%s802 + $0xc2] sm:$0xff]
      %v948 = vld [vmem:[%s802 + $0xca] sm:$0xff]
      %v949 = vld [vmem:[%s802 + $0xda] sm:$0xff]
      %v950 = vld [vmem:[%s802 + $0xe2] sm:$0xff]
      %v951 = vld [vmem:[%s802 + $0xf2] sm:$0xff]
      %v952 = vld [vmem:[%s802 + $0xfa] sm:$0xff]
      %v953 = vld [vmem:[%s802 + $0x10a] sm:$0xff]
      %v954 = vld [vmem:[%s802 + $0x112] sm:$0xff]
      %v955 = vld [vmem:[%s802 + $0x122] sm:$0xff]
      %v956 = vld [vmem:[%s802 + $0x12a] sm:$0xff]
      %v957 = vld [vmem:[%s802 + $0x13a] sm:$0xff]
      %v958 = vld [vmem:[%s802 + $0x142] sm:$0xff]
      %v959 = vld [vmem:[%s802 + $0x152] sm:$0xff]
      %v960 = vld [vmem:[%s802 + $0x15a] sm:$0xff]
      %v961 = vld [vmem:[%s802 + $0x16a] sm:$0xff]
      %v962 = vld [vmem:[%s802 + $0x172] sm:$0xff]
      %963 = vst [vmem:[#allocation3 + $0x40] sm:$0xff] %v931
      %964 = vst [vmem:[#allocation3 + $0x88] sm:$0xff] %v932
      %965 = vst [vmem:[#allocation3 + $0xd0] sm:$0xff] %v933
      %966 = vst [vmem:[#allocation3 + $0x118] sm:$0xff] %v934
      %967 = vst [vmem:[#allocation3 + $0x160] sm:$0xff] %v935
      %968 = vst [vmem:[#allocation3 + $0x1a8] sm:$0xff] %v936
      %969 = vst [vmem:[#allocation3 + $0x1f0] sm:$0xff] %v937
      %970 = vst [vmem:[#allocation3 + $0x238] sm:$0xff] %v938
      %971 = vst [vmem:[#allocation3 + $0x280] sm:$0xff] %v939
      %972 = vst [vmem:[#allocation3 + $0x2c8] sm:$0xff] %v940
      %973 = vst [vmem:[#allocation3 + $0x310] sm:$0xff] %v941
      %974 = vst [vmem:[#allocation3 + $0x358] sm:$0xff] %v942
      %975 = vst [vmem:[#allocation3 + $0x3a0] sm:$0xff] %v943
      %976 = vst [vmem:[#allocation3 + $0x3e8] sm:$0xff] %v944
      %977 = vst [vmem:[#allocation3 + $0x430] sm:$0xff] %v945
      %978 = vst [vmem:[#allocation3 + $0x478] sm:$0xff] %v946
      %979 = vst [vmem:[#allocation3 + $0x4c0] sm:$0xff] %v947
      %980 = vst [vmem:[#allocation3 + $0x508] sm:$0xff] %v948
      %981 = vst [vmem:[#allocation3 + $0x550] sm:$0xff] %v949
      %982 = vst [vmem:[#allocation3 + $0x598] sm:$0xff] %v950
      %983 = vst [vmem:[#allocation3 + $0x5e0] sm:$0xff] %v951
      %984 = vst [vmem:[#allocation3 + $0x628] sm:$0xff] %v952
      %985 = vst [vmem:[#allocation3 + $0x670] sm:$0xff] %v953
      %986 = vst [vmem:[#allocation3 + $0x6b8] sm:$0xff] %v954
      %987 = vst [vmem:[#allocation3 + $0x700] sm:$0xff] %v955
      %988 = vst [vmem:[#allocation3 + $0x748] sm:$0xff] %v956
      %989 = vst [vmem:[#allocation3 + $0x790] sm:$0xff] %v957
      %990 = vst [vmem:[#allocation3 + $0x7d8] sm:$0xff] %v958
      %991 = vst [vmem:[#allocation3 + $0x820] sm:$0xff] %v959
      %992 = vst [vmem:[#allocation3 + $0x868] sm:$0xff] %v960
      %993 = vst [vmem:[#allocation3 + $0x8b0] sm:$0xff] %v961
      %994 = vst [vmem:[#allocation3 + $0x8f8] sm:$0xff] %v962
      %v995 = vld [vmem:[#allocation3] sm:$0xff]
      %v996 = vld [vmem:[#allocation3 + $0x8] sm:$0xff]
      %v997 = vld [vmem:[#allocation3 + $0x10] sm:$0xff]
      %v998 = vld [vmem:[#allocation3 + $0x18] sm:$0xff]
      %v999 = vld [vmem:[#allocation3 + $0x20] sm:$0xff]
      %v1000 = vld [vmem:[#allocation3 + $0x28] sm:$0xff]
      %v1001 = vld [vmem:[#allocation3 + $0x30] sm:$0xff]
      %v1002 = vld [vmem:[#allocation3 + $0x38] sm:$0xff]
      %v1003 = vld [vmem:[#allocation3 + $0x40] sm:$0xff]
      %v1004 = vld [vmem:[#allocation3 + $0x48] sm:$0xff]
      %v1005 = vld [vmem:[#allocation3 + $0x50] sm:$0xff]
      %v1006 = vld [vmem:[#allocation3 + $0x58] sm:$0xff]
      %v1007 = vld [vmem:[#allocation3 + $0x60] sm:$0xff]
      %v1008 = vld [vmem:[#allocation3 + $0x68] sm:$0xff]
      %v1009 = vld [vmem:[#allocation3 + $0x70] sm:$0xff]
      %v1010 = vld [vmem:[#allocation3 + $0x78] sm:$0xff]
      %v1011 = vld [vmem:[#allocation3 + $0x80] sm:$0xff]
      %v1012 = vld [vmem:[#allocation3 + $0x88] sm:$0xff]
      %v1013 = vld [vmem:[#allocation3 + $0x90] sm:$0xff]
      %v1014 = vld [vmem:[#allocation3 + $0x98] sm:$0xff]
      %v1015 = vld [vmem:[#allocation3 + $0xa0] sm:$0xff]
      %v1016 = vld [vmem:[#allocation3 + $0xa8] sm:$0xff]
      %v1017 = vld [vmem:[#allocation3 + $0xb0] sm:$0xff]
      %v1018 = vld [vmem:[#allocation3 + $0xb8] sm:$0xff]
      %v1019 = vld [vmem:[#allocation3 + $0xc0] sm:$0xff]
      %v1020 = vld [vmem:[#allocation3 + $0xc8] sm:$0xff]
      %v1021 = vld [vmem:[#allocation3 + $0xd0] sm:$0xff]
      %v1022 = vld [vmem:[#allocation3 + $0xd8] sm:$0xff]
      %v1023 = vld [vmem:[#allocation3 + $0xe0] sm:$0xff]
      %v1024 = vld [vmem:[#allocation3 + $0xe8] sm:$0xff]
      %v1025 = vld [vmem:[#allocation3 + $0xf0] sm:$0xff]
      %v1026 = vld [vmem:[#allocation3 + $0xf8] sm:$0xff]
      %v1027 = vld [vmem:[#allocation3 + $0x100] sm:$0xff]
      %v1028 = vld [vmem:[#allocation3 + $0x108] sm:$0xff]
      %v1029 = vld [vmem:[#allocation3 + $0x110] sm:$0xff]
      %v1030 = vld [vmem:[#allocation3 + $0x118] sm:$0xff]
      %v1031 = vld [vmem:[#allocation3 + $0x120] sm:$0xff]
      %v1032 = vld [vmem:[#allocation3 + $0x128] sm:$0xff]
      %v1033 = vld [vmem:[#allocation3 + $0x130] sm:$0xff]
      %v1034 = vld [vmem:[#allocation3 + $0x138] sm:$0xff]
      %v1035 = vld [vmem:[#allocation3 + $0x140] sm:$0xff]
      %v1036 = vld [vmem:[#allocation3 + $0x148] sm:$0xff]
      %v1037 = vld [vmem:[#allocation3 + $0x150] sm:$0xff]
      %v1038 = vld [vmem:[#allocation3 + $0x158] sm:$0xff]
      %v1039 = vld [vmem:[#allocation3 + $0x160] sm:$0xff]
      %v1040 = vld [vmem:[#allocation3 + $0x168] sm:$0xff]
      %v1041 = vld [vmem:[#allocation3 + $0x170] sm:$0xff]
      %v1042 = vld [vmem:[#allocation3 + $0x178] sm:$0xff]
      %v1043 = vld [vmem:[#allocation3 + $0x180] sm:$0xff]
      %v1044 = vld [vmem:[#allocation3 + $0x188] sm:$0xff]
      %v1045 = vld [vmem:[#allocation3 + $0x190] sm:$0xff]
      %v1046 = vld [vmem:[#allocation3 + $0x198] sm:$0xff]
      %v1047 = vld [vmem:[#allocation3 + $0x1a0] sm:$0xff]
      %v1048 = vld [vmem:[#allocation3 + $0x1a8] sm:$0xff]
      %v1049 = vld [vmem:[#allocation3 + $0x1b0] sm:$0xff]
      %v1050 = vld [vmem:[#allocation3 + $0x1b8] sm:$0xff]
      %v1051 = vld [vmem:[#allocation3 + $0x1c0] sm:$0xff]
      %v1052 = vld [vmem:[#allocation3 + $0x1c8] sm:$0xff]
      %v1053 = vld [vmem:[#allocation3 + $0x1d0] sm:$0xff]
      %v1054 = vld [vmem:[#allocation3 + $0x1d8] sm:$0xff]
      %v1055 = vld [vmem:[#allocation3 + $0x1e0] sm:$0xff]
      %v1056 = vld [vmem:[#allocation3 + $0x1e8] sm:$0xff]
      %v1057 = vld [vmem:[#allocation3 + $0x1f0] sm:$0xff]
      %v1058 = vld [vmem:[#allocation3 + $0x1f8] sm:$0xff]
      %v1059 = vld [vmem:[#allocation3 + $0x200] sm:$0xff]
      %v1060 = vld [vmem:[#allocation3 + $0x208] sm:$0xff]
      %v1061 = vld [vmem:[#allocation3 + $0x210] sm:$0xff]
      %v1062 = vld [vmem:[#allocation3 + $0x218] sm:$0xff]
      %v1063 = vld [vmem:[#allocation3 + $0x220] sm:$0xff]
      %v1064 = vld [vmem:[#allocation3 + $0x228] sm:$0xff]
      %v1065 = vld [vmem:[#allocation3 + $0x230] sm:$0xff]
      %v1066 = vld [vmem:[#allocation3 + $0x238] sm:$0xff]
      %v1067 = vld [vmem:[#allocation3 + $0x240] sm:$0xff]
      %v1068 = vld [vmem:[#allocation3 + $0x248] sm:$0xff]
      %v1069 = vld [vmem:[#allocation3 + $0x250] sm:$0xff]
      %v1070 = vld [vmem:[#allocation3 + $0x258] sm:$0xff]
      %v1071 = vld [vmem:[#allocation3 + $0x260] sm:$0xff]
      %v1072 = vld [vmem:[#allocation3 + $0x268] sm:$0xff]
      %v1073 = vld [vmem:[#allocation3 + $0x270] sm:$0xff]
      %v1074 = vld [vmem:[#allocation3 + $0x278] sm:$0xff]
      %v1075 = vld [vmem:[#allocation3 + $0x280] sm:$0xff]
      %v1076 = vld [vmem:[#allocation3 + $0x288] sm:$0xff]
      %v1077 = vld [vmem:[#allocation3 + $0x290] sm:$0xff]
      %v1078 = vld [vmem:[#allocation3 + $0x298] sm:$0xff]
      %v1079 = vld [vmem:[#allocation3 + $0x2a0] sm:$0xff]
      %v1080 = vld [vmem:[#allocation3 + $0x2a8] sm:$0xff]
      %v1081 = vld [vmem:[#allocation3 + $0x2b0] sm:$0xff]
      %v1082 = vld [vmem:[#allocation3 + $0x2b8] sm:$0xff]
      %v1083 = vld [vmem:[#allocation3 + $0x2c0] sm:$0xff]
      %v1084 = vld [vmem:[#allocation3 + $0x2c8] sm:$0xff]
      %v1085 = vld [vmem:[#allocation3 + $0x2d0] sm:$0xff]
      %v1086 = vld [vmem:[#allocation3 + $0x2d8] sm:$0xff]
      %v1087 = vld [vmem:[#allocation3 + $0x2e0] sm:$0xff]
      %v1088 = vld [vmem:[#allocation3 + $0x2e8] sm:$0xff]
      %v1089 = vld [vmem:[#allocation3 + $0x2f0] sm:$0xff]
      %v1090 = vld [vmem:[#allocation3 + $0x2f8] sm:$0xff]
      %v1091 = vld [vmem:[#allocation3 + $0x300] sm:$0xff]
      %v1092 = vld [vmem:[#allocation3 + $0x308] sm:$0xff]
      %v1093 = vld [vmem:[#allocation3 + $0x310] sm:$0xff]
      %v1094 = vld [vmem:[#allocation3 + $0x318] sm:$0xff]
      %v1095 = vld [vmem:[#allocation3 + $0x320] sm:$0xff]
      %v1096 = vld [vmem:[#allocation3 + $0x328] sm:$0xff]
      %v1097 = vld [vmem:[#allocation3 + $0x330] sm:$0xff]
      %v1098 = vld [vmem:[#allocation3 + $0x338] sm:$0xff]
      %v1099 = vld [vmem:[#allocation3 + $0x340] sm:$0xff]
      %v1100 = vld [vmem:[#allocation3 + $0x348] sm:$0xff]
      %v1101 = vld [vmem:[#allocation3 + $0x350] sm:$0xff]
      %v1102 = vld [vmem:[#allocation3 + $0x358] sm:$0xff]
      %v1103 = vld [vmem:[#allocation3 + $0x360] sm:$0xff]
      %v1104 = vld [vmem:[#allocation3 + $0x368] sm:$0xff]
      %v1105 = vld [vmem:[#allocation3 + $0x370] sm:$0xff]
      %v1106 = vld [vmem:[#allocation3 + $0x378] sm:$0xff]
      %v1107 = vld [vmem:[#allocation3 + $0x380] sm:$0xff]
      %v1108 = vld [vmem:[#allocation3 + $0x388] sm:$0xff]
      %v1109 = vld [vmem:[#allocation3 + $0x390] sm:$0xff]
      %v1110 = vld [vmem:[#allocation3 + $0x398] sm:$0xff]
      %v1111 = vld [vmem:[#allocation3 + $0x3a0] sm:$0xff]
      %v1112 = vld [vmem:[#allocation3 + $0x3a8] sm:$0xff]
      %v1113 = vld [vmem:[#allocation3 + $0x3b0] sm:$0xff]
      %v1114 = vld [vmem:[#allocation3 + $0x3b8] sm:$0xff]
      %v1115 = vld [vmem:[#allocation3 + $0x3c0] sm:$0xff]
      %v1116 = vld [vmem:[#allocation3 + $0x3c8] sm:$0xff]
      %v1117 = vld [vmem:[#allocation3 + $0x3d0] sm:$0xff]
      %v1118 = vld [vmem:[#allocation3 + $0x3d8] sm:$0xff]
      %v1119 = vld [vmem:[#allocation3 + $0x3e0] sm:$0xff]
      %v1120 = vld [vmem:[#allocation3 + $0x3e8] sm:$0xff]
      %v1121 = vld [vmem:[#allocation3 + $0x3f0] sm:$0xff]
      %v1122 = vld [vmem:[#allocation3 + $0x3f8] sm:$0xff]
      %v1123 = vld [vmem:[#allocation3 + $0x400] sm:$0xff]
      %v1124 = vld [vmem:[#allocation3 + $0x408] sm:$0xff]
      %v1125 = vld [vmem:[#allocation3 + $0x410] sm:$0xff]
      %v1126 = vld [vmem:[#allocation3 + $0x418] sm:$0xff]
      %v1127 = vld [vmem:[#allocation3 + $0x420] sm:$0xff]
      %v1128 = vld [vmem:[#allocation3 + $0x428] sm:$0xff]
      %v1129 = vld [vmem:[#allocation3 + $0x430] sm:$0xff]
      %v1130 = vld [vmem:[#allocation3 + $0x438] sm:$0xff]
      %v1131 = vld [vmem:[#allocation3 + $0x440] sm:$0xff]
      %v1132 = vld [vmem:[#allocation3 + $0x448] sm:$0xff]
      %v1133 = vld [vmem:[#allocation3 + $0x450] sm:$0xff]
      %v1134 = vld [vmem:[#allocation3 + $0x458] sm:$0xff]
      %v1135 = vld [vmem:[#allocation3 + $0x460] sm:$0xff]
      %v1136 = vld [vmem:[#allocation3 + $0x468] sm:$0xff]
      %v1137 = vld [vmem:[#allocation3 + $0x470] sm:$0xff]
      %v1138 = vld [vmem:[#allocation3 + $0x478] sm:$0xff]
      %v1139 = vld [vmem:[#allocation3 + $0x480] sm:$0xff]
      %v1140 = vld [vmem:[#allocation3 + $0x488] sm:$0xff]
      %v1141 = vld [vmem:[#allocation3 + $0x490] sm:$0xff]
      %v1142 = vld [vmem:[#allocation3 + $0x498] sm:$0xff]
      %v1143 = vld [vmem:[#allocation3 + $0x4a0] sm:$0xff]
      %v1144 = vld [vmem:[#allocation3 + $0x4a8] sm:$0xff]
      %v1145 = vld [vmem:[#allocation3 + $0x4b0] sm:$0xff]
      %v1146 = vld [vmem:[#allocation3 + $0x4b8] sm:$0xff]
      %v1147 = vld [vmem:[#allocation3 + $0x4c0] sm:$0xff]
      %v1148 = vld [vmem:[#allocation3 + $0x4c8] sm:$0xff]
      %v1149 = vld [vmem:[#allocation3 + $0x4d0] sm:$0xff]
      %v1150 = vld [vmem:[#allocation3 + $0x4d8] sm:$0xff]
      %v1151 = vld [vmem:[#allocation3 + $0x4e0] sm:$0xff]
      %v1152 = vld [vmem:[#allocation3 + $0x4e8] sm:$0xff]
      %v1153 = vld [vmem:[#allocation3 + $0x4f0] sm:$0xff]
      %v1154 = vld [vmem:[#allocation3 + $0x4f8] sm:$0xff]
      %v1155 = vld [vmem:[#allocation3 + $0x500] sm:$0xff]
      %v1156 = vld [vmem:[#allocation3 + $0x508] sm:$0xff]
      %v1157 = vld [vmem:[#allocation3 + $0x510] sm:$0xff]
      %v1158 = vld [vmem:[#allocation3 + $0x518] sm:$0xff]
      %v1159 = vld [vmem:[#allocation3 + $0x520] sm:$0xff]
      %v1160 = vld [vmem:[#allocation3 + $0x528] sm:$0xff]
      %v1161 = vld [vmem:[#allocation3 + $0x530] sm:$0xff]
      %v1162 = vld [vmem:[#allocation3 + $0x538] sm:$0xff]
      %v1163 = vld [vmem:[#allocation3 + $0x540] sm:$0xff]
      %v1164 = vld [vmem:[#allocation3 + $0x548] sm:$0xff]
      %v1165 = vld [vmem:[#allocation3 + $0x550] sm:$0xff]
      %v1166 = vld [vmem:[#allocation3 + $0x558] sm:$0xff]
      %v1167 = vld [vmem:[#allocation3 + $0x560] sm:$0xff]
      %v1168 = vld [vmem:[#allocation3 + $0x568] sm:$0xff]
      %v1169 = vld [vmem:[#allocation3 + $0x570] sm:$0xff]
      %v1170 = vld [vmem:[#allocation3 + $0x578] sm:$0xff]
      %v1171 = vld [vmem:[#allocation3 + $0x580] sm:$0xff]
      %v1172 = vld [vmem:[#allocation3 + $0x588] sm:$0xff]
      %v1173 = vld [vmem:[#allocation3 + $0x590] sm:$0xff]
      %v1174 = vld [vmem:[#allocation3 + $0x598] sm:$0xff]
      %v1175 = vld [vmem:[#allocation3 + $0x5a0] sm:$0xff]
      %v1176 = vld [vmem:[#allocation3 + $0x5a8] sm:$0xff]
      %v1177 = vld [vmem:[#allocation3 + $0x5b0] sm:$0xff]
      %v1178 = vld [vmem:[#allocation3 + $0x5b8] sm:$0xff]
      %v1179 = vld [vmem:[#allocation3 + $0x5c0] sm:$0xff]
      %v1180 = vld [vmem:[#allocation3 + $0x5c8] sm:$0xff]
      %v1181 = vld [vmem:[#allocation3 + $0x5d0] sm:$0xff]
      %v1182 = vld [vmem:[#allocation3 + $0x5d8] sm:$0xff]
      %v1183 = vld [vmem:[#allocation3 + $0x5e0] sm:$0xff]
      %v1184 = vld [vmem:[#allocation3 + $0x5e8] sm:$0xff]
      %v1185 = vld [vmem:[#allocation3 + $0x5f0] sm:$0xff]
      %v1186 = vld [vmem:[#allocation3 + $0x5f8] sm:$0xff]
      %v1187 = vld [vmem:[#allocation3 + $0x600] sm:$0xff]
      %v1188 = vld [vmem:[#allocation3 + $0x608] sm:$0xff]
      %v1189 = vld [vmem:[#allocation3 + $0x610] sm:$0xff]
      %v1190 = vld [vmem:[#allocation3 + $0x618] sm:$0xff]
      %v1191 = vld [vmem:[#allocation3 + $0x620] sm:$0xff]
      %v1192 = vld [vmem:[#allocation3 + $0x628] sm:$0xff]
      %v1193 = vld [vmem:[#allocation3 + $0x630] sm:$0xff]
      %v1194 = vld [vmem:[#allocation3 + $0x638] sm:$0xff]
      %v1195 = vld [vmem:[#allocation3 + $0x640] sm:$0xff]
      %v1196 = vld [vmem:[#allocation3 + $0x648] sm:$0xff]
      %v1197 = vld [vmem:[#allocation3 + $0x650] sm:$0xff]
      %v1198 = vld [vmem:[#allocation3 + $0x658] sm:$0xff]
      %v1199 = vld [vmem:[#allocation3 + $0x660] sm:$0xff]
      %v1200 = vld [vmem:[#allocation3 + $0x668] sm:$0xff]
      %v1201 = vld [vmem:[#allocation3 + $0x670] sm:$0xff]
      %v1202 = vld [vmem:[#allocation3 + $0x678] sm:$0xff]
      %v1203 = vld [vmem:[#allocation3 + $0x680] sm:$0xff]
      %v1204 = vld [vmem:[#allocation3 + $0x688] sm:$0xff]
      %v1205 = vld [vmem:[#allocation3 + $0x690] sm:$0xff]
      %v1206 = vld [vmem:[#allocation3 + $0x698] sm:$0xff]
      %v1207 = vld [vmem:[#allocation3 + $0x6a0] sm:$0xff]
      %v1208 = vld [vmem:[#allocation3 + $0x6a8] sm:$0xff]
      %v1209 = vld [vmem:[#allocation3 + $0x6b0] sm:$0xff]
      %v1210 = vld [vmem:[#allocation3 + $0x6b8] sm:$0xff]
      %v1211 = vld [vmem:[#allocation3 + $0x6c0] sm:$0xff]
      %v1212 = vld [vmem:[#allocation3 + $0x6c8] sm:$0xff]
      %v1213 = vld [vmem:[#allocation3 + $0x6d0] sm:$0xff]
      %v1214 = vld [vmem:[#allocation3 + $0x6d8] sm:$0xff]
      %v1215 = vld [vmem:[#allocation3 + $0x6e0] sm:$0xff]
      %v1216 = vld [vmem:[#allocation3 + $0x6e8] sm:$0xff]
      %v1217 = vld [vmem:[#allocation3 + $0x6f0] sm:$0xff]
      %v1218 = vld [vmem:[#allocation3 + $0x6f8] sm:$0xff]
      %v1219 = vld [vmem:[#allocation3 + $0x700] sm:$0xff]
      %v1220 = vld [vmem:[#allocation3 + $0x708] sm:$0xff]
      %v1221 = vld [vmem:[#allocation3 + $0x710] sm:$0xff]
      %v1222 = vld [vmem:[#allocation3 + $0x718] sm:$0xff]
      %v1223 = vld [vmem:[#allocation3 + $0x720] sm:$0xff]
      %v1224 = vld [vmem:[#allocation3 + $0x728] sm:$0xff]
      %v1225 = vld [vmem:[#allocation3 + $0x730] sm:$0xff]
      %v1226 = vld [vmem:[#allocation3 + $0x738] sm:$0xff]
      %v1227 = vld [vmem:[#allocation3 + $0x740] sm:$0xff]
      %v1228 = vld [vmem:[#allocation3 + $0x748] sm:$0xff]
      %v1229 = vld [vmem:[#allocation3 + $0x750] sm:$0xff]
      %v1230 = vld [vmem:[#allocation3 + $0x758] sm:$0xff]
      %v1231 = vld [vmem:[#allocation3 + $0x760] sm:$0xff]
      %v1232 = vld [vmem:[#allocation3 + $0x768] sm:$0xff]
      %v1233 = vld [vmem:[#allocation3 + $0x770] sm:$0xff]
      %v1234 = vld [vmem:[#allocation3 + $0x778] sm:$0xff]
      %v1235 = vld [vmem:[#allocation3 + $0x780] sm:$0xff]
      %v1236 = vld [vmem:[#allocation3 + $0x788] sm:$0xff]
      %v1237 = vld [vmem:[#allocation3 + $0x790] sm:$0xff]
      %v1238 = vld [vmem:[#allocation3 + $0x798] sm:$0xff]
      %v1239 = vld [vmem:[#allocation3 + $0x7a0] sm:$0xff]
      %v1240 = vld [vmem:[#allocation3 + $0x7a8] sm:$0xff]
      %v1241 = vld [vmem:[#allocation3 + $0x7b0] sm:$0xff]
      %v1242 = vld [vmem:[#allocation3 + $0x7b8] sm:$0xff]
      %v1243 = vld [vmem:[#allocation3 + $0x7c0] sm:$0xff]
      %v1244 = vld [vmem:[#allocation3 + $0x7c8] sm:$0xff]
      %v1245 = vld [vmem:[#allocation3 + $0x7d0] sm:$0xff]
      %v1246 = vld [vmem:[#allocation3 + $0x7d8] sm:$0xff]
      %v1247 = vld [vmem:[#allocation3 + $0x7e0] sm:$0xff]
      %v1248 = vld [vmem:[#allocation3 + $0x7e8] sm:$0xff]
      %v1249 = vld [vmem:[#allocation3 + $0x7f0] sm:$0xff]
      %v1250 = vld [vmem:[#allocation3 + $0x7f8] sm:$0xff]
      %v1251 = vld [vmem:[#allocation3 + $0x800] sm:$0xff]
      %v1252 = vld [vmem:[#allocation3 + $0x808] sm:$0xff]
      %v1253 = vld [vmem:[#allocation3 + $0x810] sm:$0xff]
      %v1254 = vld [vmem:[#allocation3 + $0x818] sm:$0xff]
      %v1255 = vld [vmem:[#allocation3 + $0x820] sm:$0xff]
      %v1256 = vld [vmem:[#allocation3 + $0x828] sm:$0xff]
      %v1257 = vld [vmem:[#allocation3 + $0x830] sm:$0xff]
      %v1258 = vld [vmem:[#allocation3 + $0x838] sm:$0xff]
      %v1259 = vld [vmem:[#allocation3 + $0x840] sm:$0xff]
      %v1260 = vld [vmem:[#allocation3 + $0x848] sm:$0xff]
      %v1261 = vld [vmem:[#allocation3 + $0x850] sm:$0xff]
      %v1262 = vld [vmem:[#allocation3 + $0x858] sm:$0xff]
      %v1263 = vld [vmem:[#allocation3 + $0x860] sm:$0xff]
      %v1264 = vld [vmem:[#allocation3 + $0x868] sm:$0xff]
      %v1265 = vld [vmem:[#allocation3 + $0x870] sm:$0xff]
      %v1266 = vld [vmem:[#allocation3 + $0x878] sm:$0xff]
      %v1267 = vld [vmem:[#allocation3 + $0x880] sm:$0xff]
      %v1268 = vld [vmem:[#allocation3 + $0x888] sm:$0xff]
      %v1269 = vld [vmem:[#allocation3 + $0x890] sm:$0xff]
      %v1270 = vld [vmem:[#allocation3 + $0x898] sm:$0xff]
      %v1271 = vld [vmem:[#allocation3 + $0x8a0] sm:$0xff]
      %v1272 = vld [vmem:[#allocation3 + $0x8a8] sm:$0xff]
      %v1273 = vld [vmem:[#allocation3 + $0x8b0] sm:$0xff]
      %v1274 = vld [vmem:[#allocation3 + $0x8b8] sm:$0xff]
      %v1275 = vld [vmem:[#allocation3 + $0x8c0] sm:$0xff]
      %v1276 = vld [vmem:[#allocation3 + $0x8c8] sm:$0xff]
      %v1277 = vld [vmem:[#allocation3 + $0x8d0] sm:$0xff]
      %v1278 = vld [vmem:[#allocation3 + $0x8d8] sm:$0xff]
      %v1279 = vld [vmem:[#allocation3 + $0x8e0] sm:$0xff]
      %v1280 = vld [vmem:[#allocation3 + $0x8e8] sm:$0xff]
      %v1281 = vld [vmem:[#allocation3 + $0x8f0] sm:$0xff]
      %v1282 = vld [vmem:[#allocation3 + $0x8f8] sm:$0xff]
      %v1283 = vld [vmem:[%s1] sm:$0xff]
      %v1284 = vld [vmem:[%s1 + $0x8] sm:$0xff]
      %v1285 = vld [vmem:[%s1 + $0x10] sm:$0xff]
      %v1286 = vld [vmem:[%s1 + $0x18] sm:$0xff]
      %v1287 = vld [vmem:[%s1 + $0x20] sm:$0xff]
      %v1288 = vld [vmem:[%s1 + $0x28] sm:$0xff]
      %v1289 = vld [vmem:[%s1 + $0x30] sm:$0xff]
      %v1290 = vld [vmem:[%s1 + $0x38] sm:$0xff]
      %v1291 = vld [vmem:[%s1 + $0x40] sm:$0xff]
      %v1292 = vld [vmem:[%s1 + $0x48] sm:$0xff]
      %v1293 = vld [vmem:[%s1 + $0x50] sm:$0xff]
      %v1294 = vld [vmem:[%s1 + $0x58] sm:$0xff]
      %v1295 = vld [vmem:[%s1 + $0x60] sm:$0xff]
      %v1296 = vld [vmem:[%s1 + $0x68] sm:$0xff]
      %v1297 = vld [vmem:[%s1 + $0x70] sm:$0xff]
      %v1298 = vld [vmem:[%s1 + $0x78] sm:$0xff]
      %v1299 = vld [vmem:[%s1 + $0x80] sm:$0xff]
      %v1300 = vld [vmem:[%s1 + $0x88] sm:$0xff]
      %v1301 = vld [vmem:[%s1 + $0x90] sm:$0xff]
      %v1302 = vld [vmem:[%s1 + $0x98] sm:$0xff]
      %v1303 = vld [vmem:[%s1 + $0xa0] sm:$0xff]
      %v1304 = vld [vmem:[%s1 + $0xa8] sm:$0xff]
      %v1305 = vld [vmem:[%s1 + $0xb0] sm:$0xff]
      %v1306 = vld [vmem:[%s1 + $0xb8] sm:$0xff]
      %v1307 = vld [vmem:[%s1 + $0xc0] sm:$0xff]
      %v1308 = vld [vmem:[%s1 + $0xc8] sm:$0xff]
      %v1309 = vld [vmem:[%s1 + $0xd0] sm:$0xff]
      %v1310 = vld [vmem:[%s1 + $0xd8] sm:$0xff]
      %v1311 = vld [vmem:[%s1 + $0xe0] sm:$0xff]
      %v1312 = vld [vmem:[%s1 + $0xe8] sm:$0xff]
      %v1313 = vld [vmem:[%s1 + $0xf0] sm:$0xff]
      %v1314 = vld [vmem:[%s1 + $0xf8] sm:$0xff]
      %v1315 = vld [vmem:[%s1 + $0x100] sm:$0xff]
      %v1316 = vld [vmem:[%s1 + $0x108] sm:$0xff]
      %v1317 = vld [vmem:[%s1 + $0x110] sm:$0xff]
      %v1318 = vld [vmem:[%s1 + $0x118] sm:$0xff]
      %v1319 = vld [vmem:[%s1 + $0x120] sm:$0xff]
      %v1320 = vld [vmem:[%s1 + $0x128] sm:$0xff]
      %v1321 = vld [vmem:[%s1 + $0x130] sm:$0xff]
      %v1322 = vld [vmem:[%s1 + $0x138] sm:$0xff]
      %v1323 = vld [vmem:[%s1 + $0x140] sm:$0xff]
      %v1324 = vld [vmem:[%s1 + $0x148] sm:$0xff]
      %v1325 = vld [vmem:[%s1 + $0x150] sm:$0xff]
      %v1326 = vld [vmem:[%s1 + $0x158] sm:$0xff]
      %v1327 = vld [vmem:[%s1 + $0x160] sm:$0xff]
      %v1328 = vld [vmem:[%s1 + $0x168] sm:$0xff]
      %v1329 = vld [vmem:[%s1 + $0x170] sm:$0xff]
      %v1330 = vld [vmem:[%s1 + $0x178] sm:$0xff]
      %v1331 = vld [vmem:[%s1 + $0x180] sm:$0xff]
      %v1332 = vld [vmem:[%s1 + $0x188] sm:$0xff]
      %v1333 = vld [vmem:[%s1 + $0x190] sm:$0xff]
      %v1334 = vld [vmem:[%s1 + $0x198] sm:$0xff]
      %v1335 = vld [vmem:[%s1 + $0x1a0] sm:$0xff]
      %v1336 = vld [vmem:[%s1 + $0x1a8] sm:$0xff]
      %v1337 = vld [vmem:[%s1 + $0x1b0] sm:$0xff]
      %v1338 = vld [vmem:[%s1 + $0x1b8] sm:$0xff]
      %v1339 = vld [vmem:[%s1 + $0x1c0] sm:$0xff]
      %v1340 = vld [vmem:[%s1 + $0x1c8] sm:$0xff]
      %v1341 = vld [vmem:[%s1 + $0x1d0] sm:$0xff]
      %v1342 = vld [vmem:[%s1 + $0x1d8] sm:$0xff]
      %v1343 = vld [vmem:[%s1 + $0x1e0] sm:$0xff]
      %v1344 = vld [vmem:[%s1 + $0x1e8] sm:$0xff]
      %v1345 = vld [vmem:[%s1 + $0x1f0] sm:$0xff]
      %v1346 = vld [vmem:[%s1 + $0x1f8] sm:$0xff]
      %v1347 = vld [vmem:[%s1 + $0x200] sm:$0xff]
      %v1348 = vld [vmem:[%s1 + $0x208] sm:$0xff]
      %v1349 = vld [vmem:[%s1 + $0x210] sm:$0xff]
      %v1350 = vld [vmem:[%s1 + $0x218] sm:$0xff]
      %v1351 = vld [vmem:[%s1 + $0x220] sm:$0xff]
      %v1352 = vld [vmem:[%s1 + $0x228] sm:$0xff]
      %v1353 = vld [vmem:[%s1 + $0x230] sm:$0xff]
      %v1354 = vld [vmem:[%s1 + $0x238] sm:$0xff]
      %v1355 = vld [vmem:[%s1 + $0x240] sm:$0xff]
      %v1356 = vld [vmem:[%s1 + $0x248] sm:$0xff]
      %v1357 = vld [vmem:[%s1 + $0x250] sm:$0xff]
      %v1358 = vld [vmem:[%s1 + $0x258] sm:$0xff]
      %v1359 = vld [vmem:[%s1 + $0x260] sm:$0xff]
      %v1360 = vld [vmem:[%s1 + $0x268] sm:$0xff]
      %v1361 = vld [vmem:[%s1 + $0x270] sm:$0xff]
      %v1362 = vld [vmem:[%s1 + $0x278] sm:$0xff]
      %v1363 = vld [vmem:[%s1 + $0x280] sm:$0xff]
      %v1364 = vld [vmem:[%s1 + $0x288] sm:$0xff]
      %v1365 = vld [vmem:[%s1 + $0x290] sm:$0xff]
      %v1366 = vld [vmem:[%s1 + $0x298] sm:$0xff]
      %v1367 = vld [vmem:[%s1 + $0x2a0] sm:$0xff]
      %v1368 = vld [vmem:[%s1 + $0x2a8] sm:$0xff]
      %v1369 = vld [vmem:[%s1 + $0x2b0] sm:$0xff]
      %v1370 = vld [vmem:[%s1 + $0x2b8] sm:$0xff]
      %v1371 = vld [vmem:[%s1 + $0x2c0] sm:$0xff]
      %v1372 = vld [vmem:[%s1 + $0x2c8] sm:$0xff]
      %v1373 = vld [vmem:[%s1 + $0x2d0] sm:$0xff]
      %v1374 = vld [vmem:[%s1 + $0x2d8] sm:$0xff]
      %v1375 = vld [vmem:[%s1 + $0x2e0] sm:$0xff]
      %v1376 = vld [vmem:[%s1 + $0x2e8] sm:$0xff]
      %v1377 = vld [vmem:[%s1 + $0x2f0] sm:$0xff]
      %v1378 = vld [vmem:[%s1 + $0x2f8] sm:$0xff]
      %v1379 = vld [vmem:[%s1 + $0x300] sm:$0xff]
      %v1380 = vld [vmem:[%s1 + $0x308] sm:$0xff]
      %v1381 = vld [vmem:[%s1 + $0x310] sm:$0xff]
      %v1382 = vld [vmem:[%s1 + $0x318] sm:$0xff]
      %v1383 = vld [vmem:[%s1 + $0x320] sm:$0xff]
      %v1384 = vld [vmem:[%s1 + $0x328] sm:$0xff]
      %v1385 = vld [vmem:[%s1 + $0x330] sm:$0xff]
      %v1386 = vld [vmem:[%s1 + $0x338] sm:$0xff]
      %v1387 = vld [vmem:[%s1 + $0x340] sm:$0xff]
      %v1388 = vld [vmem:[%s1 + $0x348] sm:$0xff]
      %v1389 = vld [vmem:[%s1 + $0x350] sm:$0xff]
      %v1390 = vld [vmem:[%s1 + $0x358] sm:$0xff]
      %v1391 = vld [vmem:[%s1 + $0x360] sm:$0xff]
      %v1392 = vld [vmem:[%s1 + $0x368] sm:$0xff]
      %v1393 = vld [vmem:[%s1 + $0x370] sm:$0xff]
      %v1394 = vld [vmem:[%s1 + $0x378] sm:$0xff]
      %v1395 = vld [vmem:[%s1 + $0x380] sm:$0xff]
      %v1396 = vld [vmem:[%s1 + $0x388] sm:$0xff]
      %v1397 = vld [vmem:[%s1 + $0x390] sm:$0xff]
      %v1398 = vld [vmem:[%s1 + $0x398] sm:$0xff]
      %v1399 = vld [vmem:[%s1 + $0x3a0] sm:$0xff]
      %v1400 = vld [vmem:[%s1 + $0x3a8] sm:$0xff]
      %v1401 = vld [vmem:[%s1 + $0x3b0] sm:$0xff]
      %v1402 = vld [vmem:[%s1 + $0x3b8] sm:$0xff]
      %v1403 = vld [vmem:[%s1 + $0x3c0] sm:$0xff]
      %v1404 = vld [vmem:[%s1 + $0x3c8] sm:$0xff]
      %v1405 = vld [vmem:[%s1 + $0x3d0] sm:$0xff]
      %v1406 = vld [vmem:[%s1 + $0x3d8] sm:$0xff]
      %v1407 = vld [vmem:[%s1 + $0x3e0] sm:$0xff]
      %v1408 = vld [vmem:[%s1 + $0x3e8] sm:$0xff]
      %v1409 = vld [vmem:[%s1 + $0x3f0] sm:$0xff]
      %v1410 = vld [vmem:[%s1 + $0x3f8] sm:$0xff]
      %v1411 = vld [vmem:[%s1 + $0x400] sm:$0xff]
      %v1412 = vld [vmem:[%s1 + $0x408] sm:$0xff]
      %v1413 = vld [vmem:[%s1 + $0x410] sm:$0xff]
      %v1414 = vld [vmem:[%s1 + $0x418] sm:$0xff]
      %v1415 = vld [vmem:[%s1 + $0x420] sm:$0xff]
      %v1416 = vld [vmem:[%s1 + $0x428] sm:$0xff]
      %v1417 = vld [vmem:[%s1 + $0x430] sm:$0xff]
      %v1418 = vld [vmem:[%s1 + $0x438] sm:$0xff]
      %v1419 = vld [vmem:[%s1 + $0x440] sm:$0xff]
      %v1420 = vld [vmem:[%s1 + $0x448] sm:$0xff]
      %v1421 = vld [vmem:[%s1 + $0x450] sm:$0xff]
      %v1422 = vld [vmem:[%s1 + $0x458] sm:$0xff]
      %v1423 = vld [vmem:[%s1 + $0x460] sm:$0xff]
      %v1424 = vld [vmem:[%s1 + $0x468] sm:$0xff]
      %v1425 = vld [vmem:[%s1 + $0x470] sm:$0xff]
      %v1426 = vld [vmem:[%s1 + $0x478] sm:$0xff]
      %1427 = vmatprep.subr.mxu0 0.0
      %1428 = vmatpush1.msra.mxu0 %v1283
      %1429 = vmatprep.subr.mxu0 0.0
      %1430 = vmatpush1.msra.mxu0 %v1284
      %1431 = vmatprep.subr.mxu0 0.0
      %1432 = vmatpush1.msra.mxu0 %v1285
      %1433 = vmatprep.subr.mxu0 0.0
      %1434 = vmatpush1.msra.mxu0 %v1286
      %1435 = vmatprep.subr.mxu0 0.0
      %1436 = vmatpush1.msra.mxu0 %v1287
      %1437 = vmatprep.subr.mxu0 0.0
      %1438 = vmatpush1.msra.mxu0 %v1288
      %1439 = vmatprep.subr.mxu0 0.0
      %1440 = vmatpush1.msra.mxu0 %v1289
      %1441 = vmatprep.subr.mxu0 0.0
      %1442 = vmatpush1.msra.mxu0 %v1290
      %1443 = vmatprep.subr.mxu0 0.0
      %1444 = vmatpush1.msra.mxu0 %v1291
      %1445 = vmatprep.subr.mxu0 0.0
      %1446 = vmatpush1.msra.mxu0 %v1292
      %1447 = vmatprep.subr.mxu0 0.0
      %1448 = vmatpush1.msra.mxu0 %v1293
      %1449 = vmatprep.subr.mxu0 0.0
      %1450 = vmatpush1.msra.mxu0 %v1294
      %1451 = vmatprep.subr.mxu0 0.0
      %1452 = vmatpush1.msra.mxu0 %v1295
      %1453 = vmatprep.subr.mxu0 0.0
      %1454 = vmatpush1.msra.mxu0 %v1296
      %1455 = vmatprep.subr.mxu0 0.0
      %1456 = vmatpush1.msra.mxu0 %v1297
      %1457 = vmatprep.subr.mxu0 0.0
      %1458 = vmatpush1.msra.mxu0 %v1298
      %1459 = vmatprep.subr.mxu0 0.0
      %1460 = vmatpush1.msra.mxu0 %v1299
      %1461 = vmatprep.subr.mxu0 0.0
      %1462 = vmatpush1.msra.mxu0 %v1300
      %1463 = vmatprep.subr.mxu0 0.0
      %1464 = vmatpush1.msra.mxu0 %v1301
      %1465 = vmatprep.subr.mxu0 0.0
      %1466 = vmatpush1.msra.mxu0 %v1302
      %1467 = vmatprep.subr.mxu0 0.0
      %1468 = vmatpush1.msra.mxu0 %v1303
      %1469 = vmatprep.subr.mxu0 0.0
      %1470 = vmatpush1.msra.mxu0 %v1304
      %1471 = vmatprep.subr.mxu0 0.0
      %1472 = vmatpush1.msra.mxu0 %v1305
      %1473 = vmatprep.subr.mxu0 0.0
      %1474 = vmatpush1.msra.mxu0 %v1306
      %1475 = vmatprep.subr.mxu0 0.0
      %1476 = vmatpush1.msra.mxu0 %v1307
      %1477 = vmatprep.subr.mxu0 0.0
      %1478 = vmatpush1.msra.mxu0 %v1308
      %1479 = vmatprep.subr.mxu0 0.0
      %1480 = vmatpush1.msra.mxu0 %v1309
      %1481 = vmatprep.subr.mxu0 0.0
      %1482 = vmatpush1.msra.mxu0 %v1310
      %1483 = vmatprep.subr.mxu0 0.0
      %1484 = vmatpush1.msra.mxu0 %v1311
      %1485 = vmatprep.subr.mxu0 0.0
      %1486 = vmatpush1.msra.mxu0 %v1312
      %1487 = vmatprep.subr.mxu0 0.0
      %1488 = vmatpush1.msra.mxu0 %v1313
      %1489 = vmatprep.subr.mxu0 0.0
      %1490 = vmatpush1.msra.mxu0 %v1314
      %1491 = vmatprep.mubr.f32.mxu0 %v996
      %1492 = vmatmul.mubr.f32.gmra.mrb[0].mxu0 %v995
      %v1493 = vpop.f32.mrb[0].mxu0
      %v1494 = vadd.f32 0.0, %v1493
      %v1495 = vpop.f32.mrb[0].mxu0
      %1496 = vmatprep.mubr.f32.mxu0 %v1005
      %1497 = vmatmul.mubr.f32.gmra.mrb[0].mxu0 %v1004
      %v1498 = vpop.f32.mrb[0].mxu0
      %v1499 = vadd.f32 0.0, %v1498
      %v1500 = vpop.f32.mrb[0].mxu0
      %1501 = vmatprep.mubr.f32.mxu0 %v1014
      %1502 = vmatmul.mubr.f32.gmra.mrb[0].mxu0 %v1013
      %v1503 = vpop.f32.mrb[0].mxu0
      %v1504 = vadd.f32 0.0, %v1503
      %v1505 = vpop.f32.mrb[0].mxu0
      %1506 = vmatprep.mubr.f32.mxu0 %v1023
      %1507 = vmatmul.mubr.f32.gmra.mrb[0].mxu0 %v1022
      %v1508 = vpop.f32.mrb[0].mxu0
      %v1509 = vadd.f32 0.0, %v1508
      %v1510 = vpop.f32.mrb[0].mxu0
      %1511 = vmatprep.mubr.f32.mxu0 %v1032
      %1512 = vmatmul.mubr.f32.gmra.mrb[0].mxu0 %v1031
      %v1513 = vpop.f32.mrb[0].mxu0
      %v1514 = vadd.f32 0.0, %v1513
      %v1515 = vpop.f32.mrb[0].mxu0
      %1516 = vmatprep.mubr.f32.mxu0 %v1041
      %1517 = vmatmul.mubr.f32.gmra.mrb[0].mxu0 %v1040
      %v1518 = vpop.f32.mrb[0].mxu0
      %v1519 = vadd.f32 0.0, %v1518
      %v1520 = vpop.f32.mrb[0].mxu0
      %1521 = vmatprep.mubr.f32.mxu0 %v1050
      %1522 = vmatmul.mubr.f32.gmra.mrb[0].mxu0 %v1049
      %v1523 = vpop.f32.mrb[0].mxu0
      %v1524 = vadd.f32 0.0, %v1523
      %v1525 = vpop.f32.mrb[0].mxu0
      %1526 = vmatprep.mubr.f32.mxu0 %v1059
      %1527 = vmatmul.mubr.f32.gmra.mrb[0].mxu0 %v1058
      %v1528 = vpop.f32.mrb[0].mxu0
      %v1529 = vadd.f32 0.0, %v1528
      %v1530 = vpop.f32.mrb[0].mxu0
      %1531 = vmatprep.mubr.f32.mxu0 %v1068
      %1532 = vmatmul.mubr.f32.gmra.mrb[0].mxu0 %v1067
      %v1533 = vpop.f32.mrb[0].mxu0
      %v1534 = vadd.f32 0.0, %v1533
      %v1535 = vpop.f32.mrb[0].mxu0
      %1536 = vmatprep.mubr.f32.mxu0 %v1077
      %1537 = vmatmul.mubr.f32.gmra.mrb[0].mxu0 %v1076
      %v1538 = vpop.f32.mrb[0].mxu0
      %v1539 = vadd.f32 0.0, %v1538
      %v1540 = vpop.f32.mrb[0].mxu0
      %1541 = vmatprep.mubr.f32.mxu0 %v1086
      %1542 = vmatmul.mubr.f32.gmra.mrb[0].mxu0 %v1085
      %v1543 = vpop.f32.mrb[0].mxu0
      %v1544 = vadd.f32 0.0, %v1543
      %v1545 = vpop.f32.mrb[0].mxu0
      %1546 = vmatprep.mubr.f32.mxu0 %v1095
      %1547 = vmatmul.mubr.f32.gmra.mrb[0].mxu0 %v1094
      %v1548 = vpop.f32.mrb[0].mxu0
      %v1549 = vadd.f32 0.0, %v1548
      %v1550 = vpop.f32.mrb[0].mxu0
      %1551 = vmatprep.mubr.f32.mxu0 %v1104
      %1552 = vmatmul.mubr.f32.gmra.mrb[0].mxu0 %v1103
      %v1553 = vpop.f32.mrb[0].mxu0
      %v1554 = vadd.f32 0.0, %v1553
      %v1555 = vpop.f32.mrb[0].mxu0
      %1556 = vmatprep.mubr.f32.mxu0 %v1113
      %1557 = vmatmul.mubr.f32.gmra.mrb[0].mxu0 %v1112
      %v1558 = vpop.f32.mrb[0].mxu0
      %v1559 = vadd.f32 0.0, %v1558
      %v1560 = vpop.f32.mrb[0].mxu0
      %1561 = vmatprep.mubr.f32.mxu0 %v1122
      %1562 = vmatmul.mubr.f32.gmra.mrb[0].mxu0 %v1121
      %v1563 = vpop.f32.mrb[0].mxu0
      %v1564 = vadd.f32 0.0, %v1563
      %v1565 = vpop.f32.mrb[0].mxu0
      %1566 = vmatprep.mubr.f32.mxu0 %v1131
      %1567 = vmatmul.mubr.f32.gmra.mrb[0].mxu0 %v1130
      %v1568 = vpop.f32.mrb[0].mxu0
      %v1569 = vadd.f32 0.0, %v1568
      %v1570 = vpop.f32.mrb[0].mxu0
      %1571 = vmatprep.mubr.f32.mxu0 %v1140
      %1572 = vmatmul.mubr.f32.gmra.mrb[0].mxu0 %v1139
      %v1573 = vpop.f32.mrb[0].mxu0
      %v1574 = vadd.f32 0.0, %v1573
      %v1575 = vpop.f32.mrb[0].mxu0
      %1576 = vmatprep.mubr.f32.mxu0 %v1149
      %1577 = vmatmul.mubr.f32.gmra.mrb[0].mxu0 %v1148
      %v1578 = vpop.f32.mrb[0].mxu0
      %v1579 = vadd.f32 0.0, %v1578
      %v1580 = vpop.f32.mrb[0].mxu0
      %1581 = vmatprep.mubr.f32.mxu0 %v1158
      %1582 = vmatmul.mubr.f32.gmra.mrb[0].mxu0 %v1157
      %v1583 = vpop.f32.mrb[0].mxu0
      %v1584 = vadd.f32 0.0, %v1583
      %v1585 = vpop.f32.mrb[0].mxu0
      %1586 = vmatprep.mubr.f32.mxu0 %v1167
      %1587 = vmatmul.mubr.f32.gmra.mrb[0].mxu0 %v1166
      %v1588 = vpop.f32.mrb[0].mxu0
      %v1589 = vadd.f32 0.0, %v1588
      %v1590 = vpop.f32.mrb[0].mxu0
      %1591 = vmatprep.mubr.f32.mxu0 %v1176
      %1592 = vmatmul.mubr.f32.gmra.mrb[0].mxu0 %v1175
      %v1593 = vpop.f32.mrb[0].mxu0
      %v1594 = vadd.f32 0.0, %v1593
      %v1595 = vpop.f32.mrb[0].mxu0
      %1596 = vmatprep.mubr.f32.mxu0 %v1185
      %1597 = vmatmul.mubr.f32.gmra.mrb[0].mxu0 %v1184
      %v1598 = vpop.f32.mrb[0].mxu0
      %v1599 = vadd.f32 0.0, %v1598
      %v1600 = vpop.f32.mrb[0].mxu0
      %1601 = vmatprep.mubr.f32.mxu0 %v1194
      %1602 = vmatmul.mubr.f32.gmra.mrb[0].mxu0 %v1193
      %v1603 = vpop.f32.mrb[0].mxu0
      %v1604 = vadd.f32 0.0, %v1603
      %v1605 = vpop.f32.mrb[0].mxu0
      %1606 = vmatprep.mubr.f32.mxu0 %v1203
      %1607 = vmatmul.mubr.f32.gmra.mrb[0].mxu0 %v1202
      %v1608 = vpop.f32.mrb[0].mxu0
      %v1609 = vadd.f32 0.0, %v1608
      %v1610 = vpop.f32.mrb[0].mxu0
      %1611 = vmatprep.mubr.f32.mxu0 %v1212
      %1612 = vmatmul.mubr.f32.gmra.mrb[0].mxu0 %v1211
      %v1613 = vpop.f32.mrb[0].mxu0
      %v1614 = vadd.f32 0.0, %v1613
      %v1615 = vpop.f32.mrb[0].mxu0
      %1616 = vmatprep.mubr.f32.mxu0 %v1221
      %1617 = vmatmul.mubr.f32.gmra.mrb[0].mxu0 %v1220
      %v1618 = vpop.f32.mrb[0].mxu0
      %v1619 = vadd.f32 0.0, %v1618
      %v1620 = vpop.f32.mrb[0].mxu0
      %1621 = vmatprep.mubr.f32.mxu0 %v1230
      %1622 = vmatmul.mubr.f32.gmra.mrb[0].mxu0 %v1229
      %v1623 = vpop.f32.mrb[0].mxu0
      %v1624 = vadd.f32 0.0, %v1623
      %v1625 = vpop.f32.mrb[0].mxu0
      %1626 = vmatprep.mubr.f32.mxu0 %v1239
      %1627 = vmatmul.mubr.f32.gmra.mrb[0].mxu0 %v1238
      %v1628 = vpop.f32.mrb[0].mxu0
      %v1629 = vadd.f32 0.0, %v1628
      %v1630 = vpop.f32.mrb[0].mxu0
      %1631 = vmatprep.mubr.f32.mxu0 %v1248
      %1632 = vmatmul.mubr.f32.gmra.mrb[0].mxu0 %v1247
      %v1633 = vpop.f32.mrb[0].mxu0
      %v1634 = vadd.f32 0.0, %v1633
      %v1635 = vpop.f32.mrb[0].mxu0
      %1636 = vmatprep.mubr.f32.mxu0 %v1257
      %1637 = vmatmul.mubr.f32.gmra.mrb[0].mxu0 %v1256
      %v1638 = vpop.f32.mrb[0].mxu0
      %v1639 = vadd.f32 0.0, %v1638
      %v1640 = vpop.f32.mrb[0].mxu0
      %1641 = vmatprep.mubr.f32.mxu0 %v1266
      %1642 = vmatmul.mubr.f32.gmra.mrb[0].mxu0 %v1265
      %v1643 = vpop.f32.mrb[0].mxu0
      %v1644 = vadd.f32 0.0, %v1643
      %v1645 = vpop.f32.mrb[0].mxu0
      %1646 = vmatprep.mubr.f32.mxu0 %v1275
      %1647 = vmatmul.mubr.f32.gmra.mrb[0].mxu0 %v1274
      %v1648 = vpop.f32.mrb[0].mxu0
      %v1649 = vadd.f32 0.0, %v1648
      %v1650 = vpop.f32.mrb[0].mxu0
      %1651 = vdwg.mxu0
      %1652 = vmatprep.subr.mxu0 0.0
      %1653 = vmatpush1.msra.mxu0 %v1315
      %1654 = vmatprep.subr.mxu0 0.0
      %1655 = vmatpush1.msra.mxu0 %v1316
      %1656 = vmatprep.subr.mxu0 0.0
      %1657 = vmatpush1.msra.mxu0 %v1317
      %1658 = vmatprep.subr.mxu0 0.0
      %1659 = vmatpush1.msra.mxu0 %v1318
      %1660 = vmatprep.subr.mxu0 0.0
      %1661 = vmatpush1.msra.mxu0 %v1319
      %1662 = vmatprep.subr.mxu0 0.0
      %1663 = vmatpush1.msra.mxu0 %v1320
      %1664 = vmatprep.subr.mxu0 0.0
      %1665 = vmatpush1.msra.mxu0 %v1321
      %1666 = vmatprep.subr.mxu0 0.0
      %1667 = vmatpush1.msra.mxu0 %v1322
      %1668 = vmatprep.subr.mxu0 0.0
      %1669 = vmatpush1.msra.mxu0 %v1323
      %1670 = vmatprep.subr.mxu0 0.0
      %1671 = vmatpush1.msra.mxu0 %v1324
      %1672 = vmatprep.subr.mxu0 0.0
      %1673 = vmatpush1.msra.mxu0 %v1325
      %1674 = vmatprep.subr.mxu0 0.0
      %1675 = vmatpush1.msra.mxu0 %v1326
      %1676 = vmatprep.subr.mxu0 0.0
      %1677 = vmatpush1.msra.mxu0 %v1327
      %1678 = vmatprep.subr.mxu0 0.0
      %1679 = vmatpush1.msra.mxu0 %v1328
      %1680 = vmatprep.subr.mxu0 0.0
      %1681 = vmatpush1.msra.mxu0 %v1329
      %1682 = vmatprep.subr.mxu0 0.0
      %1683 = vmatpush1.msra.mxu0 %v1330
      %1684 = vmatprep.subr.mxu0 0.0
      %1685 = vmatpush1.msra.mxu0 %v1331
      %1686 = vmatprep.subr.mxu0 0.0
      %1687 = vmatpush1.msra.mxu0 %v1332
      %1688 = vmatprep.subr.mxu0 0.0
      %1689 = vmatpush1.msra.mxu0 %v1333
      %1690 = vmatprep.subr.mxu0 0.0
      %1691 = vmatpush1.msra.mxu0 %v1334
      %1692 = vmatprep.subr.mxu0 0.0
      %1693 = vmatpush1.msra.mxu0 %v1335
      %1694 = vmatprep.subr.mxu0 0.0
      %1695 = vmatpush1.msra.mxu0 %v1336
      %1696 = vmatprep.subr.mxu0 0.0
      %1697 = vmatpush1.msra.mxu0 %v1337
      %1698 = vmatprep.subr.mxu0 0.0
      %1699 = vmatpush1.msra.mxu0 %v1338
      %1700 = vmatprep.subr.mxu0 0.0
      %1701 = vmatpush1.msra.mxu0 %v1339
      %1702 = vmatprep.subr.mxu0 0.0
      %1703 = vmatpush1.msra.mxu0 %v1340
      %1704 = vmatprep.subr.mxu0 0.0
      %1705 = vmatpush1.msra.mxu0 %v1341
      %1706 = vmatprep.subr.mxu0 0.0
      %1707 = vmatpush1.msra.mxu0 %v1342
      %1708 = vmatprep.subr.mxu0 0.0
      %1709 = vmatpush1.msra.mxu0 %v1343
      %1710 = vmatprep.subr.mxu0 0.0
      %1711 = vmatpush1.msra.mxu0 %v1344
      %1712 = vmatprep.subr.mxu0 0.0
      %1713 = vmatpush1.msra.mxu0 %v1345
      %1714 = vmatprep.subr.mxu0 0.0
      %1715 = vmatpush1.msra.mxu0 %v1346
      %1716 = vmatprep.mubr.f32.mxu0 %v998
      %1717 = vmatmul.mubr.f32.gmra.mrb[0].mxu0 %v997
      %v1718 = vpop.f32.mrb[0].mxu0
      %v1719 = vadd.f32 %v1494, %v1718
      %v1720 = vpop.f32.mrb[0].mxu0
      %1721 = vmatprep.mubr.f32.mxu0 %v1007
      %1722 = vmatmul.mubr.f32.gmra.mrb[0].mxu0 %v1006
      %v1723 = vpop.f32.mrb[0].mxu0
      %v1724 = vadd.f32 %v1499, %v1723
      %v1725 = vpop.f32.mrb[0].mxu0
      %1726 = vmatprep.mubr.f32.mxu0 %v1016
      %1727 = vmatmul.mubr.f32.gmra.mrb[0].mxu0 %v1015
      %v1728 = vpop.f32.mrb[0].mxu0
      %v1729 = vadd.f32 %v1504, %v1728
      %v1730 = vpop.f32.mrb[0].mxu0
      %1731 = vmatprep.mubr.f32.mxu0 %v1025
      %1732 = vmatmul.mubr.f32.gmra.mrb[0].mxu0 %v1024
      %v1733 = vpop.f32.mrb[0].mxu0
      %v1734 = vadd.f32 %v1509, %v1733
      %v1735 = vpop.f32.mrb[0].mxu0
      %1736 = vmatprep.mubr.f32.mxu0 %v1034
      %1737 = vmatmul.mubr.f32.gmra.mrb[0].mxu0 %v1033
      %v1738 = vpop.f32.mrb[0].mxu0
      %v1739 = vadd.f32 %v1514, %v1738
      %v1740 = vpop.f32.mrb[0].mxu0
      %1741 = vmatprep.mubr.f32.mxu0 %v1043
      %1742 = vmatmul.mubr.f32.gmra.mrb[0].mxu0 %v1042
      %v1743 = vpop.f32.mrb[0].mxu0
      %v1744 = vadd.f32 %v1519, %v1743
      %v1745 = vpop.f32.mrb[0].mxu0
      %1746 = vmatprep.mubr.f32.mxu0 %v1052
      %1747 = vmatmul.mubr.f32.gmra.mrb[0].mxu0 %v1051
      %v1748 = vpop.f32.mrb[0].mxu0
      %v1749 = vadd.f32 %v1524, %v1748
      %v1750 = vpop.f32.mrb[0].mxu0
      %1751 = vmatprep.mubr.f32.mxu0 %v1061
      %1752 = vmatmul.mubr.f32.gmra.mrb[0].mxu0 %v1060
      %v1753 = vpop.f32.mrb[0].mxu0
      %v1754 = vadd.f32 %v1529, %v1753
      %v1755 = vpop.f32.mrb[0].mxu0
      %1756 = vmatprep.mubr.f32.mxu0 %v1070
      %1757 = vmatmul.mubr.f32.gmra.mrb[0].mxu0 %v1069
      %v1758 = vpop.f32.mrb[0].mxu0
      %v1759 = vadd.f32 %v1534, %v1758
      %v1760 = vpop.f32.mrb[0].mxu0
      %1761 = vmatprep.mubr.f32.mxu0 %v1079
      %1762 = vmatmul.mubr.f32.gmra.mrb[0].mxu0 %v1078
      %v1763 = vpop.f32.mrb[0].mxu0
      %v1764 = vadd.f32 %v1539, %v1763
      %v1765 = vpop.f32.mrb[0].mxu0
      %1766 = vmatprep.mubr.f32.mxu0 %v1088
      %1767 = vmatmul.mubr.f32.gmra.mrb[0].mxu0 %v1087
      %v1768 = vpop.f32.mrb[0].mxu0
      %v1769 = vadd.f32 %v1544, %v1768
      %v1770 = vpop.f32.mrb[0].mxu0
      %1771 = vmatprep.mubr.f32.mxu0 %v1097
      %1772 = vmatmul.mubr.f32.gmra.mrb[0].mxu0 %v1096
      %v1773 = vpop.f32.mrb[0].mxu0
      %v1774 = vadd.f32 %v1549, %v1773
      %v1775 = vpop.f32.mrb[0].mxu0
      %1776 = vmatprep.mubr.f32.mxu0 %v1106
      %1777 = vmatmul.mubr.f32.gmra.mrb[0].mxu0 %v1105
      %v1778 = vpop.f32.mrb[0].mxu0
      %v1779 = vadd.f32 %v1554, %v1778
      %v1780 = vpop.f32.mrb[0].mxu0
      %1781 = vmatprep.mubr.f32.mxu0 %v1115
      %1782 = vmatmul.mubr.f32.gmra.mrb[0].mxu0 %v1114
      %v1783 = vpop.f32.mrb[0].mxu0
      %v1784 = vadd.f32 %v1559, %v1783
      %v1785 = vpop.f32.mrb[0].mxu0
      %1786 = vmatprep.mubr.f32.mxu0 %v1124
      %1787 = vmatmul.mubr.f32.gmra.mrb[0].mxu0 %v1123
      %v1788 = vpop.f32.mrb[0].mxu0
      %v1789 = vadd.f32 %v1564, %v1788
      %v1790 = vpop.f32.mrb[0].mxu0
      %1791 = vmatprep.mubr.f32.mxu0 %v1133
      %1792 = vmatmul.mubr.f32.gmra.mrb[0].mxu0 %v1132
      %v1793 = vpop.f32.mrb[0].mxu0
      %v1794 = vadd.f32 %v1569, %v1793
      %v1795 = vpop.f32.mrb[0].mxu0
      %1796 = vmatprep.mubr.f32.mxu0 %v1142
      %1797 = vmatmul.mubr.f32.gmra.mrb[0].mxu0 %v1141
      %v1798 = vpop.f32.mrb[0].mxu0
      %v1799 = vadd.f32 %v1574, %v1798
      %v1800 = vpop.f32.mrb[0].mxu0
      %1801 = vmatprep.mubr.f32.mxu0 %v1151
      %1802 = vmatmul.mubr.f32.gmra.mrb[0].mxu0 %v1150
      %v1803 = vpop.f32.mrb[0].mxu0
      %v1804 = vadd.f32 %v1579, %v1803
      %v1805 = vpop.f32.mrb[0].mxu0
      %1806 = vmatprep.mubr.f32.mxu0 %v1160
      %1807 = vmatmul.mubr.f32.gmra.mrb[0].mxu0 %v1159
      %v1808 = vpop.f32.mrb[0].mxu0
      %v1809 = vadd.f32 %v1584, %v1808
      %v1810 = vpop.f32.mrb[0].mxu0
      %1811 = vmatprep.mubr.f32.mxu0 %v1169
      %1812 = vmatmul.mubr.f32.gmra.mrb[0].mxu0 %v1168
      %v1813 = vpop.f32.mrb[0].mxu0
      %v1814 = vadd.f32 %v1589, %v1813
      %v1815 = vpop.f32.mrb[0].mxu0
      %1816 = vmatprep.mubr.f32.mxu0 %v1178
      %1817 = vmatmul.mubr.f32.gmra.mrb[0].mxu0 %v1177
      %v1818 = vpop.f32.mrb[0].mxu0
      %v1819 = vadd.f32 %v1594, %v1818
      %v1820 = vpop.f32.mrb[0].mxu0
      %1821 = vmatprep.mubr.f32.mxu0 %v1187
      %1822 = vmatmul.mubr.f32.gmra.mrb[0].mxu0 %v1186
      %v1823 = vpop.f32.mrb[0].mxu0
      %v1824 = vadd.f32 %v1599, %v1823
      %v1825 = vpop.f32.mrb[0].mxu0
      %1826 = vmatprep.mubr.f32.mxu0 %v1196
      %1827 = vmatmul.mubr.f32.gmra.mrb[0].mxu0 %v1195
      %v1828 = vpop.f32.mrb[0].mxu0
      %v1829 = vadd.f32 %v1604, %v1828
      %v1830 = vpop.f32.mrb[0].mxu0
      %1831 = vmatprep.mubr.f32.mxu0 %v1205
      %1832 = vmatmul.mubr.f32.gmra.mrb[0].mxu0 %v1204
      %v1833 = vpop.f32.mrb[0].mxu0
      %v1834 = vadd.f32 %v1609, %v1833
      %v1835 = vpop.f32.mrb[0].mxu0
      %1836 = vmatprep.mubr.f32.mxu0 %v1214
      %1837 = vmatmul.mubr.f32.gmra.mrb[0].mxu0 %v1213
      %v1838 = vpop.f32.mrb[0].mxu0
      %v1839 = vadd.f32 %v1614, %v1838
      %v1840 = vpop.f32.mrb[0].mxu0
      %1841 = vmatprep.mubr.f32.mxu0 %v1223
      %1842 = vmatmul.mubr.f32.gmra.mrb[0].mxu0 %v1222
      %v1843 = vpop.f32.mrb[0].mxu0
      %v1844 = vadd.f32 %v1619, %v1843
      %v1845 = vpop.f32.mrb[0].mxu0
      %1846 = vmatprep.mubr.f32.mxu0 %v1232
      %1847 = vmatmul.mubr.f32.gmra.mrb[0].mxu0 %v1231
      %v1848 = vpop.f32.mrb[0].mxu0
      %v1849 = vadd.f32 %v1624, %v1848
      %v1850 = vpop.f32.mrb[0].mxu0
      %1851 = vmatprep.mubr.f32.mxu0 %v1241
      %1852 = vmatmul.mubr.f32.gmra.mrb[0].mxu0 %v1240
      %v1853 = vpop.f32.mrb[0].mxu0
      %v1854 = vadd.f32 %v1629, %v1853
      %v1855 = vpop.f32.mrb[0].mxu0
      %1856 = vmatprep.mubr.f32.mxu0 %v1250
      %1857 = vmatmul.mubr.f32.gmra.mrb[0].mxu0 %v1249
      %v1858 = vpop.f32.mrb[0].mxu0
      %v1859 = vadd.f32 %v1634, %v1858
      %v1860 = vpop.f32.mrb[0].mxu0
      %1861 = vmatprep.mubr.f32.mxu0 %v1259
      %1862 = vmatmul.mubr.f32.gmra.mrb[0].mxu0 %v1258
      %v1863 = vpop.f32.mrb[0].mxu0
      %v1864 = vadd.f32 %v1639, %v1863
      %v1865 = vpop.f32.mrb[0].mxu0
      %1866 = vmatprep.mubr.f32.mxu0 %v1268
      %1867 = vmatmul.mubr.f32.gmra.mrb[0].mxu0 %v1267
      %v1868 = vpop.f32.mrb[0].mxu0
      %v1869 = vadd.f32 %v1644, %v1868
      %v1870 = vpop.f32.mrb[0].mxu0
      %1871 = vmatprep.mubr.f32.mxu0 %v1277
      %1872 = vmatmul.mubr.f32.gmra.mrb[0].mxu0 %v1276
      %v1873 = vpop.f32.mrb[0].mxu0
      %v1874 = vadd.f32 %v1649, %v1873
      %v1875 = vpop.f32.mrb[0].mxu0
      %1876 = vdwg.mxu0
      %1877 = vmatprep.subr.mxu0 0.0
      %1878 = vmatpush1.msra.mxu0 %v1347
      %1879 = vmatprep.subr.mxu0 0.0
      %1880 = vmatpush1.msra.mxu0 %v1348
      %1881 = vmatprep.subr.mxu0 0.0
      %1882 = vmatpush1.msra.mxu0 %v1349
      %1883 = vmatprep.subr.mxu0 0.0
      %1884 = vmatpush1.msra.mxu0 %v1350
      %1885 = vmatprep.subr.mxu0 0.0
      %1886 = vmatpush1.msra.mxu0 %v1351
      %1887 = vmatprep.subr.mxu0 0.0
      %1888 = vmatpush1.msra.mxu0 %v1352
      %1889 = vmatprep.subr.mxu0 0.0
      %1890 = vmatpush1.msra.mxu0 %v1353
      %1891 = vmatprep.subr.mxu0 0.0
      %1892 = vmatpush1.msra.mxu0 %v1354
      %1893 = vmatprep.subr.mxu0 0.0
      %1894 = vmatpush1.msra.mxu0 %v1355
      %1895 = vmatprep.subr.mxu0 0.0
      %1896 = vmatpush1.msra.mxu0 %v1356
      %1897 = vmatprep.subr.mxu0 0.0
      %1898 = vmatpush1.msra.mxu0 %v1357
      %1899 = vmatprep.subr.mxu0 0.0
      %1900 = vmatpush1.msra.mxu0 %v1358
      %1901 = vmatprep.subr.mxu0 0.0
      %1902 = vmatpush1.msra.mxu0 %v1359
      %1903 = vmatprep.subr.mxu0 0.0
      %1904 = vmatpush1.msra.mxu0 %v1360
      %1905 = vmatprep.subr.mxu0 0.0
      %1906 = vmatpush1.msra.mxu0 %v1361
      %1907 = vmatprep.subr.mxu0 0.0
      %1908 = vmatpush1.msra.mxu0 %v1362
      %1909 = vmatprep.subr.mxu0 0.0
      %1910 = vmatpush1.msra.mxu0 %v1363
      %1911 = vmatprep.subr.mxu0 0.0
      %1912 = vmatpush1.msra.mxu0 %v1364
      %1913 = vmatprep.subr.mxu0 0.0
      %1914 = vmatpush1.msra.mxu0 %v1365
      %1915 = vmatprep.subr.mxu0 0.0
      %1916 = vmatpush1.msra.mxu0 %v1366
      %1917 = vmatprep.subr.mxu0 0.0
      %1918 = vmatpush1.msra.mxu0 %v1367
      %1919 = vmatprep.subr.mxu0 0.0
      %1920 = vmatpush1.msra.mxu0 %v1368
      %1921 = vmatprep.subr.mxu0 0.0
      %1922 = vmatpush1.msra.mxu0 %v1369
      %1923 = vmatprep.subr.mxu0 0.0
      %1924 = vmatpush1.msra.mxu0 %v1370
      %1925 = vmatprep.subr.mxu0 0.0
      %1926 = vmatpush1.msra.mxu0 %v1371
      %1927 = vmatprep.subr.mxu0 0.0
      %1928 = vmatpush1.msra.mxu0 %v1372
      %1929 = vmatprep.subr.mxu0 0.0
      %1930 = vmatpush1.msra.mxu0 %v1373
      %1931 = vmatprep.subr.mxu0 0.0
      %1932 = vmatpush1.msra.mxu0 %v1374
      %1933 = vmatprep.subr.mxu0 0.0
      %1934 = vmatpush1.msra.mxu0 %v1375
      %1935 = vmatprep.subr.mxu0 0.0
      %1936 = vmatpush1.msra.mxu0 %v1376
      %1937 = vmatprep.subr.mxu0 0.0
      %1938 = vmatpush1.msra.mxu0 %v1377
      %1939 = vmatprep.subr.mxu0 0.0
      %1940 = vmatpush1.msra.mxu0 %v1378
      %1941 = vmatprep.mubr.f32.mxu0 %v1000
      %1942 = vmatmul.mubr.f32.gmra.mrb[0].mxu0 %v999
      %v1943 = vpop.f32.mrb[0].mxu0
      %v1944 = vadd.f32 %v1719, %v1943
      %v1945 = vpop.f32.mrb[0].mxu0
      %1946 = vmatprep.mubr.f32.mxu0 %v1009
      %1947 = vmatmul.mubr.f32.gmra.mrb[0].mxu0 %v1008
      %v1948 = vpop.f32.mrb[0].mxu0
      %v1949 = vadd.f32 %v1724, %v1948
      %v1950 = vpop.f32.mrb[0].mxu0
      %1951 = vmatprep.mubr.f32.mxu0 %v1018
      %1952 = vmatmul.mubr.f32.gmra.mrb[0].mxu0 %v1017
      %v1953 = vpop.f32.mrb[0].mxu0
      %v1954 = vadd.f32 %v1729, %v1953
      %v1955 = vpop.f32.mrb[0].mxu0
      %1956 = vmatprep.mubr.f32.mxu0 %v1027
      %1957 = vmatmul.mubr.f32.gmra.mrb[0].mxu0 %v1026
      %v1958 = vpop.f32.mrb[0].mxu0
      %v1959 = vadd.f32 %v1734, %v1958
      %v1960 = vpop.f32.mrb[0].mxu0
      %1961 = vmatprep.mubr.f32.mxu0 %v1036
      %1962 = vmatmul.mubr.f32.gmra.mrb[0].mxu0 %v1035
      %v1963 = vpop.f32.mrb[0].mxu0
      %v1964 = vadd.f32 %v1739, %v1963
      %v1965 = vpop.f32.mrb[0].mxu0
      %1966 = vmatprep.mubr.f32.mxu0 %v1045
      %1967 = vmatmul.mubr.f32.gmra.mrb[0].mxu0 %v1044
      %v1968 = vpop.f32.mrb[0].mxu0
      %v1969 = vadd.f32 %v1744, %v1968
      %v1970 = vpop.f32.mrb[0].mxu0
      %1971 = vmatprep.mubr.f32.mxu0 %v1054
      %1972 = vmatmul.mubr.f32.gmra.mrb[0].mxu0 %v1053
      %v1973 = vpop.f32.mrb[0].mxu0
      %v1974 = vadd.f32 %v1749, %v1973
      %v1975 = vpop.f32.mrb[0].mxu0
      %1976 = vmatprep.mubr.f32.mxu0 %v1063
      %1977 = vmatmul.mubr.f32.gmra.mrb[0].mxu0 %v1062
      %v1978 = vpop.f32.mrb[0].mxu0
      %v1979 = vadd.f32 %v1754, %v1978
      %v1980 = vpop.f32.mrb[0].mxu0
      %1981 = vmatprep.mubr.f32.mxu0 %v1072
      %1982 = vmatmul.mubr.f32.gmra.mrb[0].mxu0 %v1071
      %v1983 = vpop.f32.mrb[0].mxu0
      %v1984 = vadd.f32 %v1759, %v1983
      %v1985 = vpop.f32.mrb[0].mxu0
      %1986 = vmatprep.mubr.f32.mxu0 %v1081
      %1987 = vmatmul.mubr.f32.gmra.mrb[0].mxu0 %v1080
      %v1988 = vpop.f32.mrb[0].mxu0
      %v1989 = vadd.f32 %v1764, %v1988
      %v1990 = vpop.f32.mrb[0].mxu0
      %1991 = vmatprep.mubr.f32.mxu0 %v1090
      %1992 = vmatmul.mubr.f32.gmra.mrb[0].mxu0 %v1089
      %v1993 = vpop.f32.mrb[0].mxu0
      %v1994 = vadd.f32 %v1769, %v1993
      %v1995 = vpop.f32.mrb[0].mxu0
      %1996 = vmatprep.mubr.f32.mxu0 %v1099
      %1997 = vmatmul.mubr.f32.gmra.mrb[0].mxu0 %v1098
      %v1998 = vpop.f32.mrb[0].mxu0
      %v1999 = vadd.f32 %v1774, %v1998
      %v2000 = vpop.f32.mrb[0].mxu0
      %2001 = vmatprep.mubr.f32.mxu0 %v1108
      %2002 = vmatmul.mubr.f32.gmra.mrb[0].mxu0 %v1107
      %v2003 = vpop.f32.mrb[0].mxu0
      %v2004 = vadd.f32 %v1779, %v2003
      %v2005 = vpop.f32.mrb[0].mxu0
      %2006 = vmatprep.mubr.f32.mxu0 %v1117
      %2007 = vmatmul.mubr.f32.gmra.mrb[0].mxu0 %v1116
      %v2008 = vpop.f32.mrb[0].mxu0
      %v2009 = vadd.f32 %v1784, %v2008
      %v2010 = vpop.f32.mrb[0].mxu0
      %2011 = vmatprep.mubr.f32.mxu0 %v1126
      %2012 = vmatmul.mubr.f32.gmra.mrb[0].mxu0 %v1125
      %v2013 = vpop.f32.mrb[0].mxu0
      %v2014 = vadd.f32 %v1789, %v2013
      %v2015 = vpop.f32.mrb[0].mxu0
      %2016 = vmatprep.mubr.f32.mxu0 %v1135
      %2017 = vmatmul.mubr.f32.gmra.mrb[0].mxu0 %v1134
      %v2018 = vpop.f32.mrb[0].mxu0
      %v2019 = vadd.f32 %v1794, %v2018
      %v2020 = vpop.f32.mrb[0].mxu0
      %2021 = vmatprep.mubr.f32.mxu0 %v1144
      %2022 = vmatmul.mubr.f32.gmra.mrb[0].mxu0 %v1143
      %v2023 = vpop.f32.mrb[0].mxu0
      %v2024 = vadd.f32 %v1799, %v2023
      %v2025 = vpop.f32.mrb[0].mxu0
      %2026 = vmatprep.mubr.f32.mxu0 %v1153
      %2027 = vmatmul.mubr.f32.gmra.mrb[0].mxu0 %v1152
      %v2028 = vpop.f32.mrb[0].mxu0
      %v2029 = vadd.f32 %v1804, %v2028
      %v2030 = vpop.f32.mrb[0].mxu0
      %2031 = vmatprep.mubr.f32.mxu0 %v1162
      %2032 = vmatmul.mubr.f32.gmra.mrb[0].mxu0 %v1161
      %v2033 = vpop.f32.mrb[0].mxu0
      %v2034 = vadd.f32 %v1809, %v2033
      %v2035 = vpop.f32.mrb[0].mxu0
      %2036 = vmatprep.mubr.f32.mxu0 %v1171
      %2037 = vmatmul.mubr.f32.gmra.mrb[0].mxu0 %v1170
      %v2038 = vpop.f32.mrb[0].mxu0
      %v2039 = vadd.f32 %v1814, %v2038
      %v2040 = vpop.f32.mrb[0].mxu0
      %2041 = vmatprep.mubr.f32.mxu0 %v1180
      %2042 = vmatmul.mubr.f32.gmra.mrb[0].mxu0 %v1179
      %v2043 = vpop.f32.mrb[0].mxu0
      %v2044 = vadd.f32 %v1819, %v2043
      %v2045 = vpop.f32.mrb[0].mxu0
      %2046 = vmatprep.mubr.f32.mxu0 %v1189
      %2047 = vmatmul.mubr.f32.gmra.mrb[0].mxu0 %v1188
      %v2048 = vpop.f32.mrb[0].mxu0
      %v2049 = vadd.f32 %v1824, %v2048
      %v2050 = vpop.f32.mrb[0].mxu0
      %2051 = vmatprep.mubr.f32.mxu0 %v1198
      %2052 = vmatmul.mubr.f32.gmra.mrb[0].mxu0 %v1197
      %v2053 = vpop.f32.mrb[0].mxu0
      %v2054 = vadd.f32 %v1829, %v2053
      %v2055 = vpop.f32.mrb[0].mxu0
      %2056 = vmatprep.mubr.f32.mxu0 %v1207
      %2057 = vmatmul.mubr.f32.gmra.mrb[0].mxu0 %v1206
      %v2058 = vpop.f32.mrb[0].mxu0
      %v2059 = vadd.f32 %v1834, %v2058
      %v2060 = vpop.f32.mrb[0].mxu0
      %2061 = vmatprep.mubr.f32.mxu0 %v1216
      %2062 = vmatmul.mubr.f32.gmra.mrb[0].mxu0 %v1215
      %v2063 = vpop.f32.mrb[0].mxu0
      %v2064 = vadd.f32 %v1839, %v2063
      %v2065 = vpop.f32.mrb[0].mxu0
      %2066 = vmatprep.mubr.f32.mxu0 %v1225
      %2067 = vmatmul.mubr.f32.gmra.mrb[0].mxu0 %v1224
      %v2068 = vpop.f32.mrb[0].mxu0
      %v2069 = vadd.f32 %v1844, %v2068
      %v2070 = vpop.f32.mrb[0].mxu0
      %2071 = vmatprep.mubr.f32.mxu0 %v1234
      %2072 = vmatmul.mubr.f32.gmra.mrb[0].mxu0 %v1233
      %v2073 = vpop.f32.mrb[0].mxu0
      %v2074 = vadd.f32 %v1849, %v2073
      %v2075 = vpop.f32.mrb[0].mxu0
      %2076 = vmatprep.mubr.f32.mxu0 %v1243
      %2077 = vmatmul.mubr.f32.gmra.mrb[0].mxu0 %v1242
      %v2078 = vpop.f32.mrb[0].mxu0
      %v2079 = vadd.f32 %v1854, %v2078
      %v2080 = vpop.f32.mrb[0].mxu0
      %2081 = vmatprep.mubr.f32.mxu0 %v1252
      %2082 = vmatmul.mubr.f32.gmra.mrb[0].mxu0 %v1251
      %v2083 = vpop.f32.mrb[0].mxu0
      %v2084 = vadd.f32 %v1859, %v2083
      %v2085 = vpop.f32.mrb[0].mxu0
      %2086 = vmatprep.mubr.f32.mxu0 %v1261
      %2087 = vmatmul.mubr.f32.gmra.mrb[0].mxu0 %v1260
      %v2088 = vpop.f32.mrb[0].mxu0
      %v2089 = vadd.f32 %v1864, %v2088
      %v2090 = vpop.f32.mrb[0].mxu0
      %2091 = vmatprep.mubr.f32.mxu0 %v1270
      %2092 = vmatmul.mubr.f32.gmra.mrb[0].mxu0 %v1269
      %v2093 = vpop.f32.mrb[0].mxu0
      %v2094 = vadd.f32 %v1869, %v2093
      %v2095 = vpop.f32.mrb[0].mxu0
      %2096 = vmatprep.mubr.f32.mxu0 %v1279
      %2097 = vmatmul.mubr.f32.gmra.mrb[0].mxu0 %v1278
      %v2098 = vpop.f32.mrb[0].mxu0
      %v2099 = vadd.f32 %v1874, %v2098
      %v2100 = vpop.f32.mrb[0].mxu0
      %2101 = vdwg.mxu0
      %2102 = vmatprep.subr.mxu0 0.0
      %2103 = vmatpush1.msra.mxu0 %v1379
      %2104 = vmatprep.subr.mxu0 0.0
      %2105 = vmatpush1.msra.mxu0 %v1380
      %2106 = vmatprep.subr.mxu0 0.0
      %2107 = vmatpush1.msra.mxu0 %v1381
      %2108 = vmatprep.subr.mxu0 0.0
      %2109 = vmatpush1.msra.mxu0 %v1382
      %2110 = vmatprep.subr.mxu0 0.0
      %2111 = vmatpush1.msra.mxu0 %v1383
      %2112 = vmatprep.subr.mxu0 0.0
      %2113 = vmatpush1.msra.mxu0 %v1384
      %2114 = vmatprep.subr.mxu0 0.0
      %2115 = vmatpush1.msra.mxu0 %v1385
      %2116 = vmatprep.subr.mxu0 0.0
      %2117 = vmatpush1.msra.mxu0 %v1386
      %2118 = vmatprep.subr.mxu0 0.0
      %2119 = vmatpush1.msra.mxu0 %v1387
      %2120 = vmatprep.subr.mxu0 0.0
      %2121 = vmatpush1.msra.mxu0 %v1388
      %2122 = vmatprep.subr.mxu0 0.0
      %2123 = vmatpush1.msra.mxu0 %v1389
      %2124 = vmatprep.subr.mxu0 0.0
      %2125 = vmatpush1.msra.mxu0 %v1390
      %2126 = vmatprep.subr.mxu0 0.0
      %2127 = vmatpush1.msra.mxu0 %v1391
      %2128 = vmatprep.subr.mxu0 0.0
      %2129 = vmatpush1.msra.mxu0 %v1392
      %2130 = vmatprep.subr.mxu0 0.0
      %2131 = vmatpush1.msra.mxu0 %v1393
      %2132 = vmatprep.subr.mxu0 0.0
      %2133 = vmatpush1.msra.mxu0 %v1394
      %2134 = vmatprep.subr.mxu0 0.0
      %2135 = vmatpush1.msra.mxu0 %v1395
      %2136 = vmatprep.subr.mxu0 0.0
      %2137 = vmatpush1.msra.mxu0 %v1396
      %2138 = vmatprep.subr.mxu0 0.0
      %2139 = vmatpush1.msra.mxu0 %v1397
      %2140 = vmatprep.subr.mxu0 0.0
      %2141 = vmatpush1.msra.mxu0 %v1398
      %2142 = vmatprep.subr.mxu0 0.0
      %2143 = vmatpush1.msra.mxu0 %v1399
      %2144 = vmatprep.subr.mxu0 0.0
      %2145 = vmatpush1.msra.mxu0 %v1400
      %2146 = vmatprep.subr.mxu0 0.0
      %2147 = vmatpush1.msra.mxu0 %v1401
      %2148 = vmatprep.subr.mxu0 0.0
      %2149 = vmatpush1.msra.mxu0 %v1402
      %2150 = vmatprep.subr.mxu0 0.0
      %2151 = vmatpush1.msra.mxu0 %v1403
      %2152 = vmatprep.subr.mxu0 0.0
      %2153 = vmatpush1.msra.mxu0 %v1404
      %2154 = vmatprep.subr.mxu0 0.0
      %2155 = vmatpush1.msra.mxu0 %v1405
      %2156 = vmatprep.subr.mxu0 0.0
      %2157 = vmatpush1.msra.mxu0 %v1406
      %2158 = vmatprep.subr.mxu0 0.0
      %2159 = vmatpush1.msra.mxu0 %v1407
      %2160 = vmatprep.subr.mxu0 0.0
      %2161 = vmatpush1.msra.mxu0 %v1408
      %2162 = vmatprep.subr.mxu0 0.0
      %2163 = vmatpush1.msra.mxu0 %v1409
      %2164 = vmatprep.subr.mxu0 0.0
      %2165 = vmatpush1.msra.mxu0 %v1410
      %2166 = vmatprep.mubr.f32.mxu0 %v1002
      %2167 = vmatmul.mubr.f32.gmra.mrb[0].mxu0 %v1001
      %v2168 = vpop.f32.mrb[0].mxu0
      %v2169 = vadd.f32 %v1944, %v2168
      %v2170 = vpop.f32.mrb[0].mxu0
      %2171 = vmatprep.mubr.f32.mxu0 %v1011
      %2172 = vmatmul.mubr.f32.gmra.mrb[0].mxu0 %v1010
      %v2173 = vpop.f32.mrb[0].mxu0
      %v2174 = vadd.f32 %v1949, %v2173
      %v2175 = vpop.f32.mrb[0].mxu0
      %2176 = vmatprep.mubr.f32.mxu0 %v1020
      %2177 = vmatmul.mubr.f32.gmra.mrb[0].mxu0 %v1019
      %v2178 = vpop.f32.mrb[0].mxu0
      %v2179 = vadd.f32 %v1954, %v2178
      %v2180 = vpop.f32.mrb[0].mxu0
      %2181 = vmatprep.mubr.f32.mxu0 %v1029
      %2182 = vmatmul.mubr.f32.gmra.mrb[0].mxu0 %v1028
      %v2183 = vpop.f32.mrb[0].mxu0
      %v2184 = vadd.f32 %v1959, %v2183
      %v2185 = vpop.f32.mrb[0].mxu0
      %2186 = vmatprep.mubr.f32.mxu0 %v1038
      %2187 = vmatmul.mubr.f32.gmra.mrb[0].mxu0 %v1037
      %v2188 = vpop.f32.mrb[0].mxu0
      %v2189 = vadd.f32 %v1964, %v2188
      %v2190 = vpop.f32.mrb[0].mxu0
      %2191 = vmatprep.mubr.f32.mxu0 %v1047
      %2192 = vmatmul.mubr.f32.gmra.mrb[0].mxu0 %v1046
      %v2193 = vpop.f32.mrb[0].mxu0
      %v2194 = vadd.f32 %v1969, %v2193
      %v2195 = vpop.f32.mrb[0].mxu0
      %2196 = vmatprep.mubr.f32.mxu0 %v1056
      %2197 = vmatmul.mubr.f32.gmra.mrb[0].mxu0 %v1055
      %v2198 = vpop.f32.mrb[0].mxu0
      %v2199 = vadd.f32 %v1974, %v2198
      %v2200 = vpop.f32.mrb[0].mxu0
      %2201 = vmatprep.mubr.f32.mxu0 %v1065
      %2202 = vmatmul.mubr.f32.gmra.mrb[0].mxu0 %v1064
      %v2203 = vpop.f32.mrb[0].mxu0
      %v2204 = vadd.f32 %v1979, %v2203
      %v2205 = vpop.f32.mrb[0].mxu0
      %2206 = vmatprep.mubr.f32.mxu0 %v1074
      %2207 = vmatmul.mubr.f32.gmra.mrb[0].mxu0 %v1073
      %v2208 = vpop.f32.mrb[0].mxu0
      %v2209 = vadd.f32 %v1984, %v2208
      %v2210 = vpop.f32.mrb[0].mxu0
      %2211 = vmatprep.mubr.f32.mxu0 %v1083
      %2212 = vmatmul.mubr.f32.gmra.mrb[0].mxu0 %v1082
      %v2213 = vpop.f32.mrb[0].mxu0
      %v2214 = vadd.f32 %v1989, %v2213
      %v2215 = vpop.f32.mrb[0].mxu0
      %2216 = vmatprep.mubr.f32.mxu0 %v1092
      %2217 = vmatmul.mubr.f32.gmra.mrb[0].mxu0 %v1091
      %v2218 = vpop.f32.mrb[0].mxu0
      %v2219 = vadd.f32 %v1994, %v2218
      %v2220 = vpop.f32.mrb[0].mxu0
      %2221 = vmatprep.mubr.f32.mxu0 %v1101
      %2222 = vmatmul.mubr.f32.gmra.mrb[0].mxu0 %v1100
      %v2223 = vpop.f32.mrb[0].mxu0
      %v2224 = vadd.f32 %v1999, %v2223
      %v2225 = vpop.f32.mrb[0].mxu0
      %2226 = vmatprep.mubr.f32.mxu0 %v1110
      %2227 = vmatmul.mubr.f32.gmra.mrb[0].mxu0 %v1109
      %v2228 = vpop.f32.mrb[0].mxu0
      %v2229 = vadd.f32 %v2004, %v2228
      %v2230 = vpop.f32.mrb[0].mxu0
      %2231 = vmatprep.mubr.f32.mxu0 %v1119
      %2232 = vmatmul.mubr.f32.gmra.mrb[0].mxu0 %v1118
      %v2233 = vpop.f32.mrb[0].mxu0
      %v2234 = vadd.f32 %v2009, %v2233
      %v2235 = vpop.f32.mrb[0].mxu0
      %2236 = vmatprep.mubr.f32.mxu0 %v1128
      %2237 = vmatmul.mubr.f32.gmra.mrb[0].mxu0 %v1127
      %v2238 = vpop.f32.mrb[0].mxu0
      %v2239 = vadd.f32 %v2014, %v2238
      %v2240 = vpop.f32.mrb[0].mxu0
      %2241 = vmatprep.mubr.f32.mxu0 %v1137
      %2242 = vmatmul.mubr.f32.gmra.mrb[0].mxu0 %v1136
      %v2243 = vpop.f32.mrb[0].mxu0
      %v2244 = vadd.f32 %v2019, %v2243
      %v2245 = vpop.f32.mrb[0].mxu0
      %2246 = vmatprep.mubr.f32.mxu0 %v1146
      %2247 = vmatmul.mubr.f32.gmra.mrb[0].mxu0 %v1145
      %v2248 = vpop.f32.mrb[0].mxu0
      %v2249 = vadd.f32 %v2024, %v2248
      %v2250 = vpop.f32.mrb[0].mxu0
      %2251 = vmatprep.mubr.f32.mxu0 %v1155
      %2252 = vmatmul.mubr.f32.gmra.mrb[0].mxu0 %v1154
      %v2253 = vpop.f32.mrb[0].mxu0
      %v2254 = vadd.f32 %v2029, %v2253
      %v2255 = vpop.f32.mrb[0].mxu0
      %2256 = vmatprep.mubr.f32.mxu0 %v1164
      %2257 = vmatmul.mubr.f32.gmra.mrb[0].mxu0 %v1163
      %v2258 = vpop.f32.mrb[0].mxu0
      %v2259 = vadd.f32 %v2034, %v2258
      %v2260 = vpop.f32.mrb[0].mxu0
      %2261 = vmatprep.mubr.f32.mxu0 %v1173
      %2262 = vmatmul.mubr.f32.gmra.mrb[0].mxu0 %v1172
      %v2263 = vpop.f32.mrb[0].mxu0
      %v2264 = vadd.f32 %v2039, %v2263
      %v2265 = vpop.f32.mrb[0].mxu0
      %2266 = vmatprep.mubr.f32.mxu0 %v1182
      %2267 = vmatmul.mubr.f32.gmra.mrb[0].mxu0 %v1181
      %v2268 = vpop.f32.mrb[0].mxu0
      %v2269 = vadd.f32 %v2044, %v2268
      %v2270 = vpop.f32.mrb[0].mxu0
      %2271 = vmatprep.mubr.f32.mxu0 %v1191
      %2272 = vmatmul.mubr.f32.gmra.mrb[0].mxu0 %v1190
      %v2273 = vpop.f32.mrb[0].mxu0
      %v2274 = vadd.f32 %v2049, %v2273
      %v2275 = vpop.f32.mrb[0].mxu0
      %2276 = vmatprep.mubr.f32.mxu0 %v1200
      %2277 = vmatmul.mubr.f32.gmra.mrb[0].mxu0 %v1199
      %v2278 = vpop.f32.mrb[0].mxu0
      %v2279 = vadd.f32 %v2054, %v2278
      %v2280 = vpop.f32.mrb[0].mxu0
      %2281 = vmatprep.mubr.f32.mxu0 %v1209
      %2282 = vmatmul.mubr.f32.gmra.mrb[0].mxu0 %v1208
      %v2283 = vpop.f32.mrb[0].mxu0
      %v2284 = vadd.f32 %v2059, %v2283
      %v2285 = vpop.f32.mrb[0].mxu0
      %2286 = vmatprep.mubr.f32.mxu0 %v1218
      %2287 = vmatmul.mubr.f32.gmra.mrb[0].mxu0 %v1217
      %v2288 = vpop.f32.mrb[0].mxu0
      %v2289 = vadd.f32 %v2064, %v2288
      %v2290 = vpop.f32.mrb[0].mxu0
      %2291 = vmatprep.mubr.f32.mxu0 %v1227
      %2292 = vmatmul.mubr.f32.gmra.mrb[0].mxu0 %v1226
      %v2293 = vpop.f32.mrb[0].mxu0
      %v2294 = vadd.f32 %v2069, %v2293
      %v2295 = vpop.f32.mrb[0].mxu0
      %2296 = vmatprep.mubr.f32.mxu0 %v1236
      %2297 = vmatmul.mubr.f32.gmra.mrb[0].mxu0 %v1235
      %v2298 = vpop.f32.mrb[0].mxu0
      %v2299 = vadd.f32 %v2074, %v2298
      %v2300 = vpop.f32.mrb[0].mxu0
      %2301 = vmatprep.mubr.f32.mxu0 %v1245
      %2302 = vmatmul.mubr.f32.gmra.mrb[0].mxu0 %v1244
      %v2303 = vpop.f32.mrb[0].mxu0
      %v2304 = vadd.f32 %v2079, %v2303
      %v2305 = vpop.f32.mrb[0].mxu0
      %2306 = vmatprep.mubr.f32.mxu0 %v1254
      %2307 = vmatmul.mubr.f32.gmra.mrb[0].mxu0 %v1253
      %v2308 = vpop.f32.mrb[0].mxu0
      %v2309 = vadd.f32 %v2084, %v2308
      %v2310 = vpop.f32.mrb[0].mxu0
      %2311 = vmatprep.mubr.f32.mxu0 %v1263
      %2312 = vmatmul.mubr.f32.gmra.mrb[0].mxu0 %v1262
      %v2313 = vpop.f32.mrb[0].mxu0
      %v2314 = vadd.f32 %v2089, %v2313
      %v2315 = vpop.f32.mrb[0].mxu0
      %2316 = vmatprep.mubr.f32.mxu0 %v1272
      %2317 = vmatmul.mubr.f32.gmra.mrb[0].mxu0 %v1271
      %v2318 = vpop.f32.mrb[0].mxu0
      %v2319 = vadd.f32 %v2094, %v2318
      %v2320 = vpop.f32.mrb[0].mxu0
      %2321 = vmatprep.mubr.f32.mxu0 %v1281
      %2322 = vmatmul.mubr.f32.gmra.mrb[0].mxu0 %v1280
      %v2323 = vpop.f32.mrb[0].mxu0
      %v2324 = vadd.f32 %v2099, %v2323
      %v2325 = vpop.f32.mrb[0].mxu0
      %2326 = vdwg.mxu0
      %2327 = vmatprep.subr.mxu0 0.0
      %2328 = vmatpush1.msra.mxu0 %v1411
      %2329 = vmatprep.subr.mxu0 0.0
      %2330 = vmatpush1.msra.mxu0 %v1412
      %2331 = vmatprep.subr.mxu0 0.0
      %2332 = vmatpush1.msra.mxu0 %v1413
      %2333 = vmatprep.subr.mxu0 0.0
      %2334 = vmatpush1.msra.mxu0 %v1414
      %2335 = vmatprep.subr.mxu0 0.0
      %2336 = vmatpush1.msra.mxu0 %v1415
      %2337 = vmatprep.subr.mxu0 0.0
      %2338 = vmatpush1.msra.mxu0 %v1416
      %2339 = vmatprep.subr.mxu0 0.0
      %2340 = vmatpush1.msra.mxu0 %v1417
      %2341 = vmatprep.subr.mxu0 0.0
      %2342 = vmatpush1.msra.mxu0 %v1418
      %2343 = vmatprep.subr.mxu0 0.0
      %2344 = vmatpush1.msra.mxu0 %v1419
      %2345 = vmatprep.subr.mxu0 0.0
      %2346 = vmatpush1.msra.mxu0 %v1420
      %2347 = vmatprep.subr.mxu0 0.0
      %2348 = vmatpush1.msra.mxu0 %v1421
      %2349 = vmatprep.subr.mxu0 0.0
      %2350 = vmatpush1.msra.mxu0 %v1422
      %2351 = vmatprep.subr.mxu0 0.0
      %2352 = vmatpush1.msra.mxu0 %v1423
      %2353 = vmatprep.subr.mxu0 0.0
      %2354 = vmatpush1.msra.mxu0 %v1424
      %2355 = vmatprep.subr.mxu0 0.0
      %2356 = vmatpush1.msra.mxu0 %v1425
      %2357 = vmatprep.subr.mxu0 0.0
      %2358 = vmatpush1.msra.mxu0 %v1426
      %2359 = vmatprep.subr.mxu0 0.0
      %2360 = vmatpush1.msra.mxu0 0.0
      %2361 = vmatprep.subr.mxu0 0.0
      %2362 = vmatpush1.msra.mxu0 0.0
      %2363 = vmatprep.subr.mxu0 0.0
      %2364 = vmatpush1.msra.mxu0 0.0
      %2365 = vmatprep.subr.mxu0 0.0
      %2366 = vmatpush1.msra.mxu0 0.0
      %2367 = vmatprep.subr.mxu0 0.0
      %2368 = vmatpush1.msra.mxu0 0.0
      %2369 = vmatprep.subr.mxu0 0.0
      %2370 = vmatpush1.msra.mxu0 0.0
      %2371 = vmatprep.subr.mxu0 0.0
      %2372 = vmatpush1.msra.mxu0 0.0
      %2373 = vmatprep.subr.mxu0 0.0
      %2374 = vmatpush1.msra.mxu0 0.0
      %2375 = vmatprep.subr.mxu0 0.0
      %2376 = vmatpush1.msra.mxu0 0.0
      %2377 = vmatprep.subr.mxu0 0.0
      %2378 = vmatpush1.msra.mxu0 0.0
      %2379 = vmatprep.subr.mxu0 0.0
      %2380 = vmatpush1.msra.mxu0 0.0
      %2381 = vmatprep.subr.mxu0 0.0
      %2382 = vmatpush1.msra.mxu0 0.0
      %2383 = vmatprep.subr.mxu0 0.0
      %2384 = vmatpush1.msra.mxu0 0.0
      %2385 = vmatprep.subr.mxu0 0.0
      %2386 = vmatpush1.msra.mxu0 0.0
      %2387 = vmatprep.subr.mxu0 0.0
      %2388 = vmatpush1.msra.mxu0 0.0
      %2389 = vmatprep.subr.mxu0 0.0
      %2390 = vmatpush1.msra.mxu0 0.0
      %2391 = vmatprep.mubr.f32.mxu0 0.0
      %2392 = vmatmul.mubr.f32.gmra.mrb[0].mxu0 %v1003
      %v2393 = vpop.f32.mrb[0].mxu0
      %v2394 = vadd.f32 %v2169, %v2393
      %v2395 = vpop.f32.mrb[0].mxu0
      %2396 = vmatprep.mubr.f32.mxu0 0.0
      %2397 = vmatmul.mubr.f32.gmra.mrb[0].mxu0 %v1012
      %v2398 = vpop.f32.mrb[0].mxu0
      %v2399 = vadd.f32 %v2174, %v2398
      %v2400 = vpop.f32.mrb[0].mxu0
      %2401 = vmatprep.mubr.f32.mxu0 0.0
      %2402 = vmatmul.mubr.f32.gmra.mrb[0].mxu0 %v1021
      %v2403 = vpop.f32.mrb[0].mxu0
      %v2404 = vadd.f32 %v2179, %v2403
      %v2405 = vpop.f32.mrb[0].mxu0
      %2406 = vmatprep.mubr.f32.mxu0 0.0
      %2407 = vmatmul.mubr.f32.gmra.mrb[0].mxu0 %v1030
      %v2408 = vpop.f32.mrb[0].mxu0
      %v2409 = vadd.f32 %v2184, %v2408
      %v2410 = vpop.f32.mrb[0].mxu0
      %2411 = vmatprep.mubr.f32.mxu0 0.0
      %2412 = vmatmul.mubr.f32.gmra.mrb[0].mxu0 %v1039
      %v2413 = vpop.f32.mrb[0].mxu0
      %v2414 = vadd.f32 %v2189, %v2413
      %v2415 = vpop.f32.mrb[0].mxu0
      %2416 = vmatprep.mubr.f32.mxu0 0.0
      %2417 = vmatmul.mubr.f32.gmra.mrb[0].mxu0 %v1048
      %v2418 = vpop.f32.mrb[0].mxu0
      %v2419 = vadd.f32 %v2194, %v2418
      %v2420 = vpop.f32.mrb[0].mxu0
      %2421 = vmatprep.mubr.f32.mxu0 0.0
      %2422 = vmatmul.mubr.f32.gmra.mrb[0].mxu0 %v1057
      %v2423 = vpop.f32.mrb[0].mxu0
      %v2424 = vadd.f32 %v2199, %v2423
      %v2425 = vpop.f32.mrb[0].mxu0
      %2426 = vmatprep.mubr.f32.mxu0 0.0
      %2427 = vmatmul.mubr.f32.gmra.mrb[0].mxu0 %v1066
      %v2428 = vpop.f32.mrb[0].mxu0
      %v2429 = vadd.f32 %v2204, %v2428
      %v2430 = vpop.f32.mrb[0].mxu0
      %2431 = vmatprep.mubr.f32.mxu0 0.0
      %2432 = vmatmul.mubr.f32.gmra.mrb[0].mxu0 %v1075
      %v2433 = vpop.f32.mrb[0].mxu0
      %v2434 = vadd.f32 %v2209, %v2433
      %v2435 = vpop.f32.mrb[0].mxu0
      %2436 = vmatprep.mubr.f32.mxu0 0.0
      %2437 = vmatmul.mubr.f32.gmra.mrb[0].mxu0 %v1084
      %v2438 = vpop.f32.mrb[0].mxu0
      %v2439 = vadd.f32 %v2214, %v2438
      %v2440 = vpop.f32.mrb[0].mxu0
      %2441 = vmatprep.mubr.f32.mxu0 0.0
      %2442 = vmatmul.mubr.f32.gmra.mrb[0].mxu0 %v1093
      %v2443 = vpop.f32.mrb[0].mxu0
      %v2444 = vadd.f32 %v2219, %v2443
      %v2445 = vpop.f32.mrb[0].mxu0
      %2446 = vmatprep.mubr.f32.mxu0 0.0
      %2447 = vmatmul.mubr.f32.gmra.mrb[0].mxu0 %v1102
      %v2448 = vpop.f32.mrb[0].mxu0
      %v2449 = vadd.f32 %v2224, %v2448
      %v2450 = vpop.f32.mrb[0].mxu0
      %2451 = vmatprep.mubr.f32.mxu0 0.0
      %2452 = vmatmul.mubr.f32.gmra.mrb[0].mxu0 %v1111
      %v2453 = vpop.f32.mrb[0].mxu0
      %v2454 = vadd.f32 %v2229, %v2453
      %v2455 = vpop.f32.mrb[0].mxu0
      %2456 = vmatprep.mubr.f32.mxu0 0.0
      %2457 = vmatmul.mubr.f32.gmra.mrb[0].mxu0 %v1120
      %v2458 = vpop.f32.mrb[0].mxu0
      %v2459 = vadd.f32 %v2234, %v2458
      %v2460 = vpop.f32.mrb[0].mxu0
      %2461 = vmatprep.mubr.f32.mxu0 0.0
      %2462 = vmatmul.mubr.f32.gmra.mrb[0].mxu0 %v1129
      %v2463 = vpop.f32.mrb[0].mxu0
      %v2464 = vadd.f32 %v2239, %v2463
      %v2465 = vpop.f32.mrb[0].mxu0
      %2466 = vmatprep.mubr.f32.mxu0 0.0
      %2467 = vmatmul.mubr.f32.gmra.mrb[0].mxu0 %v1138
      %v2468 = vpop.f32.mrb[0].mxu0
      %v2469 = vadd.f32 %v2244, %v2468
      %v2470 = vpop.f32.mrb[0].mxu0
      %2471 = vmatprep.mubr.f32.mxu0 0.0
      %2472 = vmatmul.mubr.f32.gmra.mrb[0].mxu0 %v1147
      %v2473 = vpop.f32.mrb[0].mxu0
      %v2474 = vadd.f32 %v2249, %v2473
      %v2475 = vpop.f32.mrb[0].mxu0
      %2476 = vmatprep.mubr.f32.mxu0 0.0
      %2477 = vmatmul.mubr.f32.gmra.mrb[0].mxu0 %v1156
      %v2478 = vpop.f32.mrb[0].mxu0
      %v2479 = vadd.f32 %v2254, %v2478
      %v2480 = vpop.f32.mrb[0].mxu0
      %2481 = vmatprep.mubr.f32.mxu0 0.0
      %2482 = vmatmul.mubr.f32.gmra.mrb[0].mxu0 %v1165
      %v2483 = vpop.f32.mrb[0].mxu0
      %v2484 = vadd.f32 %v2259, %v2483
      %v2485 = vpop.f32.mrb[0].mxu0
      %2486 = vmatprep.mubr.f32.mxu0 0.0
      %2487 = vmatmul.mubr.f32.gmra.mrb[0].mxu0 %v1174
      %v2488 = vpop.f32.mrb[0].mxu0
      %v2489 = vadd.f32 %v2264, %v2488
      %v2490 = vpop.f32.mrb[0].mxu0
      %2491 = vmatprep.mubr.f32.mxu0 0.0
      %2492 = vmatmul.mubr.f32.gmra.mrb[0].mxu0 %v1183
      %v2493 = vpop.f32.mrb[0].mxu0
      %v2494 = vadd.f32 %v2269, %v2493
      %v2495 = vpop.f32.mrb[0].mxu0
      %2496 = vmatprep.mubr.f32.mxu0 0.0
      %2497 = vmatmul.mubr.f32.gmra.mrb[0].mxu0 %v1192
      %v2498 = vpop.f32.mrb[0].mxu0
      %v2499 = vadd.f32 %v2274, %v2498
      %v2500 = vpop.f32.mrb[0].mxu0
      %2501 = vmatprep.mubr.f32.mxu0 0.0
      %2502 = vmatmul.mubr.f32.gmra.mrb[0].mxu0 %v1201
      %v2503 = vpop.f32.mrb[0].mxu0
      %v2504 = vadd.f32 %v2279, %v2503
      %v2505 = vpop.f32.mrb[0].mxu0
      %2506 = vmatprep.mubr.f32.mxu0 0.0
      %2507 = vmatmul.mubr.f32.gmra.mrb[0].mxu0 %v1210
      %v2508 = vpop.f32.mrb[0].mxu0
      %v2509 = vadd.f32 %v2284, %v2508
      %v2510 = vpop.f32.mrb[0].mxu0
      %2511 = vmatprep.mubr.f32.mxu0 0.0
      %2512 = vmatmul.mubr.f32.gmra.mrb[0].mxu0 %v1219
      %v2513 = vpop.f32.mrb[0].mxu0
      %v2514 = vadd.f32 %v2289, %v2513
      %v2515 = vpop.f32.mrb[0].mxu0
      %2516 = vmatprep.mubr.f32.mxu0 0.0
      %2517 = vmatmul.mubr.f32.gmra.mrb[0].mxu0 %v1228
      %v2518 = vpop.f32.mrb[0].mxu0
      %v2519 = vadd.f32 %v2294, %v2518
      %v2520 = vpop.f32.mrb[0].mxu0
      %2521 = vmatprep.mubr.f32.mxu0 0.0
      %2522 = vmatmul.mubr.f32.gmra.mrb[0].mxu0 %v1237
      %v2523 = vpop.f32.mrb[0].mxu0
      %v2524 = vadd.f32 %v2299, %v2523
      %v2525 = vpop.f32.mrb[0].mxu0
      %2526 = vmatprep.mubr.f32.mxu0 0.0
      %2527 = vmatmul.mubr.f32.gmra.mrb[0].mxu0 %v1246
      %v2528 = vpop.f32.mrb[0].mxu0
      %v2529 = vadd.f32 %v2304, %v2528
      %v2530 = vpop.f32.mrb[0].mxu0
      %2531 = vmatprep.mubr.f32.mxu0 0.0
      %2532 = vmatmul.mubr.f32.gmra.mrb[0].mxu0 %v1255
      %v2533 = vpop.f32.mrb[0].mxu0
      %v2534 = vadd.f32 %v2309, %v2533
      %v2535 = vpop.f32.mrb[0].mxu0
      %2536 = vmatprep.mubr.f32.mxu0 0.0
      %2537 = vmatmul.mubr.f32.gmra.mrb[0].mxu0 %v1264
      %v2538 = vpop.f32.mrb[0].mxu0
      %v2539 = vadd.f32 %v2314, %v2538
      %v2540 = vpop.f32.mrb[0].mxu0
      %2541 = vmatprep.mubr.f32.mxu0 0.0
      %2542 = vmatmul.mubr.f32.gmra.mrb[0].mxu0 %v1273
      %v2543 = vpop.f32.mrb[0].mxu0
      %v2544 = vadd.f32 %v2319, %v2543
      %v2545 = vpop.f32.mrb[0].mxu0
      %2546 = vmatprep.mubr.f32.mxu0 0.0
      %2547 = vmatmul.mubr.f32.gmra.mrb[0].mxu0 %v1282
      %v2548 = vpop.f32.mrb[0].mxu0
      %v2549 = vadd.f32 %v2324, %v2548
      %v2550 = vpop.f32.mrb[0].mxu0
      %2551 = vdwg.mxu0
      %2552 = vst [vmem:[%s231] sm:$0xff] %v2394
      %2553 = vst [vmem:[%s231 + $0x8] sm:$0xff] %v2399
      %2554 = vst [vmem:[%s231 + $0x10] sm:$0xff] %v2404
      %2555 = vst [vmem:[%s231 + $0x18] sm:$0xff] %v2409
      %2556 = vst [vmem:[%s231 + $0x20] sm:$0xff] %v2414
      %2557 = vst [vmem:[%s231 + $0x28] sm:$0xff] %v2419
      %2558 = vst [vmem:[%s231 + $0x30] sm:$0xff] %v2424
      %2559 = vst [vmem:[%s231 + $0x38] sm:$0xff] %v2429
      %2560 = vst [vmem:[%s231 + $0x40] sm:$0xff] %v2434
      %2561 = vst [vmem:[%s231 + $0x48] sm:$0xff] %v2439
      %2562 = vst [vmem:[%s231 + $0x50] sm:$0xff] %v2444
      %2563 = vst [vmem:[%s231 + $0x58] sm:$0xff] %v2449
      %2564 = vst [vmem:[%s231 + $0x60] sm:$0xff] %v2454
      %2565 = vst [vmem:[%s231 + $0x68] sm:$0xff] %v2459
      %2566 = vst [vmem:[%s231 + $0x70] sm:$0xff] %v2464
      %2567 = vst [vmem:[%s231 + $0x78] sm:$0xff] %v2469
      %2568 = vst [vmem:[%s231 + $0x80] sm:$0xff] %v2474
      %2569 = vst [vmem:[%s231 + $0x88] sm:$0xff] %v2479
      %2570 = vst [vmem:[%s231 + $0x90] sm:$0xff] %v2484
      %2571 = vst [vmem:[%s231 + $0x98] sm:$0xff] %v2489
      %2572 = vst [vmem:[%s231 + $0xa0] sm:$0xff] %v2494
      %2573 = vst [vmem:[%s231 + $0xa8] sm:$0xff] %v2499
      %2574 = vst [vmem:[%s231 + $0xb0] sm:$0xff] %v2504
      %2575 = vst [vmem:[%s231 + $0xb8] sm:$0xff] %v2509
      %2576 = vst [vmem:[%s231 + $0xc0] sm:$0xff] %v2514
      %2577 = vst [vmem:[%s231 + $0xc8] sm:$0xff] %v2519
      %2578 = vst [vmem:[%s231 + $0xd0] sm:$0xff] %v2524
      %2579 = vst [vmem:[%s231 + $0xd8] sm:$0xff] %v2529
      %2580 = vst [vmem:[%s231 + $0xe0] sm:$0xff] %v2534
      %2581 = vst [vmem:[%s231 + $0xe8] sm:$0xff] %v2539
      %2582 = vst [vmem:[%s231 + $0xf0] sm:$0xff] %v2544
      %2583 = vst [vmem:[%s231 + $0xf8] sm:$0xff] %v2549
      %v2584 = vadd.f32 %v2394, %v2399
      %v2585 = vadd.f32 %v2584, %v2404
      %v2586 = vadd.f32 %v2585, %v2409
      %v2587 = vadd.f32 %v2586, %v2414
      %v2588 = vadd.f32 %v2587, %v2419
      %v2589 = vadd.f32 %v2588, %v2424
      %v2590 = vadd.f32 %v2589, %v2429
      %v2591 = vadd.f32 %v2590, %v2434
      %v2592 = vadd.f32 %v2591, %v2439
      %v2593 = vadd.f32 %v2592, %v2444
      %v2594 = vadd.f32 %v2593, %v2449
      %v2595 = vadd.f32 %v2594, %v2454
      %v2596 = vadd.f32 %v2595, %v2459
      %v2597 = vadd.f32 %v2596, %v2464
      %v2598 = vadd.f32 %v2597, %v2469
      %v2599 = vadd.f32 %v2598, %v2474
      %v2600 = vadd.f32 %v2599, %v2479
      %v2601 = vadd.f32 %v2600, %v2484
      %v2602 = vadd.f32 %v2601, %v2489
      %v2603 = vadd.f32 %v2602, %v2494
      %v2604 = vadd.f32 %v2603, %v2499
      %v2605 = vadd.f32 %v2604, %v2504
      %v2606 = vadd.f32 %v2605, %v2509
      %v2607 = vadd.f32 %v2606, %v2514
      %v2608 = vadd.f32 %v2607, %v2519
      %v2609 = vadd.f32 %v2608, %v2524
      %v2610 = vadd.f32 %v2609, %v2529
      %v2611 = vadd.f32 %v2610, %v2534
      %v2612 = vadd.f32 %v2611, %v2539
      %v2613 = vadd.f32 %v2612, %v2544
      %v2614 = vadd.f32 %v2613, %v2549
      %v2615 = vrot.slane %v2614, 4
      %v2616 = vadd.f32 %v2614, %v2615
      %v2617 = vrot.slane %v2616, 2
      %v2618 = vadd.f32 %v2616, %v2617
      %v2619 = vrot.slane %v2618, 1
      %v2620 = vadd.f32 %v2618, %v2619
      %v2621 = vmul.f32 %v2394, %v2394
      %v2622 = vmul.f32 %v2399, %v2399
      %v2623 = vmul.f32 %v2404, %v2404
      %v2624 = vmul.f32 %v2409, %v2409
      %v2625 = vmul.f32 %v2414, %v2414
      %v2626 = vmul.f32 %v2419, %v2419
      %v2627 = vmul.f32 %v2424, %v2424
      %v2628 = vmul.f32 %v2429, %v2429
      %v2629 = vmul.f32 %v2434, %v2434
      %v2630 = vmul.f32 %v2439, %v2439
      %v2631 = vmul.f32 %v2444, %v2444
      %v2632 = vmul.f32 %v2449, %v2449
      %v2633 = vmul.f32 %v2454, %v2454
      %v2634 = vmul.f32 %v2459, %v2459
      %v2635 = vmul.f32 %v2464, %v2464
      %v2636 = vmul.f32 %v2469, %v2469
      %v2637 = vmul.f32 %v2474, %v2474
      %v2638 = vmul.f32 %v2479, %v2479
      %v2639 = vmul.f32 %v2484, %v2484
      %v2640 = vmul.f32 %v2489, %v2489
      %v2641 = vmul.f32 %v2494, %v2494
      %v2642 = vmul.f32 %v2499, %v2499
      %v2643 = vmul.f32 %v2504, %v2504
      %v2644 = vmul.f32 %v2509, %v2509
      %v2645 = vmul.f32 %v2514, %v2514
      %v2646 = vmul.f32 %v2519, %v2519
      %v2647 = vmul.f32 %v2524, %v2524
      %v2648 = vmul.f32 %v2529, %v2529
      %v2649 = vmul.f32 %v2534, %v2534
      %v2650 = vmul.f32 %v2539, %v2539
      %v2651 = vmul.f32 %v2544, %v2544
      %v2652 = vmul.f32 %v2549, %v2549
      %v2653 = vadd.f32 %v2621, %v2622
      %v2654 = vadd.f32 %v2653, %v2623
      %v2655 = vadd.f32 %v2654, %v2624
      %v2656 = vadd.f32 %v2655, %v2625
      %v2657 = vadd.f32 %v2656, %v2626
      %v2658 = vadd.f32 %v2657, %v2627
      %v2659 = vadd.f32 %v2658, %v2628
      %v2660 = vadd.f32 %v2659, %v2629
      %v2661 = vadd.f32 %v2660, %v2630
      %v2662 = vadd.f32 %v2661, %v2631
      %v2663 = vadd.f32 %v2662, %v2632
      %v2664 = vadd.f32 %v2663, %v2633
      %v2665 = vadd.f32 %v2664, %v2634
      %v2666 = vadd.f32 %v2665, %v2635
      %v2667 = vadd.f32 %v2666, %v2636
      %v2668 = vadd.f32 %v2667, %v2637
      %v2669 = vadd.f32 %v2668, %v2638
      %v2670 = vadd.f32 %v2669, %v2639
      %v2671 = vadd.f32 %v2670, %v2640
      %v2672 = vadd.f32 %v2671, %v2641
      %v2673 = vadd.f32 %v2672, %v2642
      %v2674 = vadd.f32 %v2673, %v2643
      %v2675 = vadd.f32 %v2674, %v2644
      %v2676 = vadd.f32 %v2675, %v2645
      %v2677 = vadd.f32 %v2676, %v2646
      %v2678 = vadd.f32 %v2677, %v2647
      %v2679 = vadd.f32 %v2678, %v2648
      %v2680 = vadd.f32 %v2679, %v2649
      %v2681 = vadd.f32 %v2680, %v2650
      %v2682 = vadd.f32 %v2681, %v2651
      %v2683 = vadd.f32 %v2682, %v2652
      %v2684 = vrot.slane %v2683, 4
      %v2685 = vadd.f32 %v2683, %v2684
      %v2686 = vrot.slane %v2685, 2
      %v2687 = vadd.f32 %v2685, %v2686
      %v2688 = vrot.slane %v2687, 1
      %v2689 = vadd.f32 %v2687, %v2688
      %vm2690 = vcmask 1040384
      %v2691 = vsel %vm2690, %v2620, %v2689
      %2692 = vst [vmem:[%s235] sm:$0x3] %v2691
      %p2693 = scmp.lt.s32.totalorder %s17, 1
      %s2694 = scalar_select %p2693, %s17, 1
      %s2695 = smul.addr %s2694, 32
      %s2696 = smul.addr %s2695, 8
      %s2697 = scalar_lea.vmem %s4, %s2696
      %p2698 = scmp.lt.s32.totalorder %s17, 1
      %s2699 = scalar_select %p2698, %s17, 1
      %s2700 = smul.addr %s2699, 2
      %s2701 = scalar_lea.vmem %s5, %s2700
      // Predicated region
      $region37: #{residual_block.3} parent=35 // pred_check
        %p2702 = pneg %p124
      $region38: #{residual_block.3} parent=35 // pred_check_branch
        %2704 = sbr.rel (%p2702) target = $region40
      $region39: #{residual_block.3} parent=35 // pred_region
        _
      $region40: #{residual_block.3} parent=35 // pred_fallthru
        _
      // Predicated region
      $region41: #{residual_block.3} parent=35 // pred_check
        %p2705 = pneg %p150
      $region42: #{residual_block.3} parent=35 // pred_check_branch
        %2707 = sbr.rel (%p2705) target = $region44
      $region43: #{residual_block.3} parent=35 // pred_region
        _
      $region44: #{residual_block.3} parent=35 // pred_fallthru
        _
    $region36: #{residual_block.3} parent=5 // pred_fallthru
      _
    %p2708 = scmp.le.s32.totalorder 2, %s12
    // Predicated region
    $region45: #{residual_block.3} parent=5 // pred_check
      %p2709 = pneg %p2708
    $region46: #{residual_block.3} parent=5 // pred_check_branch
      %2711 = sbr.rel (%p2709) target = $region48
    $region47: #{residual_block.3} parent=5 // pred_region
      %s2712 = ssub.s32 %s12, 2
      // Predicated region
      $region49: #{residual_block.3} parent=47 // pred_check
        %p2713 = pneg %p130
      $region50: #{residual_block.3} parent=47 // pred_check_branch
        %2715 = sbr.rel (%p2713) target = $region52
      $region51: #{residual_block.3} parent=47 // pred_region
        %p2716 = scmp.lt.s32.totalorder %s18, 1
        %s2717 = scalar_select %p2716, %s18, 1
        %s2718 = smul.addr %s2717, 32
        %s2719 = smul.addr %s2718, 8
        %s2720 = scalar_lea.vmem %s4, %s2719
      $region52: #{residual_block.3} parent=47 // pred_fallthru
        _
      // Predicated region
      $region53: #{residual_block.3} parent=47 // pred_check
        %p2721 = pneg %p156
      $region54: #{residual_block.3} parent=47 // pred_check_branch
        %2723 = sbr.rel (%p2721) target = $region56
      $region55: #{residual_block.3} parent=47 // pred_region
        %p2724 = scmp.lt.s32.totalorder %s18, 1
        %s2725 = scalar_select %p2724, %s18, 1
        %s2726 = smul.addr %s2725, 2
        %s2727 = scalar_lea.vmem %s5, %s2726
      $region56: #{residual_block.3} parent=47 // pred_fallthru
        _
    $region48: #{residual_block.3} parent=5 // pred_fallthru
      _
  $region6: #{residual_block.3} parent=0 // loop_footer
    %s16 = sadd.s32 1, %s12
  $region7: #{residual_block.3} parent=0 // loop_footer_branch
    %11 = sbr.rel target = $region3
  $region8: #{residual_block.3} parent=0 // loop_exit
    _

// kernel: residual_block.4
$region0: #{residual_block.4}
  #allocation0 [shape = 'u32[]', space=smem, size = 0x4, offset = 0x4, fixed_abs, tag = 'smem constant byte address 0x4 - core index']
  #allocation1 [shape = 'u32[144,128]{1,0:T(1,128)}', space=vmem, size = 0x12000, scoped, tag = 'internal scratch']
  #allocation2 [shape = 'f32[18,18,128]{2,1,0:T(8,128)}', space=vmem, size = 0x36000, scoped, tag = 'scratch operand']
  #allocation3 [shape = 'f32[256,1152]{1,0:T(8,128)}', space=vmem, size = 0x120000, scoped, tag = 'scratch operand']
  %s0 = inlined_call_operand.vmem [shape: f32[2,16,16,128], index: 0, kind: input, shape index: {}]
  %s1 = inlined_call_operand.vmem [shape: f32[1152,128], index: 1, kind: input, shape index: {}]
  %s2 = inlined_call_operand.vmem [shape: f32[1,128], index: 2, kind: input, shape index: {}]
  %s3 = inlined_call_operand.vmem [shape: f32[1,128], index: 3, kind: input, shape index: {}]
  %s4 = inlined_call_operand.vmem [shape: f32[2,16,16,128], index: 4, kind: output, shape index: {0}]
  %s5 = inlined_call_operand.vmem [shape: f32[2,2,128], index: 5, kind: output, shape index: {1}]
  %6 = xla_tuple %s4, %s5
  %s7 = sld [smem:[#allocation0]]
  $region57: #{residual_block.4} parent=0
    _
  %s9 = ssub.s32 1, %s7
  %s10 = scalar_select 0, %s9, %s7
  loop: start=0, step=1, limit=4
  $region2: #{residual_block.4} parent=0 // loop_pre_header
    _
  $region3: #{residual_block.4} parent=0 // loop_header
    %s12 = sphi 0, %s16
    %p13 = scmp.ge.s32.totalorder %s12, 4
    %s22 = sphi 0, %s24
    %s25 = sphi 0, %s22
    %s26 = sphi 0, %s25
    %s42 = sphi 0, %s26
    %s46 = sphi 0, %s46
    %s48 = sphi 0, %s46
    %s49 = sphi 0, %s48
    %s63 = sphi 0, %s49
    %s67 = sphi 0, %s67
    %s69 = sphi 0, %s67
    %s70 = sphi 0, %s69
    %s84 = sphi 0, %s70
    %s88 = sphi 0, %s88
    %s90 = sphi 0, %s88
    %s91 = sphi 0, %s90
    %s105 = sphi 0, %s91
    %s111 = sphi 0, %s113
    %s114 = sphi 0, %s111
    %s115 = sphi 0, %s114
    %s131 = sphi 0, %s115
    %s137 = sphi 0, %s139
    %s140 = sphi 0, %s137
    %s141 = sphi 0, %s140
    %s157 = sphi 0, %s141
  $region4: #{residual_block.4} parent=0 // loop_header_branch
    %15 = sbr.rel (%p13) target = $region8
  $region5: #{residual_block.4} parent=0 // loop_body
    %s17 = ssub.s32 %s12, 1
    %s18 = ssub.s32 %s12, 2
    %s19 = sadd.s32 %s12, 1
    %s20 = ssub.s32 %s12, %s19
    %p21 = scmp.eq.s32.totalorder %s20, 0
    %s23 = sadd.s32 %s22, 1
    %s24 = scalar_select %p21, %s22, %s23
    %p27 = pneg %p21
    %p28 = scmp.eq.s32.totalorder %s12, 1
    %p29 = por %p27, %p28
    %p30 = scmp.ne.s32.totalorder %s22, %s25
    %p31 = scmp.eq.s32.totalorder %s12, 0
    %p32 = por %p30, %p31
    %p33 = scmp.ne.s32.totalorder %s22, %s25
    %p34 = scmp.eq.s32.totalorder %s17, 1
    %p35 = por %p33, %p34
    %p36 = scmp.ne.s32.totalorder %s25, %s26
    %p37 = scmp.eq.s32.totalorder %s17, 0
    %p38 = por %p36, %p37
    %p39 = scmp.ne.s32.totalorder %s25, %s26
    %p40 = scmp.eq.s32.totalorder %s18, 1
    %p41 = por %p39, %p40
    %p43 = scmp.ne.s32.totalorder %s26, %s42
    %p44 = scmp.eq.s32.totalorder %s18, 0
    %p45 = por %p43, %p44
    %s47 = sadd.s32 %s46, 1
    %p50 = scmp.eq.s32.totalorder %s12, 1
    %p51 = scmp.ne.s32.totalorder %s46, %s48
    %p52 = scmp.eq.s32.totalorder %s12, 0
    %p53 = por %p51, %p52
    %p54 = scmp.ne.s32.totalorder %s46, %s48
    %p55 = scmp.eq.s32.totalorder %s17, 1
    %p56 = por %p54, %p55
    %p57 = scmp.ne.s32.totalorder %s48, %s49
    %p58 = scmp.eq.s32.totalorder %s17, 0
    %p59 = por %p57, %p58
    %p60 = scmp.ne.s32.totalorder %s48, %s49
    %p61 = scmp.eq.s32.totalorder %s18, 1
    %p62 = por %p60, %p61
    %p64 = scmp.ne.s32.totalorder %s49, %s63
    %p65 = scmp.eq.s32.totalorder %s18, 0
    %p66 = por %p64, %p65
    %s68 = sadd.s32 %s67, 1
    %p71 = scmp.eq.s32.totalorder %s12, 1
    %p72 = scmp.ne.s32.totalorder %s67, %s69
    %p73 = scmp.eq.s32.totalorder %s12, 0
    %p74 = por %p72, %p73
    %p75 = scmp.ne.s32.totalorder %s67, %s69
    %p76 = scmp.eq.s32.totalorder %s17, 1
    %p77 = por %p75, %p76
    %p78 = scmp.ne.s32.totalorder %s69, %s70
    %p79 = scmp.eq.s32.totalorder %s17, 0
    %p80 = por %p78, %p79
    %p81 = scmp.ne.s32.totalorder %s69, %s70
    %p82 = scmp.eq.s32.totalorder %s18, 1
    %p83 = por %p81, %p82
    %p85 = scmp.ne.s32.totalorder %s70, %s84
    %p86 = scmp.eq.s32.totalorder %s18, 0
    %p87 = por %p85, %p86
    %s89 = sadd.s32 %s88, 1
    %p92 = scmp.eq.s32.totalorder %s12, 1
    %p93 = scmp.ne.s32.totalorder %s88, %s90
    %p94 = scmp.eq.s32.totalorder %s12, 0
    %p95 = por %p93, %p94
    %p96 = scmp.ne.s32.totalorder %s88, %s90
    %p97 = scmp.eq.s32.totalorder %s17, 1
    %p98 = por %p96, %p97
    %p99 = scmp.ne.s32.totalorder %s90, %s91
    %p100 = scmp.eq.s32.totalorder %s17, 0
    %p101 = por %p99, %p100
    %p102 = scmp.ne.s32.totalorder %s90, %s91
    %p103 = scmp.eq.s32.totalorder %s18, 1
    %p104 = por %p102, %p103
    %p106 = scmp.ne.s32.totalorder %s91, %s105
    %p107 = scmp.eq.s32.totalorder %s18, 0
    %p108 = por %p106, %p107
    %s109 = ssub.s32 %s12, %s19
    %p110 = scmp.eq.s32.totalorder %s109, 0
    %s112 = sadd.s32 %s111, 1
    %s113 = scalar_select %p110, %s111, %s112
    %p116 = pneg %p110
    %p117 = scmp.eq.s32.totalorder %s12, 1
    %p118 = por %p116, %p117
    %p119 = scmp.ne.s32.totalorder %s111, %s114
    %p120 = scmp.eq.s32.totalorder %s12, 0
    %p121 = por %p119, %p120
    %p122 = scmp.ne.s32.totalorder %s111, %s114
    %p123 = scmp.eq.s32.totalorder %s17, 1
    %p124 = por %p122, %p123
    %p125 = scmp.ne.s32.totalorder %s114, %s115
    %p126 = scmp.eq.s32.totalorder %s17, 0
    %p127 = por %p125, %p126
    %p128 = scmp.ne.s32.totalorder %s114, %s115
    %p129 = scmp.eq.s32.totalorder %s18, 1
    %p130 = por %p128, %p129
    %p132 = scmp.ne.s32.totalorder %s115, %s131
    %p133 = scmp.eq.s32.totalorder %s18, 0
    %p134 = por %p132, %p133
    %s135 = ssub.s32 %s12, %s19
    %p136 = scmp.eq.s32.totalorder %s135, 0
    %s138 = sadd.s32 %s137, 1
    %s139 = scalar_select %p136, %s137, %s138
    %p142 = pneg %p136
    %p143 = scmp.eq.s32.totalorder %s12, 1
    %p144 = por %p142, %p143
    %p145 = scmp.ne.s32.totalorder %s137, %s140
    %p146 = scmp.eq.s32.totalorder %s12, 0
    %p147 = por %p145, %p146
    %p148 = scmp.ne.s32.totalorder %s137, %s140
    %p149 = scmp.eq.s32.totalorder %s17, 1
    %p150 = por %p148, %p149
    %p151 = scmp.ne.s32.totalorder %s140, %s141
    %p152 = scmp.eq.s32.totalorder %s17, 0
    %p153 = por %p151, %p152
    %p154 = scmp.ne.s32.totalorder %s140, %s141
    %p155 = scmp.eq.s32.totalorder %s18, 1
    %p156 = por %p154, %p155
    %p158 = scmp.ne.s32.totalorder %s141, %s157
    %p159 = scmp.eq.s32.totalorder %s18, 0
    %p160 = por %p158, %p159
    %p161 = scmp.le.s32.totalorder 1, %s12
    %p162 = scmp.lt.s32.totalorder %s12, 3
    %p163 = pnand %p161, %p162
    %p164 = pneg %p163
    // Predicated region
    $region9: #{residual_block.4} parent=5 // pred_check
      _
    $region10: #{residual_block.4} parent=5 // pred_check_branch
      %166 = sbr.rel (%p163) target = $region12
    $region11: #{residual_block.4} parent=5 // pred_region
      %s167 = ssub.s32 %s12, 1
      // Predicated region
      $region13: #{residual_block.4} parent=11 // pred_check
        %p168 = pneg %p59
      $region14: #{residual_block.4} parent=11 // pred_check_branch
        %170 = sbr.rel (%p168) target = $region16
      $region15: #{residual_block.4} parent=11 // pred_region
        _
      $region16: #{residual_block.4} parent=11 // pred_fallthru
        _
      // Predicated region
      $region17: #{residual_block.4} parent=11 // pred_check
        %p171 = pneg %p80
      $region18: #{residual_block.4} parent=11 // pred_check_branch
        %173 = sbr.rel (%p171) target = $region20
      $region19: #{residual_block.4} parent=11 // pred_region
        _
      $region20: #{residual_block.4} parent=11 // pred_fallthru
        _
      // Predicated region
      $region21: #{residual_block.4} parent=11 // pred_check
        %p174 = pneg %p101
      $region22: #{residual_block.4} parent=11 // pred_check_branch
        %176 = sbr.rel (%p174) target = $region24
      $region23: #{residual_block.4} parent=11 // pred_region
        _
      $region24: #{residual_block.4} parent=11 // pred_fallthru
        _
    $region12: #{residual_block.4} parent=5 // pred_fallthru
      _
    %p177 = scmp.lt.s32.totalorder %s12, 2
    // Predicated region
    $region25: #{residual_block.4} parent=5 // pred_check
      %p178 = pneg %p177
    $region26: #{residual_block.4} parent=5 // pred_check_branch
      %180 = sbr.rel (%p178) target = $region28
    $region27: #{residual_block.4} parent=5 // pred_region
      // Predicated region
      $region29: #{residual_block.4} parent=27 // pred_check
        %p181 = pneg %p32
      $region30: #{residual_block.4} parent=27 // pred_check_branch
        %183 = sbr.rel (%p181) target = $region32
      $region31: #{residual_block.4} parent=27 // pred_region
        %p184 = scmp.lt.s32.totalorder %s12, 1
        %s185 = scalar_select %p184, %s12, 1
        %s186 = smul.addr %s185, 32
        %s187 = smul.addr %s186, 8
        %s188 = scalar_lea.vmem %s0, %s187
      $region32: #{residual_block.4} parent=27 // pred_fallthru
        _
    $region28: #{residual_block.4} parent=5 // pred_fallthru
      _
    %p189 = scmp.le.s32.totalorder 1, %s12
    %p190 = scmp.lt.s32.totalorder %s12, 3
    %p191 = pnand %p189, %p190
    %p192 = pneg %p191
    // Predicated region
    $region33: #{residual_block.4} parent=5 // pred_check
      _
    $region34: #{residual_block.4} parent=5 // pred_check_branch
      %194 = sbr.rel (%p191) target = $region36
    $region35: #{residual_block.4} parent=5 // pred_region
      %s195 = ssub.s32 %s12, 1
      %p196 = scmp.lt.s32.totalorder %s17, 1
      %s197 = scalar_select %p196, %s17, 1
      %s198 = smul.addr %s197, 32
      %s199 = smul.addr %s198, 8
      %s200 = scalar_lea.vmem %s0, %s199
      %p201 = pneg %p38
      %p202 = pneg %p35
      %p203 = pneg %p59
      %p204 = pneg %p56
      %p205 = pneg %p80
      %p206 = pneg %p77
      %p207 = pneg %p101
      %p208 = pneg %p98
      %p209 = pneg %p127
      %p210 = pneg %p124
      %p211 = scmp.lt.s32.totalorder %s17, 1
      %s212 = scalar_select %p211, %s17, 1
      %s213 = smul.addr %s212, 32
      %s214 = smul.addr %s213, 8
      %s215 = scalar_lea.vmem %s4, %s214
      %p216 = pneg %p153
      %p217 = pneg %p150
      %p218 = scmp.lt.s32.totalorder %s17, 1
      %s219 = scalar_select %p218, %s17, 1
      %s220 = smul.addr %s219, 2
      %s221 = scalar_lea.vmem %s5, %s220
      %p222 = scmp.lt.s32.totalorder %s17, 1
      %s223 = scalar_select %p222, %s17, 1
      %s224 = smul.addr %s223, 32
      %s225 = smul.addr %s224, 8
      %s226 = scalar_lea.vmem %s0, %s225
      %p227 = scmp.lt.s32.totalorder %s17, 1
      %s228 = scalar_select %p227, %s17, 1
      %s229 = smul.addr %s228, 32
      %s230 = smul.addr %s229, 8
      %s231 = scalar_lea.vmem %s4, %s230
      %p232 = scmp.lt.s32.totalorder %s17, 1
      %s233 = scalar_select %p232, %s17, 1
      %s234 = smul.addr %s233, 2
      %s235 = scalar_lea.vmem %s5, %s234
      %v236 = vld [vmem:[%s226] sm:$0xff]
      %v237 = vld [vmem:[%s226 + $0x8] sm:$0xff]
      %v238 = vld [vmem:[%s226 + $0x10] sm:$0xff]
      %v239 = vld [vmem:[%s226 + $0x18] sm:$0xff]
      %v240 = vld [vmem:[%s226 + $0x20] sm:$0xff]
      %v241 = vld [vmem:[%s226 + $0x28] sm:$0xff]
      %v242 = vld [vmem:[%s226 + $0x30] sm:$0xff]
      %v243 = vld [vmem:[%s226 + $0x38] sm:$0xff]
      %v244 = vld [vmem:[%s226 + $0x40] sm:$0xff]
      %v245 = vld [vmem:[%s226 + $0x48] sm:$0xff]
      %v246 = vld [vmem:[%s226 + $0x50] sm:$0xff]
      %v247 = vld [vmem:[%s226 + $0x58] sm:$0xff]
      %v248 = vld [vmem:[%s226 + $0x60] sm:$0xff]
      %v249 = vld [vmem:[%s226 + $0x68] sm:$0xff]
      %v250 = vld [vmem:[%s226 + $0x70] sm:$0xff]
      %v251 = vld [vmem:[%s226 + $0x78] sm:$0xff]
      %v252 = vld [vmem:[%s226 + $0x80] sm:$0xff]
      %v253 = vld [vmem:[%s226 + $0x88] sm:$0xff]
      %v254 = vld [vmem:[%s226 + $0x90] sm:$0xff]
      %v255 = vld [vmem:[%s226 + $0x98] sm:$0xff]
      %v256 = vld [vmem:[%s226 + $0xa0] sm:$0xff]
      %v257 = vld [vmem:[%s226 + $0xa8] sm:$0xff]
      %v258 = vld [vmem:[%s226 + $0xb0] sm:$0xff]
      %v259 = vld [vmem:[%s226 + $0xb8] sm:$0xff]
      %v260 = vld [vmem:[%s226 + $0xc0] sm:$0xff]
      %v261 = vld [vmem:[%s226 + $0xc8] sm:$0xff]
      %v262 = vld [vmem:[%s226 + $0xd0] sm:$0xff]
      %v263 = vld [vmem:[%s226 + $0xd8] sm:$0xff]
      %v264 = vld [vmem:[%s226 + $0xe0] sm:$0xff]
      %v265 = vld [vmem:[%s226 + $0xe8] sm:$0xff]
      %v266 = vld [vmem:[%s226 + $0xf0] sm:$0xff]
      %v267 = vld [vmem:[%s226 + $0xf8] sm:$0xff]
      %v268 = vld [vmem:[%s2] sm:$0x1]
      %v270 = vlaneseq
      %v271 = vshrl.u32 %v270, 7
      %v272 = vsub.s32 0, %v271
      %v273 = vrot.slane %v268, %v272
      %v275 = vmul.f32 %v236, %v273
      %v276 = vmul.f32 %v237, %v273
      %v277 = vmul.f32 %v238, %v273
      %v278 = vmul.f32 %v239, %v273
      %v279 = vmul.f32 %v240, %v273
      %v280 = vmul.f32 %v241, %v273
      %v281 = vmul.f32 %v242, %v273
      %v282 = vmul.f32 %v243, %v273
      %v283 = vmul.f32 %v244, %v273
      %v284 = vmul.f32 %v245, %v273
      %v285 = vmul.f32 %v246, %v273
      %v286 = vmul.f32 %v247, %v273
      %v287 = vmul.f32 %v248, %v273
      %v288 = vmul.f32 %v249, %v273
      %v289 = vmul.f32 %v250, %v273
      %v290 = vmul.f32 %v251, %v273
      %v291 = vmul.f32 %v252, %v273
      %v292 = vmul.f32 %v253, %v273
      %v293 = vmul.f32 %v254, %v273
      %v294 = vmul.f32 %v255, %v273
      %v295 = vmul.f32 %v256, %v273
      %v296 = vmul.f32 %v257, %v273
      %v297 = vmul.f32 %v258, %v273
      %v298 = vmul.f32 %v259, %v273
      %v299 = vmul.f32 %v260, %v273
      %v300 = vmul.f32 %v261, %v273
      %v301 = vmul.f32 %v262, %v273
      %v302 = vmul.f32 %v263, %v273
      %v303 = vmul.f32 %v264, %v273
      %v304 = vmul.f32 %v265, %v273
      %v305 = vmul.f32 %v266, %v273
      %v306 = vmul.f32 %v267, %v273
      %v307 = vld [vmem:[%s3] sm:$0x1]
      %v309 = vlaneseq
      %v310 = vshrl.u32 %v309, 7
      %v311 = vsub.s32 0, %v310
      %v312 = vrot.slane %v307, %v311
      %v314 = vadd.f32 %v275, %v312
      %v315 = vadd.f32 %v276, %v312
      %v316 = vadd.f32 %v277, %v312
      %v317 = vadd.f32 %v278, %v312
      %v318 = vadd.f32 %v279, %v312
      %v319 = vadd.f32 %v280, %v312
      %v320 = vadd.f32 %v281, %v312
      %v321 = vadd.f32 %v282, %v312
      %v322 = vadd.f32 %v283, %v312
      %v323 = vadd.f32 %v284, %v312
      %v324 = vadd.f32 %v285, %v312
      %v325 = vadd.f32 %v286, %v312
      %v326 = vadd.f32 %v287, %v312
      %v327 = vadd.f32 %v288, %v312
      %v328 = vadd.f32 %v289, %v312
      %v329 = vadd.f32 %v290, %v312
      %v330 = vadd.f32 %v291, %v312
      %v331 = vadd.f32 %v292, %v312
      %v332 = vadd.f32 %v293, %v312
      %v333 = vadd.f32 %v294, %v312
      %v334 = vadd.f32 %v295, %v312
      %v335 = vadd.f32 %v296, %v312
      %v336 = vadd.f32 %v297, %v312
      %v337 = vadd.f32 %v298, %v312
      %v338 = vadd.f32 %v299, %v312
      %v339 = vadd.f32 %v300, %v312
      %v340 = vadd.f32 %v301, %v312
      %v341 = vadd.f32 %v302, %v312
      %v342 = vadd.f32 %v303, %v312
      %v343 = vadd.f32 %v304, %v312
      %v344 = vadd.f32 %v305, %v312
      %v345 = vadd.f32 %v306, %v312
      %v346 = vmax.f32 %v314, 0.0
      %v347 = vmax.f32 %v315, 0.0
      %v348 = vmax.f32 %v316, 0.0
      %v349 = vmax.f32 %v317, 0.0
      %v350 = vmax.f32 %v318, 0.0
      %v351 = vmax.f32 %v319, 0.0
      %v352 = vmax.f32 %v320, 0.0
      %v353 = vmax.f32 %v321, 0.0
      %v354 = vmax.f32 %v322, 0.0
      %v355 = vmax.f32 %v323, 0.0
      %v356 = vmax.f32 %v324, 0.0
      %v357 = vmax.f32 %v325, 0.0
      %v358 = vmax.f32 %v326, 0.0
      %v359 = vmax.f32 %v327, 0.0
      %v360 = vmax.f32 %v328, 0.0
      %v361 = vmax.f32 %v329, 0.0
      %v362 = vmax.f32 %v330, 0.0
      %v363 = vmax.f32 %v331, 0.0
      %v364 = vmax.f32 %v332, 0.0
      %v365 = vmax.f32 %v333, 0.0
      %v366 = vmax.f32 %v334, 0.0
      %v367 = vmax.f32 %v335, 0.0
      %v368 = vmax.f32 %v336, 0.0
      %v369 = vmax.f32 %v337, 0.0
      %v370 = vmax.f32 %v338, 0.0
      %v371 = vmax.f32 %v339, 0.0
      %v372 = vmax.f32 %v340, 0.0
      %v373 = vmax.f32 %v341, 0.0
      %v374 = vmax.f32 %v342, 0.0
      %v375 = vmax.f32 %v343, 0.0
      %v376 = vmax.f32 %v344, 0.0
      %v377 = vmax.f32 %v345, 0.0
      %378 = vst [vmem:[#allocation2] sm:$0xff] 0.0
      %379 = vst [vmem:[#allocation2 + $0x8] sm:$0xff] 0.0
      %380 = vst [vmem:[#allocation2 + $0x10] sm:$0x3] 0.0
      %s381 = scalar_lea.vmem [#allocation2], 408
      %382 = vst [vmem:[%s381] sm:$0xff] 0.0
      %383 = vst [vmem:[%s381 + $0x8] sm:$0xff] 0.0
      %384 = vst [vmem:[%s381 + $0x10] sm:$0x3] 0.0
      %s385 = scalar_lea.vmem [#allocation2], 24
      %386 = vst [vmem:[%s385] sm:$0x1] 0.0
      %387 = vst [vmem:[%s385 + $0x18] sm:$0x1] 0.0
      %388 = vst [vmem:[%s385 + $0x30] sm:$0x1] 0.0
      %389 = vst [vmem:[%s385 + $0x48] sm:$0x1] 0.0
      %390 = vst [vmem:[%s385 + $0x60] sm:$0x1] 0.0
      %391 = vst [vmem:[%s385 + $0x78] sm:$0x1] 0.0
      %392 = vst [vmem:[%s385 + $0x90] sm:$0x1] 0.0
      %393 = vst [vmem:[%s385 + $0xa8] sm:$0x1] 0.0
      %394 = vst [vmem:[%s385 + $0xc0] sm:$0x1] 0.0
      %395 = vst [vmem:[%s385 + $0xd8] sm:$0x1] 0.0
      %396 = vst [vmem:[%s385 + $0xf0] sm:$0x1] 0.0
      %397 = vst [vmem:[%s385 + $0x108] sm:$0x1] 0.0
      %398 = vst [vmem:[%s385 + $0x120] sm:$0x1] 0.0
      %399 = vst [vmem:[%s385 + $0x138] sm:$0x1] 0.0
      %400 = vst [vmem:[%s385 + $0x150] sm:$0x1] 0.0
      %401 = vst [vmem:[%s385 + $0x168] sm:$0x1] 0.0
      %402 = vst [vmem:[%s385 + $0x11] sm:$0x1] 0.0
      %403 = vst [vmem:[%s385 + $0x29] sm:$0x1] 0.0
      %404 = vst [vmem:[%s385 + $0x41] sm:$0x1] 0.0
      %405 = vst [vmem:[%s385 + $0x59] sm:$0x1] 0.0
      %406 = vst [vmem:[%s385 + $0x71] sm:$0x1] 0.0
      %407 = vst [vmem:[%s385 + $0x89] sm:$0x1] 0.0
      %408 = vst [vmem:[%s385 + $0xa1] sm:$0x1] 0.0
      %409 = vst [vmem:[%s385 + $0xb9] sm:$0x1] 0.0
      %410 = vst [vmem:[%s385 + $0xd1] sm:$0x1] 0.0
      %411 = vst [vmem:[%s385 + $0xe9] sm:$0x1] 0.0
      %412 = vst [vmem:[%s385 + $0x101] sm:$0x1] 0.0
      %413 = vst [vmem:[%s385 + $0x119] sm:$0x1] 0.0
      %414 = vst [vmem:[%s385 + $0x131] sm:$0x1] 0.0
      %415 = vst [vmem:[%s385 + $0x149] sm:$0x1] 0.0
      %416 = vst [vmem:[%s385 + $0x161] sm:$0x1] 0.0
      %417 = vst [vmem:[%s385 + $0x179] sm:$0x1] 0.0
      %418 = vst [vmem:[%s385 + $0x1] sm:$0xff] %v346
      %419 = vst [vmem:[%s385 + $0x9] sm:$0xff] %v347
      %420 = vst [vmem:[%s385 + $0x19] sm:$0xff] %v348
      %421 = vst [vmem:[%s385 + $0x21] sm:$0xff] %v349
      %422 = vst [vmem:[%s385 + $0x31] sm:$0xff] %v350
      %423 = vst [vmem:[%s385 + $0x39] sm:$0xff] %v351
      %424 = vst [vmem:[%s385 + $0x49] sm:$0xff] %v352
      %425 = vst [vmem:[%s385 + $0x51] sm:$0xff] %v353
      %426 = vst [vmem:[%s385 + $0x61] sm:$0xff] %v354
      %427 = vst [vmem:[%s385 + $0x69] sm:$0xff] %v355
      %428 = vst [vmem:[%s385 + $0x79] sm:$0xff] %v356
      %429 = vst [vmem:[%s385 + $0x81] sm:$0xff] %v357
      %430 = vst [vmem:[%s385 + $0x91] sm:$0xff] %v358
      %431 = vst [vmem:[%s385 + $0x99] sm:$0xff] %v359
      %432 = vst [vmem:[%s385 + $0xa9] sm:$0xff] %v360
      %433 = vst [vmem:[%s385 + $0xb1] sm:$0xff] %v361
      %434 = vst [vmem:[%s385 + $0xc1] sm:$0xff] %v362
      %435 = vst [vmem:[%s385 + $0xc9] sm:$0xff] %v363
      %436 = vst [vmem:[%s385 + $0xd9] sm:$0xff] %v364
      %437 = vst [vmem:[%s385 + $0xe1] sm:$0xff] %v365
      %438 = vst [vmem:[%s385 + $0xf1] sm:$0xff] %v366
      %439 = vst [vmem:[%s385 + $0xf9] sm:$0xff] %v367
      %440 = vst [vmem:[%s385 + $0x109] sm:$0xff] %v368
      %441 = vst [vmem:[%s385 + $0x111] sm:$0xff] %v369
      %442 = vst [vmem:[%s385 + $0x121] sm:$0xff] %v370
      %443 = vst [vmem:[%s385 + $0x129] sm:$0xff] %v371
      %444 = vst [vmem:[%s385 + $0x139] sm:$0xff] %v372
      %445 = vst [vmem:[%s385 + $0x141] sm:$0xff] %v373
      %446 = vst [vmem:[%s385 + $0x151] sm:$0xff] %v374
      %447 = vst [vmem:[%s385 + $0x159] sm:$0xff] %v375
      %448 = vst [vmem:[%s385 + $0x169] sm:$0xff] %v376
      %449 = vst [vmem:[%s385 + $0x171] sm:$0xff] %v377
      %v450 = vld [vmem:[#allocation2] sm:$0xff]
      %v451 = vld [vmem:[#allocation2 + $0x8] sm:$0xff]
      %v452 = vld [vmem:[#allocation2 + $0x18] sm:$0xff]
      %v453 = vld [vmem:[#allocation2 + $0x20] sm:$0xff]
      %v454 = vld [vmem:[#allocation2 + $0x30] sm:$0xff]
      %v455 = vld [vmem:[#allocation2 + $0x38] sm:$0xff]
      %v456 = vld [vmem:[#allocation2 + $0x48] sm:$0xff]
      %v457 = vld [vmem:[#allocation2 + $0x50] sm:$0xff]
      %v458 = vld [vmem:[#allocation2 + $0x60] sm:$0xff]
      %v459 = vld [vmem:[#allocation2 + $0x68] sm:$0xff]
      %v460 = vld [vmem:[#allocation2 + $0x78] sm:$0xff]
      %v461 = vld [vmem:[#allocation2 + $0x80] sm:$0xff]
      %v462 = vld [vmem:[#allocation2 + $0x90] sm:$0xff]
      %v463 = vld [vmem:[#allocation2 + $0x98] sm:$0xff]
      %v464 = vld [vmem:[#allocation2 + $0xa8] sm:$0xff]
      %v465 = vld [vmem:[#allocation2 + $0xb0] sm:$0xff]
      %v466 = vld [vmem:[#allocation2 + $0xc0] sm:$0xff]
      %v467 = vld [vmem:[#allocation2 + $0xc8] sm:$0xff]
      %v468 = vld [vmem:[#allocation2 + $0xd8] sm:$0xff]
      %v469 = vld [vmem:[#allocation2 + $0xe0] sm:$0xff]
      %v470 = vld [vmem:[#allocation2 + $0xf0] sm:$0xff]
      %v471 = vld [vmem:[#allocation2 + $0xf8] sm:$0xff]
      %v472 = vld [vmem:[#allocation2 + $0x108] sm:$0xff]
      %v473 = vld [vmem:[#allocation2 + $0x110] sm:$0xff]
      %v474 = vld [vmem:[#allocation2 + $0x120] sm:$0xff]
      %v475 = vld [vmem:[#allocation2 + $0x128] sm:$0xff]
      %v476 = vld [vmem:[#allocation2 + $0x138] sm:$0xff]
      %v477 = vld [vmem:[#allocation2 + $0x140] sm:$0xff]
      %v478 = vld [vmem:[#allocation2 + $0x150] sm:$0xff]
      %v479 = vld [vmem:[#allocation2 + $0x158] sm:$0xff]
      %v480 = vld [vmem:[#allocation2 + $0x168] sm:$0xff]
      %v481 = vld [vmem:[#allocation2 + $0x170] sm:$0xff]
      %482 = vst [vmem:[#allocation3] sm:$0xff] %v450
      %483 = vst [vmem:[#allocation3 + $0x48] sm:$0xff] %v451
      %484 = vst [vmem:[#allocation3 + $0x90] sm:$0xff] %v452
      %485 = vst [vmem:[#allocation3 + $0xd8] sm:$0xff] %v453
      %486 = vst [vmem:[#allocation3 + $0x120] sm:$0xff] %v454
      %487 = vst [vmem:[#allocation3 + $0x168] sm:$0xff] %v455
      %488 = vst [vmem:[#allocation3 + $0x1b0] sm:$0xff] %v456
      %489 = vst [vmem:[#allocation3 + $0x1f8] sm:$0xff] %v457
      %490 = vst [vmem:[#allocation3 + $0x240] sm:$0xff] %v458
      %491 = vst [vmem:[#allocation3 + $0x288] sm:$0xff] %v459
      %492 = vst [vmem:[#allocation3 + $0x2d0] sm:$0xff] %v460
      %493 = vst [vmem:[#allocation3 + $0x318] sm:$0xff] %v461
      %494 = vst [vmem:[#allocation3 + $0x360] sm:$0xff] %v462
      %495 = vst [vmem:[#allocation3 + $0x3a8] sm:$0xff] %v463
      %496 = vst [vmem:[#allocation3 + $0x3f0] sm:$0xff] %v464
      %497 = vst [vmem:[#allocation3 + $0x438] sm:$0xff] %v465
      %498 = vst [vmem:[#allocation3 + $0x480] sm:$0xff] %v466
      %499 = vst [vmem:[#allocation3 + $0x4c8] sm:$0xff] %v467
      %500 = vst [vmem:[#allocation3 + $0x510] sm:$0xff] %v468
      %501 = vst [vmem:[#allocation3 + $0x558] sm:$0xff] %v469
      %502 = vst [vmem:[#allocation3 + $0x5a0] sm:$0xff] %v470
      %503 = vst [vmem:[#allocation3 + $0x5e8] sm:$0xff] %v471
      %504 = vst [vmem:[#allocation3 + $0x630] sm:$0xff] %v472
      %505 = vst [vmem:[#allocation3 + $0x678] sm:$0xff] %v473
      %506 = vst [vmem:[#allocation3 + $0x6c0] sm:$0xff] %v474
      %507 = vst [vmem:[#allocation3 + $0x708] sm:$0xff] %v475
      %508 = vst [vmem:[#allocation3 + $0x750] sm:$0xff] %v476
      %509 = vst [vmem:[#allocation3 + $0x798] sm:$0xff] %v477
      %510 = vst [vmem:[#allocation3 + $0x7e0] sm:$0xff] %v478
      %511 = vst [vmem:[#allocation3 + $0x828] sm:$0xff] %v479
      %512 = vst [vmem:[#allocation3 + $0x870] sm:$0xff] %v480
      %513 = vst [vmem:[#allocation3 + $0x8b8] sm:$0xff] %v481
      %v514 = vld [vmem:[#allocation2 + $0x1] sm:$0xff]
      %v515 = vld [vmem:[#allocation2 + $0x9] sm:$0xff]
      %v516 = vld [vmem:[#allocation2 + $0x19] sm:$0xff]
      %v517 = vld [vmem:[#allocation2 + $0x21] sm:$0xff]
      %v518 = vld [vmem:[#allocation2 + $0x31] sm:$0xff]
      %v519 = vld [vmem:[#allocation2 + $0x39] sm:$0xff]
      %v520 = vld [vmem:[#allocation2 + $0x49] sm:$0xff]
      %v521 = vld [vmem:[#allocation2 + $0x51] sm:$0xff]
      %v522 = vld [vmem:[#allocation2 + $0x61] sm:$0xff]
      %v523 = vld [vmem:[#allocation2 + $0x69] sm:$0xff]
      %v524 = vld [vmem:[#allocation2 + $0x79] sm:$0xff]
      %v525 = vld [vmem:[#allocation2 + $0x81] sm:$0xff]
      %v526 = vld [vmem:[#allocation2 + $0x91] sm:$0xff]
      %v527 = vld [vmem:[#allocation2 + $0x99] sm:$0xff]
      %v528 = vld [vmem:[#allocation2 + $0xa9] sm:$0xff]
      %v529 = vld [vmem:[#allocation2 + $0xb1] sm:$0xff]
      %v530 = vld [vmem:[#allocation2 + $0xc1] sm:$0xff]
      %v531 = vld [vmem:[#allocation2 + $0xc9] sm:$0xff]
      %v532 = vld [vmem:[#allocation2 + $0xd9] sm:$0xff]
      %v533 = vld [vmem:[#allocation2 + $0xe1] sm:$0xff]
      %v534 = vld [vmem:[#allocation2 + $0xf1] sm:$0xff]
      %v535 = vld [vmem:[#allocation2 + $0xf9] sm:$0xff]
      %v536 = vld [vmem:[#allocation2 + $0x109] sm:$0xff]
      %v537 = vld [vmem:[#allocation2 + $0x111] sm:$0xff]
      %v538 = vld [vmem:[#allocation2 + $0x121] sm:$0xff]
      %v539 = vld [vmem:[#allocation2 + $0x129] sm:$0xff]
      %v540 = vld [vmem:[#allocation2 + $0x139] sm:$0xff]
      %v541 = vld [vmem:[#allocation2 + $0x141] sm:$0xff]
      %v542 = vld [vmem:[#allocation2 + $0x151] sm:$0xff]
      %v543 = vld [vmem:[#allocation2 + $0x159] sm:$0xff]
      %v544 = vld [vmem:[#allocation2 + $0x169] sm:$0xff]
      %v545 = vld [vmem:[#allocation2 + $0x171] sm:$0xff]
      %546 = vst [vmem:[#allocation3 + $0x8] sm:$0xff] %v514
      %547 = vst [vmem:[#allocation3 + $0x50] sm:$0xff] %v515
      %548 = vst [vmem:[#allocation3 + $0x98] sm:$0xff] %v516
      %549 = vst [vmem:[#allocation3 + $0xe0] sm:$0xff] %v517
      %550 = vst [vmem:[#allocation3 + $0x128] sm:$0xff] %v518
      %551 = vst [vmem:[#allocation3 + $0x170] sm:$0xff] %v519
      %552 = vst [vmem:[#allocation3 + $0x1b8] sm:$0xff] %v520
      %553 = vst [vmem:[#allocation3 + $0x200] sm:$0xff] %v521
      %554 = vst [vmem:[#allocation3 + $0x248] sm:$0xff] %v522
      %555 = vst [vmem:[#allocation3 + $0x290] sm:$0xff] %v523
      %556 = vst [vmem:[#allocation3 + $0x2d8] sm:$0xff] %v524
      %557 = vst [vmem:[#allocation3 + $0x320] sm:$0xff] %v525
      %558 = vst [vmem:[#allocation3 + $0x368] sm:$0xff] %v526
      %559 = vst [vmem:[#allocation3 + $0x3b0] sm:$0xff] %v527
      %560 = vst [vmem:[#allocation3 + $0x3f8] sm:$0xff] %v528
      %561 = vst [vmem:[#allocation3 + $0x440] sm:$0xff] %v529
      %562 = vst [vmem:[#allocation3 + $0x488] sm:$0xff] %v530
      %563 = vst [vmem:[#allocation3 + $0x4d0] sm:$0xff] %v531
      %564 = vst [vmem:[#allocation3 + $0x518] sm:$0xff] %v532
      %565 = vst [vmem:[#allocation3 + $0x560] sm:$0xff] %v533
      %566 = vst [vmem:[#allocation3 + $0x5a8] sm:$0xff] %v534
      %567 = vst [vmem:[#allocation3 + $0x5f0] sm:$0xff] %v535
      %568 = vst [vmem:[#allocation3 + $0x638] sm:$0xff] %v536
      %569 = vst [vmem:[#allocation3 + $0x680] sm:$0xff] %v537
      %570 = vst [vmem:[#allocation3 + $0x6c8] sm:$0xff] %v538
      %571 = vst [vmem:[#allocation3 + $0x710] sm:$0xff] %v539
      %572 = vst [vmem:[#allocation3 + $0x758] sm:$0xff] %v540
      %573 = vst [vmem:[#allocation3 + $0x7a0] sm:$0xff] %v541
      %574 = vst [vmem:[#allocation3 + $0x7e8] sm:$0xff] %v542
      %575 = vst [vmem:[#allocation3 + $0x830] sm:$0xff] %v543
      %576 = vst [vmem:[#allocation3 + $0x878] sm:$0xff] %v544
      %577 = vst [vmem:[#allocation3 + $0x8c0] sm:$0xff] %v545
      %v578 = vld [vmem:[#allocation2 + $0x2] sm:$0xff]
      %v579 = vld [vmem:[#allocation2 + $0xa] sm:$0xff]
      %v580 = vld [vmem:[#allocation2 + $0x1a] sm:$0xff]
      %v581 = vld [vmem:[#allocation2 + $0x22] sm:$0xff]
      %v582 = vld [vmem:[#allocation2 + $0x32] sm:$0xff]
      %v583 = vld [vmem:[#allocation2 + $0x3a] sm:$0xff]
      %v584 = vld [vmem:[#allocation2 + $0x4a] sm:$0xff]
      %v585 = vld [vmem:[#allocation2 + $0x52] sm:$0xff]
      %v586 = vld [vmem:[#allocation2 + $0x62] sm:$0xff]
      %v587 = vld [vmem:[#allocation2 + $0x6a] sm:$0xff]
      %v588 = vld [vmem:[#allocation2 + $0x7a] sm:$0xff]
      %v589 = vld [vmem:[#allocation2 + $0x82] sm:$0xff]
      %v590 = vld [vmem:[#allocation2 + $0x92] sm:$0xff]
      %v591 = vld [vmem:[#allocation2 + $0x9a] sm:$0xff]
      %v592 = vld [vmem:[#allocation2 + $0xaa] sm:$0xff]
      %v593 = vld [vmem:[#allocation2 + $0xb2] sm:$0xff]
      %v594 = vld [vmem:[#allocation2 + $0xc2] sm:$0xff]
      %v595 = vld [vmem:[#allocation2 + $0xca] sm:$0xff]
      %v596 = vld [vmem:[#allocation2 + $0xda] sm:$0xff]
      %v597 = vld [vmem:[#allocation2 + $0xe2] sm:$0xff]
      %v598 = vld [vmem:[#allocation2 + $0xf2] sm:$0xff]
      %v599 = vld [vmem:[#allocation2 + $0xfa] sm:$0xff]
      %v600 = vld [vmem:[#allocation2 + $0x10a] sm:$0xff]
      %v601 = vld [vmem:[#allocation2 + $0x112] sm:$0xff]
      %v602 = vld [vmem:[#allocation2 + $0x122] sm:$0xff]
      %v603 = vld [vmem:[#allocation2 + $0x12a] sm:$0xff]
      %v604 = vld [vmem:[#allocation2 + $0x13a] sm:$0xff]
      %v605 = vld [vmem:[#allocation2 + $0x142] sm:$0xff]
      %v606 = vld [vmem:[#allocation2 + $0x152] sm:$0xff]
      %v607 = vld [vmem:[#allocation2 + $0x15a] sm:$0xff]
      %v608 = vld [vmem:[#allocation2 + $0x16a] sm:$0xff]
      %v609 = vld [vmem:[#allocation2 + $0x172] sm:$0xff]
      %610 = vst [vmem:[#allocation3 + $0x10] sm:$0xff] %v578
      %611 = vst [vmem:[#allocation3 + $0x58] sm:$0xff] %v579
      %612 = vst [vmem:[#allocation3 + $0xa0] sm:$0xff] %v580
      %613 = vst [vmem:[#allocation3 + $0xe8] sm:$0xff] %v581
      %614 = vst [vmem:[#allocation3 + $0x130] sm:$0xff] %v582
      %615 = vst [vmem:[#allocation3 + $0x178] sm:$0xff] %v583
      %616 = vst [vmem:[#allocation3 + $0x1c0] sm:$0xff] %v584
      %617 = vst [vmem:[#allocation3 + $0x208] sm:$0xff] %v585
      %618 = vst [vmem:[#allocation3 + $0x250] sm:$0xff] %v586
      %619 = vst [vmem:[#allocation3 + $0x298] sm:$0xff] %v587
      %620 = vst [vmem:[#allocation3 + $0x2e0] sm:$0xff] %v588
      %621 = vst [vmem:[#allocation3 + $0x328] sm:$0xff] %v589
      %622 = vst [vmem:[#allocation3 + $0x370] sm:$0xff] %v590
      %623 = vst [vmem:[#allocation3 + $0x3b8] sm:$0xff] %v591
      %624 = vst [vmem:[#allocation3 + $0x400] sm:$0xff] %v592
      %625 = vst [vmem:[#allocation3 + $0x448] sm:$0xff] %v593
      %626 = vst [vmem:[#allocation3 + $0x490] sm:$0xff] %v594
      %627 = vst [vmem:[#allocation3 + $0x4d8] sm:$0xff] %v595
      %628 = vst [vmem:[#allocation3 + $0x520] sm:$0xff] %v596
      %629 = vst [vmem:[#allocation3 + $0x568] sm:$0xff] %v597
      %630 = vst [vmem:[#allocation3 + $0x5b0] sm:$0xff] %v598
      %631 = vst [vmem:[#allocation3 + $0x5f8] sm:$0xff] %v599
      %632 = vst [vmem:[#allocation3 + $0x640] sm:$0xff] %v600
      %633 = vst [vmem:[#allocation3 + $0x688] sm:$0xff] %v601
      %634 = vst [vmem:[#allocation3 + $0x6d0] sm:$0xff] %v602
      %635 = vst [vmem:[#allocation3 + $0x718] sm:$0xff] %v603
      %636 = vst [vmem:[#allocation3 + $0x760] sm:$0xff] %v604
      %637 = vst [vmem:[#allocation3 + $0x7a8] sm:$0xff] %v605
      %638 = vst [vmem:[#allocation3 + $0x7f0] sm:$0xff] %v606
      %639 = vst [vmem:[#allocation3 + $0x838] sm:$0xff] %v607
      %640 = vst [vmem:[#allocation3 + $0x880] sm:$0xff] %v608
      %641 = vst [vmem:[#allocation3 + $0x8c8] sm:$0xff] %v609
      %v642 = vld [vmem:[%s385] sm:$0xff]
      %v643 = vld [vmem:[%s385 + $0x8] sm:$0xff]
      %v644 = vld [vmem:[%s385 + $0x18] sm:$0xff]
      %v645 = vld [vmem:[%s385 + $0x20] sm:$0xff]
      %v646 = vld [vmem:[%s385 + $0x30] sm:$0xff]
      %v647 = vld [vmem:[%s385 + $0x38] sm:$0xff]
      %v648 = vld [vmem:[%s385 + $0x48] sm:$0xff]
      %v649 = vld [vmem:[%s385 + $0x50] sm:$0xff]
      %v650 = vld [vmem:[%s385 + $0x60] sm:$0xff]
      %v651 = vld [vmem:[%s385 + $0x68] sm:$0xff]
      %v652 = vld [vmem:[%s385 + $0x78] sm:$0xff]
      %v653 = vld [vmem:[%s385 + $0x80] sm:$0xff]
      %v654 = vld [vmem:[%s385 + $0x90] sm:$0xff]
      %v655 = vld [vmem:[%s385 + $0x98] sm:$0xff]
      %v656 = vld [vmem:[%s385 + $0xa8] sm:$0xff]
      %v657 = vld [vmem:[%s385 + $0xb0] sm:$0xff]
      %v658 = vld [vmem:[%s385 + $0xc0] sm:$0xff]
      %v659 = vld [vmem:[%s385 + $0xc8] sm:$0xff]
      %v660 = vld [vmem:[%s385 + $0xd8] sm:$0xff]
      %v661 = vld [vmem:[%s385 + $0xe0] sm:$0xff]
      %v662 = vld [vmem:[%s385 + $0xf0] sm:$0xff]
      %v663 = vld [vmem:[%s385 + $0xf8] sm:$0xff]
      %v664 = vld [vmem:[%s385 + $0x108] sm:$0xff]
      %v665 = vld [vmem:[%s385 + $0x110] sm:$0xff]
      %v666 = vld [vmem:[%s385 + $0x120] sm:$0xff]
      %v667 = vld [vmem:[%s385 + $0x128] sm:$0xff]
      %v668 = vld [vmem:[%s385 + $0x138] sm:$0xff]
      %v669 = vld [vmem:[%s385 + $0x140] sm:$0xff]
      %v670 = vld [vmem:[%s385 + $0x150] sm:$0xff]
      %v671 = vld [vmem:[%s385 + $0x158] sm:$0xff]
      %v672 = vld [vmem:[%s385 + $0x168] sm:$0xff]
      %v673 = vld [vmem:[%s385 + $0x170] sm:$0xff]
      %674 = vst [vmem:[#allocation3 + $0x18] sm:$0xff] %v642
      %675 = vst [vmem:[#allocation3 + $0x60] sm:$0xff] %v643
      %676 = vst [vmem:[#allocation3 + $0xa8] sm:$0xff] %v644
      %677 = vst [vmem:[#allocation3 + $0xf0] sm:$0xff] %v645
      %678 = vst [vmem:[#allocation3 + $0x138] sm:$0xff] %v646
      %679 = vst [vmem:[#allocation3 + $0x180] sm:$0xff] %v647
      %680 = vst [vmem:[#allocation3 + $0x1c8] sm:$0xff] %v648
      %681 = vst [vmem:[#allocation3 + $0x210] sm:$0xff] %v649
      %682 = vst [vmem:[#allocation3 + $0x258] sm:$0xff] %v650
      %683 = vst [vmem:[#allocation3 + $0x2a0] sm:$0xff] %v651
      %684 = vst [vmem:[#allocation3 + $0x2e8] sm:$0xff] %v652
      %685 = vst [vmem:[#allocation3 + $0x330] sm:$0xff] %v653
      %686 = vst [vmem:[#allocation3 + $0x378] sm:$0xff] %v654
      %687 = vst [vmem:[#allocation3 + $0x3c0] sm:$0xff] %v655
      %688 = vst [vmem:[#allocation3 + $0x408] sm:$0xff] %v656
      %689 = vst [vmem:[#allocation3 + $0x450] sm:$0xff] %v657
      %690 = vst [vmem:[#allocation3 + $0x498] sm:$0xff] %v658
      %691 = vst [vmem:[#allocation3 + $0x4e0] sm:$0xff] %v659
      %692 = vst [vmem:[#allocation3 + $0x528] sm:$0xff] %v660
      %693 = vst [vmem:[#allocation3 + $0x570] sm:$0xff] %v661
      %694 = vst [vmem:[#allocation3 + $0x5b8] sm:$0xff] %v662
      %695 = vst [vmem:[#allocation3 + $0x600] sm:$0xff] %v663
      %696 = vst [vmem:[#allocation3 + $0x648] sm:$0xff] %v664
      %697 = vst [vmem:[#allocation3 + $0x690] sm:$0xff] %v665
      %698 = vst [vmem:[#allocation3 + $0x6d8] sm:$0xff] %v666
      %699 = vst [vmem:[#allocation3 + $0x720] sm:$0xff] %v667
      %700 = vst [vmem:[#allocation3 + $0x768] sm:$0xff] %v668
      %701 = vst [vmem:[#allocation3 + $0x7b0] sm:$0xff] %v669
      %702 = vst [vmem:[#allocation3 + $0x7f8] sm:$0xff] %v670
      %703 = vst [vmem:[#allocation3 + $0x840] sm:$0xff] %v671
      %704 = vst [vmem:[#allocation3 + $0x888] sm:$0xff] %v672
      %705 = vst [vmem:[#allocation3 + $0x8d0] sm:$0xff] %v673
      %v706 = vld [vmem:[%s385 + $0x1] sm:$0xff]
      %v707 = vld [vmem:[%s385 + $0x9] sm:$0xff]
      %v708 = vld [vmem:[%s385 + $0x19] sm:$0xff]
      %v709 = vld [vmem:[%s385 + $0x21] sm:$0xff]
      %v710 = vld [vmem:[%s385 + $0x31] sm:$0xff]
      %v711 = vld [vmem:[%s385 + $0x39] sm:$0xff]
      %v712 = vld [vmem:[%s385 + $0x49] sm:$0xff]
      %v713 = vld [vmem:[%s385 + $0x51] sm:$0xff]
      %v714 = vld [vmem:[%s385 + $0x61] sm:$0xff]
      %v715 = vld [vmem:[%s385 + $0x69] sm:$0xff]
      %v716 = vld [vmem:[%s385 + $0x79] sm:$0xff]
      %v717 = vld [vmem:[%s385 + $0x81] sm:$0xff]
      %v718 = vld [vmem:[%s385 + $0x91] sm:$0xff]
      %v719 = vld [vmem:[%s385 + $0x99] sm:$0xff]
      %v720 = vld [vmem:[%s385 + $0xa9] sm:$0xff]
      %v721 = vld [vmem:[%s385 + $0xb1] sm:$0xff]
      %v722 = vld [vmem:[%s385 + $0xc1] sm:$0xff]
      %v723 = vld [vmem:[%s385 + $0xc9] sm:$0xff]
      %v724 = vld [vmem:[%s385 + $0xd9] sm:$0xff]
      %v725 = vld [vmem:[%s385 + $0xe1] sm:$0xff]
      %v726 = vld [vmem:[%s385 + $0xf1] sm:$0xff]
      %v727 = vld [vmem:[%s385 + $0xf9] sm:$0xff]
      %v728 = vld [vmem:[%s385 + $0x109] sm:$0xff]
      %v729 = vld [vmem:[%s385 + $0x111] sm:$0xff]
      %v730 = vld [vmem:[%s385 + $0x121] sm:$0xff]
      %v731 = vld [vmem:[%s385 + $0x129] sm:$0xff]
      %v732 = vld [vmem:[%s385 + $0x139] sm:$0xff]
      %v733 = vld [vmem:[%s385 + $0x141] sm:$0xff]
      %v734 = vld [vmem:[%s385 + $0x151] sm:$0xff]
      %v735 = vld [vmem:[%s385 + $0x159] sm:$0xff]
      %v736 = vld [vmem:[%s385 + $0x169] sm:$0xff]
      %v737 = vld [vmem:[%s385 + $0x171] sm:$0xff]
      %738 = vst [vmem:[#allocation3 + $0x20] sm:$0xff] %v706
      %739 = vst [vmem:[#allocation3 + $0x68] sm:$0xff] %v707
      %740 = vst [vmem:[#allocation3 + $0xb0] sm:$0xff] %v708
      %741 = vst [vmem:[#allocation3 + $0xf8] sm:$0xff] %v709
      %742 = vst [vmem:[#allocation3 + $0x140] sm:$0xff] %v710
      %743 = vst [vmem:[#allocation3 + $0x188] sm:$0xff] %v711
      %744 = vst [vmem:[#allocation3 + $0x1d0] sm:$0xff] %v712
      %745 = vst [vmem:[#allocation3 + $0x218] sm:$0xff] %v713
      %746 = vst [vmem:[#allocation3 + $0x260] sm:$0xff] %v714
      %747 = vst [vmem:[#allocation3 + $0x2a8] sm:$0xff] %v715
      %748 = vst [vmem:[#allocation3 + $0x2f0] sm:$0xff] %v716
      %749 = vst [vmem:[#allocation3 + $0x338] sm:$0xff] %v717
      %750 = vst [vmem:[#allocation3 + $0x380] sm:$0xff] %v718
      %751 = vst [vmem:[#allocation3 + $0x3c8] sm:$0xff] %v719
      %752 = vst [vmem:[#allocation3 + $0x410] sm:$0xff] %v720
      %753 = vst [vmem:[#allocation3 + $0x458] sm:$0xff] %v721
      %754 = vst [vmem:[#allocation3 + $0x4a0] sm:$0xff] %v722
      %755 = vst [vmem:[#allocation3 + $0x4e8] sm:$0xff] %v723
      %756 = vst [vmem:[#allocation3 + $0x530] sm:$0xff] %v724
      %757 = vst [vmem:[#allocation3 + $0x578] sm:$0xff] %v725
      %758 = vst [vmem:[#allocation3 + $0x5c0] sm:$0xff] %v726
      %759 = vst [vmem:[#allocation3 + $0x608] sm:$0xff] %v727
      %760 = vst [vmem:[#allocation3 + $0x650] sm:$0xff] %v728
      %761 = vst [vmem:[#allocation3 + $0x698] sm:$0xff] %v729
      %762 = vst [vmem:[#allocation3 + $0x6e0] sm:$0xff] %v730
      %763 = vst [vmem:[#allocation3 + $0x728] sm:$0xff] %v731
      %764 = vst [vmem:[#allocation3 + $0x770] sm:$0xff] %v732
      %765 = vst [vmem:[#allocation3 + $0x7b8] sm:$0xff] %v733
      %766 = vst [vmem:[#allocation3 + $0x800] sm:$0xff] %v734
      %767 = vst [vmem:[#allocation3 + $0x848] sm:$0xff] %v735
      %768 = vst [vmem:[#allocation3 + $0x890] sm:$0xff] %v736
      %769 = vst [vmem:[#allocation3 + $0x8d8] sm:$0xff] %v737
      %v770 = vld [vmem:[%s385 + $0x2] sm:$0xff]
      %v771 = vld [vmem:[%s385 + $0xa] sm:$0xff]
      %v772 = vld [vmem:[%s385 + $0x1a] sm:$0xff]
      %v773 = vld [vmem:[%s385 + $0x22] sm:$0xff]
      %v774 = vld [vmem:[%s385 + $0x32] sm:$0xff]
      %v775 = vld [vmem:[%s385 + $0x3a] sm:$0xff]
      %v776 = vld [vmem:[%s385 + $0x4a] sm:$0xff]
      %v777 = vld [vmem:[%s385 + $0x52] sm:$0xff]
      %v778 = vld [vmem:[%s385 + $0x62] sm:$0xff]
      %v779 = vld [vmem:[%s385 + $0x6a] sm:$0xff]
      %v780 = vld [vmem:[%s385 + $0x7a] sm:$0xff]
      %v781 = vld [vmem:[%s385 + $0x82] sm:$0xff]
      %v782 = vld [vmem:[%s385 + $0x92] sm:$0xff]
      %v783 = vld [vmem:[%s385 + $0x9a] sm:$0xff]
      %v784 = vld [vmem:[%s385 + $0xaa] sm:$0xff]
      %v785 = vld [vmem:[%s385 + $0xb2] sm:$0xff]
      %v786 = vld [vmem:[%s385 + $0xc2] sm:$0xff]
      %v787 = vld [vmem:[%s385 + $0xca] sm:$0xff]
      %v788 = vld [vmem:[%s385 + $0xda] sm:$0xff]
      %v789 = vld [vmem:[%s385 + $0xe2] sm:$0xff]
      %v790 = vld [vmem:[%s385 + $0xf2] sm:$0xff]
      %v791 = vld [vmem:[%s385 + $0xfa] sm:$0xff]
      %v792 = vld [vmem:[%s385 + $0x10a] sm:$0xff]
      %v793 = vld [vmem:[%s385 + $0x112] sm:$0xff]
      %v794 = vld [vmem:[%s385 + $0x122] sm:$0xff]
      %v795 = vld [vmem:[%s385 + $0x12a] sm:$0xff]
      %v796 = vld [vmem:[%s385 + $0x13a] sm:$0xff]
      %v797 = vld [vmem:[%s385 + $0x142] sm:$0xff]
      %v798 = vld [vmem:[%s385 + $0x152] sm:$0xff]
      %v799 = vld [vmem:[%s385 + $0x15a] sm:$0xff]
      %v800 = vld [vmem:[%s385 + $0x16a] sm:$0xff]
      %v801 = vld [vmem:[%s385 + $0x172] sm:$0xff]
      %802 = vst [vmem:[#allocation3 + $0x28] sm:$0xff] %v770
      %803 = vst [vmem:[#allocation3 + $0x70] sm:$0xff] %v771
      %804 = vst [vmem:[#allocation3 + $0xb8] sm:$0xff] %v772
      %805 = vst [vmem:[#allocation3 + $0x100] sm:$0xff] %v773
      %806 = vst [vmem:[#allocation3 + $0x148] sm:$0xff] %v774
      %807 = vst [vmem:[#allocation3 + $0x190] sm:$0xff] %v775
      %808 = vst [vmem:[#allocation3 + $0x1d8] sm:$0xff] %v776
      %809 = vst [vmem:[#allocation3 + $0x220] sm:$0xff] %v777
      %810 = vst [vmem:[#allocation3 + $0x268] sm:$0xff] %v778
      %811 = vst [vmem:[#allocation3 + $0x2b0] sm:$0xff] %v779
      %812 = vst [vmem:[#allocation3 + $0x2f8] sm:$0xff] %v780
      %813 = vst [vmem:[#allocation3 + $0x340] sm:$0xff] %v781
      %814 = vst [vmem:[#allocation3 + $0x388] sm:$0xff] %v782
      %815 = vst [vmem:[#allocation3 + $0x3d0] sm:$0xff] %v783
      %816 = vst [vmem:[#allocation3 + $0x418] sm:$0xff] %v784
      %817 = vst [vmem:[#allocation3 + $0x460] sm:$0xff] %v785
      %818 = vst [vmem:[#allocation3 + $0x4a8] sm:$0xff] %v786
      %819 = vst [vmem:[#allocation3 + $0x4f0] sm:$0xff] %v787
      %820 = vst [vmem:[#allocation3 + $0x538] sm:$0xff] %v788
      %821 = vst [vmem:[#allocation3 + $0x580] sm:$0xff] %v789
      %822 = vst [vmem:[#allocation3 + $0x5c8] sm:$0xff] %v790
      %823 = vst [vmem:[#allocation3 + $0x610] sm:$0xff] %v791
      %824 = vst [vmem:[#allocation3 + $0x658] sm:$0xff] %v792
      %825 = vst [vmem:[#allocation3 + $0x6a0] sm:$0xff] %v793
      %826 = vst [vmem:[#allocation3 + $0x6e8] sm:$0xff] %v794
      %827 = vst [vmem:[#allocation3 + $0x730] sm:$0xff] %v795
      %828 = vst [vmem:[#allocation3 + $0x778] sm:$0xff] %v796
      %829 = vst [vmem:[#allocation3 + $0x7c0] sm:$0xff] %v797
      %830 = vst [vmem:[#allocation3 + $0x808] sm:$0xff] %v798
      %831 = vst [vmem:[#allocation3 + $0x850] sm:$0xff] %v799
      %832 = vst [vmem:[#allocation3 + $0x898] sm:$0xff] %v800
      %833 = vst [vmem:[#allocation3 + $0x8e0] sm:$0xff] %v801
      %s834 = scalar_lea.vmem [#allocation2], 48
      %v835 = vld [vmem:[%s834] sm:$0xff]
      %v836 = vld [vmem:[%s834 + $0x8] sm:$0xff]
      %v837 = vld [vmem:[%s834 + $0x18] sm:$0xff]
      %v838 = vld [vmem:[%s834 + $0x20] sm:$0xff]
      %v839 = vld [vmem:[%s834 + $0x30] sm:$0xff]
      %v840 = vld [vmem:[%s834 + $0x38] sm:$0xff]
      %v841 = vld [vmem:[%s834 + $0x48] sm:$0xff]
      %v842 = vld [vmem:[%s834 + $0x50] sm:$0xff]
      %v843 = vld [vmem:[%s834 + $0x60] sm:$0xff]
      %v844 = vld [vmem:[%s834 + $0x68] sm:$0xff]
      %v845 = vld [vmem:[%s834 + $0x78] sm:$0xff]
      %v846 = vld [vmem:[%s834 + $0x80] sm:$0xff]
      %v847 = vld [vmem:[%s834 + $0x90] sm:$0xff]
      %v848 = vld [vmem:[%s834 + $0x98] sm:$0xff]
      %v849 = vld [vmem:[%s834 + $0xa8] sm:$0xff]
      %v850 = vld [vmem:[%s834 + $0xb0] sm:$0xff]
      %v851 = vld [vmem:[%s834 + $0xc0] sm:$0xff]
      %v852 = vld [vmem:[%s834 + $0xc8] sm:$0xff]
      %v853 = vld [vmem:[%s834 + $0xd8] sm:$0xff]
      %v854 = vld [vmem:[%s834 + $0xe0] sm:$0xff]
      %v855 = vld [vmem:[%s834 + $0xf0] sm:$0xff]
      %v856 = vld [vmem:[%s834 + $0xf8] sm:$0xff]
      %v857 = vld [vmem:[%s834 + $0x108] sm:$0xff]
      %v858 = vld [vmem:[%s834 + $0x110] sm:$0xff]
      %v859 = vld [vmem:[%s834 + $0x120] sm:$0xff]
      %v860 = vld [vmem:[%s834 + $0x128] sm:$0xff]
      %v861 = vld [vmem:[%s834 + $0x138] sm:$0xff]
      %v862 = vld [vmem:[%s834 + $0x140] sm:$0xff]
      %v863 = vld [vmem:[%s834 + $0x150] sm:$0xff]
      %v864 = vld [vmem:[%s834 + $0x158] sm:$0xff]
      %v865 = vld [vmem:[%s834 + $0x168] sm:$0xff]
      %v866 = vld [vmem:[%s834 + $0x170] sm:$0xff]
      %867 = vst [vmem:[#allocation3 + $0x30] sm:$0xff] %v835
      %868 = vst [vmem:[#allocation3 + $0x78] sm:$0xff] %v836
      %869 = vst [vmem:[#allocation3 + $0xc0] sm:$0xff] %v837
      %870 = vst [vmem:[#allocation3 + $0x108] sm:$0xff] %v838
      %871 = vst [vmem:[#allocation3 + $0x150] sm:$0xff] %v839
      %872 = vst [vmem:[#allocation3 + $0x198] sm:$0xff] %v840
      %873 = vst [vmem:[#allocation3 + $0x1e0] sm:$0xff] %v841
      %874 = vst [vmem:[#allocation3 + $0x228] sm:$0xff] %v842
      %875 = vst [vmem:[#allocation3 + $0x270] sm:$0xff] %v843
      %876 = vst [vmem:[#allocation3 + $0x2b8] sm:$0xff] %v844
      %877 = vst [vmem:[#allocation3 + $0x300] sm:$0xff] %v845
      %878 = vst [vmem:[#allocation3 + $0x348] sm:$0xff] %v846
      %879 = vst [vmem:[#allocation3 + $0x390] sm:$0xff] %v847
      %880 = vst [vmem:[#allocation3 + $0x3d8] sm:$0xff] %v848
      %881 = vst [vmem:[#allocation3 + $0x420] sm:$0xff] %v849
      %882 = vst [vmem:[#allocation3 + $0x468] sm:$0xff] %v850
      %883 = vst [vmem:[#allocation3 + $0x4b0] sm:$0xff] %v851
      %884 = vst [vmem:[#allocation3 + $0x4f8] sm:$0xff] %v852
      %885 = vst [vmem:[#allocation3 + $0x540] sm:$0xff] %v853
      %886 = vst [vmem:[#allocation3 + $0x588] sm:$0xff] %v854
      %887 = vst [vmem:[#allocation3 + $0x5d0] sm:$0xff] %v855
      %888 = vst [vmem:[#allocation3 + $0x618] sm:$0xff] %v856
      %889 = vst [vmem:[#allocation3 + $0x660] sm:$0xff] %v857
      %890 = vst [vmem:[#allocation3 + $0x6a8] sm:$0xff] %v858
      %891 = vst [vmem:[#allocation3 + $0x6f0] sm:$0xff] %v859
      %892 = vst [vmem:[#allocation3 + $0x738] sm:$0xff] %v860
      %893 = vst [vmem:[#allocation3 + $0x780] sm:$0xff] %v861
      %894 = vst [vmem:[#allocation3 + $0x7c8] sm:$0xff] %v862
      %895 = vst [vmem:[#allocation3 + $0x810] sm:$0xff] %v863
      %896 = vst [vmem:[#allocation3 + $0x858] sm:$0xff] %v864
      %897 = vst [vmem:[#allocation3 + $0x8a0] sm:$0xff] %v865
      %898 = vst [vmem:[#allocation3 + $0x8e8] sm:$0xff] %v866
      %v899 = vld [vmem:[%s834 + $0x1] sm:$0xff]
      %v900 = vld [vmem:[%s834 + $0x9] sm:$0xff]
      %v901 = vld [vmem:[%s834 + $0x19] sm:$0xff]
      %v902 = vld [vmem:[%s834 + $0x21] sm:$0xff]
      %v903 = vld [vmem:[%s834 + $0x31] sm:$0xff]
      %v904 = vld [vmem:[%s834 + $0x39] sm:$0xff]
      %v905 = vld [vmem:[%s834 + $0x49] sm:$0xff]
      %v906 = vld [vmem:[%s834 + $0x51] sm:$0xff]
      %v907 = vld [vmem:[%s834 + $0x61] sm:$0xff]
      %v908 = vld [vmem:[%s834 + $0x69] sm:$0xff]
      %v909 = vld [vmem:[%s834 + $0x79] sm:$0xff]
      %v910 = vld [vmem:[%s834 + $0x81] sm:$0xff]
      %v911 = vld [vmem:[%s834 + $0x91] sm:$0xff]
      %v912 = vld [vmem:[%s834 + $0x99] sm:$0xff]
      %v913 = vld [vmem:[%s834 + $0xa9] sm:$0xff]
      %v914 = vld [vmem:[%s834 + $0xb1] sm:$0xff]
      %v915 = vld [vmem:[%s834 + $0xc1] sm:$0xff]
      %v916 = vld [vmem:[%s834 + $0xc9] sm:$0xff]
      %v917 = vld [vmem:[%s834 + $0xd9] sm:$0xff]
      %v918 = vld [vmem:[%s834 + $0xe1] sm:$0xff]
      %v919 = vld [vmem:[%s834 + $0xf1] sm:$0xff]
      %v920 = vld [vmem:[%s834 + $0xf9] sm:$0xff]
      %v921 = vld [vmem:[%s834 + $0x109] sm:$0xff]
      %v922 = vld [vmem:[%s834 + $0x111] sm:$0xff]
      %v923 = vld [vmem:[%s834 + $0x121] sm:$0xff]
      %v924 = vld [vmem:[%s834 + $0x129] sm:$0xff]
      %v925 = vld [vmem:[%s834 + $0x139] sm:$0xff]
      %v926 = vld [vmem:[%s834 + $0x141] sm:$0xff]
      %v927 = vld [vmem:[%s834 + $0x151] sm:$0xff]
      %v928 = vld [vmem:[%s834 + $0x159] sm:$0xff]
      %v929 = vld [vmem:[%s834 + $0x169] sm:$0xff]
      %v930 = vld [vmem:[%s834 + $0x171] sm:$0xff]
      %931 = vst [vmem:[#allocation3 + $0x38] sm:$0xff] %v899
      %932 = vst [vmem:[#allocation3 + $0x80] sm:$0xff] %v900
      %933 = vst [vmem:[#allocation3 + $0xc8] sm:$0xff] %v901
      %934 = vst [vmem:[#allocation3 + $0x110] sm:$0xff] %v902
      %935 = vst [vmem:[#allocation3 + $0x158] sm:$0xff] %v903
      %936 = vst [vmem:[#allocation3 + $0x1a0] sm:$0xff] %v904
      %937 = vst [vmem:[#allocation3 + $0x1e8] sm:$0xff] %v905
      %938 = vst [vmem:[#allocation3 + $0x230] sm:$0xff] %v906
      %939 = vst [vmem:[#allocation3 + $0x278] sm:$0xff] %v907
      %940 = vst [vmem:[#allocation3 + $0x2c0] sm:$0xff] %v908
      %941 = vst [vmem:[#allocation3 + $0x308] sm:$0xff] %v909
      %942 = vst [vmem:[#allocation3 + $0x350] sm:$0xff] %v910
      %943 = vst [vmem:[#allocation3 + $0x398] sm:$0xff] %v911
      %944 = vst [vmem:[#allocation3 + $0x3e0] sm:$0xff] %v912
      %945 = vst [vmem:[#allocation3 + $0x428] sm:$0xff] %v913
      %946 = vst [vmem:[#allocation3 + $0x470] sm:$0xff] %v914
      %947 = vst [vmem:[#allocation3 + $0x4b8] sm:$0xff] %v915
      %948 = vst [vmem:[#allocation3 + $0x500] sm:$0xff] %v916
      %949 = vst [vmem:[#allocation3 + $0x548] sm:$0xff] %v917
      %950 = vst [vmem:[#allocation3 + $0x590] sm:$0xff] %v918
      %951 = vst [vmem:[#allocation3 + $0x5d8] sm:$0xff] %v919
      %952 = vst [vmem:[#allocation3 + $0x620] sm:$0xff] %v920
      %953 = vst [vmem:[#allocation3 + $0x668] sm:$0xff] %v921
      %954 = vst [vmem:[#allocation3 + $0x6b0] sm:$0xff] %v922
      %955 = vst [vmem:[#allocation3 + $0x6f8] sm:$0xff] %v923
      %956 = vst [vmem:[#allocation3 + $0x740] sm:$0xff] %v924
      %957 = vst [vmem:[#allocation3 + $0x788] sm:$0xff] %v925
      %958 = vst [vmem:[#allocation3 + $0x7d0] sm:$0xff] %v926
      %959 = vst [vmem:[#allocation3 + $0x818] sm:$0xff] %v927
      %960 = vst [vmem:[#allocation3 + $0x860] sm:$0xff] %v928
      %961 = vst [vmem:[#allocation3 + $0x8a8] sm:$0xff] %v929
      %962 = vst [vmem:[#allocation3 + $0x8f0] sm:$0xff] %v930
      %v963 = vld [vmem:[%s834 + $0x2] sm:$0xff]
      %v964 = vld [vmem:[%s834 + $0xa] sm:$0xff]
      %v965 = vld [vmem:[%s834 + $0x1a] sm:$0xff]
      %v966 = vld [vmem:[%s834 + $0x22] sm:$0xff]
      %v967 = vld [vmem:[%s834 + $0x32] sm:$0xff]
      %v968 = vld [vmem:[%s834 + $0x3a] sm:$0xff]
      %v969 = vld [vmem:[%s834 + $0x4a] sm:$0xff]
      %v970 = vld [vmem:[%s834 + $0x52] sm:$0xff]
      %v971 = vld [vmem:[%s834 + $0x62] sm:$0xff]
      %v972 = vld [vmem:[%s834 + $0x6a] sm:$0xff]
      %v973 = vld [vmem:[%s834 + $0x7a] sm:$0xff]
      %v974 = vld [vmem:[%s834 + $0x82] sm:$0xff]
      %v975 = vld [vmem:[%s834 + $0x92] sm:$0xff]
      %v976 = vld [vmem:[%s834 + $0x9a] sm:$0xff]
      %v977 = vld [vmem:[%s834 + $0xaa] sm:$0xff]
      %v978 = vld [vmem:[%s834 + $0xb2] sm:$0xff]
      %v979 = vld [vmem:[%s834 + $0xc2] sm:$0xff]
      %v980 = vld [vmem:[%s834 + $0xca] sm:$0xff]
      %v981 = vld [vmem:[%s834 + $0xda] sm:$0xff]
      %v982 = vld [vmem:[%s834 + $0xe2] sm:$0xff]
      %v983 = vld [vmem:[%s834 + $0xf2] sm:$0xff]
      %v984 = vld [vmem:[%s834 + $0xfa] sm:$0xff]
      %v985 = vld [vmem:[%s834 + $0x10a] sm:$0xff]
      %v986 = vld [vmem:[%s834 + $0x112] sm:$0xff]
      %v987 = vld [vmem:[%s834 + $0x122] sm:$0xff]
      %v988 = vld [vmem:[%s834 + $0x12a] sm:$0xff]
      %v989 = vld [vmem:[%s834 + $0x13a] sm:$0xff]
      %v990 = vld [vmem:[%s834 + $0x142] sm:$0xff]
      %v991 = vld [vmem:[%s834 + $0x152] sm:$0xff]
      %v992 = vld [vmem:[%s834 + $0x15a] sm:$0xff]
      %v993 = vld [vmem:[%s834 + $0x16a] sm:$0xff]
      %v994 = vld [vmem:[%s834 + $0x172] sm:$0xff]
      %995 = vst [vmem:[#allocation3 + $0x40] sm:$0xff] %v963
      %996 = vst [vmem:[#allocation3 + $0x88] sm:$0xff] %v964
      %997 = vst [vmem:[#allocation3 + $0xd0] sm:$0xff] %v965
      %998 = vst [vmem:[#allocation3 + $0x118] sm:$0xff] %v966
      %999 = vst [vmem:[#allocation3 + $0x160] sm:$0xff] %v967
      %1000 = vst [vmem:[#allocation3 + $0x1a8] sm:$0xff] %v968
      %1001 = vst [vmem:[#allocation3 + $0x1f0] sm:$0xff] %v969
      %1002 = vst [vmem:[#allocation3 + $0x238] sm:$0xff] %v970
      %1003 = vst [vmem:[#allocation3 + $0x280] sm:$0xff] %v971
      %1004 = vst [vmem:[#allocation3 + $0x2c8] sm:$0xff] %v972
      %1005 = vst [vmem:[#allocation3 + $0x310] sm:$0xff] %v973
      %1006 = vst [vmem:[#allocation3 + $0x358] sm:$0xff] %v974
      %1007 = vst [vmem:[#allocation3 + $0x3a0] sm:$0xff] %v975
      %1008 = vst [vmem:[#allocation3 + $0x3e8] sm:$0xff] %v976
      %1009 = vst [vmem:[#allocation3 + $0x430] sm:$0xff] %v977
      %1010 = vst [vmem:[#allocation3 + $0x478] sm:$0xff] %v978
      %1011 = vst [vmem:[#allocation3 + $0x4c0] sm:$0xff] %v979
      %1012 = vst [vmem:[#allocation3 + $0x508] sm:$0xff] %v980
      %1013 = vst [vmem:[#allocation3 + $0x550] sm:$0xff] %v981
      %1014 = vst [vmem:[#allocation3 + $0x598] sm:$0xff] %v982
      %1015 = vst [vmem:[#allocation3 + $0x5e0] sm:$0xff] %v983
      %1016 = vst [vmem:[#allocation3 + $0x628] sm:$0xff] %v984
      %1017 = vst [vmem:[#allocation3 + $0x670] sm:$0xff] %v985
      %1018 = vst [vmem:[#allocation3 + $0x6b8] sm:$0xff] %v986
      %1019 = vst [vmem:[#allocation3 + $0x700] sm:$0xff] %v987
      %1020 = vst [vmem:[#allocation3 + $0x748] sm:$0xff] %v988
      %1021 = vst [vmem:[#allocation3 + $0x790] sm:$0xff] %v989
      %1022 = vst [vmem:[#allocation3 + $0x7d8] sm:$0xff] %v990
      %1023 = vst [vmem:[#allocation3 + $0x820] sm:$0xff] %v991
      %1024 = vst [vmem:[#allocation3 + $0x868] sm:$0xff] %v992
      %1025 = vst [vmem:[#allocation3 + $0x8b0] sm:$0xff] %v993
      %1026 = vst [vmem:[#allocation3 + $0x8f8] sm:$0xff] %v994
      %v1027 = vld [vmem:[#allocation3] sm:$0xff]
      %v1028 = vld [vmem:[#allocation3 + $0x8] sm:$0xff]
      %v1029 = vld [vmem:[#allocation3 + $0x10] sm:$0xff]
      %v1030 = vld [vmem:[#allocation3 + $0x18] sm:$0xff]
      %v1031 = vld [vmem:[#allocation3 + $0x20] sm:$0xff]
      %v1032 = vld [vmem:[#allocation3 + $0x28] sm:$0xff]
      %v1033 = vld [vmem:[#allocation3 + $0x30] sm:$0xff]
      %v1034 = vld [vmem:[#allocation3 + $0x38] sm:$0xff]
      %v1035 = vld [vmem:[#allocation3 + $0x40] sm:$0xff]
      %v1036 = vld [vmem:[#allocation3 + $0x48] sm:$0xff]
      %v1037 = vld [vmem:[#allocation3 + $0x50] sm:$0xff]
      %v1038 = vld [vmem:[#allocation3 + $0x58] sm:$0xff]
      %v1039 = vld [vmem:[#allocation3 + $0x60] sm:$0xff]
      %v1040 = vld [vmem:[#allocation3 + $0x68] sm:$0xff]
      %v1041 = vld [vmem:[#allocation3 + $0x70] sm:$0xff]
      %v1042 = vld [vmem:[#allocation3 + $0x78] sm:$0xff]
      %v1043 = vld [vmem:[#allocation3 + $0x80] sm:$0xff]
      %v1044 = vld [vmem:[#allocation3 + $0x88] sm:$0xff]
      %v1045 = vld [vmem:[#allocation3 + $0x90] sm:$0xff]
      %v1046 = vld [vmem:[#allocation3 + $0x98] sm:$0xff]
      %v1047 = vld [vmem:[#allocation3 + $0xa0] sm:$0xff]
      %v1048 = vld [vmem:[#allocation3 + $0xa8] sm:$0xff]
      %v1049 = vld [vmem:[#allocation3 + $0xb0] sm:$0xff]
      %v1050 = vld [vmem:[#allocation3 + $0xb8] sm:$0xff]
      %v1051 = vld [vmem:[#allocation3 + $0xc0] sm:$0xff]
      %v1052 = vld [vmem:[#allocation3 + $0xc8] sm:$0xff]
      %v1053 = vld [vmem:[#allocation3 + $0xd0] sm:$0xff]
      %v1054 = vld [vmem:[#allocation3 + $0xd8] sm:$0xff]
      %v1055 = vld [vmem:[#allocation3 + $0xe0] sm:$0xff]
      %v1056 = vld [vmem:[#allocation3 + $0xe8] sm:$0xff]
      %v1057 = vld [vmem:[#allocation3 + $0xf0] sm:$0xff]
      %v1058 = vld [vmem:[#allocation3 + $0xf8] sm:$0xff]
      %v1059 = vld [vmem:[#allocation3 + $0x100] sm:$0xff]
      %v1060 = vld [vmem:[#allocation3 + $0x108] sm:$0xff]
      %v1061 = vld [vmem:[#allocation3 + $0x110] sm:$0xff]
      %v1062 = vld [vmem:[#allocation3 + $0x118] sm:$0xff]
      %v1063 = vld [vmem:[#allocation3 + $0x120] sm:$0xff]
      %v1064 = vld [vmem:[#allocation3 + $0x128] sm:$0xff]
      %v1065 = vld [vmem:[#allocation3 + $0x130] sm:$0xff]
      %v1066 = vld [vmem:[#allocation3 + $0x138] sm:$0xff]
      %v1067 = vld [vmem:[#allocation3 + $0x140] sm:$0xff]
      %v1068 = vld [vmem:[#allocation3 + $0x148] sm:$0xff]
      %v1069 = vld [vmem:[#allocation3 + $0x150] sm:$0xff]
      %v1070 = vld [vmem:[#allocation3 + $0x158] sm:$0xff]
      %v1071 = vld [vmem:[#allocation3 + $0x160] sm:$0xff]
      %v1072 = vld [vmem:[#allocation3 + $0x168] sm:$0xff]
      %v1073 = vld [vmem:[#allocation3 + $0x170] sm:$0xff]
      %v1074 = vld [vmem:[#allocation3 + $0x178] sm:$0xff]
      %v1075 = vld [vmem:[#allocation3 + $0x180] sm:$0xff]
      %v1076 = vld [vmem:[#allocation3 + $0x188] sm:$0xff]
      %v1077 = vld [vmem:[#allocation3 + $0x190] sm:$0xff]
      %v1078 = vld [vmem:[#allocation3 + $0x198] sm:$0xff]
      %v1079 = vld [vmem:[#allocation3 + $0x1a0] sm:$0xff]
      %v1080 = vld [vmem:[#allocation3 + $0x1a8] sm:$0xff]
      %v1081 = vld [vmem:[#allocation3 + $0x1b0] sm:$0xff]
      %v1082 = vld [vmem:[#allocation3 + $0x1b8] sm:$0xff]
      %v1083 = vld [vmem:[#allocation3 + $0x1c0] sm:$0xff]
      %v1084 = vld [vmem:[#allocation3 + $0x1c8] sm:$0xff]
      %v1085 = vld [vmem:[#allocation3 + $0x1d0] sm:$0xff]
      %v1086 = vld [vmem:[#allocation3 + $0x1d8] sm:$0xff]
      %v1087 = vld [vmem:[#allocation3 + $0x1e0] sm:$0xff]
      %v1088 = vld [vmem:[#allocation3 + $0x1e8] sm:$0xff]
      %v1089 = vld [vmem:[#allocation3 + $0x1f0] sm:$0xff]
      %v1090 = vld [vmem:[#allocation3 + $0x1f8] sm:$0xff]
      %v1091 = vld [vmem:[#allocation3 + $0x200] sm:$0xff]
      %v1092 = vld [vmem:[#allocation3 + $0x208] sm:$0xff]
      %v1093 = vld [vmem:[#allocation3 + $0x210] sm:$0xff]
      %v1094 = vld [vmem:[#allocation3 + $0x218] sm:$0xff]
      %v1095 = vld [vmem:[#allocation3 + $0x220] sm:$0xff]
      %v1096 = vld [vmem:[#allocation3 + $0x228] sm:$0xff]
      %v1097 = vld [vmem:[#allocation3 + $0x230] sm:$0xff]
      %v1098 = vld [vmem:[#allocation3 + $0x238] sm:$0xff]
      %v1099 = vld [vmem:[#allocation3 + $0x240] sm:$0xff]
      %v1100 = vld [vmem:[#allocation3 + $0x248] sm:$0xff]
      %v1101 = vld [vmem:[#allocation3 + $0x250] sm:$0xff]
      %v1102 = vld [vmem:[#allocation3 + $0x258] sm:$0xff]
      %v1103 = vld [vmem:[#allocation3 + $0x260] sm:$0xff]
      %v1104 = vld [vmem:[#allocation3 + $0x268] sm:$0xff]
      %v1105 = vld [vmem:[#allocation3 + $0x270] sm:$0xff]
      %v1106 = vld [vmem:[#allocation3 + $0x278] sm:$0xff]
      %v1107 = vld [vmem:[#allocation3 + $0x280] sm:$0xff]
      %v1108 = vld [vmem:[#allocation3 + $0x288] sm:$0xff]
      %v1109 = vld [vmem:[#allocation3 + $0x290] sm:$0xff]
      %v1110 = vld [vmem:[#allocation3 + $0x298] sm:$0xff]
      %v1111 = vld [vmem:[#allocation3 + $0x2a0] sm:$0xff]
      %v1112 = vld [vmem:[#allocation3 + $0x2a8] sm:$0xff]
      %v1113 = vld [vmem:[#allocation3 + $0x2b0] sm:$0xff]
      %v1114 = vld [vmem:[#allocation3 + $0x2b8] sm:$0xff]
      %v1115 = vld [vmem:[#allocation3 + $0x2c0] sm:$0xff]
      %v1116 = vld [vmem:[#allocation3 + $0x2c8] sm:$0xff]
      %v1117 = vld [vmem:[#allocation3 + $0x2d0] sm:$0xff]
      %v1118 = vld [vmem:[#allocation3 + $0x2d8] sm:$0xff]
      %v1119 = vld [vmem:[#allocation3 + $0x2e0] sm:$0xff]
      %v1120 = vld [vmem:[#allocation3 + $0x2e8] sm:$0xff]
      %v1121 = vld [vmem:[#allocation3 + $0x2f0] sm:$0xff]
      %v1122 = vld [vmem:[#allocation3 + $0x2f8] sm:$0xff]
      %v1123 = vld [vmem:[#allocation3 + $0x300] sm:$0xff]
      %v1124 = vld [vmem:[#allocation3 + $0x308] sm:$0xff]
      %v1125 = vld [vmem:[#allocation3 + $0x310] sm:$0xff]
      %v1126 = vld [vmem:[#allocation3 + $0x318] sm:$0xff]
      %v1127 = vld [vmem:[#allocation3 + $0x320] sm:$0xff]
      %v1128 = vld [vmem:[#allocation3 + $0x328] sm:$0xff]
      %v1129 = vld [vmem:[#allocation3 + $0x330] sm:$0xff]
      %v1130 = vld [vmem:[#allocation3 + $0x338] sm:$0xff]
      %v1131 = vld [vmem:[#allocation3 + $0x340] sm:$0xff]
      %v1132 = vld [vmem:[#allocation3 + $0x348] sm:$0xff]
      %v1133 = vld [vmem:[#allocation3 + $0x350] sm:$0xff]
      %v1134 = vld [vmem:[#allocation3 + $0x358] sm:$0xff]
      %v1135 = vld [vmem:[#allocation3 + $0x360] sm:$0xff]
      %v1136 = vld [vmem:[#allocation3 + $0x368] sm:$0xff]
      %v1137 = vld [vmem:[#allocation3 + $0x370] sm:$0xff]
      %v1138 = vld [vmem:[#allocation3 + $0x378] sm:$0xff]
      %v1139 = vld [vmem:[#allocation3 + $0x380] sm:$0xff]
      %v1140 = vld [vmem:[#allocation3 + $0x388] sm:$0xff]
      %v1141 = vld [vmem:[#allocation3 + $0x390] sm:$0xff]
      %v1142 = vld [vmem:[#allocation3 + $0x398] sm:$0xff]
      %v1143 = vld [vmem:[#allocation3 + $0x3a0] sm:$0xff]
      %v1144 = vld [vmem:[#allocation3 + $0x3a8] sm:$0xff]
      %v1145 = vld [vmem:[#allocation3 + $0x3b0] sm:$0xff]
      %v1146 = vld [vmem:[#allocation3 + $0x3b8] sm:$0xff]
      %v1147 = vld [vmem:[#allocation3 + $0x3c0] sm:$0xff]
      %v1148 = vld [vmem:[#allocation3 + $0x3c8] sm:$0xff]
      %v1149 = vld [vmem:[#allocation3 + $0x3d0] sm:$0xff]
      %v1150 = vld [vmem:[#allocation3 + $0x3d8] sm:$0xff]
      %v1151 = vld [vmem:[#allocation3 + $0x3e0] sm:$0xff]
      %v1152 = vld [vmem:[#allocation3 + $0x3e8] sm:$0xff]
      %v1153 = vld [vmem:[#allocation3 + $0x3f0] sm:$0xff]
      %v1154 = vld [vmem:[#allocation3 + $0x3f8] sm:$0xff]
      %v1155 = vld [vmem:[#allocation3 + $0x400] sm:$0xff]
      %v1156 = vld [vmem:[#allocation3 + $0x408] sm:$0xff]
      %v1157 = vld [vmem:[#allocation3 + $0x410] sm:$0xff]
      %v1158 = vld [vmem:[#allocation3 + $0x418] sm:$0xff]
      %v1159 = vld [vmem:[#allocation3 + $0x420] sm:$0xff]
      %v1160 = vld [vmem:[#allocation3 + $0x428] sm:$0xff]
      %v1161 = vld [vmem:[#allocation3 + $0x430] sm:$0xff]
      %v1162 = vld [vmem:[#allocation3 + $0x438] sm:$0xff]
      %v1163 = vld [vmem:[#allocation3 + $0x440] sm:$0xff]
      %v1164 = vld [vmem:[#allocation3 + $0x448] sm:$0xff]
      %v1165 = vld [vmem:[#allocation3 + $0x450] sm:$0xff]
      %v1166 = vld [vmem:[#allocation3 + $0x458] sm:$0xff]
      %v1167 = vld [vmem:[#allocation3 + $0x460] sm:$0xff]
      %v1168 = vld [vmem:[#allocation3 + $0x468] sm:$0xff]
      %v1169 = vld [vmem:[#allocation3 + $0x470] sm:$0xff]
      %v1170 = vld [vmem:[#allocation3 + $0x478] sm:$0xff]
      %v1171 = vld [vmem:[#allocation3 + $0x480] sm:$0xff]
      %v1172 = vld [vmem:[#allocation3 + $0x488] sm:$0xff]
      %v1173 = vld [vmem:[#allocation3 + $0x490] sm:$0xff]
      %v1174 = vld [vmem:[#allocation3 + $0x498] sm:$0xff]
      %v1175 = vld [vmem:[#allocation3 + $0x4a0] sm:$0xff]
      %v1176 = vld [vmem:[#allocation3 + $0x4a8] sm:$0xff]
      %v1177 = vld [vmem:[#allocation3 + $0x4b0] sm:$0xff]
      %v1178 = vld [vmem:[#allocation3 + $0x4b8] sm:$0xff]
      %v1179 = vld [vmem:[#allocation3 + $0x4c0] sm:$0xff]
      %v1180 = vld [vmem:[#allocation3 + $0x4c8] sm:$0xff]
      %v1181 = vld [vmem:[#allocation3 + $0x4d0] sm:$0xff]
      %v1182 = vld [vmem:[#allocation3 + $0x4d8] sm:$0xff]
      %v1183 = vld [vmem:[#allocation3 + $0x4e0] sm:$0xff]
      %v1184 = vld [vmem:[#allocation3 + $0x4e8] sm:$0xff]
      %v1185 = vld [vmem:[#allocation3 + $0x4f0] sm:$0xff]
      %v1186 = vld [vmem:[#allocation3 + $0x4f8] sm:$0xff]
      %v1187 = vld [vmem:[#allocation3 + $0x500] sm:$0xff]
      %v1188 = vld [vmem:[#allocation3 + $0x508] sm:$0xff]
      %v1189 = vld [vmem:[#allocation3 + $0x510] sm:$0xff]
      %v1190 = vld [vmem:[#allocation3 + $0x518] sm:$0xff]
      %v1191 = vld [vmem:[#allocation3 + $0x520] sm:$0xff]
      %v1192 = vld [vmem:[#allocation3 + $0x528] sm:$0xff]
      %v1193 = vld [vmem:[#allocation3 + $0x530] sm:$0xff]
      %v1194 = vld [vmem:[#allocation3 + $0x538] sm:$0xff]
      %v1195 = vld [vmem:[#allocation3 + $0x540] sm:$0xff]
      %v1196 = vld [vmem:[#allocation3 + $0x548] sm:$0xff]
      %v1197 = vld [vmem:[#allocation3 + $0x550] sm:$0xff]
      %v1198 = vld [vmem:[#allocation3 + $0x558] sm:$0xff]
      %v1199 = vld [vmem:[#allocation3 + $0x560] sm:$0xff]
      %v1200 = vld [vmem:[#allocation3 + $0x568] sm:$0xff]
      %v1201 = vld [vmem:[#allocation3 + $0x570] sm:$0xff]
      %v1202 = vld [vmem:[#allocation3 + $0x578] sm:$0xff]
      %v1203 = vld [vmem:[#allocation3 + $0x580] sm:$0xff]
      %v1204 = vld [vmem:[#allocation3 + $0x588] sm:$0xff]
      %v1205 = vld [vmem:[#allocation3 + $0x590] sm:$0xff]
      %v1206 = vld [vmem:[#allocation3 + $0x598] sm:$0xff]
      %v1207 = vld [vmem:[#allocation3 + $0x5a0] sm:$0xff]
      %v1208 = vld [vmem:[#allocation3 + $0x5a8] sm:$0xff]
      %v1209 = vld [vmem:[#allocation3 + $0x5b0] sm:$0xff]
      %v1210 = vld [vmem:[#allocation3 + $0x5b8] sm:$0xff]
      %v1211 = vld [vmem:[#allocation3 + $0x5c0] sm:$0xff]
      %v1212 = vld [vmem:[#allocation3 + $0x5c8] sm:$0xff]
      %v1213 = vld [vmem:[#allocation3 + $0x5d0] sm:$0xff]
      %v1214 = vld [vmem:[#allocation3 + $0x5d8] sm:$0xff]
      %v1215 = vld [vmem:[#allocation3 + $0x5e0] sm:$0xff]
      %v1216 = vld [vmem:[#allocation3 + $0x5e8] sm:$0xff]
      %v1217 = vld [vmem:[#allocation3 + $0x5f0] sm:$0xff]
      %v1218 = vld [vmem:[#allocation3 + $0x5f8] sm:$0xff]
      %v1219 = vld [vmem:[#allocation3 + $0x600] sm:$0xff]
      %v1220 = vld [vmem:[#allocation3 + $0x608] sm:$0xff]
      %v1221 = vld [vmem:[#allocation3 + $0x610] sm:$0xff]
      %v1222 = vld [vmem:[#allocation3 + $0x618] sm:$0xff]
      %v1223 = vld [vmem:[#allocation3 + $0x620] sm:$0xff]
      %v1224 = vld [vmem:[#allocation3 + $0x628] sm:$0xff]
      %v1225 = vld [vmem:[#allocation3 + $0x630] sm:$0xff]
      %v1226 = vld [vmem:[#allocation3 + $0x638] sm:$0xff]
      %v1227 = vld [vmem:[#allocation3 + $0x640] sm:$0xff]
      %v1228 = vld [vmem:[#allocation3 + $0x648] sm:$0xff]
      %v1229 = vld [vmem:[#allocation3 + $0x650] sm:$0xff]
      %v1230 = vld [vmem:[#allocation3 + $0x658] sm:$0xff]
      %v1231 = vld [vmem:[#allocation3 + $0x660] sm:$0xff]
      %v1232 = vld [vmem:[#allocation3 + $0x668] sm:$0xff]
      %v1233 = vld [vmem:[#allocation3 + $0x670] sm:$0xff]
      %v1234 = vld [vmem:[#allocation3 + $0x678] sm:$0xff]
      %v1235 = vld [vmem:[#allocation3 + $0x680] sm:$0xff]
      %v1236 = vld [vmem:[#allocation3 + $0x688] sm:$0xff]
      %v1237 = vld [vmem:[#allocation3 + $0x690] sm:$0xff]
      %v1238 = vld [vmem:[#allocation3 + $0x698] sm:$0xff]
      %v1239 = vld [vmem:[#allocation3 + $0x6a0] sm:$0xff]
      %v1240 = vld [vmem:[#allocation3 + $0x6a8] sm:$0xff]
      %v1241 = vld [vmem:[#allocation3 + $0x6b0] sm:$0xff]
      %v1242 = vld [vmem:[#allocation3 + $0x6b8] sm:$0xff]
      %v1243 = vld [vmem:[#allocation3 + $0x6c0] sm:$0xff]
      %v1244 = vld [vmem:[#allocation3 + $0x6c8] sm:$0xff]
      %v1245 = vld [vmem:[#allocation3 + $0x6d0] sm:$0xff]
      %v1246 = vld [vmem:[#allocation3 + $0x6d8] sm:$0xff]
      %v1247 = vld [vmem:[#allocation3 + $0x6e0] sm:$0xff]
      %v1248 = vld [vmem:[#allocation3 + $0x6e8] sm:$0xff]
      %v1249 = vld [vmem:[#allocation3 + $0x6f0] sm:$0xff]
      %v1250 = vld [vmem:[#allocation3 + $0x6f8] sm:$0xff]
      %v1251 = vld [vmem:[#allocation3 + $0x700] sm:$0xff]
      %v1252 = vld [vmem:[#allocation3 + $0x708] sm:$0xff]
      %v1253 = vld [vmem:[#allocation3 + $0x710] sm:$0xff]
      %v1254 = vld [vmem:[#allocation3 + $0x718] sm:$0xff]
      %v1255 = vld [vmem:[#allocation3 + $0x720] sm:$0xff]
      %v1256 = vld [vmem:[#allocation3 + $0x728] sm:$0xff]
      %v1257 = vld [vmem:[#allocation3 + $0x730] sm:$0xff]
      %v1258 = vld [vmem:[#allocation3 + $0x738] sm:$0xff]
      %v1259 = vld [vmem:[#allocation3 + $0x740] sm:$0xff]
      %v1260 = vld [vmem:[#allocation3 + $0x748] sm:$0xff]
      %v1261 = vld [vmem:[#allocation3 + $0x750] sm:$0xff]
      %v1262 = vld [vmem:[#allocation3 + $0x758] sm:$0xff]
      %v1263 = vld [vmem:[#allocation3 + $0x760] sm:$0xff]
      %v1264 = vld [vmem:[#allocation3 + $0x768] sm:$0xff]
      %v1265 = vld [vmem:[#allocation3 + $0x770] sm:$0xff]
      %v1266 = vld [vmem:[#allocation3 + $0x778] sm:$0xff]
      %v1267 = vld [vmem:[#allocation3 + $0x780] sm:$0xff]
      %v1268 = vld [vmem:[#allocation3 + $0x788] sm:$0xff]
      %v1269 = vld [vmem:[#allocation3 + $0x790] sm:$0xff]
      %v1270 = vld [vmem:[#allocation3 + $0x798] sm:$0xff]
      %v1271 = vld [vmem:[#allocation3 + $0x7a0] sm:$0xff]
      %v1272 = vld [vmem:[#allocation3 + $0x7a8] sm:$0xff]
      %v1273 = vld [vmem:[#allocation3 + $0x7b0] sm:$0xff]
      %v1274 = vld [vmem:[#allocation3 + $0x7b8] sm:$0xff]
      %v1275 = vld [vmem:[#allocation3 + $0x7c0] sm:$0xff]
      %v1276 = vld [vmem:[#allocation3 + $0x7c8] sm:$0xff]
      %v1277 = vld [vmem:[#allocation3 + $0x7d0] sm:$0xff]
      %v1278 = vld [vmem:[#allocation3 + $0x7d8] sm:$0xff]
      %v1279 = vld [vmem:[#allocation3 + $0x7e0] sm:$0xff]
      %v1280 = vld [vmem:[#allocation3 + $0x7e8] sm:$0xff]
      %v1281 = vld [vmem:[#allocation3 + $0x7f0] sm:$0xff]
      %v1282 = vld [vmem:[#allocation3 + $0x7f8] sm:$0xff]
      %v1283 = vld [vmem:[#allocation3 + $0x800] sm:$0xff]
      %v1284 = vld [vmem:[#allocation3 + $0x808] sm:$0xff]
      %v1285 = vld [vmem:[#allocation3 + $0x810] sm:$0xff]
      %v1286 = vld [vmem:[#allocation3 + $0x818] sm:$0xff]
      %v1287 = vld [vmem:[#allocation3 + $0x820] sm:$0xff]
      %v1288 = vld [vmem:[#allocation3 + $0x828] sm:$0xff]
      %v1289 = vld [vmem:[#allocation3 + $0x830] sm:$0xff]
      %v1290 = vld [vmem:[#allocation3 + $0x838] sm:$0xff]
      %v1291 = vld [vmem:[#allocation3 + $0x840] sm:$0xff]
      %v1292 = vld [vmem:[#allocation3 + $0x848] sm:$0xff]
      %v1293 = vld [vmem:[#allocation3 + $0x850] sm:$0xff]
      %v1294 = vld [vmem:[#allocation3 + $0x858] sm:$0xff]
      %v1295 = vld [vmem:[#allocation3 + $0x860] sm:$0xff]
      %v1296 = vld [vmem:[#allocation3 + $0x868] sm:$0xff]
      %v1297 = vld [vmem:[#allocation3 + $0x870] sm:$0xff]
      %v1298 = vld [vmem:[#allocation3 + $0x878] sm:$0xff]
      %v1299 = vld [vmem:[#allocation3 + $0x880] sm:$0xff]
      %v1300 = vld [vmem:[#allocation3 + $0x888] sm:$0xff]
      %v1301 = vld [vmem:[#allocation3 + $0x890] sm:$0xff]
      %v1302 = vld [vmem:[#allocation3 + $0x898] sm:$0xff]
      %v1303 = vld [vmem:[#allocation3 + $0x8a0] sm:$0xff]
      %v1304 = vld [vmem:[#allocation3 + $0x8a8] sm:$0xff]
      %v1305 = vld [vmem:[#allocation3 + $0x8b0] sm:$0xff]
      %v1306 = vld [vmem:[#allocation3 + $0x8b8] sm:$0xff]
      %v1307 = vld [vmem:[#allocation3 + $0x8c0] sm:$0xff]
      %v1308 = vld [vmem:[#allocation3 + $0x8c8] sm:$0xff]
      %v1309 = vld [vmem:[#allocation3 + $0x8d0] sm:$0xff]
      %v1310 = vld [vmem:[#allocation3 + $0x8d8] sm:$0xff]
      %v1311 = vld [vmem:[#allocation3 + $0x8e0] sm:$0xff]
      %v1312 = vld [vmem:[#allocation3 + $0x8e8] sm:$0xff]
      %v1313 = vld [vmem:[#allocation3 + $0x8f0] sm:$0xff]
      %v1314 = vld [vmem:[#allocation3 + $0x8f8] sm:$0xff]
      %v1315 = vld [vmem:[%s1] sm:$0xff]
      %v1316 = vld [vmem:[%s1 + $0x8] sm:$0xff]
      %v1317 = vld [vmem:[%s1 + $0x10] sm:$0xff]
      %v1318 = vld [vmem:[%s1 + $0x18] sm:$0xff]
      %v1319 = vld [vmem:[%s1 + $0x20] sm:$0xff]
      %v1320 = vld [vmem:[%s1 + $0x28] sm:$0xff]
      %v1321 = vld [vmem:[%s1 + $0x30] sm:$0xff]
      %v1322 = vld [vmem:[%s1 + $0x38] sm:$0xff]
      %v1323 = vld [vmem:[%s1 + $0x40] sm:$0xff]
      %v1324 = vld [vmem:[%s1 + $0x48] sm:$0xff]
      %v1325 = vld [vmem:[%s1 + $0x50] sm:$0xff]
      %v1326 = vld [vmem:[%s1 + $0x58] sm:$0xff]
      %v1327 = vld [vmem:[%s1 + $0x60] sm:$0xff]
      %v1328 = vld [vmem:[%s1 + $0x68] sm:$0xff]
      %v1329 = vld [vmem:[%s1 + $0x70] sm:$0xff]
      %v1330 = vld [vmem:[%s1 + $0x78] sm:$0xff]
      %v1331 = vld [vmem:[%s1 + $0x80] sm:$0xff]
      %v1332 = vld [vmem:[%s1 + $0x88] sm:$0xff]
      %v1333 = vld [vmem:[%s1 + $0x90] sm:$0xff]
      %v1334 = vld [vmem:[%s1 + $0x98] sm:$0xff]
      %v1335 = vld [vmem:[%s1 + $0xa0] sm:$0xff]
      %v1336 = vld [vmem:[%s1 + $0xa8] sm:$0xff]
      %v1337 = vld [vmem:[%s1 + $0xb0] sm:$0xff]
      %v1338 = vld [vmem:[%s1 + $0xb8] sm:$0xff]
      %v1339 = vld [vmem:[%s1 + $0xc0] sm:$0xff]
      %v1340 = vld [vmem:[%s1 + $0xc8] sm:$0xff]
      %v1341 = vld [vmem:[%s1 + $0xd0] sm:$0xff]
      %v1342 = vld [vmem:[%s1 + $0xd8] sm:$0xff]
      %v1343 = vld [vmem:[%s1 + $0xe0] sm:$0xff]
      %v1344 = vld [vmem:[%s1 + $0xe8] sm:$0xff]
      %v1345 = vld [vmem:[%s1 + $0xf0] sm:$0xff]
      %v1346 = vld [vmem:[%s1 + $0xf8] sm:$0xff]
      %v1347 = vld [vmem:[%s1 + $0x100] sm:$0xff]
      %v1348 = vld [vmem:[%s1 + $0x108] sm:$0xff]
      %v1349 = vld [vmem:[%s1 + $0x110] sm:$0xff]
      %v1350 = vld [vmem:[%s1 + $0x118] sm:$0xff]
      %v1351 = vld [vmem:[%s1 + $0x120] sm:$0xff]
      %v1352 = vld [vmem:[%s1 + $0x128] sm:$0xff]
      %v1353 = vld [vmem:[%s1 + $0x130] sm:$0xff]
      %v1354 = vld [vmem:[%s1 + $0x138] sm:$0xff]
      %v1355 = vld [vmem:[%s1 + $0x140] sm:$0xff]
      %v1356 = vld [vmem:[%s1 + $0x148] sm:$0xff]
      %v1357 = vld [vmem:[%s1 + $0x150] sm:$0xff]
      %v1358 = vld [vmem:[%s1 + $0x158] sm:$0xff]
      %v1359 = vld [vmem:[%s1 + $0x160] sm:$0xff]
      %v1360 = vld [vmem:[%s1 + $0x168] sm:$0xff]
      %v1361 = vld [vmem:[%s1 + $0x170] sm:$0xff]
      %v1362 = vld [vmem:[%s1 + $0x178] sm:$0xff]
      %v1363 = vld [vmem:[%s1 + $0x180] sm:$0xff]
      %v1364 = vld [vmem:[%s1 + $0x188] sm:$0xff]
      %v1365 = vld [vmem:[%s1 + $0x190] sm:$0xff]
      %v1366 = vld [vmem:[%s1 + $0x198] sm:$0xff]
      %v1367 = vld [vmem:[%s1 + $0x1a0] sm:$0xff]
      %v1368 = vld [vmem:[%s1 + $0x1a8] sm:$0xff]
      %v1369 = vld [vmem:[%s1 + $0x1b0] sm:$0xff]
      %v1370 = vld [vmem:[%s1 + $0x1b8] sm:$0xff]
      %v1371 = vld [vmem:[%s1 + $0x1c0] sm:$0xff]
      %v1372 = vld [vmem:[%s1 + $0x1c8] sm:$0xff]
      %v1373 = vld [vmem:[%s1 + $0x1d0] sm:$0xff]
      %v1374 = vld [vmem:[%s1 + $0x1d8] sm:$0xff]
      %v1375 = vld [vmem:[%s1 + $0x1e0] sm:$0xff]
      %v1376 = vld [vmem:[%s1 + $0x1e8] sm:$0xff]
      %v1377 = vld [vmem:[%s1 + $0x1f0] sm:$0xff]
      %v1378 = vld [vmem:[%s1 + $0x1f8] sm:$0xff]
      %v1379 = vld [vmem:[%s1 + $0x200] sm:$0xff]
      %v1380 = vld [vmem:[%s1 + $0x208] sm:$0xff]
      %v1381 = vld [vmem:[%s1 + $0x210] sm:$0xff]
      %v1382 = vld [vmem:[%s1 + $0x218] sm:$0xff]
      %v1383 = vld [vmem:[%s1 + $0x220] sm:$0xff]
      %v1384 = vld [vmem:[%s1 + $0x228] sm:$0xff]
      %v1385 = vld [vmem:[%s1 + $0x230] sm:$0xff]
      %v1386 = vld [vmem:[%s1 + $0x238] sm:$0xff]
      %v1387 = vld [vmem:[%s1 + $0x240] sm:$0xff]
      %v1388 = vld [vmem:[%s1 + $0x248] sm:$0xff]
      %v1389 = vld [vmem:[%s1 + $0x250] sm:$0xff]
      %v1390 = vld [vmem:[%s1 + $0x258] sm:$0xff]
      %v1391 = vld [vmem:[%s1 + $0x260] sm:$0xff]
      %v1392 = vld [vmem:[%s1 + $0x268] sm:$0xff]
      %v1393 = vld [vmem:[%s1 + $0x270] sm:$0xff]
      %v1394 = vld [vmem:[%s1 + $0x278] sm:$0xff]
      %v1395 = vld [vmem:[%s1 + $0x280] sm:$0xff]
      %v1396 = vld [vmem:[%s1 + $0x288] sm:$0xff]
      %v1397 = vld [vmem:[%s1 + $0x290] sm:$0xff]
      %v1398 = vld [vmem:[%s1 + $0x298] sm:$0xff]
      %v1399 = vld [vmem:[%s1 + $0x2a0] sm:$0xff]
      %v1400 = vld [vmem:[%s1 + $0x2a8] sm:$0xff]
      %v1401 = vld [vmem:[%s1 + $0x2b0] sm:$0xff]
      %v1402 = vld [vmem:[%s1 + $0x2b8] sm:$0xff]
      %v1403 = vld [vmem:[%s1 + $0x2c0] sm:$0xff]
      %v1404 = vld [vmem:[%s1 + $0x2c8] sm:$0xff]
      %v1405 = vld [vmem:[%s1 + $0x2d0] sm:$0xff]
      %v1406 = vld [vmem:[%s1 + $0x2d8] sm:$0xff]
      %v1407 = vld [vmem:[%s1 + $0x2e0] sm:$0xff]
      %v1408 = vld [vmem:[%s1 + $0x2e8] sm:$0xff]
      %v1409 = vld [vmem:[%s1 + $0x2f0] sm:$0xff]
      %v1410 = vld [vmem:[%s1 + $0x2f8] sm:$0xff]
      %v1411 = vld [vmem:[%s1 + $0x300] sm:$0xff]
      %v1412 = vld [vmem:[%s1 + $0x308] sm:$0xff]
      %v1413 = vld [vmem:[%s1 + $0x310] sm:$0xff]
      %v1414 = vld [vmem:[%s1 + $0x318] sm:$0xff]
      %v1415 = vld [vmem:[%s1 + $0x320] sm:$0xff]
      %v1416 = vld [vmem:[%s1 + $0x328] sm:$0xff]
      %v1417 = vld [vmem:[%s1 + $0x330] sm:$0xff]
      %v1418 = vld [vmem:[%s1 + $0x338] sm:$0xff]
      %v1419 = vld [vmem:[%s1 + $0x340] sm:$0xff]
      %v1420 = vld [vmem:[%s1 + $0x348] sm:$0xff]
      %v1421 = vld [vmem:[%s1 + $0x350] sm:$0xff]
      %v1422 = vld [vmem:[%s1 + $0x358] sm:$0xff]
      %v1423 = vld [vmem:[%s1 + $0x360] sm:$0xff]
      %v1424 = vld [vmem:[%s1 + $0x368] sm:$0xff]
      %v1425 = vld [vmem:[%s1 + $0x370] sm:$0xff]
      %v1426 = vld [vmem:[%s1 + $0x378] sm:$0xff]
      %v1427 = vld [vmem:[%s1 + $0x380] sm:$0xff]
      %v1428 = vld [vmem:[%s1 + $0x388] sm:$0xff]
      %v1429 = vld [vmem:[%s1 + $0x390] sm:$0xff]
      %v1430 = vld [vmem:[%s1 + $0x398] sm:$0xff]
      %v1431 = vld [vmem:[%s1 + $0x3a0] sm:$0xff]
      %v1432 = vld [vmem:[%s1 + $0x3a8] sm:$0xff]
      %v1433 = vld [vmem:[%s1 + $0x3b0] sm:$0xff]
      %v1434 = vld [vmem:[%s1 + $0x3b8] sm:$0xff]
      %v1435 = vld [vmem:[%s1 + $0x3c0] sm:$0xff]
      %v1436 = vld [vmem:[%s1 + $0x3c8] sm:$0xff]
      %v1437 = vld [vmem:[%s1 + $0x3d0] sm:$0xff]
      %v1438 = vld [vmem:[%s1 + $0x3d8] sm:$0xff]
      %v1439 = vld [vmem:[%s1 + $0x3e0] sm:$0xff]
      %v1440 = vld [vmem:[%s1 + $0x3e8] sm:$0xff]
      %v1441 = vld [vmem:[%s1 + $0x3f0] sm:$0xff]
      %v1442 = vld [vmem:[%s1 + $0x3f8] sm:$0xff]
      %v1443 = vld [vmem:[%s1 + $0x400] sm:$0xff]
      %v1444 = vld [vmem:[%s1 + $0x408] sm:$0xff]
      %v1445 = vld [vmem:[%s1 + $0x410] sm:$0xff]
      %v1446 = vld [vmem:[%s1 + $0x418] sm:$0xff]
      %v1447 = vld [vmem:[%s1 + $0x420] sm:$0xff]
      %v1448 = vld [vmem:[%s1 + $0x428] sm:$0xff]
      %v1449 = vld [vmem:[%s1 + $0x430] sm:$0xff]
      %v1450 = vld [vmem:[%s1 + $0x438] sm:$0xff]
      %v1451 = vld [vmem:[%s1 + $0x440] sm:$0xff]
      %v1452 = vld [vmem:[%s1 + $0x448] sm:$0xff]
      %v1453 = vld [vmem:[%s1 + $0x450] sm:$0xff]
      %v1454 = vld [vmem:[%s1 + $0x458] sm:$0xff]
      %v1455 = vld [vmem:[%s1 + $0x460] sm:$0xff]
      %v1456 = vld [vmem:[%s1 + $0x468] sm:$0xff]
      %v1457 = vld [vmem:[%s1 + $0x470] sm:$0xff]
      %v1458 = vld [vmem:[%s1 + $0x478] sm:$0xff]
      %1459 = vmatprep.subr.mxu0 0.0
      %1460 = vmatpush1.msra.mxu0 %v1315
      %1461 = vmatprep.subr.mxu0 0.0
      %1462 = vmatpush1.msra.mxu0 %v1316
      %1463 = vmatprep.subr.mxu0 0.0
      %1464 = vmatpush1.msra.mxu0 %v1317
      %1465 = vmatprep.subr.mxu0 0.0
      %1466 = vmatpush1.msra.mxu0 %v1318
      %1467 = vmatprep.subr.mxu0 0.0
      %1468 = vmatpush1.msra.mxu0 %v1319
      %1469 = vmatprep.subr.mxu0 0.0
      %1470 = vmatpush1.msra.mxu0 %v1320
      %1471 = vmatprep.subr.mxu0 0.0
      %1472 = vmatpush1.msra.mxu0 %v1321
      %1473 = vmatprep.subr.mxu0 0.0
      %1474 = vmatpush1.msra.mxu0 %v1322
      %1475 = vmatprep.subr.mxu0 0.0
      %1476 = vmatpush1.msra.mxu0 %v1323
      %1477 = vmatprep.subr.mxu0 0.0
      %1478 = vmatpush1.msra.mxu0 %v1324
      %1479 = vmatprep.subr.mxu0 0.0
      %1480 = vmatpush1.msra.mxu0 %v1325
      %1481 = vmatprep.subr.mxu0 0.0
      %1482 = vmatpush1.msra.mxu0 %v1326
      %1483 = vmatprep.subr.mxu0 0.0
      %1484 = vmatpush1.msra.mxu0 %v1327
      %1485 = vmatprep.subr.mxu0 0.0
      %1486 = vmatpush1.msra.mxu0 %v1328
      %1487 = vmatprep.subr.mxu0 0.0
      %1488 = vmatpush1.msra.mxu0 %v1329
      %1489 = vmatprep.subr.mxu0 0.0
      %1490 = vmatpush1.msra.mxu0 %v1330
      %1491 = vmatprep.subr.mxu0 0.0
      %1492 = vmatpush1.msra.mxu0 %v1331
      %1493 = vmatprep.subr.mxu0 0.0
      %1494 = vmatpush1.msra.mxu0 %v1332
      %1495 = vmatprep.subr.mxu0 0.0
      %1496 = vmatpush1.msra.mxu0 %v1333
      %1497 = vmatprep.subr.mxu0 0.0
      %1498 = vmatpush1.msra.mxu0 %v1334
      %1499 = vmatprep.subr.mxu0 0.0
      %1500 = vmatpush1.msra.mxu0 %v1335
      %1501 = vmatprep.subr.mxu0 0.0
      %1502 = vmatpush1.msra.mxu0 %v1336
      %1503 = vmatprep.subr.mxu0 0.0
      %1504 = vmatpush1.msra.mxu0 %v1337
      %1505 = vmatprep.subr.mxu0 0.0
      %1506 = vmatpush1.msra.mxu0 %v1338
      %1507 = vmatprep.subr.mxu0 0.0
      %1508 = vmatpush1.msra.mxu0 %v1339
      %1509 = vmatprep.subr.mxu0 0.0
      %1510 = vmatpush1.msra.mxu0 %v1340
      %1511 = vmatprep.subr.mxu0 0.0
      %1512 = vmatpush1.msra.mxu0 %v1341
      %1513 = vmatprep.subr.mxu0 0.0
      %1514 = vmatpush1.msra.mxu0 %v1342
      %1515 = vmatprep.subr.mxu0 0.0
      %1516 = vmatpush1.msra.mxu0 %v1343
      %1517 = vmatprep.subr.mxu0 0.0
      %1518 = vmatpush1.msra.mxu0 %v1344
      %1519 = vmatprep.subr.mxu0 0.0
      %1520 = vmatpush1.msra.mxu0 %v1345
      %1521 = vmatprep.subr.mxu0 0.0
      %1522 = vmatpush1.msra.mxu0 %v1346
      %1523 = vmatprep.mubr.f32.mxu0 %v1028
      %1524 = vmatmul.mubr.f32.gmra.mrb[0].mxu0 %v1027
      %v1525 = vpop.f32.mrb[0].mxu0
      %v1526 = vadd.f32 0.0, %v1525
      %v1527 = vpop.f32.mrb[0].mxu0
      %1528 = vmatprep.mubr.f32.mxu0 %v1037
      %1529 = vmatmul.mubr.f32.gmra.mrb[0].mxu0 %v1036
      %v1530 = vpop.f32.mrb[0].mxu0
      %v1531 = vadd.f32 0.0, %v1530
      %v1532 = vpop.f32.mrb[0].mxu0
      %1533 = vmatprep.mubr.f32.mxu0 %v1046
      %1534 = vmatmul.mubr.f32.gmra.mrb[0].mxu0 %v1045
      %v1535 = vpop.f32.mrb[0].mxu0
      %v1536 = vadd.f32 0.0, %v1535
      %v1537 = vpop.f32.mrb[0].mxu0
      %1538 = vmatprep.mubr.f32.mxu0 %v1055
      %1539 = vmatmul.mubr.f32.gmra.mrb[0].mxu0 %v1054
      %v1540 = vpop.f32.mrb[0].mxu0
      %v1541 = vadd.f32 0.0, %v1540
      %v1542 = vpop.f32.mrb[0].mxu0
      %1543 = vmatprep.mubr.f32.mxu0 %v1064
      %1544 = vmatmul.mubr.f32.gmra.mrb[0].mxu0 %v1063
      %v1545 = vpop.f32.mrb[0].mxu0
      %v1546 = vadd.f32 0.0, %v1545
      %v1547 = vpop.f32.mrb[0].mxu0
      %1548 = vmatprep.mubr.f32.mxu0 %v1073
      %1549 = vmatmul.mubr.f32.gmra.mrb[0].mxu0 %v1072
      %v1550 = vpop.f32.mrb[0].mxu0
      %v1551 = vadd.f32 0.0, %v1550
      %v1552 = vpop.f32.mrb[0].mxu0
      %1553 = vmatprep.mubr.f32.mxu0 %v1082
      %1554 = vmatmul.mubr.f32.gmra.mrb[0].mxu0 %v1081
      %v1555 = vpop.f32.mrb[0].mxu0
      %v1556 = vadd.f32 0.0, %v1555
      %v1557 = vpop.f32.mrb[0].mxu0
      %1558 = vmatprep.mubr.f32.mxu0 %v1091
      %1559 = vmatmul.mubr.f32.gmra.mrb[0].mxu0 %v1090
      %v1560 = vpop.f32.mrb[0].mxu0
      %v1561 = vadd.f32 0.0, %v1560
      %v1562 = vpop.f32.mrb[0].mxu0
      %1563 = vmatprep.mubr.f32.mxu0 %v1100
      %1564 = vmatmul.mubr.f32.gmra.mrb[0].mxu0 %v1099
      %v1565 = vpop.f32.mrb[0].mxu0
      %v1566 = vadd.f32 0.0, %v1565
      %v1567 = vpop.f32.mrb[0].mxu0
      %1568 = vmatprep.mubr.f32.mxu0 %v1109
      %1569 = vmatmul.mubr.f32.gmra.mrb[0].mxu0 %v1108
      %v1570 = vpop.f32.mrb[0].mxu0
      %v1571 = vadd.f32 0.0, %v1570
      %v1572 = vpop.f32.mrb[0].mxu0
      %1573 = vmatprep.mubr.f32.mxu0 %v1118
      %1574 = vmatmul.mubr.f32.gmra.mrb[0].mxu0 %v1117
      %v1575 = vpop.f32.mrb[0].mxu0
      %v1576 = vadd.f32 0.0, %v1575
      %v1577 = vpop.f32.mrb[0].mxu0
      %1578 = vmatprep.mubr.f32.mxu0 %v1127
      %1579 = vmatmul.mubr.f32.gmra.mrb[0].mxu0 %v1126
      %v1580 = vpop.f32.mrb[0].mxu0
      %v1581 = vadd.f32 0.0, %v1580
      %v1582 = vpop.f32.mrb[0].mxu0
      %1583 = vmatprep.mubr.f32.mxu0 %v1136
      %1584 = vmatmul.mubr.f32.gmra.mrb[0].mxu0 %v1135
      %v1585 = vpop.f32.mrb[0].mxu0
      %v1586 = vadd.f32 0.0, %v1585
      %v1587 = vpop.f32.mrb[0].mxu0
      %1588 = vmatprep.mubr.f32.mxu0 %v1145
      %1589 = vmatmul.mubr.f32.gmra.mrb[0].mxu0 %v1144
      %v1590 = vpop.f32.mrb[0].mxu0
      %v1591 = vadd.f32 0.0, %v1590
      %v1592 = vpop.f32.mrb[0].mxu0
      %1593 = vmatprep.mubr.f32.mxu0 %v1154
      %1594 = vmatmul.mubr.f32.gmra.mrb[0].mxu0 %v1153
      %v1595 = vpop.f32.mrb[0].mxu0
      %v1596 = vadd.f32 0.0, %v1595
      %v1597 = vpop.f32.mrb[0].mxu0
      %1598 = vmatprep.mubr.f32.mxu0 %v1163
      %1599 = vmatmul.mubr.f32.gmra.mrb[0].mxu0 %v1162
      %v1600 = vpop.f32.mrb[0].mxu0
      %v1601 = vadd.f32 0.0, %v1600
      %v1602 = vpop.f32.mrb[0].mxu0
      %1603 = vmatprep.mubr.f32.mxu0 %v1172
      %1604 = vmatmul.mubr.f32.gmra.mrb[0].mxu0 %v1171
      %v1605 = vpop.f32.mrb[0].mxu0
      %v1606 = vadd.f32 0.0, %v1605
      %v1607 = vpop.f32.mrb[0].mxu0
      %1608 = vmatprep.mubr.f32.mxu0 %v1181
      %1609 = vmatmul.mubr.f32.gmra.mrb[0].mxu0 %v1180
      %v1610 = vpop.f32.mrb[0].mxu0
      %v1611 = vadd.f32 0.0, %v1610
      %v1612 = vpop.f32.mrb[0].mxu0
      %1613 = vmatprep.mubr.f32.mxu0 %v1190
      %1614 = vmatmul.mubr.f32.gmra.mrb[0].mxu0 %v1189
      %v1615 = vpop.f32.mrb[0].mxu0
      %v1616 = vadd.f32 0.0, %v1615
      %v1617 = vpop.f32.mrb[0].mxu0
      %1618 = vmatprep.mubr.f32.mxu0 %v1199
      %1619 = vmatmul.mubr.f32.gmra.mrb[0].mxu0 %v1198
      %v1620 = vpop.f32.mrb[0].mxu0
      %v1621 = vadd.f32 0.0, %v1620
      %v1622 = vpop.f32.mrb[0].mxu0
      %1623 = vmatprep.mubr.f32.mxu0 %v1208
      %1624 = vmatmul.mubr.f32.gmra.mrb[0].mxu0 %v1207
      %v1625 = vpop.f32.mrb[0].mxu0
      %v1626 = vadd.f32 0.0, %v1625
      %v1627 = vpop.f32.mrb[0].mxu0
      %1628 = vmatprep.mubr.f32.mxu0 %v1217
      %1629 = vmatmul.mubr.f32.gmra.mrb[0].mxu0 %v1216
      %v1630 = vpop.f32.mrb[0].mxu0
      %v1631 = vadd.f32 0.0, %v1630
      %v1632 = vpop.f32.mrb[0].mxu0
      %1633 = vmatprep.mubr.f32.mxu0 %v1226
      %1634 = vmatmul.mubr.f32.gmra.mrb[0].mxu0 %v1225
      %v1635 = vpop.f32.mrb[0].mxu0
      %v1636 = vadd.f32 0.0, %v1635
      %v1637 = vpop.f32.mrb[0].mxu0
      %1638 = vmatprep.mubr.f32.mxu0 %v1235
      %1639 = vmatmul.mubr.f32.gmra.mrb[0].mxu0 %v1234
      %v1640 = vpop.f32.mrb[0].mxu0
      %v1641 = vadd.f32 0.0, %v1640
      %v1642 = vpop.f32.mrb[0].mxu0
      %1643 = vmatprep.mubr.f32.mxu0 %v1244
      %1644 = vmatmul.mubr.f32.gmra.mrb[0].mxu0 %v1243
      %v1645 = vpop.f32.mrb[0].mxu0
      %v1646 = vadd.f32 0.0, %v1645
      %v1647 = vpop.f32.mrb[0].mxu0
      %1648 = vmatprep.mubr.f32.mxu0 %v1253
      %1649 = vmatmul.mubr.f32.gmra.mrb[0].mxu0 %v1252
      %v1650 = vpop.f32.mrb[0].mxu0
      %v1651 = vadd.f32 0.0, %v1650
      %v1652 = vpop.f32.mrb[0].mxu0
      %1653 = vmatprep.mubr.f32.mxu0 %v1262
      %1654 = vmatmul.mubr.f32.gmra.mrb[0].mxu0 %v1261
      %v1655 = vpop.f32.mrb[0].mxu0
      %v1656 = vadd.f32 0.0, %v1655
      %v1657 = vpop.f32.mrb[0].mxu0
      %1658 = vmatprep.mubr.f32.mxu0 %v1271
      %1659 = vmatmul.mubr.f32.gmra.mrb[0].mxu0 %v1270
      %v1660 = vpop.f32.mrb[0].mxu0
      %v1661 = vadd.f32 0.0, %v1660
      %v1662 = vpop.f32.mrb[0].mxu0
      %1663 = vmatprep.mubr.f32.mxu0 %v1280
      %1664 = vmatmul.mubr.f32.gmra.mrb[0].mxu0 %v1279
      %v1665 = vpop.f32.mrb[0].mxu0
      %v1666 = vadd.f32 0.0, %v1665
      %v1667 = vpop.f32.mrb[0].mxu0
      %1668 = vmatprep.mubr.f32.mxu0 %v1289
      %1669 = vmatmul.mubr.f32.gmra.mrb[0].mxu0 %v1288
      %v1670 = vpop.f32.mrb[0].mxu0
      %v1671 = vadd.f32 0.0, %v1670
      %v1672 = vpop.f32.mrb[0].mxu0
      %1673 = vmatprep.mubr.f32.mxu0 %v1298
      %1674 = vmatmul.mubr.f32.gmra.mrb[0].mxu0 %v1297
      %v1675 = vpop.f32.mrb[0].mxu0
      %v1676 = vadd.f32 0.0, %v1675
      %v1677 = vpop.f32.mrb[0].mxu0
      %1678 = vmatprep.mubr.f32.mxu0 %v1307
      %1679 = vmatmul.mubr.f32.gmra.mrb[0].mxu0 %v1306
      %v1680 = vpop.f32.mrb[0].mxu0
      %v1681 = vadd.f32 0.0, %v1680
      %v1682 = vpop.f32.mrb[0].mxu0
      %1683 = vdwg.mxu0
      %1684 = vmatprep.subr.mxu0 0.0
      %1685 = vmatpush1.msra.mxu0 %v1347
      %1686 = vmatprep.subr.mxu0 0.0
      %1687 = vmatpush1.msra.mxu0 %v1348
      %1688 = vmatprep.subr.mxu0 0.0
      %1689 = vmatpush1.msra.mxu0 %v1349
      %1690 = vmatprep.subr.mxu0 0.0
      %1691 = vmatpush1.msra.mxu0 %v1350
      %1692 = vmatprep.subr.mxu0 0.0
      %1693 = vmatpush1.msra.mxu0 %v1351
      %1694 = vmatprep.subr.mxu0 0.0
      %1695 = vmatpush1.msra.mxu0 %v1352
      %1696 = vmatprep.subr.mxu0 0.0
      %1697 = vmatpush1.msra.mxu0 %v1353
      %1698 = vmatprep.subr.mxu0 0.0
      %1699 = vmatpush1.msra.mxu0 %v1354
      %1700 = vmatprep.subr.mxu0 0.0
      %1701 = vmatpush1.msra.mxu0 %v1355
      %1702 = vmatprep.subr.mxu0 0.0
      %1703 = vmatpush1.msra.mxu0 %v1356
      %1704 = vmatprep.subr.mxu0 0.0
      %1705 = vmatpush1.msra.mxu0 %v1357
      %1706 = vmatprep.subr.mxu0 0.0
      %1707 = vmatpush1.msra.mxu0 %v1358
      %1708 = vmatprep.subr.mxu0 0.0
      %1709 = vmatpush1.msra.mxu0 %v1359
      %1710 = vmatprep.subr.mxu0 0.0
      %1711 = vmatpush1.msra.mxu0 %v1360
      %1712 = vmatprep.subr.mxu0 0.0
      %1713 = vmatpush1.msra.mxu0 %v1361
      %1714 = vmatprep.subr.mxu0 0.0
      %1715 = vmatpush1.msra.mxu0 %v1362
      %1716 = vmatprep.subr.mxu0 0.0
      %1717 = vmatpush1.msra.mxu0 %v1363
      %1718 = vmatprep.subr.mxu0 0.0
      %1719 = vmatpush1.msra.mxu0 %v1364
      %1720 = vmatprep.subr.mxu0 0.0
      %1721 = vmatpush1.msra.mxu0 %v1365
      %1722 = vmatprep.subr.mxu0 0.0
      %1723 = vmatpush1.msra.mxu0 %v1366
      %1724 = vmatprep.subr.mxu0 0.0
      %1725 = vmatpush1.msra.mxu0 %v1367
      %1726 = vmatprep.subr.mxu0 0.0
      %1727 = vmatpush1.msra.mxu0 %v1368
      %1728 = vmatprep.subr.mxu0 0.0
      %1729 = vmatpush1.msra.mxu0 %v1369
      %1730 = vmatprep.subr.mxu0 0.0
      %1731 = vmatpush1.msra.mxu0 %v1370
      %1732 = vmatprep.subr.mxu0 0.0
      %1733 = vmatpush1.msra.mxu0 %v1371
      %1734 = vmatprep.subr.mxu0 0.0
      %1735 = vmatpush1.msra.mxu0 %v1372
      %1736 = vmatprep.subr.mxu0 0.0
      %1737 = vmatpush1.msra.mxu0 %v1373
      %1738 = vmatprep.subr.mxu0 0.0
      %1739 = vmatpush1.msra.mxu0 %v1374
      %1740 = vmatprep.subr.mxu0 0.0
      %1741 = vmatpush1.msra.mxu0 %v1375
      %1742 = vmatprep.subr.mxu0 0.0
      %1743 = vmatpush1.msra.mxu0 %v1376
      %1744 = vmatprep.subr.mxu0 0.0
      %1745 = vmatpush1.msra.mxu0 %v1377
      %1746 = vmatprep.subr.mxu0 0.0
      %1747 = vmatpush1.msra.mxu0 %v1378
      %1748 = vmatprep.mubr.f32.mxu0 %v1030
      %1749 = vmatmul.mubr.f32.gmra.mrb[0].mxu0 %v1029
      %v1750 = vpop.f32.mrb[0].mxu0
      %v1751 = vadd.f32 %v1526, %v1750
      %v1752 = vpop.f32.mrb[0].mxu0
      %1753 = vmatprep.mubr.f32.mxu0 %v1039
      %1754 = vmatmul.mubr.f32.gmra.mrb[0].mxu0 %v1038
      %v1755 = vpop.f32.mrb[0].mxu0
      %v1756 = vadd.f32 %v1531, %v1755
      %v1757 = vpop.f32.mrb[0].mxu0
      %1758 = vmatprep.mubr.f32.mxu0 %v1048
      %1759 = vmatmul.mubr.f32.gmra.mrb[0].mxu0 %v1047
      %v1760 = vpop.f32.mrb[0].mxu0
      %v1761 = vadd.f32 %v1536, %v1760
      %v1762 = vpop.f32.mrb[0].mxu0
      %1763 = vmatprep.mubr.f32.mxu0 %v1057
      %1764 = vmatmul.mubr.f32.gmra.mrb[0].mxu0 %v1056
      %v1765 = vpop.f32.mrb[0].mxu0
      %v1766 = vadd.f32 %v1541, %v1765
      %v1767 = vpop.f32.mrb[0].mxu0
      %1768 = vmatprep.mubr.f32.mxu0 %v1066
      %1769 = vmatmul.mubr.f32.gmra.mrb[0].mxu0 %v1065
      %v1770 = vpop.f32.mrb[0].mxu0
      %v1771 = vadd.f32 %v1546, %v1770
      %v1772 = vpop.f32.mrb[0].mxu0
      %1773 = vmatprep.mubr.f32.mxu0 %v1075
      %1774 = vmatmul.mubr.f32.gmra.mrb[0].mxu0 %v1074
      %v1775 = vpop.f32.mrb[0].mxu0
      %v1776 = vadd.f32 %v1551, %v1775
      %v1777 = vpop.f32.mrb[0].mxu0
      %1778 = vmatprep.mubr.f32.mxu0 %v1084
      %1779 = vmatmul.mubr.f32.gmra.mrb[0].mxu0 %v1083
      %v1780 = vpop.f32.mrb[0].mxu0
      %v1781 = vadd.f32 %v1556, %v1780
      %v1782 = vpop.f32.mrb[0].mxu0
      %1783 = vmatprep.mubr.f32.mxu0 %v1093
      %1784 = vmatmul.mubr.f32.gmra.mrb[0].mxu0 %v1092
      %v1785 = vpop.f32.mrb[0].mxu0
      %v1786 = vadd.f32 %v1561, %v1785
      %v1787 = vpop.f32.mrb[0].mxu0
      %1788 = vmatprep.mubr.f32.mxu0 %v1102
      %1789 = vmatmul.mubr.f32.gmra.mrb[0].mxu0 %v1101
      %v1790 = vpop.f32.mrb[0].mxu0
      %v1791 = vadd.f32 %v1566, %v1790
      %v1792 = vpop.f32.mrb[0].mxu0
      %1793 = vmatprep.mubr.f32.mxu0 %v1111
      %1794 = vmatmul.mubr.f32.gmra.mrb[0].mxu0 %v1110
      %v1795 = vpop.f32.mrb[0].mxu0
      %v1796 = vadd.f32 %v1571, %v1795
      %v1797 = vpop.f32.mrb[0].mxu0
      %1798 = vmatprep.mubr.f32.mxu0 %v1120
      %1799 = vmatmul.mubr.f32.gmra.mrb[0].mxu0 %v1119
      %v1800 = vpop.f32.mrb[0].mxu0
      %v1801 = vadd.f32 %v1576, %v1800
      %v1802 = vpop.f32.mrb[0].mxu0
      %1803 = vmatprep.mubr.f32.mxu0 %v1129
      %1804 = vmatmul.mubr.f32.gmra.mrb[0].mxu0 %v1128
      %v1805 = vpop.f32.mrb[0].mxu0
      %v1806 = vadd.f32 %v1581, %v1805
      %v1807 = vpop.f32.mrb[0].mxu0
      %1808 = vmatprep.mubr.f32.mxu0 %v1138
      %1809 = vmatmul.mubr.f32.gmra.mrb[0].mxu0 %v1137
      %v1810 = vpop.f32.mrb[0].mxu0
      %v1811 = vadd.f32 %v1586, %v1810
      %v1812 = vpop.f32.mrb[0].mxu0
      %1813 = vmatprep.mubr.f32.mxu0 %v1147
      %1814 = vmatmul.mubr.f32.gmra.mrb[0].mxu0 %v1146
      %v1815 = vpop.f32.mrb[0].mxu0
      %v1816 = vadd.f32 %v1591, %v1815
      %v1817 = vpop.f32.mrb[0].mxu0
      %1818 = vmatprep.mubr.f32.mxu0 %v1156
      %1819 = vmatmul.mubr.f32.gmra.mrb[0].mxu0 %v1155
      %v1820 = vpop.f32.mrb[0].mxu0
      %v1821 = vadd.f32 %v1596, %v1820
      %v1822 = vpop.f32.mrb[0].mxu0
      %1823 = vmatprep.mubr.f32.mxu0 %v1165
      %1824 = vmatmul.mubr.f32.gmra.mrb[0].mxu0 %v1164
      %v1825 = vpop.f32.mrb[0].mxu0
      %v1826 = vadd.f32 %v1601, %v1825
      %v1827 = vpop.f32.mrb[0].mxu0
      %1828 = vmatprep.mubr.f32.mxu0 %v1174
      %1829 = vmatmul.mubr.f32.gmra.mrb[0].mxu0 %v1173
      %v1830 = vpop.f32.mrb[0].mxu0
      %v1831 = vadd.f32 %v1606, %v1830
      %v1832 = vpop.f32.mrb[0].mxu0
      %1833 = vmatprep.mubr.f32.mxu0 %v1183
      %1834 = vmatmul.mubr.f32.gmra.mrb[0].mxu0 %v1182
      %v1835 = vpop.f32.mrb[0].mxu0
      %v1836 = vadd.f32 %v1611, %v1835
      %v1837 = vpop.f32.mrb[0].mxu0
      %1838 = vmatprep.mubr.f32.mxu0 %v1192
      %1839 = vmatmul.mubr.f32.gmra.mrb[0].mxu0 %v1191
      %v1840 = vpop.f32.mrb[0].mxu0
      %v1841 = vadd.f32 %v1616, %v1840
      %v1842 = vpop.f32.mrb[0].mxu0
      %1843 = vmatprep.mubr.f32.mxu0 %v1201
      %1844 = vmatmul.mubr.f32.gmra.mrb[0].mxu0 %v1200
      %v1845 = vpop.f32.mrb[0].mxu0
      %v1846 = vadd.f32 %v1621, %v1845
      %v1847 = vpop.f32.mrb[0].mxu0
      %1848 = vmatprep.mubr.f32.mxu0 %v1210
      %1849 = vmatmul.mubr.f32.gmra.mrb[0].mxu0 %v1209
      %v1850 = vpop.f32.mrb[0].mxu0
      %v1851 = vadd.f32 %v1626, %v1850
      %v1852 = vpop.f32.mrb[0].mxu0
      %1853 = vmatprep.mubr.f32.mxu0 %v1219
      %1854 = vmatmul.mubr.f32.gmra.mrb[0].mxu0 %v1218
      %v1855 = vpop.f32.mrb[0].mxu0
      %v1856 = vadd.f32 %v1631, %v1855
      %v1857 = vpop.f32.mrb[0].mxu0
      %1858 = vmatprep.mubr.f32.mxu0 %v1228
      %1859 = vmatmul.mubr.f32.gmra.mrb[0].mxu0 %v1227
      %v1860 = vpop.f32.mrb[0].mxu0
      %v1861 = vadd.f32 %v1636, %v1860
      %v1862 = vpop.f32.mrb[0].mxu0
      %1863 = vmatprep.mubr.f32.mxu0 %v1237
      %1864 = vmatmul.mubr.f32.gmra.mrb[0].mxu0 %v1236
      %v1865 = vpop.f32.mrb[0].mxu0
      %v1866 = vadd.f32 %v1641, %v1865
      %v1867 = vpop.f32.mrb[0].mxu0
      %1868 = vmatprep.mubr.f32.mxu0 %v1246
      %1869 = vmatmul.mubr.f32.gmra.mrb[0].mxu0 %v1245
      %v1870 = vpop.f32.mrb[0].mxu0
      %v1871 = vadd.f32 %v1646, %v1870
      %v1872 = vpop.f32.mrb[0].mxu0
      %1873 = vmatprep.mubr.f32.mxu0 %v1255
      %1874 = vmatmul.mubr.f32.gmra.mrb[0].mxu0 %v1254
      %v1875 = vpop.f32.mrb[0].mxu0
      %v1876 = vadd.f32 %v1651, %v1875
      %v1877 = vpop.f32.mrb[0].mxu0
      %1878 = vmatprep.mubr.f32.mxu0 %v1264
      %1879 = vmatmul.mubr.f32.gmra.mrb[0].mxu0 %v1263
      %v1880 = vpop.f32.mrb[0].mxu0
      %v1881 = vadd.f32 %v1656, %v1880
      %v1882 = vpop.f32.mrb[0].mxu0
      %1883 = vmatprep.mubr.f32.mxu0 %v1273
      %1884 = vmatmul.mubr.f32.gmra.mrb[0].mxu0 %v1272
      %v1885 = vpop.f32.mrb[0].mxu0
      %v1886 = vadd.f32 %v1661, %v1885
      %v1887 = vpop.f32.mrb[0].mxu0
      %1888 = vmatprep.mubr.f32.mxu0 %v1282
      %1889 = vmatmul.mubr.f32.gmra.mrb[0].mxu0 %v1281
      %v1890 = vpop.f32.mrb[0].mxu0
      %v1891 = vadd.f32 %v1666, %v1890
      %v1892 = vpop.f32.mrb[0].mxu0
      %1893 = vmatprep.mubr.f32.mxu0 %v1291
      %1894 = vmatmul.mubr.f32.gmra.mrb[0].mxu0 %v1290
      %v1895 = vpop.f32.mrb[0].mxu0
      %v1896 = vadd.f32 %v1671, %v1895
      %v1897 = vpop.f32.mrb[0].mxu0
      %1898 = vmatprep.mubr.f32.mxu0 %v1300
      %1899 = vmatmul.mubr.f32.gmra.mrb[0].mxu0 %v1299
      %v1900 = vpop.f32.mrb[0].mxu0
      %v1901 = vadd.f32 %v1676, %v1900
      %v1902 = vpop.f32.mrb[0].mxu0
      %1903 = vmatprep.mubr.f32.mxu0 %v1309
      %1904 = vmatmul.mubr.f32.gmra.mrb[0].mxu0 %v1308
      %v1905 = vpop.f32.mrb[0].mxu0
      %v1906 = vadd.f32 %v1681, %v1905
      %v1907 = vpop.f32.mrb[0].mxu0
      %1908 = vdwg.mxu0
      %1909 = vmatprep.subr.mxu0 0.0
      %1910 = vmatpush1.msra.mxu0 %v1379
      %1911 = vmatprep.subr.mxu0 0.0
      %1912 = vmatpush1.msra.mxu0 %v1380
      %1913 = vmatprep.subr.mxu0 0.0
      %1914 = vmatpush1.msra.mxu0 %v1381
      %1915 = vmatprep.subr.mxu0 0.0
      %1916 = vmatpush1.msra.mxu0 %v1382
      %1917 = vmatprep.subr.mxu0 0.0
      %1918 = vmatpush1.msra.mxu0 %v1383
      %1919 = vmatprep.subr.mxu0 0.0
      %1920 = vmatpush1.msra.mxu0 %v1384
      %1921 = vmatprep.subr.mxu0 0.0
      %1922 = vmatpush1.msra.mxu0 %v1385
      %1923 = vmatprep.subr.mxu0 0.0
      %1924 = vmatpush1.msra.mxu0 %v1386
      %1925 = vmatprep.subr.mxu0 0.0
      %1926 = vmatpush1.msra.mxu0 %v1387
      %1927 = vmatprep.subr.mxu0 0.0
      %1928 = vmatpush1.msra.mxu0 %v1388
      %1929 = vmatprep.subr.mxu0 0.0
      %1930 = vmatpush1.msra.mxu0 %v1389
      %1931 = vmatprep.subr.mxu0 0.0
      %1932 = vmatpush1.msra.mxu0 %v1390
      %1933 = vmatprep.subr.mxu0 0.0
      %1934 = vmatpush1.msra.mxu0 %v1391
      %1935 = vmatprep.subr.mxu0 0.0
      %1936 = vmatpush1.msra.mxu0 %v1392
      %1937 = vmatprep.subr.mxu0 0.0
      %1938 = vmatpush1.msra.mxu0 %v1393
      %1939 = vmatprep.subr.mxu0 0.0
      %1940 = vmatpush1.msra.mxu0 %v1394
      %1941 = vmatprep.subr.mxu0 0.0
      %1942 = vmatpush1.msra.mxu0 %v1395
      %1943 = vmatprep.subr.mxu0 0.0
      %1944 = vmatpush1.msra.mxu0 %v1396
      %1945 = vmatprep.subr.mxu0 0.0
      %1946 = vmatpush1.msra.mxu0 %v1397
      %1947 = vmatprep.subr.mxu0 0.0
      %1948 = vmatpush1.msra.mxu0 %v1398
      %1949 = vmatprep.subr.mxu0 0.0
      %1950 = vmatpush1.msra.mxu0 %v1399
      %1951 = vmatprep.subr.mxu0 0.0
      %1952 = vmatpush1.msra.mxu0 %v1400
      %1953 = vmatprep.subr.mxu0 0.0
      %1954 = vmatpush1.msra.mxu0 %v1401
      %1955 = vmatprep.subr.mxu0 0.0
      %1956 = vmatpush1.msra.mxu0 %v1402
      %1957 = vmatprep.subr.mxu0 0.0
      %1958 = vmatpush1.msra.mxu0 %v1403
      %1959 = vmatprep.subr.mxu0 0.0
      %1960 = vmatpush1.msra.mxu0 %v1404
      %1961 = vmatprep.subr.mxu0 0.0
      %1962 = vmatpush1.msra.mxu0 %v1405
      %1963 = vmatprep.subr.mxu0 0.0
      %1964 = vmatpush1.msra.mxu0 %v1406
      %1965 = vmatprep.subr.mxu0 0.0
      %1966 = vmatpush1.msra.mxu0 %v1407
      %1967 = vmatprep.subr.mxu0 0.0
      %1968 = vmatpush1.msra.mxu0 %v1408
      %1969 = vmatprep.subr.mxu0 0.0
      %1970 = vmatpush1.msra.mxu0 %v1409
      %1971 = vmatprep.subr.mxu0 0.0
      %1972 = vmatpush1.msra.mxu0 %v1410
      %1973 = vmatprep.mubr.f32.mxu0 %v1032
      %1974 = vmatmul.mubr.f32.gmra.mrb[0].mxu0 %v1031
      %v1975 = vpop.f32.mrb[0].mxu0
      %v1976 = vadd.f32 %v1751, %v1975
      %v1977 = vpop.f32.mrb[0].mxu0
      %1978 = vmatprep.mubr.f32.mxu0 %v1041
      %1979 = vmatmul.mubr.f32.gmra.mrb[0].mxu0 %v1040
      %v1980 = vpop.f32.mrb[0].mxu0
      %v1981 = vadd.f32 %v1756, %v1980
      %v1982 = vpop.f32.mrb[0].mxu0
      %1983 = vmatprep.mubr.f32.mxu0 %v1050
      %1984 = vmatmul.mubr.f32.gmra.mrb[0].mxu0 %v1049
      %v1985 = vpop.f32.mrb[0].mxu0
      %v1986 = vadd.f32 %v1761, %v1985
      %v1987 = vpop.f32.mrb[0].mxu0
      %1988 = vmatprep.mubr.f32.mxu0 %v1059
      %1989 = vmatmul.mubr.f32.gmra.mrb[0].mxu0 %v1058
      %v1990 = vpop.f32.mrb[0].mxu0
      %v1991 = vadd.f32 %v1766, %v1990
      %v1992 = vpop.f32.mrb[0].mxu0
      %1993 = vmatprep.mubr.f32.mxu0 %v1068
      %1994 = vmatmul.mubr.f32.gmra.mrb[0].mxu0 %v1067
      %v1995 = vpop.f32.mrb[0].mxu0
      %v1996 = vadd.f32 %v1771, %v1995
      %v1997 = vpop.f32.mrb[0].mxu0
      %1998 = vmatprep.mubr.f32.mxu0 %v1077
      %1999 = vmatmul.mubr.f32.gmra.mrb[0].mxu0 %v1076
      %v2000 = vpop.f32.mrb[0].mxu0
      %v2001 = vadd.f32 %v1776, %v2000
      %v2002 = vpop.f32.mrb[0].mxu0
      %2003 = vmatprep.mubr.f32.mxu0 %v1086
      %2004 = vmatmul.mubr.f32.gmra.mrb[0].mxu0 %v1085
      %v2005 = vpop.f32.mrb[0].mxu0
      %v2006 = vadd.f32 %v1781, %v2005
      %v2007 = vpop.f32.mrb[0].mxu0
      %2008 = vmatprep.mubr.f32.mxu0 %v1095
      %2009 = vmatmul.mubr.f32.gmra.mrb[0].mxu0 %v1094
      %v2010 = vpop.f32.mrb[0].mxu0
      %v2011 = vadd.f32 %v1786, %v2010
      %v2012 = vpop.f32.mrb[0].mxu0
      %2013 = vmatprep.mubr.f32.mxu0 %v1104
      %2014 = vmatmul.mubr.f32.gmra.mrb[0].mxu0 %v1103
      %v2015 = vpop.f32.mrb[0].mxu0
      %v2016 = vadd.f32 %v1791, %v2015
      %v2017 = vpop.f32.mrb[0].mxu0
      %2018 = vmatprep.mubr.f32.mxu0 %v1113
      %2019 = vmatmul.mubr.f32.gmra.mrb[0].mxu0 %v1112
      %v2020 = vpop.f32.mrb[0].mxu0
      %v2021 = vadd.f32 %v1796, %v2020
      %v2022 = vpop.f32.mrb[0].mxu0
      %2023 = vmatprep.mubr.f32.mxu0 %v1122
      %2024 = vmatmul.mubr.f32.gmra.mrb[0].mxu0 %v1121
      %v2025 = vpop.f32.mrb[0].mxu0
      %v2026 = vadd.f32 %v1801, %v2025
      %v2027 = vpop.f32.mrb[0].mxu0
      %2028 = vmatprep.mubr.f32.mxu0 %v1131
      %2029 = vmatmul.mubr.f32.gmra.mrb[0].mxu0 %v1130
      %v2030 = vpop.f32.mrb[0].mxu0
      %v2031 = vadd.f32 %v1806, %v2030
      %v2032 = vpop.f32.mrb[0].mxu0
      %2033 = vmatprep.mubr.f32.mxu0 %v1140
      %2034 = vmatmul.mubr.f32.gmra.mrb[0].mxu0 %v1139
      %v2035 = vpop.f32.mrb[0].mxu0
      %v2036 = vadd.f32 %v1811, %v2035
      %v2037 = vpop.f32.mrb[0].mxu0
      %2038 = vmatprep.mubr.f32.mxu0 %v1149
      %2039 = vmatmul.mubr.f32.gmra.mrb[0].mxu0 %v1148
      %v2040 = vpop.f32.mrb[0].mxu0
      %v2041 = vadd.f32 %v1816, %v2040
      %v2042 = vpop.f32.mrb[0].mxu0
      %2043 = vmatprep.mubr.f32.mxu0 %v1158
      %2044 = vmatmul.mubr.f32.gmra.mrb[0].mxu0 %v1157
      %v2045 = vpop.f32.mrb[0].mxu0
      %v2046 = vadd.f32 %v1821, %v2045
      %v2047 = vpop.f32.mrb[0].mxu0
      %2048 = vmatprep.mubr.f32.mxu0 %v1167
      %2049 = vmatmul.mubr.f32.gmra.mrb[0].mxu0 %v1166
      %v2050 = vpop.f32.mrb[0].mxu0
      %v2051 = vadd.f32 %v1826, %v2050
      %v2052 = vpop.f32.mrb[0].mxu0
      %2053 = vmatprep.mubr.f32.mxu0 %v1176
      %2054 = vmatmul.mubr.f32.gmra.mrb[0].mxu0 %v1175
      %v2055 = vpop.f32.mrb[0].mxu0
      %v2056 = vadd.f32 %v1831, %v2055
      %v2057 = vpop.f32.mrb[0].mxu0
      %2058 = vmatprep.mubr.f32.mxu0 %v1185
      %2059 = vmatmul.mubr.f32.gmra.mrb[0].mxu0 %v1184
      %v2060 = vpop.f32.mrb[0].mxu0
      %v2061 = vadd.f32 %v1836, %v2060
      %v2062 = vpop.f32.mrb[0].mxu0
      %2063 = vmatprep.mubr.f32.mxu0 %v1194
      %2064 = vmatmul.mubr.f32.gmra.mrb[0].mxu0 %v1193
      %v2065 = vpop.f32.mrb[0].mxu0
      %v2066 = vadd.f32 %v1841, %v2065
      %v2067 = vpop.f32.mrb[0].mxu0
      %2068 = vmatprep.mubr.f32.mxu0 %v1203
      %2069 = vmatmul.mubr.f32.gmra.mrb[0].mxu0 %v1202
      %v2070 = vpop.f32.mrb[0].mxu0
      %v2071 = vadd.f32 %v1846, %v2070
      %v2072 = vpop.f32.mrb[0].mxu0
      %2073 = vmatprep.mubr.f32.mxu0 %v1212
      %2074 = vmatmul.mubr.f32.gmra.mrb[0].mxu0 %v1211
      %v2075 = vpop.f32.mrb[0].mxu0
      %v2076 = vadd.f32 %v1851, %v2075
      %v2077 = vpop.f32.mrb[0].mxu0
      %2078 = vmatprep.mubr.f32.mxu0 %v1221
      %2079 = vmatmul.mubr.f32.gmra.mrb[0].mxu0 %v1220
      %v2080 = vpop.f32.mrb[0].mxu0
      %v2081 = vadd.f32 %v1856, %v2080
      %v2082 = vpop.f32.mrb[0].mxu0
      %2083 = vmatprep.mubr.f32.mxu0 %v1230
      %2084 = vmatmul.mubr.f32.gmra.mrb[0].mxu0 %v1229
      %v2085 = vpop.f32.mrb[0].mxu0
      %v2086 = vadd.f32 %v1861, %v2085
      %v2087 = vpop.f32.mrb[0].mxu0
      %2088 = vmatprep.mubr.f32.mxu0 %v1239
      %2089 = vmatmul.mubr.f32.gmra.mrb[0].mxu0 %v1238
      %v2090 = vpop.f32.mrb[0].mxu0
      %v2091 = vadd.f32 %v1866, %v2090
      %v2092 = vpop.f32.mrb[0].mxu0
      %2093 = vmatprep.mubr.f32.mxu0 %v1248
      %2094 = vmatmul.mubr.f32.gmra.mrb[0].mxu0 %v1247
      %v2095 = vpop.f32.mrb[0].mxu0
      %v2096 = vadd.f32 %v1871, %v2095
      %v2097 = vpop.f32.mrb[0].mxu0
      %2098 = vmatprep.mubr.f32.mxu0 %v1257
      %2099 = vmatmul.mubr.f32.gmra.mrb[0].mxu0 %v1256
      %v2100 = vpop.f32.mrb[0].mxu0
      %v2101 = vadd.f32 %v1876, %v2100
      %v2102 = vpop.f32.mrb[0].mxu0
      %2103 = vmatprep.mubr.f32.mxu0 %v1266
      %2104 = vmatmul.mubr.f32.gmra.mrb[0].mxu0 %v1265
      %v2105 = vpop.f32.mrb[0].mxu0
      %v2106 = vadd.f32 %v1881, %v2105
      %v2107 = vpop.f32.mrb[0].mxu0
      %2108 = vmatprep.mubr.f32.mxu0 %v1275
      %2109 = vmatmul.mubr.f32.gmra.mrb[0].mxu0 %v1274
      %v2110 = vpop.f32.mrb[0].mxu0
      %v2111 = vadd.f32 %v1886, %v2110
      %v2112 = vpop.f32.mrb[0].mxu0
      %2113 = vmatprep.mubr.f32.mxu0 %v1284
      %2114 = vmatmul.mubr.f32.gmra.mrb[0].mxu0 %v1283
      %v2115 = vpop.f32.mrb[0].mxu0
      %v2116 = vadd.f32 %v1891, %v2115
      %v2117 = vpop.f32.mrb[0].mxu0
      %2118 = vmatprep.mubr.f32.mxu0 %v1293
      %2119 = vmatmul.mubr.f32.gmra.mrb[0].mxu0 %v1292
      %v2120 = vpop.f32.mrb[0].mxu0
      %v2121 = vadd.f32 %v1896, %v2120
      %v2122 = vpop.f32.mrb[0].mxu0
      %2123 = vmatprep.mubr.f32.mxu0 %v1302
      %2124 = vmatmul.mubr.f32.gmra.mrb[0].mxu0 %v1301
      %v2125 = vpop.f32.mrb[0].mxu0
      %v2126 = vadd.f32 %v1901, %v2125
      %v2127 = vpop.f32.mrb[0].mxu0
      %2128 = vmatprep.mubr.f32.mxu0 %v1311
      %2129 = vmatmul.mubr.f32.gmra.mrb[0].mxu0 %v1310
      %v2130 = vpop.f32.mrb[0].mxu0
      %v2131 = vadd.f32 %v1906, %v2130
      %v2132 = vpop.f32.mrb[0].mxu0
      %2133 = vdwg.mxu0
      %2134 = vmatprep.subr.mxu0 0.0
      %2135 = vmatpush1.msra.mxu0 %v1411
      %2136 = vmatprep.subr.mxu0 0.0
      %2137 = vmatpush1.msra.mxu0 %v1412
      %2138 = vmatprep.subr.mxu0 0.0
      %2139 = vmatpush1.msra.mxu0 %v1413
      %2140 = vmatprep.subr.mxu0 0.0
      %2141 = vmatpush1.msra.mxu0 %v1414
      %2142 = vmatprep.subr.mxu0 0.0
      %2143 = vmatpush1.msra.mxu0 %v1415
      %2144 = vmatprep.subr.mxu0 0.0
      %2145 = vmatpush1.msra.mxu0 %v1416
      %2146 = vmatprep.subr.mxu0 0.0
      %2147 = vmatpush1.msra.mxu0 %v1417
      %2148 = vmatprep.subr.mxu0 0.0
      %2149 = vmatpush1.msra.mxu0 %v1418
      %2150 = vmatprep.subr.mxu0 0.0
      %2151 = vmatpush1.msra.mxu0 %v1419
      %2152 = vmatprep.subr.mxu0 0.0
      %2153 = vmatpush1.msra.mxu0 %v1420
      %2154 = vmatprep.subr.mxu0 0.0
      %2155 = vmatpush1.msra.mxu0 %v1421
      %2156 = vmatprep.subr.mxu0 0.0
      %2157 = vmatpush1.msra.mxu0 %v1422
      %2158 = vmatprep.subr.mxu0 0.0
      %2159 = vmatpush1.msra.mxu0 %v1423
      %2160 = vmatprep.subr.mxu0 0.0
      %2161 = vmatpush1.msra.mxu0 %v1424
      %2162 = vmatprep.subr.mxu0 0.0
      %2163 = vmatpush1.msra.mxu0 %v1425
      %2164 = vmatprep.subr.mxu0 0.0
      %2165 = vmatpush1.msra.mxu0 %v1426
      %2166 = vmatprep.subr.mxu0 0.0
      %2167 = vmatpush1.msra.mxu0 %v1427
      %2168 = vmatprep.subr.mxu0 0.0
      %2169 = vmatpush1.msra.mxu0 %v1428
      %2170 = vmatprep.subr.mxu0 0.0
      %2171 = vmatpush1.msra.mxu0 %v1429
      %2172 = vmatprep.subr.mxu0 0.0
      %2173 = vmatpush1.msra.mxu0 %v1430
      %2174 = vmatprep.subr.mxu0 0.0
      %2175 = vmatpush1.msra.mxu0 %v1431
      %2176 = vmatprep.subr.mxu0 0.0
      %2177 = vmatpush1.msra.mxu0 %v1432
      %2178 = vmatprep.subr.mxu0 0.0
      %2179 = vmatpush1.msra.mxu0 %v1433
      %2180 = vmatprep.subr.mxu0 0.0
      %2181 = vmatpush1.msra.mxu0 %v1434
      %2182 = vmatprep.subr.mxu0 0.0
      %2183 = vmatpush1.msra.mxu0 %v1435
      %2184 = vmatprep.subr.mxu0 0.0
      %2185 = vmatpush1.msra.mxu0 %v1436
      %2186 = vmatprep.subr.mxu0 0.0
      %2187 = vmatpush1.msra.mxu0 %v1437
      %2188 = vmatprep.subr.mxu0 0.0
      %2189 = vmatpush1.msra.mxu0 %v1438
      %2190 = vmatprep.subr.mxu0 0.0
      %2191 = vmatpush1.msra.mxu0 %v1439
      %2192 = vmatprep.subr.mxu0 0.0
      %2193 = vmatpush1.msra.mxu0 %v1440
      %2194 = vmatprep.subr.mxu0 0.0
      %2195 = vmatpush1.msra.mxu0 %v1441
      %2196 = vmatprep.subr.mxu0 0.0
      %2197 = vmatpush1.msra.mxu0 %v1442
      %2198 = vmatprep.mubr.f32.mxu0 %v1034
      %2199 = vmatmul.mubr.f32.gmra.mrb[0].mxu0 %v1033
      %v2200 = vpop.f32.mrb[0].mxu0
      %v2201 = vadd.f32 %v1976, %v2200
      %v2202 = vpop.f32.mrb[0].mxu0
      %2203 = vmatprep.mubr.f32.mxu0 %v1043
      %2204 = vmatmul.mubr.f32.gmra.mrb[0].mxu0 %v1042
      %v2205 = vpop.f32.mrb[0].mxu0
      %v2206 = vadd.f32 %v1981, %v2205
      %v2207 = vpop.f32.mrb[0].mxu0
      %2208 = vmatprep.mubr.f32.mxu0 %v1052
      %2209 = vmatmul.mubr.f32.gmra.mrb[0].mxu0 %v1051
      %v2210 = vpop.f32.mrb[0].mxu0
      %v2211 = vadd.f32 %v1986, %v2210
      %v2212 = vpop.f32.mrb[0].mxu0
      %2213 = vmatprep.mubr.f32.mxu0 %v1061
      %2214 = vmatmul.mubr.f32.gmra.mrb[0].mxu0 %v1060
      %v2215 = vpop.f32.mrb[0].mxu0
      %v2216 = vadd.f32 %v1991, %v2215
      %v2217 = vpop.f32.mrb[0].mxu0
      %2218 = vmatprep.mubr.f32.mxu0 %v1070
      %2219 = vmatmul.mubr.f32.gmra.mrb[0].mxu0 %v1069
      %v2220 = vpop.f32.mrb[0].mxu0
      %v2221 = vadd.f32 %v1996, %v2220
      %v2222 = vpop.f32.mrb[0].mxu0
      %2223 = vmatprep.mubr.f32.mxu0 %v1079
      %2224 = vmatmul.mubr.f32.gmra.mrb[0].mxu0 %v1078
      %v2225 = vpop.f32.mrb[0].mxu0
      %v2226 = vadd.f32 %v2001, %v2225
      %v2227 = vpop.f32.mrb[0].mxu0
      %2228 = vmatprep.mubr.f32.mxu0 %v1088
      %2229 = vmatmul.mubr.f32.gmra.mrb[0].mxu0 %v1087
      %v2230 = vpop.f32.mrb[0].mxu0
      %v2231 = vadd.f32 %v2006, %v2230
      %v2232 = vpop.f32.mrb[0].mxu0
      %2233 = vmatprep.mubr.f32.mxu0 %v1097
      %2234 = vmatmul.mubr.f32.gmra.mrb[0].mxu0 %v1096
      %v2235 = vpop.f32.mrb[0].mxu0
      %v2236 = vadd.f32 %v2011, %v2235
      %v2237 = vpop.f32.mrb[0].mxu0
      %2238 = vmatprep.mubr.f32.mxu0 %v1106
      %2239 = vmatmul.mubr.f32.gmra.mrb[0].mxu0 %v1105
      %v2240 = vpop.f32.mrb[0].mxu0
      %v2241 = vadd.f32 %v2016, %v2240
      %v2242 = vpop.f32.mrb[0].mxu0
      %2243 = vmatprep.mubr.f32.mxu0 %v1115
      %2244 = vmatmul.mubr.f32.gmra.mrb[0].mxu0 %v1114
      %v2245 = vpop.f32.mrb[0].mxu0
      %v2246 = vadd.f32 %v2021, %v2245
      %v2247 = vpop.f32.mrb[0].mxu0
      %2248 = vmatprep.mubr.f32.mxu0 %v1124
      %2249 = vmatmul.mubr.f32.gmra.mrb[0].mxu0 %v1123
      %v2250 = vpop.f32.mrb[0].mxu0
      %v2251 = vadd.f32 %v2026, %v2250
      %v2252 = vpop.f32.mrb[0].mxu0
      %2253 = vmatprep.mubr.f32.mxu0 %v1133
      %2254 = vmatmul.mubr.f32.gmra.mrb[0].mxu0 %v1132
      %v2255 = vpop.f32.mrb[0].mxu0
      %v2256 = vadd.f32 %v2031, %v2255
      %v2257 = vpop.f32.mrb[0].mxu0
      %2258 = vmatprep.mubr.f32.mxu0 %v1142
      %2259 = vmatmul.mubr.f32.gmra.mrb[0].mxu0 %v1141
      %v2260 = vpop.f32.mrb[0].mxu0
      %v2261 = vadd.f32 %v2036, %v2260
      %v2262 = vpop.f32.mrb[0].mxu0
      %2263 = vmatprep.mubr.f32.mxu0 %v1151
      %2264 = vmatmul.mubr.f32.gmra.mrb[0].mxu0 %v1150
      %v2265 = vpop.f32.mrb[0].mxu0
      %v2266 = vadd.f32 %v2041, %v2265
      %v2267 = vpop.f32.mrb[0].mxu0
      %2268 = vmatprep.mubr.f32.mxu0 %v1160
      %2269 = vmatmul.mubr.f32.gmra.mrb[0].mxu0 %v1159
      %v2270 = vpop.f32.mrb[0].mxu0
      %v2271 = vadd.f32 %v2046, %v2270
      %v2272 = vpop.f32.mrb[0].mxu0
      %2273 = vmatprep.mubr.f32.mxu0 %v1169
      %2274 = vmatmul.mubr.f32.gmra.mrb[0].mxu0 %v1168
      %v2275 = vpop.f32.mrb[0].mxu0
      %v2276 = vadd.f32 %v2051, %v2275
      %v2277 = vpop.f32.mrb[0].mxu0
      %2278 = vmatprep.mubr.f32.mxu0 %v1178
      %2279 = vmatmul.mubr.f32.gmra.mrb[0].mxu0 %v1177
      %v2280 = vpop.f32.mrb[0].mxu0
      %v2281 = vadd.f32 %v2056, %v2280
      %v2282 = vpop.f32.mrb[0].mxu0
      %2283 = vmatprep.mubr.f32.mxu0 %v1187
      %2284 = vmatmul.mubr.f32.gmra.mrb[0].mxu0 %v1186
      %v2285 = vpop.f32.mrb[0].mxu0
      %v2286 = vadd.f32 %v2061, %v2285
      %v2287 = vpop.f32.mrb[0].mxu0
      %2288 = vmatprep.mubr.f32.mxu0 %v1196
      %2289 = vmatmul.mubr.f32.gmra.mrb[0].mxu0 %v1195
      %v2290 = vpop.f32.mrb[0].mxu0
      %v2291 = vadd.f32 %v2066, %v2290
      %v2292 = vpop.f32.mrb[0].mxu0
      %2293 = vmatprep.mubr.f32.mxu0 %v1205
      %2294 = vmatmul.mubr.f32.gmra.mrb[0].mxu0 %v1204
      %v2295 = vpop.f32.mrb[0].mxu0
      %v2296 = vadd.f32 %v2071, %v2295
      %v2297 = vpop.f32.mrb[0].mxu0
      %2298 = vmatprep.mubr.f32.mxu0 %v1214
      %2299 = vmatmul.mubr.f32.gmra.mrb[0].mxu0 %v1213
      %v2300 = vpop.f32.mrb[0].mxu0
      %v2301 = vadd.f32 %v2076, %v2300
      %v2302 = vpop.f32.mrb[0].mxu0
      %2303 = vmatprep.mubr.f32.mxu0 %v1223
      %2304 = vmatmul.mubr.f32.gmra.mrb[0].mxu0 %v1222
      %v2305 = vpop.f32.mrb[0].mxu0
      %v2306 = vadd.f32 %v2081, %v2305
      %v2307 = vpop.f32.mrb[0].mxu0
      %2308 = vmatprep.mubr.f32.mxu0 %v1232
      %2309 = vmatmul.mubr.f32.gmra.mrb[0].mxu0 %v1231
      %v2310 = vpop.f32.mrb[0].mxu0
      %v2311 = vadd.f32 %v2086, %v2310
      %v2312 = vpop.f32.mrb[0].mxu0
      %2313 = vmatprep.mubr.f32.mxu0 %v1241
      %2314 = vmatmul.mubr.f32.gmra.mrb[0].mxu0 %v1240
      %v2315 = vpop.f32.mrb[0].mxu0
      %v2316 = vadd.f32 %v2091, %v2315
      %v2317 = vpop.f32.mrb[0].mxu0
      %2318 = vmatprep.mubr.f32.mxu0 %v1250
      %2319 = vmatmul.mubr.f32.gmra.mrb[0].mxu0 %v1249
      %v2320 = vpop.f32.mrb[0].mxu0
      %v2321 = vadd.f32 %v2096, %v2320
      %v2322 = vpop.f32.mrb[0].mxu0
      %2323 = vmatprep.mubr.f32.mxu0 %v1259
      %2324 = vmatmul.mubr.f32.gmra.mrb[0].mxu0 %v1258
      %v2325 = vpop.f32.mrb[0].mxu0
      %v2326 = vadd.f32 %v2101, %v2325
      %v2327 = vpop.f32.mrb[0].mxu0
      %2328 = vmatprep.mubr.f32.mxu0 %v1268
      %2329 = vmatmul.mubr.f32.gmra.mrb[0].mxu0 %v1267
      %v2330 = vpop.f32.mrb[0].mxu0
      %v2331 = vadd.f32 %v2106, %v2330
      %v2332 = vpop.f32.mrb[0].mxu0
      %2333 = vmatprep.mubr.f32.mxu0 %v1277
      %2334 = vmatmul.mubr.f32.gmra.mrb[0].mxu0 %v1276
      %v2335 = vpop.f32.mrb[0].mxu0
      %v2336 = vadd.f32 %v2111, %v2335
      %v2337 = vpop.f32.mrb[0].mxu0
      %2338 = vmatprep.mubr.f32.mxu0 %v1286
      %2339 = vmatmul.mubr.f32.gmra.mrb[0].mxu0 %v1285
      %v2340 = vpop.f32.mrb[0].mxu0
      %v2341 = vadd.f32 %v2116, %v2340
      %v2342 = vpop.f32.mrb[0].mxu0
      %2343 = vmatprep.mubr.f32.mxu0 %v1295
      %2344 = vmatmul.mubr.f32.gmra.mrb[0].mxu0 %v1294
      %v2345 = vpop.f32.mrb[0].mxu0
      %v2346 = vadd.f32 %v2121, %v2345
      %v2347 = vpop.f32.mrb[0].mxu0
      %2348 = vmatprep.mubr.f32.mxu0 %v1304
      %2349 = vmatmul.mubr.f32.gmra.mrb[0].mxu0 %v1303
      %v2350 = vpop.f32.mrb[0].mxu0
      %v2351 = vadd.f32 %v2126, %v2350
      %v2352 = vpop.f32.mrb[0].mxu0
      %2353 = vmatprep.mubr.f32.mxu0 %v1313
      %2354 = vmatmul.mubr.f32.gmra.mrb[0].mxu0 %v1312
      %v2355 = vpop.f32.mrb[0].mxu0
      %v2356 = vadd.f32 %v2131, %v2355
      %v2357 = vpop.f32.mrb[0].mxu0
      %2358 = vdwg.mxu0
      %2359 = vmatprep.subr.mxu0 0.0
      %2360 = vmatpush1.msra.mxu0 %v1443
      %2361 = vmatprep.subr.mxu0 0.0
      %2362 = vmatpush1.msra.mxu0 %v1444
      %2363 = vmatprep.subr.mxu0 0.0
      %2364 = vmatpush1.msra.mxu0 %v1445
      %2365 = vmatprep.subr.mxu0 0.0
      %2366 = vmatpush1.msra.mxu0 %v1446
      %2367 = vmatprep.subr.mxu0 0.0
      %2368 = vmatpush1.msra.mxu0 %v1447
      %2369 = vmatprep.subr.mxu0 0.0
      %2370 = vmatpush1.msra.mxu0 %v1448
      %2371 = vmatprep.subr.mxu0 0.0
      %2372 = vmatpush1.msra.mxu0 %v1449
      %2373 = vmatprep.subr.mxu0 0.0
      %2374 = vmatpush1.msra.mxu0 %v1450
      %2375 = vmatprep.subr.mxu0 0.0
      %2376 = vmatpush1.msra.mxu0 %v1451
      %2377 = vmatprep.subr.mxu0 0.0
      %2378 = vmatpush1.msra.mxu0 %v1452
      %2379 = vmatprep.subr.mxu0 0.0
      %2380 = vmatpush1.msra.mxu0 %v1453
      %2381 = vmatprep.subr.mxu0 0.0
      %2382 = vmatpush1.msra.mxu0 %v1454
      %2383 = vmatprep.subr.mxu0 0.0
      %2384 = vmatpush1.msra.mxu0 %v1455
      %2385 = vmatprep.subr.mxu0 0.0
      %2386 = vmatpush1.msra.mxu0 %v1456
      %2387 = vmatprep.subr.mxu0 0.0
      %2388 = vmatpush1.msra.mxu0 %v1457
      %2389 = vmatprep.subr.mxu0 0.0
      %2390 = vmatpush1.msra.mxu0 %v1458
      %2391 = vmatprep.subr.mxu0 0.0
      %2392 = vmatpush1.msra.mxu0 0.0
      %2393 = vmatprep.subr.mxu0 0.0
      %2394 = vmatpush1.msra.mxu0 0.0
      %2395 = vmatprep.subr.mxu0 0.0
      %2396 = vmatpush1.msra.mxu0 0.0
      %2397 = vmatprep.subr.mxu0 0.0
      %2398 = vmatpush1.msra.mxu0 0.0
      %2399 = vmatprep.subr.mxu0 0.0
      %2400 = vmatpush1.msra.mxu0 0.0
      %2401 = vmatprep.subr.mxu0 0.0
      %2402 = vmatpush1.msra.mxu0 0.0
      %2403 = vmatprep.subr.mxu0 0.0
      %2404 = vmatpush1.msra.mxu0 0.0
      %2405 = vmatprep.subr.mxu0 0.0
      %2406 = vmatpush1.msra.mxu0 0.0
      %2407 = vmatprep.subr.mxu0 0.0
      %2408 = vmatpush1.msra.mxu0 0.0
      %2409 = vmatprep.subr.mxu0 0.0
      %2410 = vmatpush1.msra.mxu0 0.0
      %2411 = vmatprep.subr.mxu0 0.0
      %2412 = vmatpush1.msra.mxu0 0.0
      %2413 = vmatprep.subr.mxu0 0.0
      %2414 = vmatpush1.msra.mxu0 0.0
      %2415 = vmatprep.subr.mxu0 0.0
      %2416 = vmatpush1.msra.mxu0 0.0
      %2417 = vmatprep.subr.mxu0 0.0
      %2418 = vmatpush1.msra.mxu0 0.0
      %2419 = vmatprep.subr.mxu0 0.0
      %2420 = vmatpush1.msra.mxu0 0.0
      %2421 = vmatprep.subr.mxu0 0.0
      %2422 = vmatpush1.msra.mxu0 0.0
      %2423 = vmatprep.mubr.f32.mxu0 0.0
      %2424 = vmatmul.mubr.f32.gmra.mrb[0].mxu0 %v1035
      %v2425 = vpop.f32.mrb[0].mxu0
      %v2426 = vadd.f32 %v2201, %v2425
      %v2427 = vpop.f32.mrb[0].mxu0
      %2428 = vmatprep.mubr.f32.mxu0 0.0
      %2429 = vmatmul.mubr.f32.gmra.mrb[0].mxu0 %v1044
      %v2430 = vpop.f32.mrb[0].mxu0
      %v2431 = vadd.f32 %v2206, %v2430
      %v2432 = vpop.f32.mrb[0].mxu0
      %2433 = vmatprep.mubr.f32.mxu0 0.0
      %2434 = vmatmul.mubr.f32.gmra.mrb[0].mxu0 %v1053
      %v2435 = vpop.f32.mrb[0].mxu0
      %v2436 = vadd.f32 %v2211, %v2435
      %v2437 = vpop.f32.mrb[0].mxu0
      %2438 = vmatprep.mubr.f32.mxu0 0.0
      %2439 = vmatmul.mubr.f32.gmra.mrb[0].mxu0 %v1062
      %v2440 = vpop.f32.mrb[0].mxu0
      %v2441 = vadd.f32 %v2216, %v2440
      %v2442 = vpop.f32.mrb[0].mxu0
      %2443 = vmatprep.mubr.f32.mxu0 0.0
      %2444 = vmatmul.mubr.f32.gmra.mrb[0].mxu0 %v1071
      %v2445 = vpop.f32.mrb[0].mxu0
      %v2446 = vadd.f32 %v2221, %v2445
      %v2447 = vpop.f32.mrb[0].mxu0
      %2448 = vmatprep.mubr.f32.mxu0 0.0
      %2449 = vmatmul.mubr.f32.gmra.mrb[0].mxu0 %v1080
      %v2450 = vpop.f32.mrb[0].mxu0
      %v2451 = vadd.f32 %v2226, %v2450
      %v2452 = vpop.f32.mrb[0].mxu0
      %2453 = vmatprep.mubr.f32.mxu0 0.0
      %2454 = vmatmul.mubr.f32.gmra.mrb[0].mxu0 %v1089
      %v2455 = vpop.f32.mrb[0].mxu0
      %v2456 = vadd.f32 %v2231, %v2455
      %v2457 = vpop.f32.mrb[0].mxu0
      %2458 = vmatprep.mubr.f32.mxu0 0.0
      %2459 = vmatmul.mubr.f32.gmra.mrb[0].mxu0 %v1098
      %v2460 = vpop.f32.mrb[0].mxu0
      %v2461 = vadd.f32 %v2236, %v2460
      %v2462 = vpop.f32.mrb[0].mxu0
      %2463 = vmatprep.mubr.f32.mxu0 0.0
      %2464 = vmatmul.mubr.f32.gmra.mrb[0].mxu0 %v1107
      %v2465 = vpop.f32.mrb[0].mxu0
      %v2466 = vadd.f32 %v2241, %v2465
      %v2467 = vpop.f32.mrb[0].mxu0
      %2468 = vmatprep.mubr.f32.mxu0 0.0
      %2469 = vmatmul.mubr.f32.gmra.mrb[0].mxu0 %v1116
      %v2470 = vpop.f32.mrb[0].mxu0
      %v2471 = vadd.f32 %v2246, %v2470
      %v2472 = vpop.f32.mrb[0].mxu0
      %2473 = vmatprep.mubr.f32.mxu0 0.0
      %2474 = vmatmul.mubr.f32.gmra.mrb[0].mxu0 %v1125
      %v2475 = vpop.f32.mrb[0].mxu0
      %v2476 = vadd.f32 %v2251, %v2475
      %v2477 = vpop.f32.mrb[0].mxu0
      %2478 = vmatprep.mubr.f32.mxu0 0.0
      %2479 = vmatmul.mubr.f32.gmra.mrb[0].mxu0 %v1134
      %v2480 = vpop.f32.mrb[0].mxu0
      %v2481 = vadd.f32 %v2256, %v2480
      %v2482 = vpop.f32.mrb[0].mxu0
      %2483 = vmatprep.mubr.f32.mxu0 0.0
      %2484 = vmatmul.mubr.f32.gmra.mrb[0].mxu0 %v1143
      %v2485 = vpop.f32.mrb[0].mxu0
      %v2486 = vadd.f32 %v2261, %v2485
      %v2487 = vpop.f32.mrb[0].mxu0
      %2488 = vmatprep.mubr.f32.mxu0 0.0
      %2489 = vmatmul.mubr.f32.gmra.mrb[0].mxu0 %v1152
      %v2490 = vpop.f32.mrb[0].mxu0
      %v2491 = vadd.f32 %v2266, %v2490
      %v2492 = vpop.f32.mrb[0].mxu0
      %2493 = vmatprep.mubr.f32.mxu0 0.0
      %2494 = vmatmul.mubr.f32.gmra.mrb[0].mxu0 %v1161
      %v2495 = vpop.f32.mrb[0].mxu0
      %v2496 = vadd.f32 %v2271, %v2495
      %v2497 = vpop.f32.mrb[0].mxu0
      %2498 = vmatprep.mubr.f32.mxu0 0.0
      %2499 = vmatmul.mubr.f32.gmra.mrb[0].mxu0 %v1170
      %v2500 = vpop.f32.mrb[0].mxu0
      %v2501 = vadd.f32 %v2276, %v2500
      %v2502 = vpop.f32.mrb[0].mxu0
      %2503 = vmatprep.mubr.f32.mxu0 0.0
      %2504 = vmatmul.mubr.f32.gmra.mrb[0].mxu0 %v1179
      %v2505 = vpop.f32.mrb[0].mxu0
      %v2506 = vadd.f32 %v2281, %v2505
      %v2507 = vpop.f32.mrb[0].mxu0
      %2508 = vmatprep.mubr.f32.mxu0 0.0
      %2509 = vmatmul.mubr.f32.gmra.mrb[0].mxu0 %v1188
      %v2510 = vpop.f32.mrb[0].mxu0
      %v2511 = vadd.f32 %v2286, %v2510
      %v2512 = vpop.f32.mrb[0].mxu0
      %2513 = vmatprep.mubr.f32.mxu0 0.0
      %2514 = vmatmul.mubr.f32.gmra.mrb[0].mxu0 %v1197
      %v2515 = vpop.f32.mrb[0].mxu0
      %v2516 = vadd.f32 %v2291, %v2515
      %v2517 = vpop.f32.mrb[0].mxu0
      %2518 = vmatprep.mubr.f32.mxu0 0.0
      %2519 = vmatmul.mubr.f32.gmra.mrb[0].mxu0 %v1206
      %v2520 = vpop.f32.mrb[0].mxu0
      %v2521 = vadd.f32 %v2296, %v2520
      %v2522 = vpop.f32.mrb[0].mxu0
      %2523 = vmatprep.mubr.f32.mxu0 0.0
      %2524 = vmatmul.mubr.f32.gmra.mrb[0].mxu0 %v1215
      %v2525 = vpop.f32.mrb[0].mxu0
      %v2526 = vadd.f32 %v2301, %v2525
      %v2527 = vpop.f32.mrb[0].mxu0
      %2528 = vmatprep.mubr.f32.mxu0 0.0
      %2529 = vmatmul.mubr.f32.gmra.mrb[0].mxu0 %v1224
      %v2530 = vpop.f32.mrb[0].mxu0
      %v2531 = vadd.f32 %v2306, %v2530
      %v2532 = vpop.f32.mrb[0].mxu0
      %2533 = vmatprep.mubr.f32.mxu0 0.0
      %2534 = vmatmul.mubr.f32.gmra.mrb[0].mxu0 %v1233
      %v2535 = vpop.f32.mrb[0].mxu0
      %v2536 = vadd.f32 %v2311, %v2535
      %v2537 = vpop.f32.mrb[0].mxu0
      %2538 = vmatprep.mubr.f32.mxu0 0.0
      %2539 = vmatmul.mubr.f32.gmra.mrb[0].mxu0 %v1242
      %v2540 = vpop.f32.mrb[0].mxu0
      %v2541 = vadd.f32 %v2316, %v2540
      %v2542 = vpop.f32.mrb[0].mxu0
      %2543 = vmatprep.mubr.f32.mxu0 0.0
      %2544 = vmatmul.mubr.f32.gmra.mrb[0].mxu0 %v1251
      %v2545 = vpop.f32.mrb[0].mxu0
      %v2546 = vadd.f32 %v2321, %v2545
      %v2547 = vpop.f32.mrb[0].mxu0
      %2548 = vmatprep.mubr.f32.mxu0 0.0
      %2549 = vmatmul.mubr.f32.gmra.mrb[0].mxu0 %v1260
      %v2550 = vpop.f32.mrb[0].mxu0
      %v2551 = vadd.f32 %v2326, %v2550
      %v2552 = vpop.f32.mrb[0].mxu0
      %2553 = vmatprep.mubr.f32.mxu0 0.0
      %2554 = vmatmul.mubr.f32.gmra.mrb[0].mxu0 %v1269
      %v2555 = vpop.f32.mrb[0].mxu0
      %v2556 = vadd.f32 %v2331, %v2555
      %v2557 = vpop.f32.mrb[0].mxu0
      %2558 = vmatprep.mubr.f32.mxu0 0.0
      %2559 = vmatmul.mubr.f32.gmra.mrb[0].mxu0 %v1278
      %v2560 = vpop.f32.mrb[0].mxu0
      %v2561 = vadd.f32 %v2336, %v2560
      %v2562 = vpop.f32.mrb[0].mxu0
      %2563 = vmatprep.mubr.f32.mxu0 0.0
      %2564 = vmatmul.mubr.f32.gmra.mrb[0].mxu0 %v1287
      %v2565 = vpop.f32.mrb[0].mxu0
      %v2566 = vadd.f32 %v2341, %v2565
      %v2567 = vpop.f32.mrb[0].mxu0
      %2568 = vmatprep.mubr.f32.mxu0 0.0
      %2569 = vmatmul.mubr.f32.gmra.mrb[0].mxu0 %v1296
      %v2570 = vpop.f32.mrb[0].mxu0
      %v2571 = vadd.f32 %v2346, %v2570
      %v2572 = vpop.f32.mrb[0].mxu0
      %2573 = vmatprep.mubr.f32.mxu0 0.0
      %2574 = vmatmul.mubr.f32.gmra.mrb[0].mxu0 %v1305
      %v2575 = vpop.f32.mrb[0].mxu0
      %v2576 = vadd.f32 %v2351, %v2575
      %v2577 = vpop.f32.mrb[0].mxu0
      %2578 = vmatprep.mubr.f32.mxu0 0.0
      %2579 = vmatmul.mubr.f32.gmra.mrb[0].mxu0 %v1314
      %v2580 = vpop.f32.mrb[0].mxu0
      %v2581 = vadd.f32 %v2356, %v2580
      %v2582 = vpop.f32.mrb[0].mxu0
      %2583 = vdwg.mxu0
      %2584 = vst [vmem:[%s231] sm:$0xff] %v2426
      %2585 = vst [vmem:[%s231 + $0x8] sm:$0xff] %v2431
      %2586 = vst [vmem:[%s231 + $0x10] sm:$0xff] %v2436
      %2587 = vst [vmem:[%s231 + $0x18] sm:$0xff] %v2441
      %2588 = vst [vmem:[%s231 + $0x20] sm:$0xff] %v2446
      %2589 = vst [vmem:[%s231 + $0x28] sm:$0xff] %v2451
      %2590 = vst [vmem:[%s231 + $0x30] sm:$0xff] %v2456
      %2591 = vst [vmem:[%s231 + $0x38] sm:$0xff] %v2461
      %2592 = vst [vmem:[%s231 + $0x40] sm:$0xff] %v2466
      %2593 = vst [vmem:[%s231 + $0x48] sm:$0xff] %v2471
      %2594 = vst [vmem:[%s231 + $0x50] sm:$0xff] %v2476
      %2595 = vst [vmem:[%s231 + $0x58] sm:$0xff] %v2481
      %2596 = vst [vmem:[%s231 + $0x60] sm:$0xff] %v2486
      %2597 = vst [vmem:[%s231 + $0x68] sm:$0xff] %v2491
      %2598 = vst [vmem:[%s231 + $0x70] sm:$0xff] %v2496
      %2599 = vst [vmem:[%s231 + $0x78] sm:$0xff] %v2501
      %2600 = vst [vmem:[%s231 + $0x80] sm:$0xff] %v2506
      %2601 = vst [vmem:[%s231 + $0x88] sm:$0xff] %v2511
      %2602 = vst [vmem:[%s231 + $0x90] sm:$0xff] %v2516
      %2603 = vst [vmem:[%s231 + $0x98] sm:$0xff] %v2521
      %2604 = vst [vmem:[%s231 + $0xa0] sm:$0xff] %v2526
      %2605 = vst [vmem:[%s231 + $0xa8] sm:$0xff] %v2531
      %2606 = vst [vmem:[%s231 + $0xb0] sm:$0xff] %v2536
      %2607 = vst [vmem:[%s231 + $0xb8] sm:$0xff] %v2541
      %2608 = vst [vmem:[%s231 + $0xc0] sm:$0xff] %v2546
      %2609 = vst [vmem:[%s231 + $0xc8] sm:$0xff] %v2551
      %2610 = vst [vmem:[%s231 + $0xd0] sm:$0xff] %v2556
      %2611 = vst [vmem:[%s231 + $0xd8] sm:$0xff] %v2561
      %2612 = vst [vmem:[%s231 + $0xe0] sm:$0xff] %v2566
      %2613 = vst [vmem:[%s231 + $0xe8] sm:$0xff] %v2571
      %2614 = vst [vmem:[%s231 + $0xf0] sm:$0xff] %v2576
      %2615 = vst [vmem:[%s231 + $0xf8] sm:$0xff] %v2581
      %v2616 = vadd.f32 %v2426, %v2431
      %v2617 = vadd.f32 %v2616, %v2436
      %v2618 = vadd.f32 %v2617, %v2441
      %v2619 = vadd.f32 %v2618, %v2446
      %v2620 = vadd.f32 %v2619, %v2451
      %v2621 = vadd.f32 %v2620, %v2456
      %v2622 = vadd.f32 %v2621, %v2461
      %v2623 = vadd.f32 %v2622, %v2466
      %v2624 = vadd.f32 %v2623, %v2471
      %v2625 = vadd.f32 %v2624, %v2476
      %v2626 = vadd.f32 %v2625, %v2481
      %v2627 = vadd.f32 %v2626, %v2486
      %v2628 = vadd.f32 %v2627, %v2491
      %v2629 = vadd.f32 %v2628, %v2496
      %v2630 = vadd.f32 %v2629, %v2501
      %v2631 = vadd.f32 %v2630, %v2506
      %v2632 = vadd.f32 %v2631, %v2511
      %v2633 = vadd.f32 %v2632, %v2516
      %v2634 = vadd.f32 %v2633, %v2521
      %v2635 = vadd.f32 %v2634, %v2526
      %v2636 = vadd.f32 %v2635, %v2531
      %v2637 = vadd.f32 %v2636, %v2536
      %v2638 = vadd.f32 %v2637, %v2541
      %v2639 = vadd.f32 %v2638, %v2546
      %v2640 = vadd.f32 %v2639, %v2551
      %v2641 = vadd.f32 %v2640, %v2556
      %v2642 = vadd.f32 %v2641, %v2561
      %v2643 = vadd.f32 %v2642, %v2566
      %v2644 = vadd.f32 %v2643, %v2571
      %v2645 = vadd.f32 %v2644, %v2576
      %v2646 = vadd.f32 %v2645, %v2581
      %v2647 = vrot.slane %v2646, 4
      %v2648 = vadd.f32 %v2646, %v2647
      %v2649 = vrot.slane %v2648, 2
      %v2650 = vadd.f32 %v2648, %v2649
      %v2651 = vrot.slane %v2650, 1
      %v2652 = vadd.f32 %v2650, %v2651
      %v2653 = vmul.f32 %v2426, %v2426
      %v2654 = vmul.f32 %v2431, %v2431
      %v2655 = vmul.f32 %v2436, %v2436
      %v2656 = vmul.f32 %v2441, %v2441
      %v2657 = vmul.f32 %v2446, %v2446
      %v2658 = vmul.f32 %v2451, %v2451
      %v2659 = vmul.f32 %v2456, %v2456
      %v2660 = vmul.f32 %v2461, %v2461
      %v2661 = vmul.f32 %v2466, %v2466
      %v2662 = vmul.f32 %v2471, %v2471
      %v2663 = vmul.f32 %v2476, %v2476
      %v2664 = vmul.f32 %v2481, %v2481
      %v2665 = vmul.f32 %v2486, %v2486
      %v2666 = vmul.f32 %v2491, %v2491
      %v2667 = vmul.f32 %v2496, %v2496
      %v2668 = vmul.f32 %v2501, %v2501
      %v2669 = vmul.f32 %v2506, %v2506
      %v2670 = vmul.f32 %v2511, %v2511
      %v2671 = vmul.f32 %v2516, %v2516
      %v2672 = vmul.f32 %v2521, %v2521
      %v2673 = vmul.f32 %v2526, %v2526
      %v2674 = vmul.f32 %v2531, %v2531
      %v2675 = vmul.f32 %v2536, %v2536
      %v2676 = vmul.f32 %v2541, %v2541
      %v2677 = vmul.f32 %v2546, %v2546
      %v2678 = vmul.f32 %v2551, %v2551
      %v2679 = vmul.f32 %v2556, %v2556
      %v2680 = vmul.f32 %v2561, %v2561
      %v2681 = vmul.f32 %v2566, %v2566
      %v2682 = vmul.f32 %v2571, %v2571
      %v2683 = vmul.f32 %v2576, %v2576
      %v2684 = vmul.f32 %v2581, %v2581
      %v2685 = vadd.f32 %v2653, %v2654
      %v2686 = vadd.f32 %v2685, %v2655
      %v2687 = vadd.f32 %v2686, %v2656
      %v2688 = vadd.f32 %v2687, %v2657
      %v2689 = vadd.f32 %v2688, %v2658
      %v2690 = vadd.f32 %v2689, %v2659
      %v2691 = vadd.f32 %v2690, %v2660
      %v2692 = vadd.f32 %v2691, %v2661
      %v2693 = vadd.f32 %v2692, %v2662
      %v2694 = vadd.f32 %v2693, %v2663
      %v2695 = vadd.f32 %v2694, %v2664
      %v2696 = vadd.f32 %v2695, %v2665
      %v2697 = vadd.f32 %v2696, %v2666
      %v2698 = vadd.f32 %v2697, %v2667
      %v2699 = vadd.f32 %v2698, %v2668
      %v2700 = vadd.f32 %v2699, %v2669
      %v2701 = vadd.f32 %v2700, %v2670
      %v2702 = vadd.f32 %v2701, %v2671
      %v2703 = vadd.f32 %v2702, %v2672
      %v2704 = vadd.f32 %v2703, %v2673
      %v2705 = vadd.f32 %v2704, %v2674
      %v2706 = vadd.f32 %v2705, %v2675
      %v2707 = vadd.f32 %v2706, %v2676
      %v2708 = vadd.f32 %v2707, %v2677
      %v2709 = vadd.f32 %v2708, %v2678
      %v2710 = vadd.f32 %v2709, %v2679
      %v2711 = vadd.f32 %v2710, %v2680
      %v2712 = vadd.f32 %v2711, %v2681
      %v2713 = vadd.f32 %v2712, %v2682
      %v2714 = vadd.f32 %v2713, %v2683
      %v2715 = vadd.f32 %v2714, %v2684
      %v2716 = vrot.slane %v2715, 4
      %v2717 = vadd.f32 %v2715, %v2716
      %v2718 = vrot.slane %v2717, 2
      %v2719 = vadd.f32 %v2717, %v2718
      %v2720 = vrot.slane %v2719, 1
      %v2721 = vadd.f32 %v2719, %v2720
      %vm2722 = vcmask 1040384
      %v2723 = vsel %vm2722, %v2652, %v2721
      %2724 = vst [vmem:[%s235] sm:$0x3] %v2723
      %p2725 = scmp.lt.s32.totalorder %s17, 1
      %s2726 = scalar_select %p2725, %s17, 1
      %s2727 = smul.addr %s2726, 32
      %s2728 = smul.addr %s2727, 8
      %s2729 = scalar_lea.vmem %s4, %s2728
      %p2730 = scmp.lt.s32.totalorder %s17, 1
      %s2731 = scalar_select %p2730, %s17, 1
      %s2732 = smul.addr %s2731, 2
      %s2733 = scalar_lea.vmem %s5, %s2732
      // Predicated region
      $region37: #{residual_block.4} parent=35 // pred_check
        %p2734 = pneg %p124
      $region38: #{residual_block.4} parent=35 // pred_check_branch
        %2736 = sbr.rel (%p2734) target = $region40
      $region39: #{residual_block.4} parent=35 // pred_region
        _
      $region40: #{residual_block.4} parent=35 // pred_fallthru
        _
      // Predicated region
      $region41: #{residual_block.4} parent=35 // pred_check
        %p2737 = pneg %p150
      $region42: #{residual_block.4} parent=35 // pred_check_branch
        %2739 = sbr.rel (%p2737) target = $region44
      $region43: #{residual_block.4} parent=35 // pred_region
        _
      $region44: #{residual_block.4} parent=35 // pred_fallthru
        _
    $region36: #{residual_block.4} parent=5 // pred_fallthru
      _
    %p2740 = scmp.le.s32.totalorder 2, %s12
    // Predicated region
    $region45: #{residual_block.4} parent=5 // pred_check
      %p2741 = pneg %p2740
    $region46: #{residual_block.4} parent=5 // pred_check_branch
      %2743 = sbr.rel (%p2741) target = $region48
    $region47: #{residual_block.4} parent=5 // pred_region
      %s2744 = ssub.s32 %s12, 2
      // Predicated region
      $region49: #{residual_block.4} parent=47 // pred_check
        %p2745 = pneg %p130
      $region50: #{residual_block.4} parent=47 // pred_check_branch
        %2747 = sbr.rel (%p2745) target = $region52
      $region51: #{residual_block.4} parent=47 // pred_region
        %p2748 = scmp.lt.s32.totalorder %s18, 1
        %s2749 = scalar_select %p2748, %s18, 1
        %s2750 = smul.addr %s2749, 32
        %s2751 = smul.addr %s2750, 8
        %s2752 = scalar_lea.vmem %s4, %s2751
      $region52: #{residual_block.4} parent=47 // pred_fallthru
        _
      // Predicated region
      $region53: #{residual_block.4} parent=47 // pred_check
        %p2753 = pneg %p156
      $region54: #{residual_block.4} parent=47 // pred_check_branch
        %2755 = sbr.rel (%p2753) target = $region56
      $region55: #{residual_block.4} parent=47 // pred_region
        %p2756 = scmp.lt.s32.totalorder %s18, 1
        %s2757 = scalar_select %p2756, %s18, 1
        %s2758 = smul.addr %s2757, 2
        %s2759 = scalar_lea.vmem %s5, %s2758
      $region56: #{residual_block.4} parent=47 // pred_fallthru
        _
    $region48: #{residual_block.4} parent=5 // pred_fallthru
      _
  $region6: #{residual_block.4} parent=0 // loop_footer
    %s16 = sadd.s32 1, %s12
  $region7: #{residual_block.4} parent=0 // loop_footer_branch
    %11 = sbr.rel target = $region3
  $region8: #{residual_block.4} parent=0 // loop_exit
    _

</llo_original>
